<compile_context>
chip_gen: v6e
topology: v6e:2x2x1
jax: 0.10.0
libtpu: 0.0.40
codegen_flags: <defaults>
</compile_context>

<pallas_src>
import numpy as np
import jax
import jax.numpy as jnp
from jax import lax
from jax.experimental import pallas as pl
from jax.experimental.pallas import tpu as pltpu

EPS = 1e-3  # BatchNorm3d eps in the PyTorch module


# --------------------------------------------------------------------------
# Kernel 1: fused (x @ w) * scale + shift -> relu   (merged 1x1x1 heads)
# --------------------------------------------------------------------------
def _matmul_bn_relu_kernel(x_ref, w_ref, scale_ref, shift_ref, o_ref):
    acc = jnp.dot(x_ref[...], w_ref[...], preferred_element_type=jnp.float32)
    y = acc * scale_ref[...] + shift_ref[...]
    o_ref[...] = jnp.maximum(y, 0.0).astype(o_ref.dtype)


def _pick_tm(M, pref=512):
    if M <= pref:
        return M
    for tm in (pref, 256, 128):
        if M % tm == 0:
            return tm
    return pref


def fused_matmul_bn_relu(x, w, scale, shift):
    """relu((x @ w) * scale + shift), x bf16 (M,K), w bf16 (K,N) -> bf16 (M,N)."""
    M, K = x.shape
    N = w.shape[1]
    tm = _pick_tm(M)
    Mp = pl.cdiv(M, tm) * tm
    xin = x if Mp == M else jnp.pad(x, ((0, Mp - M), (0, 0)))
    out = pl.pallas_call(
        _matmul_bn_relu_kernel,
        out_shape=jax.ShapeDtypeStruct((Mp, N), jnp.bfloat16),
        grid=(Mp // tm,),
        in_specs=[
            pl.BlockSpec((tm, K), lambda i: (i, 0)),
            pl.BlockSpec((K, N), lambda i: (0, 0)),
            pl.BlockSpec((1, N), lambda i: (0, 0)),
            pl.BlockSpec((1, N), lambda i: (0, 0)),
        ],
        out_specs=pl.BlockSpec((tm, N), lambda i: (i, 0)),
        compiler_params=pltpu.CompilerParams(dimension_semantics=("parallel",)),
    )(xin, w, scale.reshape(1, N).astype(jnp.float32),
      shift.reshape(1, N).astype(jnp.float32))
    return out if Mp == M else out[:M]


# --------------------------------------------------------------------------
# Kernel 2: fused 1x3x3 spatial conv + BN + ReLU  (one padded plane per step)
# --------------------------------------------------------------------------
def _sep_spatial_kernel(x_ref, w_ref, scale_ref, shift_ref, o_ref):
    xp = x_ref[0, 0]                       # (H+2, W+2, Cin)
    Hp, Wp, Cin = xp.shape
    H, W = Hp - 2, Wp - 2
    Cout = w_ref.shape[-1]
    acc = jnp.zeros((H * W, Cout), jnp.float32)
    for k in range(9):                     # 9 shifted taps, accumulated in-register
        dh, dw = divmod(k, 3)
        tap = xp[dh:dh + H, dw:dw + W, :].reshape(H * W, Cin)
        acc = acc + jnp.dot(tap, w_ref[k], preferred_element_type=jnp.float32)
    y = acc * scale_ref[...] + shift_ref[...]
    o_ref[...] = jnp.maximum(y, 0.0).astype(o_ref.dtype).reshape(o_ref.shape)


def sep_spatial_conv(y, p):
    """y: (N,T,H,W,Cin) bf16; 1x3x3 conv (pad=1) + BN + ReLU -> (N,T,H,W,Cout)."""
    N, T, H, W, Cin = y.shape
    Cout = p["w"].shape[-1]
    yp = jnp.pad(y, ((0, 0), (0, 0), (1, 1), (1, 1), (0, 0)))
    return pl.pallas_call(
        _sep_spatial_kernel,
        out_shape=jax.ShapeDtypeStruct((N, T, H, W, Cout), jnp.bfloat16),
        grid=(N, T),
        in_specs=[
            pl.BlockSpec((1, 1, H + 2, W + 2, Cin), lambda n, t: (n, t, 0, 0, 0)),
            pl.BlockSpec((9, Cin, Cout), lambda n, t: (0, 0, 0)),
            pl.BlockSpec((1, Cout), lambda n, t: (0, 0)),
            pl.BlockSpec((1, Cout), lambda n, t: (0, 0)),
        ],
        out_specs=pl.BlockSpec((1, 1, H, W, Cout), lambda n, t: (n, t, 0, 0, 0)),
        compiler_params=pltpu.CompilerParams(
            dimension_semantics=("parallel", "parallel")),
    )(yp, p["w"], p["scale"].reshape(1, Cout), p["shift"].reshape(1, Cout))


# --------------------------------------------------------------------------
# Kernel 3: fused 3x1x1 temporal conv + BN + ReLU (tap grid axis, accumulator)
# --------------------------------------------------------------------------
def _sep_temporal_kernel(x_ref, w_ref, scale_ref, shift_ref, o_ref, acc_ref):
    k = pl.program_id(2)

    @pl.when(k == 0)
    def _():
        acc_ref[...] = jnp.zeros_like(acc_ref)

    x = x_ref[0, 0]                        # (H, W, C)
    H, W, C = x.shape
    acc_ref[...] += jnp.dot(x.reshape(H * W, C), w_ref[0],
                            preferred_element_type=jnp.float32)

    @pl.when(k == pl.num_programs(2) - 1)
    def _():
        y = acc_ref[...] * scale_ref[...] + shift_ref[...]
        o_ref[...] = jnp.maximum(y, 0.0).astype(o_ref.dtype).reshape(o_ref.shape)


def sep_temporal_conv(y, p):
    """y: (N,T,H,W,C) bf16; 3x1x1 conv (pad=1) + BN + ReLU -> (N,T,H,W,Cout)."""
    N, T, H, W, C = y.shape
    Cout = p["w"].shape[-1]
    yp = jnp.pad(y, ((0, 0), (1, 1), (0, 0), (0, 0), (0, 0)))
    return pl.pallas_call(
        _sep_temporal_kernel,
        out_shape=jax.ShapeDtypeStruct((N, T, H, W, Cout), jnp.bfloat16),
        grid=(N, T, 3),
        in_specs=[
            pl.BlockSpec((1, 1, H, W, C), lambda n, t, k: (n, t + k, 0, 0, 0)),
            pl.BlockSpec((1, C, Cout), lambda n, t, k: (k, 0, 0)),
            pl.BlockSpec((1, Cout), lambda n, t, k: (0, 0)),
            pl.BlockSpec((1, Cout), lambda n, t, k: (0, 0)),
        ],
        out_specs=pl.BlockSpec((1, 1, H, W, Cout), lambda n, t, k: (n, t, 0, 0, 0)),
        scratch_shapes=[pltpu.VMEM((H * W, Cout), jnp.float32)],
        compiler_params=pltpu.CompilerParams(
            dimension_semantics=("parallel", "parallel", "arbitrary")),
    )(yp, p["w"], p["scale"].reshape(1, Cout), p["shift"].reshape(1, Cout))


# --------------------------------------------------------------------------
# Kernel 4: fused 3x3x3 max-pool (stride 1, pad 1) + 1x1x1 conv + BN + ReLU
# --------------------------------------------------------------------------
def _maxpool_conv_kernel(x_ref, w_ref, scale_ref, shift_ref, o_ref, pool_ref):
    k = pl.program_id(2)
    xp = x_ref[0, 0]                       # (H+2, W+2, C), -inf padded
    Hp, Wp, C = xp.shape
    H, W = Hp - 2, Wp - 2

    m = xp[0:H, 0:W, :]
    for dh in range(3):
        for dw in range(3):
            if dh == 0 and dw == 0:
                continue
            m = jnp.maximum(m, xp[dh:dh + H, dw:dw + W, :])

    @pl.when(k == 0)
    def _():
        pool_ref[...] = jnp.full_like(pool_ref, -jnp.inf)

    pool_ref[...] = jnp.maximum(pool_ref[...], m)

    @pl.when(k == pl.num_programs(2) - 1)
    def _():
        pooled = pool_ref[...].reshape(H * W, C)
        acc = jnp.dot(pooled, w_ref[...], preferred_element_type=jnp.float32)
        y = acc * scale_ref[...] + shift_ref[...]
        o_ref[...] = jnp.maximum(y, 0.0).astype(o_ref.dtype).reshape(o_ref.shape)


def maxpool_conv(x, p):
    """x: (N,T,H,W,C) bf16; 3x3x3 maxpool (pad=1) fused with 1x1x1 conv+BN+ReLU."""
    N, T, H, W, C = x.shape
    Cout = p["w"].shape[-1]
    xp = jnp.pad(x, ((0, 0), (1, 1), (1, 1), (1, 1), (0, 0)),
                 constant_values=-jnp.inf)
    return pl.pallas_call(
        _maxpool_conv_kernel,
        out_shape=jax.ShapeDtypeStruct((N, T, H, W, Cout), jnp.bfloat16),
        grid=(N, T, 3),
        in_specs=[
            pl.BlockSpec((1, 1, H + 2, W + 2, C), lambda n, t, k: (n, t + k, 0, 0, 0)),
            pl.BlockSpec((C, Cout), lambda n, t, k: (0, 0)),
            pl.BlockSpec((1, Cout), lambda n, t, k: (0, 0)),
            pl.BlockSpec((1, Cout), lambda n, t, k: (0, 0)),
        ],
        out_specs=pl.BlockSpec((1, 1, H, W, Cout), lambda n, t, k: (n, t, 0, 0, 0)),
        scratch_shapes=[pltpu.VMEM((H, W, C), jnp.bfloat16)],
        compiler_params=pltpu.CompilerParams(
            dimension_semantics=("parallel", "parallel", "arbitrary")),
    )(xp, p["w"], p["scale"].reshape(1, Cout), p["shift"].reshape(1, Cout))


# --------------------------------------------------------------------------
# Parameters (deterministic synthetic init, PyTorch OIDHW conv weight shapes)
# --------------------------------------------------------------------------
def init_conv_bn(key, cin, cout, ksize):
    kT, kH, kW = ksize
    kw, kg, kb, km, kv = jax.random.split(key, 5)
    fan_in = cin * kT * kH * kW
    w_pt = jax.random.normal(kw, (cout, cin, kT, kH, kW), jnp.float32)
    w_pt = w_pt * (2.0 / fan_in) ** 0.5
    gamma = 1.0 + 0.1 * jax.random.normal(kg, (cout,), jnp.float32)
    beta = 0.1 * jax.random.normal(kb, (cout,), jnp.float32)
    mean = 0.1 * jax.random.normal(km, (cout,), jnp.float32)
    var = 0.5 + jax.random.uniform(kv, (cout,), jnp.float32)
    scale = gamma / jnp.sqrt(var + EPS)
    shift = beta - mean * scale
    return {"w_pt": w_pt, "scale": scale, "shift": shift}


def pack_1x1(p):
    cout, cin = p["w_pt"].shape[:2]
    return p["w_pt"].reshape(cout, cin).T.astype(jnp.bfloat16)          # (Cin, Cout)


def pack_spatial(p):
    # (Cout, Cin, 1, 3, 3) -> (kH, kW, Cin, Cout) -> (9, Cin, Cout)
    cout, cin = p["w_pt"].shape[:2]
    w = jnp.transpose(p["w_pt"][:, :, 0], (2, 3, 1, 0)).reshape(9, cin, cout)
    return w.astype(jnp.bfloat16)


def pack_temporal(p):
    # (Cout, Cin, 3, 1, 1) -> (3, Cin, Cout)
    return jnp.transpose(p["w_pt"][:, :, :, 0, 0], (2, 1, 0)).astype(jnp.bfloat16)


def init_params(key):
    ks = jax.random.split(key, 8)
    raw = {
        "b0":   init_conv_bn(ks[0], 512, 112, (1, 1, 1)),
        "b1_0": init_conv_bn(ks[1], 512, 144, (1, 1, 1)),
        "b1_s": init_conv_bn(ks[2], 144, 288, (1, 3, 3)),
        "b1_t": init_conv_bn(ks[3], 288, 288, (3, 1, 1)),
        "b2_0": init_conv_bn(ks[4], 512, 32, (1, 1, 1)),
        "b2_s": init_conv_bn(ks[5], 32, 64, (1, 3, 3)),
        "b2_t": init_conv_bn(ks[6], 64, 64, (3, 1, 1)),
        "b3":   init_conv_bn(ks[7], 512, 64, (1, 1, 1)),
    }
    head_w = jnp.concatenate(
        [pack_1x1(raw["b0"]), pack_1x1(raw["b1_0"]), pack_1x1(raw["b2_0"])], axis=1)
    head_scale = jnp.concatenate(
        [raw["b0"]["scale"], raw["b1_0"]["scale"], raw["b2_0"]["scale"]])
    head_shift = jnp.concatenate(
        [raw["b0"]["shift"], raw["b1_0"]["shift"], raw["b2_0"]["shift"]])

    def conv_p(name, packer):
        return {"w": packer(raw[name]),
                "scale": raw[name]["scale"], "shift": raw[name]["shift"]}

    return {
        "head_w": head_w, "head_scale": head_scale, "head_shift": head_shift,
        "b1_s": conv_p("b1_s", pack_spatial),
        "b1_t": conv_p("b1_t", pack_temporal),
        "b2_s": conv_p("b2_s", pack_spatial),
        "b2_t": conv_p("b2_t", pack_temporal),
        "b3":   conv_p("b3", pack_1x1),
        "raw": raw,
    }


# --------------------------------------------------------------------------
# Mixed_4e forward (Pallas path)
# --------------------------------------------------------------------------
def mixed_4e_forward(x_ncdhw, params):
    x = jnp.transpose(x_ncdhw, (0, 2, 3, 4, 1)).astype(jnp.bfloat16)  # NDHWC
    N, T, H, W, C = x.shape
    P = N * T * H * W
    xf = x.reshape(P, C)

    # Merged 1x1x1 branch heads: b0 (112) | b1_0 (144) | b2_0 (32)
    heads = fused_matmul_bn_relu(xf, params["head_w"],
                                 params["head_scale"], params["head_shift"])
    b0 = heads[:, 0:112].reshape(N, T, H, W, 112)
    y1 = heads[:, 112:256].reshape(N, T, H, W, 144)
    y2 = heads[:, 256:288].reshape(N, T, H, W, 32)

    # branch1: SepConv3d(144 -> 288, k=3): fused spatial then fused temporal
    b1 = sep_temporal_conv(sep_spatial_conv(y1, params["b1_s"]), params["b1_t"])

    # branch2: SepConv3d(32 -> 64, k=3)
    b2 = sep_temporal_conv(sep_spatial_conv(y2, params["b2_s"]), params["b2_t"])

    # branch3: MaxPool3d(3, stride=1, pad=1) fused with 1x1x1 conv + BN + ReLU
    b3 = maxpool_conv(x, params["b3"])

    out = jnp.concatenate([b0, b1, b2, b3], axis=-1).astype(jnp.float32)
    return jnp.transpose(out, (0, 4, 1, 2, 3))            # back to NCDHW


# --------------------------------------------------------------------------
# Pure-XLA f32 reference (matches PyTorch forward semantics, eval-mode BN)
# --------------------------------------------------------------------------
def reference_forward(x, params):
    raw = params["raw"]

    def conv_bn_relu(inp, p, padding):
        y = lax.conv_general_dilated(
            inp, p["w_pt"], window_strides=(1, 1, 1), padding=padding,
            dimension_numbers=("NCDHW", "OIDHW", "NCDHW"))
        s = p["scale"].reshape(1, -1, 1, 1, 1)
        b = p["shift"].reshape(1, -1, 1, 1, 1)
        return jnp.maximum(y * s + b, 0.0)

    no_pad = [(0, 0)] * 3
    sp_pad = [(0, 0), (1, 1), (1, 1)]
    tm_pad = [(1, 1), (0, 0), (0, 0)]

    b0 = conv_bn_relu(x, raw["b0"], no_pad)

    b1 = conv_bn_relu(x, raw["b1_0"], no_pad)
    b1 = conv_bn_relu(b1, raw["b1_s"], sp_pad)
    b1 = conv_bn_relu(b1, raw["b1_t"], tm_pad)

    b2 = conv_bn_relu(x, raw["b2_0"], no_pad)
    b2 = conv_bn_relu(b2, raw["b2_s"], sp_pad)
    b2 = conv_bn_relu(b2, raw["b2_t"], tm_pad)

    pooled = lax.reduce_window(
        x, -jnp.inf, lax.max, (1, 1, 3, 3, 3), (1, 1, 1, 1, 1),
        ((0, 0), (0, 0), (1, 1), (1, 1), (1, 1)))
    b3 = conv_bn_relu(pooled, raw["b3"], no_pad)

    return jnp.concatenate([b0, b1, b2, b3], axis=1)


# --------------------------------------------------------------------------
if __name__ == "__main__":
    key = jax.random.PRNGKey(0)
    kx, kp = jax.random.split(key)

    # Mixed_4e requires 512 input channels; small T/H/W for the smoke test.
    x = jax.random.normal(kx, (1, 512, 4, 8, 8), jnp.float32)   # NCDHW
    params = init_params(kp)

    out = jax.jit(mixed_4e_forward)(x, params)
    out = jax.block_until_ready(out)
    assert out.shape == (1, 112 + 288 + 64 + 64, 4, 8, 8), out.shape
    assert bool(jnp.all(jnp.isfinite(out)))

    ref = jax.block_until_ready(jax.jit(reference_forward)(x, params))
    # bf16 activations/weights vs f32 reference -> loose tolerance.
    np.testing.assert_allclose(np.asarray(out), np.asarray(ref),
                               rtol=5e-2, atol=1e-1)

    print("KERNEL_OK")
</pallas_src>

<mosaic_0001>
module attributes {stable_mosaic.version = 11 : i64} {
  func.func @_maxpool_conv_kernel(%arg0: i32, %arg1: i32, %arg2: i32, %arg3: memref<1x1x10x10x512xbf16, #tpu.memory_space<vmem>>, %arg4: memref<512x64xbf16, #tpu.memory_space<vmem>>, %arg5: memref<1x64xf32, #tpu.memory_space<vmem>>, %arg6: memref<1x64xf32, #tpu.memory_space<vmem>>, %arg7: memref<1x1x8x8x64xbf16, #tpu.memory_space<vmem>>, %arg8: memref<8x8x512xbf16, #tpu.memory_space<vmem>>) attributes {dimension_semantics = [#tpu.dimension_semantics<parallel>, #tpu.dimension_semantics<parallel>, #tpu.dimension_semantics<arbitrary>], iteration_bounds = array<i64: 1, 4, 3>, scalar_prefetch = 0 : i64, scratch_operands = 1 : i64, tpu.core_type = #tpu.core_type<tc>, window_params = [{transform_indices = @transform_0, window_bounds = array<i64: 1, 1, 10, 10, 512>}, {pipeline_mode = #tpu.pipeline_mode<synchronous>, transform_indices = @transform_1, window_bounds = array<i64: 512, 64>}, {pipeline_mode = #tpu.pipeline_mode<synchronous>, transform_indices = @transform_2, window_bounds = array<i64: 1, 64>}, {pipeline_mode = #tpu.pipeline_mode<synchronous>, transform_indices = @transform_3, window_bounds = array<i64: 1, 64>}, {transform_indices = @transform_4, window_bounds = array<i64: 1, 1, 8, 8, 64>}]} {
    %c0 = arith.constant 0 : index
    %c0_0 = arith.constant 0 : index
    %c0_1 = arith.constant 0 : index
    %c0_2 = arith.constant 0 : index
    %c0_3 = arith.constant 0 : index
    %0 = vector.load %arg3[%c0, %c0_0, %c0_1, %c0_2, %c0_3] : memref<1x1x10x10x512xbf16, #tpu.memory_space<vmem>>, vector<1x1x10x10x512xbf16>
    %1 = vector.shape_cast %0 : vector<1x1x10x10x512xbf16> to vector<10x10x512xbf16>
    %2 = vector.extract_strided_slice %1 {offsets = [0, 0, 0], sizes = [8, 8, 512], strides = [1, 1, 1]} : vector<10x10x512xbf16> to vector<8x8x512xbf16>
    %3 = vector.extract_strided_slice %1 {offsets = [0, 1, 0], sizes = [8, 8, 512], strides = [1, 1, 1]} : vector<10x10x512xbf16> to vector<8x8x512xbf16>
    %4 = arith.maximumf %2, %3 : vector<8x8x512xbf16>
    %5 = vector.extract_strided_slice %1 {offsets = [0, 2, 0], sizes = [8, 8, 512], strides = [1, 1, 1]} : vector<10x10x512xbf16> to vector<8x8x512xbf16>
    %6 = arith.maximumf %4, %5 : vector<8x8x512xbf16>
    %7 = vector.extract_strided_slice %1 {offsets = [1, 0, 0], sizes = [8, 8, 512], strides = [1, 1, 1]} : vector<10x10x512xbf16> to vector<8x8x512xbf16>
    %8 = arith.maximumf %6, %7 : vector<8x8x512xbf16>
    %9 = vector.extract_strided_slice %1 {offsets = [1, 1, 0], sizes = [8, 8, 512], strides = [1, 1, 1]} : vector<10x10x512xbf16> to vector<8x8x512xbf16>
    %10 = arith.maximumf %8, %9 : vector<8x8x512xbf16>
    %11 = vector.extract_strided_slice %1 {offsets = [1, 2, 0], sizes = [8, 8, 512], strides = [1, 1, 1]} : vector<10x10x512xbf16> to vector<8x8x512xbf16>
    %12 = arith.maximumf %10, %11 : vector<8x8x512xbf16>
    %13 = vector.extract_strided_slice %1 {offsets = [2, 0, 0], sizes = [8, 8, 512], strides = [1, 1, 1]} : vector<10x10x512xbf16> to vector<8x8x512xbf16>
    %14 = arith.maximumf %12, %13 : vector<8x8x512xbf16>
    %15 = vector.extract_strided_slice %1 {offsets = [2, 1, 0], sizes = [8, 8, 512], strides = [1, 1, 1]} : vector<10x10x512xbf16> to vector<8x8x512xbf16>
    %16 = arith.maximumf %14, %15 : vector<8x8x512xbf16>
    %17 = vector.extract_strided_slice %1 {offsets = [2, 2, 0], sizes = [8, 8, 512], strides = [1, 1, 1]} : vector<10x10x512xbf16> to vector<8x8x512xbf16>
    %18 = arith.maximumf %16, %17 : vector<8x8x512xbf16>
    %c0_i32 = arith.constant 0 : i32
    %19 = arith.cmpi eq, %arg2, %c0_i32 : i32
    %20 = arith.extui %19 : i1 to i32
    %c0_i32_4 = arith.constant 0 : i32
    %21 = arith.cmpi ne, %20, %c0_i32_4 : i32
    scf.if %21 {
      %cst = arith.constant 0xFF80 : bf16
      %28 = vector.broadcast %cst : bf16 to vector<8x8x512xbf16>
      %c0_12 = arith.constant 0 : index
      %c0_13 = arith.constant 0 : index
      %c0_14 = arith.constant 0 : index
      %29 = vector.load %arg8[%c0_12, %c0_13, %c0_14] : memref<8x8x512xbf16, #tpu.memory_space<vmem>>, vector<8x8x512xbf16>
      tpu.vector_store %arg8[%c0_12, %c0_13, %c0_14], %28 {strides = array<i32>} : memref<8x8x512xbf16, #tpu.memory_space<vmem>>, vector<8x8x512xbf16>,
    } else {
    }
    %c0_5 = arith.constant 0 : index
    %c0_6 = arith.constant 0 : index
    %c0_7 = arith.constant 0 : index
    %22 = vector.load %arg8[%c0_5, %c0_6, %c0_7] : memref<8x8x512xbf16, #tpu.memory_space<vmem>>, vector<8x8x512xbf16>
    %23 = arith.maximumf %22, %18 : vector<8x8x512xbf16>
    %c0_8 = arith.constant 0 : index
    %c0_9 = arith.constant 0 : index
    %c0_10 = arith.constant 0 : index
    %24 = vector.load %arg8[%c0_8, %c0_9, %c0_10] : memref<8x8x512xbf16, #tpu.memory_space<vmem>>, vector<8x8x512xbf16>
    tpu.vector_store %arg8[%c0_8, %c0_9, %c0_10], %23 {strides = array<i32>} : memref<8x8x512xbf16, #tpu.memory_space<vmem>>, vector<8x8x512xbf16>,
    %c2_i32 = arith.constant 2 : i32
    %25 = arith.cmpi eq, %arg2, %c2_i32 : i32
    %26 = arith.extui %25 : i1 to i32
    %c0_i32_11 = arith.constant 0 : i32
    %27 = arith.cmpi ne, %26, %c0_i32_11 : i32
    scf.if %27 {
      %c0_12 = arith.constant 0 : index
      %c0_13 = arith.constant 0 : index
      %c0_14 = arith.constant 0 : index
      %28 = vector.load %arg8[%c0_12, %c0_13, %c0_14] : memref<8x8x512xbf16, #tpu.memory_space<vmem>>, vector<8x8x512xbf16>
      %29 = vector.shape_cast %28 : vector<8x8x512xbf16> to vector<64x512xbf16>
      %c0_15 = arith.constant 0 : index
      %c0_16 = arith.constant 0 : index
      %30 = vector.load %arg4[%c0_15, %c0_16] : memref<512x64xbf16, #tpu.memory_space<vmem>>, vector<512x64xbf16>
      %cst = arith.constant dense<0.000000e+00> : vector<64x64xf32>
      %31 = tpu.matmul %29, %30, %cst {dimension_numbers = #tpu.dot_dimension_numbers<[1], [0], [0], [1], [0, 0, 1, 1], [], []>} : vector<64x512xbf16>, vector<512x64xbf16>, vector<64x64xf32> -> vector<64x64xf32>
      %c0_17 = arith.constant 0 : index
      %c0_18 = arith.constant 0 : index
      %32 = vector.load %arg5[%c0_17, %c0_18] : memref<1x64xf32, #tpu.memory_space<vmem>>, vector<1x64xf32>
      %33 = vector.broadcast %32 : vector<1x64xf32> to vector<64x64xf32>
      %34 = arith.mulf %31, %33 : vector<64x64xf32>
      %c0_19 = arith.constant 0 : index
      %c0_20 = arith.constant 0 : index
      %35 = vector.load %arg6[%c0_19, %c0_20] : memref<1x64xf32, #tpu.memory_space<vmem>>, vector<1x64xf32>
      %36 = vector.broadcast %35 : vector<1x64xf32> to vector<64x64xf32>
      %37 = arith.addf %34, %36 : vector<64x64xf32>
      %cst_21 = arith.constant 0.000000e+00 : f32
      %38 = vector.broadcast %cst_21 : f32 to vector<64x64xf32>
      %39 = arith.maximumf %37, %38 : vector<64x64xf32>
      %40 = arith.truncf %39 : vector<64x64xf32> to vector<64x64xbf16>
      %41 = vector.shape_cast %40 : vector<64x64xbf16> to vector<1x1x8x8x64xbf16>
      %c0_22 = arith.constant 0 : index
      %c0_23 = arith.constant 0 : index
      %c0_24 = arith.constant 0 : index
      %c0_25 = arith.constant 0 : index
      %c0_26 = arith.constant 0 : index
      %42 = vector.load %arg7[%c0_22, %c0_23, %c0_24, %c0_25, %c0_26] : memref<1x1x8x8x64xbf16, #tpu.memory_space<vmem>>, vector<1x1x8x8x64xbf16>
      tpu.vector_store %arg7[%c0_22, %c0_23, %c0_24, %c0_25, %c0_26], %41 {strides = array<i32>} : memref<1x1x8x8x64xbf16, #tpu.memory_space<vmem>>, vector<1x1x8x8x64xbf16>,
    } else {
    }
    return
  }
  func.func @transform_0(%arg0: i32, %arg1: i32, %arg2: i32) -> (i32, i32, i32, i32, i32) {
    %0 = arith.addi %arg1, %arg2 : i32
    %c0_i32 = arith.constant 0 : i32
    %c0_i32_0 = arith.constant 0 : i32
    %c0_i32_1 = arith.constant 0 : i32
    %c0_i32_2 = arith.constant 0 : i32
    return %arg0, %0, %c0_i32, %c0_i32_0, %c0_i32_1 : i32, i32, i32, i32, i32
  }
  func.func @transform_1(%arg0: i32, %arg1: i32, %arg2: i32) -> (i32, i32) {
    %c0_i32 = arith.constant 0 : i32
    %c0_i32_0 = arith.constant 0 : i32
    %c0_i32_1 = arith.constant 0 : i32
    return %c0_i32, %c0_i32_0 : i32, i32
  }
  func.func @transform_2(%arg0: i32, %arg1: i32, %arg2: i32) -> (i32, i32) {
    %c0_i32 = arith.constant 0 : i32
    %c0_i32_0 = arith.constant 0 : i32
    %c0_i32_1 = arith.constant 0 : i32
    return %c0_i32, %c0_i32_0 : i32, i32
  }
  func.func @transform_3(%arg0: i32, %arg1: i32, %arg2: i32) -> (i32, i32) {
    %c0_i32 = arith.constant 0 : i32
    %c0_i32_0 = arith.constant 0 : i32
    %c0_i32_1 = arith.constant 0 : i32
    return %c0_i32, %c0_i32_0 : i32, i32
  }
  func.func @transform_4(%arg0: i32, %arg1: i32, %arg2: i32) -> (i32, i32, i32, i32, i32) {
    %c0_i32 = arith.constant 0 : i32
    %c0_i32_0 = arith.constant 0 : i32
    %c0_i32_1 = arith.constant 0 : i32
    %c0_i32_2 = arith.constant 0 : i32
    return %arg0, %arg1, %c0_i32, %c0_i32_0, %c0_i32_1 : i32, i32, i32, i32, i32
  }
}

module attributes {stable_mosaic.version = 11 : i64} {
  func.func @_matmul_bn_relu_kernel(%arg0: i32, %arg1: memref<256x512xbf16, #tpu.memory_space<vmem>>, %arg2: memref<512x288xbf16, #tpu.memory_space<vmem>>, %arg3: memref<1x288xf32, #tpu.memory_space<vmem>>, %arg4: memref<1x288xf32, #tpu.memory_space<vmem>>, %arg5: memref<256x288xbf16, #tpu.memory_space<vmem>>) attributes {dimension_semantics = [#tpu.dimension_semantics<parallel>], iteration_bounds = array<i64: 1>, scalar_prefetch = 0 : i64, scratch_operands = 0 : i64, tpu.core_type = #tpu.core_type<tc>, window_params = [{transform_indices = @transform_0, window_bounds = array<i64: 256, 512>}, {pipeline_mode = #tpu.pipeline_mode<synchronous>, transform_indices = @transform_1, window_bounds = array<i64: 512, 288>}, {pipeline_mode = #tpu.pipeline_mode<synchronous>, transform_indices = @transform_2, window_bounds = array<i64: 1, 288>}, {pipeline_mode = #tpu.pipeline_mode<synchronous>, transform_indices = @transform_3, window_bounds = array<i64: 1, 288>}, {transform_indices = @transform_4, window_bounds = array<i64: 256, 288>}]} {
    %c0 = arith.constant 0 : index
    %c0_0 = arith.constant 0 : index
    %0 = vector.load %arg1[%c0, %c0_0] : memref<256x512xbf16, #tpu.memory_space<vmem>>, vector<256x512xbf16>
    %c0_1 = arith.constant 0 : index
    %c0_2 = arith.constant 0 : index
    %1 = vector.load %arg2[%c0_1, %c0_2] : memref<512x288xbf16, #tpu.memory_space<vmem>>, vector<512x288xbf16>
    %cst = arith.constant dense<0.000000e+00> : vector<256x288xf32>
    %2 = tpu.matmul %0, %1, %cst {dimension_numbers = #tpu.dot_dimension_numbers<[1], [0], [0], [1], [0, 0, 1, 1], [], []>} : vector<256x512xbf16>, vector<512x288xbf16>, vector<256x288xf32> -> vector<256x288xf32>
    %c0_3 = arith.constant 0 : index
    %c0_4 = arith.constant 0 : index
    %3 = vector.load %arg3[%c0_3, %c0_4] : memref<1x288xf32, #tpu.memory_space<vmem>>, vector<1x288xf32>
    %4 = vector.broadcast %3 : vector<1x288xf32> to vector<256x288xf32>
    %5 = arith.mulf %2, %4 : vector<256x288xf32>
    %c0_5 = arith.constant 0 : index
    %c0_6 = arith.constant 0 : index
    %6 = vector.load %arg4[%c0_5, %c0_6] : memref<1x288xf32, #tpu.memory_space<vmem>>, vector<1x288xf32>
    %7 = vector.broadcast %6 : vector<1x288xf32> to vector<256x288xf32>
    %8 = arith.addf %5, %7 : vector<256x288xf32>
    %cst_7 = arith.constant 0.000000e+00 : f32
    %9 = vector.broadcast %cst_7 : f32 to vector<256x288xf32>
    %10 = arith.maximumf %8, %9 : vector<256x288xf32>
    %11 = arith.truncf %10 : vector<256x288xf32> to vector<256x288xbf16>
    %c0_8 = arith.constant 0 : index
    %c0_9 = arith.constant 0 : index
    %12 = vector.load %arg5[%c0_8, %c0_9] : memref<256x288xbf16, #tpu.memory_space<vmem>>, vector<256x288xbf16>
    tpu.vector_store %arg5[%c0_8, %c0_9], %11 {strides = array<i32>} : memref<256x288xbf16, #tpu.memory_space<vmem>>, vector<256x288xbf16>,
    return
  }
  func.func @transform_0(%arg0: i32) -> (i32, i32) {
    %c0_i32 = arith.constant 0 : i32
    %c0_i32_0 = arith.constant 0 : i32
    return %arg0, %c0_i32 : i32, i32
  }
  func.func @transform_1(%arg0: i32) -> (i32, i32) {
    %c0_i32 = arith.constant 0 : i32
    %c0_i32_0 = arith.constant 0 : i32
    %c0_i32_1 = arith.constant 0 : i32
    return %c0_i32, %c0_i32_0 : i32, i32
  }
  func.func @transform_2(%arg0: i32) -> (i32, i32) {
    %c0_i32 = arith.constant 0 : i32
    %c0_i32_0 = arith.constant 0 : i32
    %c0_i32_1 = arith.constant 0 : i32
    return %c0_i32, %c0_i32_0 : i32, i32
  }
  func.func @transform_3(%arg0: i32) -> (i32, i32) {
    %c0_i32 = arith.constant 0 : i32
    %c0_i32_0 = arith.constant 0 : i32
    %c0_i32_1 = arith.constant 0 : i32
    return %c0_i32, %c0_i32_0 : i32, i32
  }
  func.func @transform_4(%arg0: i32) -> (i32, i32) {
    %c0_i32 = arith.constant 0 : i32
    %c0_i32_0 = arith.constant 0 : i32
    return %arg0, %c0_i32 : i32, i32
  }
}

module attributes {stable_mosaic.version = 11 : i64} {
  func.func @_sep_spatial_kernel(%arg0: i32, %arg1: i32, %arg2: memref<1x1x10x10x32xbf16, #tpu.memory_space<vmem>>, %arg3: memref<9x32x64xbf16, #tpu.memory_space<vmem>>, %arg4: memref<1x64xf32, #tpu.memory_space<vmem>>, %arg5: memref<1x64xf32, #tpu.memory_space<vmem>>, %arg6: memref<1x1x8x8x64xbf16, #tpu.memory_space<vmem>>) attributes {dimension_semantics = [#tpu.dimension_semantics<parallel>, #tpu.dimension_semantics<parallel>], iteration_bounds = array<i64: 1, 4>, scalar_prefetch = 0 : i64, scratch_operands = 0 : i64, tpu.core_type = #tpu.core_type<tc>, window_params = [{transform_indices = @transform_0, window_bounds = array<i64: 1, 1, 10, 10, 32>}, {pipeline_mode = #tpu.pipeline_mode<synchronous>, transform_indices = @transform_1, window_bounds = array<i64: 9, 32, 64>}, {pipeline_mode = #tpu.pipeline_mode<synchronous>, transform_indices = @transform_2, window_bounds = array<i64: 1, 64>}, {pipeline_mode = #tpu.pipeline_mode<synchronous>, transform_indices = @transform_3, window_bounds = array<i64: 1, 64>}, {transform_indices = @transform_4, window_bounds = array<i64: 1, 1, 8, 8, 64>}]} {
    %c0 = arith.constant 0 : index
    %c0_0 = arith.constant 0 : index
    %c0_1 = arith.constant 0 : index
    %c0_2 = arith.constant 0 : index
    %c0_3 = arith.constant 0 : index
    %0 = vector.load %arg2[%c0, %c0_0, %c0_1, %c0_2, %c0_3] : memref<1x1x10x10x32xbf16, #tpu.memory_space<vmem>>, vector<1x1x10x10x32xbf16>
    %1 = vector.shape_cast %0 : vector<1x1x10x10x32xbf16> to vector<10x10x32xbf16>
    %cst = arith.constant 0.000000e+00 : f32
    %2 = vector.broadcast %cst : f32 to vector<64x64xf32>
    %3 = vector.extract_strided_slice %1 {offsets = [0, 0, 0], sizes = [8, 8, 32], strides = [1, 1, 1]} : vector<10x10x32xbf16> to vector<8x8x32xbf16>
    %4 = vector.shape_cast %3 : vector<8x8x32xbf16> to vector<64x32xbf16>
    %c0_4 = arith.constant 0 : index
    %c0_5 = arith.constant 0 : index
    %c0_6 = arith.constant 0 : index
    %5 = vector.load %arg3[%c0_4, %c0_5, %c0_6] : memref<9x32x64xbf16, #tpu.memory_space<vmem>>, vector<1x32x64xbf16>
    %6 = vector.shape_cast %5 : vector<1x32x64xbf16> to vector<32x64xbf16>
    %cst_7 = arith.constant dense<0.000000e+00> : vector<64x64xf32>
    %7 = tpu.matmul %4, %6, %cst_7 {dimension_numbers = #tpu.dot_dimension_numbers<[1], [0], [0], [1], [0, 0, 1, 1], [], []>} : vector<64x32xbf16>, vector<32x64xbf16>, vector<64x64xf32> -> vector<64x64xf32>
    %8 = arith.addf %2, %7 : vector<64x64xf32>
    %9 = vector.extract_strided_slice %1 {offsets = [0, 1, 0], sizes = [8, 8, 32], strides = [1, 1, 1]} : vector<10x10x32xbf16> to vector<8x8x32xbf16>
    %10 = vector.shape_cast %9 : vector<8x8x32xbf16> to vector<64x32xbf16>
    %c1 = arith.constant 1 : index
    %c0_8 = arith.constant 0 : index
    %c0_9 = arith.constant 0 : index
    %11 = vector.load %arg3[%c1, %c0_8, %c0_9] : memref<9x32x64xbf16, #tpu.memory_space<vmem>>, vector<1x32x64xbf16>
    %12 = vector.shape_cast %11 : vector<1x32x64xbf16> to vector<32x64xbf16>
    %cst_10 = arith.constant dense<0.000000e+00> : vector<64x64xf32>
    %13 = tpu.matmul %10, %12, %cst_10 {dimension_numbers = #tpu.dot_dimension_numbers<[1], [0], [0], [1], [0, 0, 1, 1], [], []>} : vector<64x32xbf16>, vector<32x64xbf16>, vector<64x64xf32> -> vector<64x64xf32>
    %14 = arith.addf %8, %13 : vector<64x64xf32>
    %15 = vector.extract_strided_slice %1 {offsets = [0, 2, 0], sizes = [8, 8, 32], strides = [1, 1, 1]} : vector<10x10x32xbf16> to vector<8x8x32xbf16>
    %16 = vector.shape_cast %15 : vector<8x8x32xbf16> to vector<64x32xbf16>
    %c2 = arith.constant 2 : index
    %c0_11 = arith.constant 0 : index
    %c0_12 = arith.constant 0 : index
    %17 = vector.load %arg3[%c2, %c0_11, %c0_12] : memref<9x32x64xbf16, #tpu.memory_space<vmem>>, vector<1x32x64xbf16>
    %18 = vector.shape_cast %17 : vector<1x32x64xbf16> to vector<32x64xbf16>
    %cst_13 = arith.constant dense<0.000000e+00> : vector<64x64xf32>
    %19 = tpu.matmul %16, %18, %cst_13 {dimension_numbers = #tpu.dot_dimension_numbers<[1], [0], [0], [1], [0, 0, 1, 1], [], []>} : vector<64x32xbf16>, vector<32x64xbf16>, vector<64x64xf32> -> vector<64x64xf32>
    %20 = arith.addf %14, %19 : vector<64x64xf32>
    %21 = vector.extract_strided_slice %1 {offsets = [1, 0, 0], sizes = [8, 8, 32], strides = [1, 1, 1]} : vector<10x10x32xbf16> to vector<8x8x32xbf16>
    %22 = vector.shape_cast %21 : vector<8x8x32xbf16> to vector<64x32xbf16>
    %c3 = arith.constant 3 : index
    %c0_14 = arith.constant 0 : index
    %c0_15 = arith.constant 0 : index
    %23 = vector.load %arg3[%c3, %c0_14, %c0_15] : memref<9x32x64xbf16, #tpu.memory_space<vmem>>, vector<1x32x64xbf16>
    %24 = vector.shape_cast %23 : vector<1x32x64xbf16> to vector<32x64xbf16>
    %cst_16 = arith.constant dense<0.000000e+00> : vector<64x64xf32>
    %25 = tpu.matmul %22, %24, %cst_16 {dimension_numbers = #tpu.dot_dimension_numbers<[1], [0], [0], [1], [0, 0, 1, 1], [], []>} : vector<64x32xbf16>, vector<32x64xbf16>, vector<64x64xf32> -> vector<64x64xf32>
    %26 = arith.addf %20, %25 : vector<64x64xf32>
    %27 = vector.extract_strided_slice %1 {offsets = [1, 1, 0], sizes = [8, 8, 32], strides = [1, 1, 1]} : vector<10x10x32xbf16> to vector<8x8x32xbf16>
    %28 = vector.shape_cast %27 : vector<8x8x32xbf16> to vector<64x32xbf16>
    %c4 = arith.constant 4 : index
    %c0_17 = arith.constant 0 : index
    %c0_18 = arith.constant 0 : index
    %29 = vector.load %arg3[%c4, %c0_17, %c0_18] : memref<9x32x64xbf16, #tpu.memory_space<vmem>>, vector<1x32x64xbf16>
    %30 = vector.shape_cast %29 : vector<1x32x64xbf16> to vector<32x64xbf16>
    %cst_19 = arith.constant dense<0.000000e+00> : vector<64x64xf32>
    %31 = tpu.matmul %28, %30, %cst_19 {dimension_numbers = #tpu.dot_dimension_numbers<[1], [0], [0], [1], [0, 0, 1, 1], [], []>} : vector<64x32xbf16>, vector<32x64xbf16>, vector<64x64xf32> -> vector<64x64xf32>
    %32 = arith.addf %26, %31 : vector<64x64xf32>
    %33 = vector.extract_strided_slice %1 {offsets = [1, 2, 0], sizes = [8, 8, 32], strides = [1, 1, 1]} : vector<10x10x32xbf16> to vector<8x8x32xbf16>
    %34 = vector.shape_cast %33 : vector<8x8x32xbf16> to vector<64x32xbf16>
    %c5 = arith.constant 5 : index
    %c0_20 = arith.constant 0 : index
    %c0_21 = arith.constant 0 : index
    %35 = vector.load %arg3[%c5, %c0_20, %c0_21] : memref<9x32x64xbf16, #tpu.memory_space<vmem>>, vector<1x32x64xbf16>
    %36 = vector.shape_cast %35 : vector<1x32x64xbf16> to vector<32x64xbf16>
    %cst_22 = arith.constant dense<0.000000e+00> : vector<64x64xf32>
    %37 = tpu.matmul %34, %36, %cst_22 {dimension_numbers = #tpu.dot_dimension_numbers<[1], [0], [0], [1], [0, 0, 1, 1], [], []>} : vector<64x32xbf16>, vector<32x64xbf16>, vector<64x64xf32> -> vector<64x64xf32>
    %38 = arith.addf %32, %37 : vector<64x64xf32>
    %39 = vector.extract_strided_slice %1 {offsets = [2, 0, 0], sizes = [8, 8, 32], strides = [1, 1, 1]} : vector<10x10x32xbf16> to vector<8x8x32xbf16>
    %40 = vector.shape_cast %39 : vector<8x8x32xbf16> to vector<64x32xbf16>
    %c6 = arith.constant 6 : index
    %c0_23 = arith.constant 0 : index
    %c0_24 = arith.constant 0 : index
    %41 = vector.load %arg3[%c6, %c0_23, %c0_24] : memref<9x32x64xbf16, #tpu.memory_space<vmem>>, vector<1x32x64xbf16>
    %42 = vector.shape_cast %41 : vector<1x32x64xbf16> to vector<32x64xbf16>
    %cst_25 = arith.constant dense<0.000000e+00> : vector<64x64xf32>
    %43 = tpu.matmul %40, %42, %cst_25 {dimension_numbers = #tpu.dot_dimension_numbers<[1], [0], [0], [1], [0, 0, 1, 1], [], []>} : vector<64x32xbf16>, vector<32x64xbf16>, vector<64x64xf32> -> vector<64x64xf32>
    %44 = arith.addf %38, %43 : vector<64x64xf32>
    %45 = vector.extract_strided_slice %1 {offsets = [2, 1, 0], sizes = [8, 8, 32], strides = [1, 1, 1]} : vector<10x10x32xbf16> to vector<8x8x32xbf16>
    %46 = vector.shape_cast %45 : vector<8x8x32xbf16> to vector<64x32xbf16>
    %c7 = arith.constant 7 : index
    %c0_26 = arith.constant 0 : index
    %c0_27 = arith.constant 0 : index
    %47 = vector.load %arg3[%c7, %c0_26, %c0_27] : memref<9x32x64xbf16, #tpu.memory_space<vmem>>, vector<1x32x64xbf16>
    %48 = vector.shape_cast %47 : vector<1x32x64xbf16> to vector<32x64xbf16>
    %cst_28 = arith.constant dense<0.000000e+00> : vector<64x64xf32>
    %49 = tpu.matmul %46, %48, %cst_28 {dimension_numbers = #tpu.dot_dimension_numbers<[1], [0], [0], [1], [0, 0, 1, 1], [], []>} : vector<64x32xbf16>, vector<32x64xbf16>, vector<64x64xf32> -> vector<64x64xf32>
    %50 = arith.addf %44, %49 : vector<64x64xf32>
    %51 = vector.extract_strided_slice %1 {offsets = [2, 2, 0], sizes = [8, 8, 32], strides = [1, 1, 1]} : vector<10x10x32xbf16> to vector<8x8x32xbf16>
    %52 = vector.shape_cast %51 : vector<8x8x32xbf16> to vector<64x32xbf16>
    %c8 = arith.constant 8 : index
    %c0_29 = arith.constant 0 : index
    %c0_30 = arith.constant 0 : index
    %53 = vector.load %arg3[%c8, %c0_29, %c0_30] : memref<9x32x64xbf16, #tpu.memory_space<vmem>>, vector<1x32x64xbf16>
    %54 = vector.shape_cast %53 : vector<1x32x64xbf16> to vector<32x64xbf16>
    %cst_31 = arith.constant dense<0.000000e+00> : vector<64x64xf32>
    %55 = tpu.matmul %52, %54, %cst_31 {dimension_numbers = #tpu.dot_dimension_numbers<[1], [0], [0], [1], [0, 0, 1, 1], [], []>} : vector<64x32xbf16>, vector<32x64xbf16>, vector<64x64xf32> -> vector<64x64xf32>
    %56 = arith.addf %50, %55 : vector<64x64xf32>
    %c0_32 = arith.constant 0 : index
    %c0_33 = arith.constant 0 : index
    %57 = vector.load %arg4[%c0_32, %c0_33] : memref<1x64xf32, #tpu.memory_space<vmem>>, vector<1x64xf32>
    %58 = vector.broadcast %57 : vector<1x64xf32> to vector<64x64xf32>
    %59 = arith.mulf %56, %58 : vector<64x64xf32>
    %c0_34 = arith.constant 0 : index
    %c0_35 = arith.constant 0 : index
    %60 = vector.load %arg5[%c0_34, %c0_35] : memref<1x64xf32, #tpu.memory_space<vmem>>, vector<1x64xf32>
    %61 = vector.broadcast %60 : vector<1x64xf32> to vector<64x64xf32>
    %62 = arith.addf %59, %61 : vector<64x64xf32>
    %cst_36 = arith.constant 0.000000e+00 : f32
    %63 = vector.broadcast %cst_36 : f32 to vector<64x64xf32>
    %64 = arith.maximumf %62, %63 : vector<64x64xf32>
    %65 = arith.truncf %64 : vector<64x64xf32> to vector<64x64xbf16>
    %66 = vector.shape_cast %65 : vector<64x64xbf16> to vector<1x1x8x8x64xbf16>
    %c0_37 = arith.constant 0 : index
    %c0_38 = arith.constant 0 : index
    %c0_39 = arith.constant 0 : index
    %c0_40 = arith.constant 0 : index
    %c0_41 = arith.constant 0 : index
    %67 = vector.load %arg6[%c0_37, %c0_38, %c0_39, %c0_40, %c0_41] : memref<1x1x8x8x64xbf16, #tpu.memory_space<vmem>>, vector<1x1x8x8x64xbf16>
    tpu.vector_store %arg6[%c0_37, %c0_38, %c0_39, %c0_40, %c0_41], %66 {strides = array<i32>} : memref<1x1x8x8x64xbf16, #tpu.memory_space<vmem>>, vector<1x1x8x8x64xbf16>,
    return
  }
  func.func @transform_0(%arg0: i32, %arg1: i32) -> (i32, i32, i32, i32, i32) {
    %c0_i32 = arith.constant 0 : i32
    %c0_i32_0 = arith.constant 0 : i32
    %c0_i32_1 = arith.constant 0 : i32
    %c0_i32_2 = arith.constant 0 : i32
    return %arg0, %arg1, %c0_i32, %c0_i32_0, %c0_i32_1 : i32, i32, i32, i32, i32
  }
  func.func @transform_1(%arg0: i32, %arg1: i32) -> (i32, i32, i32) {
    %c0_i32 = arith.constant 0 : i32
    %c0_i32_0 = arith.constant 0 : i32
    %c0_i32_1 = arith.constant 0 : i32
    %c0_i32_2 = arith.constant 0 : i32
    return %c0_i32, %c0_i32_0, %c0_i32_1 : i32, i32, i32
  }
  func.func @transform_2(%arg0: i32, %arg1: i32) -> (i32, i32) {
    %c0_i32 = arith.constant 0 : i32
    %c0_i32_0 = arith.constant 0 : i32
    %c0_i32_1 = arith.constant 0 : i32
    return %c0_i32, %c0_i32_0 : i32, i32
  }
  func.func @transform_3(%arg0: i32, %arg1: i32) -> (i32, i32) {
    %c0_i32 = arith.constant 0 : i32
    %c0_i32_0 = arith.constant 0 : i32
    %c0_i32_1 = arith.constant 0 : i32
    return %c0_i32, %c0_i32_0 : i32, i32
  }
  func.func @transform_4(%arg0: i32, %arg1: i32) -> (i32, i32, i32, i32, i32) {
    %c0_i32 = arith.constant 0 : i32
    %c0_i32_0 = arith.constant 0 : i32
    %c0_i32_1 = arith.constant 0 : i32
    %c0_i32_2 = arith.constant 0 : i32
    return %arg0, %arg1, %c0_i32, %c0_i32_0, %c0_i32_1 : i32, i32, i32, i32, i32
  }
}

module attributes {stable_mosaic.version = 11 : i64} {
  func.func @_sep_temporal_kernel(%arg0: i32, %arg1: i32, %arg2: i32, %arg3: memref<1x1x8x8x64xbf16, #tpu.memory_space<vmem>>, %arg4: memref<1x64x64xbf16, #tpu.memory_space<vmem>>, %arg5: memref<1x64xf32, #tpu.memory_space<vmem>>, %arg6: memref<1x64xf32, #tpu.memory_space<vmem>>, %arg7: memref<1x1x8x8x64xbf16, #tpu.memory_space<vmem>>, %arg8: memref<64x64xf32, #tpu.memory_space<vmem>>) attributes {dimension_semantics = [#tpu.dimension_semantics<parallel>, #tpu.dimension_semantics<parallel>, #tpu.dimension_semantics<arbitrary>], iteration_bounds = array<i64: 1, 4, 3>, scalar_prefetch = 0 : i64, scratch_operands = 1 : i64, tpu.core_type = #tpu.core_type<tc>, window_params = [{transform_indices = @transform_0, window_bounds = array<i64: 1, 1, 8, 8, 64>}, {transform_indices = @transform_1, window_bounds = array<i64: 1, 64, 64>}, {pipeline_mode = #tpu.pipeline_mode<synchronous>, transform_indices = @transform_2, window_bounds = array<i64: 1, 64>}, {pipeline_mode = #tpu.pipeline_mode<synchronous>, transform_indices = @transform_3, window_bounds = array<i64: 1, 64>}, {transform_indices = @transform_4, window_bounds = array<i64: 1, 1, 8, 8, 64>}]} {
    %c0_i32 = arith.constant 0 : i32
    %0 = arith.cmpi eq, %arg2, %c0_i32 : i32
    %1 = arith.extui %0 : i1 to i32
    %c0_i32_0 = arith.constant 0 : i32
    %2 = arith.cmpi ne, %1, %c0_i32_0 : i32
    scf.if %2 {
      %cst_13 = arith.constant 0.000000e+00 : f32
      %15 = vector.broadcast %cst_13 : f32 to vector<64x64xf32>
      %c0_14 = arith.constant 0 : index
      %c0_15 = arith.constant 0 : index
      %16 = vector.load %arg8[%c0_14, %c0_15] : memref<64x64xf32, #tpu.memory_space<vmem>>, vector<64x64xf32>
      tpu.vector_store %arg8[%c0_14, %c0_15], %15 {strides = array<i32>} : memref<64x64xf32, #tpu.memory_space<vmem>>, vector<64x64xf32>,
    } else {
    }
    %c0 = arith.constant 0 : index
    %c0_1 = arith.constant 0 : index
    %c0_2 = arith.constant 0 : index
    %c0_3 = arith.constant 0 : index
    %c0_4 = arith.constant 0 : index
    %3 = vector.load %arg3[%c0, %c0_1, %c0_2, %c0_3, %c0_4] : memref<1x1x8x8x64xbf16, #tpu.memory_space<vmem>>, vector<1x1x8x8x64xbf16>
    %4 = vector.shape_cast %3 : vector<1x1x8x8x64xbf16> to vector<8x8x64xbf16>
    %c0_5 = arith.constant 0 : index
    %c0_6 = arith.constant 0 : index
    %5 = vector.load %arg8[%c0_5, %c0_6] : memref<64x64xf32, #tpu.memory_space<vmem>>, vector<64x64xf32>
    %6 = vector.shape_cast %4 : vector<8x8x64xbf16> to vector<64x64xbf16>
    %c0_7 = arith.constant 0 : index
    %c0_8 = arith.constant 0 : index
    %c0_9 = arith.constant 0 : index
    %7 = vector.load %arg4[%c0_7, %c0_8, %c0_9] : memref<1x64x64xbf16, #tpu.memory_space<vmem>>, vector<1x64x64xbf16>
    %8 = vector.shape_cast %7 : vector<1x64x64xbf16> to vector<64x64xbf16>
    %cst = arith.constant dense<0.000000e+00> : vector<64x64xf32>
    %9 = tpu.matmul %6, %8, %cst {dimension_numbers = #tpu.dot_dimension_numbers<[1], [0], [0], [1], [0, 0, 1, 1], [], []>} : vector<64x64xbf16>, vector<64x64xbf16>, vector<64x64xf32> -> vector<64x64xf32>
    %10 = arith.addf %5, %9 : vector<64x64xf32>
    %c0_10 = arith.constant 0 : index
    %c0_11 = arith.constant 0 : index
    %11 = vector.load %arg8[%c0_10, %c0_11] : memref<64x64xf32, #tpu.memory_space<vmem>>, vector<64x64xf32>
    tpu.vector_store %arg8[%c0_10, %c0_11], %10 {strides = array<i32>} : memref<64x64xf32, #tpu.memory_space<vmem>>, vector<64x64xf32>,
    %c2_i32 = arith.constant 2 : i32
    %12 = arith.cmpi eq, %arg2, %c2_i32 : i32
    %13 = arith.extui %12 : i1 to i32
    %c0_i32_12 = arith.constant 0 : i32
    %14 = arith.cmpi ne, %13, %c0_i32_12 : i32
    scf.if %14 {
      %c0_13 = arith.constant 0 : index
      %c0_14 = arith.constant 0 : index
      %15 = vector.load %arg8[%c0_13, %c0_14] : memref<64x64xf32, #tpu.memory_space<vmem>>, vector<64x64xf32>
      %c0_15 = arith.constant 0 : index
      %c0_16 = arith.constant 0 : index
      %16 = vector.load %arg5[%c0_15, %c0_16] : memref<1x64xf32, #tpu.memory_space<vmem>>, vector<1x64xf32>
      %17 = vector.broadcast %16 : vector<1x64xf32> to vector<64x64xf32>
      %18 = arith.mulf %15, %17 : vector<64x64xf32>
      %c0_17 = arith.constant 0 : index
      %c0_18 = arith.constant 0 : index
      %19 = vector.load %arg6[%c0_17, %c0_18] : memref<1x64xf32, #tpu.memory_space<vmem>>, vector<1x64xf32>
      %20 = vector.broadcast %19 : vector<1x64xf32> to vector<64x64xf32>
      %21 = arith.addf %18, %20 : vector<64x64xf32>
      %cst_19 = arith.constant 0.000000e+00 : f32
      %22 = vector.broadcast %cst_19 : f32 to vector<64x64xf32>
      %23 = arith.maximumf %21, %22 : vector<64x64xf32>
      %24 = arith.truncf %23 : vector<64x64xf32> to vector<64x64xbf16>
      %25 = vector.shape_cast %24 : vector<64x64xbf16> to vector<1x1x8x8x64xbf16>
      %c0_20 = arith.constant 0 : index
      %c0_21 = arith.constant 0 : index
      %c0_22 = arith.constant 0 : index
      %c0_23 = arith.constant 0 : index
      %c0_24 = arith.constant 0 : index
      %26 = vector.load %arg7[%c0_20, %c0_21, %c0_22, %c0_23, %c0_24] : memref<1x1x8x8x64xbf16, #tpu.memory_space<vmem>>, vector<1x1x8x8x64xbf16>
      tpu.vector_store %arg7[%c0_20, %c0_21, %c0_22, %c0_23, %c0_24], %25 {strides = array<i32>} : memref<1x1x8x8x64xbf16, #tpu.memory_space<vmem>>, vector<1x1x8x8x64xbf16>,
    } else {
    }
    return
  }
  func.func @transform_0(%arg0: i32, %arg1: i32, %arg2: i32) -> (i32, i32, i32, i32, i32) {
    %0 = arith.addi %arg1, %arg2 : i32
    %c0_i32 = arith.constant 0 : i32
    %c0_i32_0 = arith.constant 0 : i32
    %c0_i32_1 = arith.constant 0 : i32
    %c0_i32_2 = arith.constant 0 : i32
    return %arg0, %0, %c0_i32, %c0_i32_0, %c0_i32_1 : i32, i32, i32, i32, i32
  }
  func.func @transform_1(%arg0: i32, %arg1: i32, %arg2: i32) -> (i32, i32, i32) {
    %c0_i32 = arith.constant 0 : i32
    %c0_i32_0 = arith.constant 0 : i32
    %c0_i32_1 = arith.constant 0 : i32
    return %arg2, %c0_i32, %c0_i32_0 : i32, i32, i32
  }
  func.func @transform_2(%arg0: i32, %arg1: i32, %arg2: i32) -> (i32, i32) {
    %c0_i32 = arith.constant 0 : i32
    %c0_i32_0 = arith.constant 0 : i32
    %c0_i32_1 = arith.constant 0 : i32
    return %c0_i32, %c0_i32_0 : i32, i32
  }
  func.func @transform_3(%arg0: i32, %arg1: i32, %arg2: i32) -> (i32, i32) {
    %c0_i32 = arith.constant 0 : i32
    %c0_i32_0 = arith.constant 0 : i32
    %c0_i32_1 = arith.constant 0 : i32
    return %c0_i32, %c0_i32_0 : i32, i32
  }
  func.func @transform_4(%arg0: i32, %arg1: i32, %arg2: i32) -> (i32, i32, i32, i32, i32) {
    %c0_i32 = arith.constant 0 : i32
    %c0_i32_0 = arith.constant 0 : i32
    %c0_i32_1 = arith.constant 0 : i32
    %c0_i32_2 = arith.constant 0 : i32
    return %arg0, %arg1, %c0_i32, %c0_i32_0, %c0_i32_1 : i32, i32, i32, i32, i32
  }
}

module attributes {stable_mosaic.version = 11 : i64} {
  func.func @_sep_spatial_kernel(%arg0: i32, %arg1: i32, %arg2: memref<1x1x10x10x144xbf16, #tpu.memory_space<vmem>>, %arg3: memref<9x144x288xbf16, #tpu.memory_space<vmem>>, %arg4: memref<1x288xf32, #tpu.memory_space<vmem>>, %arg5: memref<1x288xf32, #tpu.memory_space<vmem>>, %arg6: memref<1x1x8x8x288xbf16, #tpu.memory_space<vmem>>) attributes {dimension_semantics = [#tpu.dimension_semantics<parallel>, #tpu.dimension_semantics<parallel>], iteration_bounds = array<i64: 1, 4>, scalar_prefetch = 0 : i64, scratch_operands = 0 : i64, tpu.core_type = #tpu.core_type<tc>, window_params = [{transform_indices = @transform_0, window_bounds = array<i64: 1, 1, 10, 10, 144>}, {pipeline_mode = #tpu.pipeline_mode<synchronous>, transform_indices = @transform_1, window_bounds = array<i64: 9, 144, 288>}, {pipeline_mode = #tpu.pipeline_mode<synchronous>, transform_indices = @transform_2, window_bounds = array<i64: 1, 288>}, {pipeline_mode = #tpu.pipeline_mode<synchronous>, transform_indices = @transform_3, window_bounds = array<i64: 1, 288>}, {transform_indices = @transform_4, window_bounds = array<i64: 1, 1, 8, 8, 288>}]} {
    %c0 = arith.constant 0 : index
    %c0_0 = arith.constant 0 : index
    %c0_1 = arith.constant 0 : index
    %c0_2 = arith.constant 0 : index
    %c0_3 = arith.constant 0 : index
    %0 = vector.load %arg2[%c0, %c0_0, %c0_1, %c0_2, %c0_3] : memref<1x1x10x10x144xbf16, #tpu.memory_space<vmem>>, vector<1x1x10x10x144xbf16>
    %1 = vector.shape_cast %0 : vector<1x1x10x10x144xbf16> to vector<10x10x144xbf16>
    %cst = arith.constant 0.000000e+00 : f32
    %2 = vector.broadcast %cst : f32 to vector<64x288xf32>
    %3 = vector.extract_strided_slice %1 {offsets = [0, 0, 0], sizes = [8, 8, 144], strides = [1, 1, 1]} : vector<10x10x144xbf16> to vector<8x8x144xbf16>
    %4 = vector.shape_cast %3 : vector<8x8x144xbf16> to vector<64x144xbf16>
    %c0_4 = arith.constant 0 : index
    %c0_5 = arith.constant 0 : index
    %c0_6 = arith.constant 0 : index
    %5 = vector.load %arg3[%c0_4, %c0_5, %c0_6] : memref<9x144x288xbf16, #tpu.memory_space<vmem>>, vector<1x144x288xbf16>
    %6 = vector.shape_cast %5 : vector<1x144x288xbf16> to vector<144x288xbf16>
    %cst_7 = arith.constant dense<0.000000e+00> : vector<64x288xf32>
    %7 = tpu.matmul %4, %6, %cst_7 {dimension_numbers = #tpu.dot_dimension_numbers<[1], [0], [0], [1], [0, 0, 1, 1], [], []>} : vector<64x144xbf16>, vector<144x288xbf16>, vector<64x288xf32> -> vector<64x288xf32>
    %8 = arith.addf %2, %7 : vector<64x288xf32>
    %9 = vector.extract_strided_slice %1 {offsets = [0, 1, 0], sizes = [8, 8, 144], strides = [1, 1, 1]} : vector<10x10x144xbf16> to vector<8x8x144xbf16>
    %10 = vector.shape_cast %9 : vector<8x8x144xbf16> to vector<64x144xbf16>
    %c1 = arith.constant 1 : index
    %c0_8 = arith.constant 0 : index
    %c0_9 = arith.constant 0 : index
    %11 = vector.load %arg3[%c1, %c0_8, %c0_9] : memref<9x144x288xbf16, #tpu.memory_space<vmem>>, vector<1x144x288xbf16>
    %12 = vector.shape_cast %11 : vector<1x144x288xbf16> to vector<144x288xbf16>
    %cst_10 = arith.constant dense<0.000000e+00> : vector<64x288xf32>
    %13 = tpu.matmul %10, %12, %cst_10 {dimension_numbers = #tpu.dot_dimension_numbers<[1], [0], [0], [1], [0, 0, 1, 1], [], []>} : vector<64x144xbf16>, vector<144x288xbf16>, vector<64x288xf32> -> vector<64x288xf32>
    %14 = arith.addf %8, %13 : vector<64x288xf32>
    %15 = vector.extract_strided_slice %1 {offsets = [0, 2, 0], sizes = [8, 8, 144], strides = [1, 1, 1]} : vector<10x10x144xbf16> to vector<8x8x144xbf16>
    %16 = vector.shape_cast %15 : vector<8x8x144xbf16> to vector<64x144xbf16>
    %c2 = arith.constant 2 : index
    %c0_11 = arith.constant 0 : index
    %c0_12 = arith.constant 0 : index
    %17 = vector.load %arg3[%c2, %c0_11, %c0_12] : memref<9x144x288xbf16, #tpu.memory_space<vmem>>, vector<1x144x288xbf16>
    %18 = vector.shape_cast %17 : vector<1x144x288xbf16> to vector<144x288xbf16>
    %cst_13 = arith.constant dense<0.000000e+00> : vector<64x288xf32>
    %19 = tpu.matmul %16, %18, %cst_13 {dimension_numbers = #tpu.dot_dimension_numbers<[1], [0], [0], [1], [0, 0, 1, 1], [], []>} : vector<64x144xbf16>, vector<144x288xbf16>, vector<64x288xf32> -> vector<64x288xf32>
    %20 = arith.addf %14, %19 : vector<64x288xf32>
    %21 = vector.extract_strided_slice %1 {offsets = [1, 0, 0], sizes = [8, 8, 144], strides = [1, 1, 1]} : vector<10x10x144xbf16> to vector<8x8x144xbf16>
    %22 = vector.shape_cast %21 : vector<8x8x144xbf16> to vector<64x144xbf16>
    %c3 = arith.constant 3 : index
    %c0_14 = arith.constant 0 : index
    %c0_15 = arith.constant 0 : index
    %23 = vector.load %arg3[%c3, %c0_14, %c0_15] : memref<9x144x288xbf16, #tpu.memory_space<vmem>>, vector<1x144x288xbf16>
    %24 = vector.shape_cast %23 : vector<1x144x288xbf16> to vector<144x288xbf16>
    %cst_16 = arith.constant dense<0.000000e+00> : vector<64x288xf32>
    %25 = tpu.matmul %22, %24, %cst_16 {dimension_numbers = #tpu.dot_dimension_numbers<[1], [0], [0], [1], [0, 0, 1, 1], [], []>} : vector<64x144xbf16>, vector<144x288xbf16>, vector<64x288xf32> -> vector<64x288xf32>
    %26 = arith.addf %20, %25 : vector<64x288xf32>
    %27 = vector.extract_strided_slice %1 {offsets = [1, 1, 0], sizes = [8, 8, 144], strides = [1, 1, 1]} : vector<10x10x144xbf16> to vector<8x8x144xbf16>
    %28 = vector.shape_cast %27 : vector<8x8x144xbf16> to vector<64x144xbf16>
    %c4 = arith.constant 4 : index
    %c0_17 = arith.constant 0 : index
    %c0_18 = arith.constant 0 : index
    %29 = vector.load %arg3[%c4, %c0_17, %c0_18] : memref<9x144x288xbf16, #tpu.memory_space<vmem>>, vector<1x144x288xbf16>
    %30 = vector.shape_cast %29 : vector<1x144x288xbf16> to vector<144x288xbf16>
    %cst_19 = arith.constant dense<0.000000e+00> : vector<64x288xf32>
    %31 = tpu.matmul %28, %30, %cst_19 {dimension_numbers = #tpu.dot_dimension_numbers<[1], [0], [0], [1], [0, 0, 1, 1], [], []>} : vector<64x144xbf16>, vector<144x288xbf16>, vector<64x288xf32> -> vector<64x288xf32>
    %32 = arith.addf %26, %31 : vector<64x288xf32>
    %33 = vector.extract_strided_slice %1 {offsets = [1, 2, 0], sizes = [8, 8, 144], strides = [1, 1, 1]} : vector<10x10x144xbf16> to vector<8x8x144xbf16>
    %34 = vector.shape_cast %33 : vector<8x8x144xbf16> to vector<64x144xbf16>
    %c5 = arith.constant 5 : index
    %c0_20 = arith.constant 0 : index
    %c0_21 = arith.constant 0 : index
    %35 = vector.load %arg3[%c5, %c0_20, %c0_21] : memref<9x144x288xbf16, #tpu.memory_space<vmem>>, vector<1x144x288xbf16>
    %36 = vector.shape_cast %35 : vector<1x144x288xbf16> to vector<144x288xbf16>
    %cst_22 = arith.constant dense<0.000000e+00> : vector<64x288xf32>
    %37 = tpu.matmul %34, %36, %cst_22 {dimension_numbers = #tpu.dot_dimension_numbers<[1], [0], [0], [1], [0, 0, 1, 1], [], []>} : vector<64x144xbf16>, vector<144x288xbf16>, vector<64x288xf32> -> vector<64x288xf32>
    %38 = arith.addf %32, %37 : vector<64x288xf32>
    %39 = vector.extract_strided_slice %1 {offsets = [2, 0, 0], sizes = [8, 8, 144], strides = [1, 1, 1]} : vector<10x10x144xbf16> to vector<8x8x144xbf16>
    %40 = vector.shape_cast %39 : vector<8x8x144xbf16> to vector<64x144xbf16>
    %c6 = arith.constant 6 : index
    %c0_23 = arith.constant 0 : index
    %c0_24 = arith.constant 0 : index
    %41 = vector.load %arg3[%c6, %c0_23, %c0_24] : memref<9x144x288xbf16, #tpu.memory_space<vmem>>, vector<1x144x288xbf16>
    %42 = vector.shape_cast %41 : vector<1x144x288xbf16> to vector<144x288xbf16>
    %cst_25 = arith.constant dense<0.000000e+00> : vector<64x288xf32>
    %43 = tpu.matmul %40, %42, %cst_25 {dimension_numbers = #tpu.dot_dimension_numbers<[1], [0], [0], [1], [0, 0, 1, 1], [], []>} : vector<64x144xbf16>, vector<144x288xbf16>, vector<64x288xf32> -> vector<64x288xf32>
    %44 = arith.addf %38, %43 : vector<64x288xf32>
    %45 = vector.extract_strided_slice %1 {offsets = [2, 1, 0], sizes = [8, 8, 144], strides = [1, 1, 1]} : vector<10x10x144xbf16> to vector<8x8x144xbf16>
    %46 = vector.shape_cast %45 : vector<8x8x144xbf16> to vector<64x144xbf16>
    %c7 = arith.constant 7 : index
    %c0_26 = arith.constant 0 : index
    %c0_27 = arith.constant 0 : index
    %47 = vector.load %arg3[%c7, %c0_26, %c0_27] : memref<9x144x288xbf16, #tpu.memory_space<vmem>>, vector<1x144x288xbf16>
    %48 = vector.shape_cast %47 : vector<1x144x288xbf16> to vector<144x288xbf16>
    %cst_28 = arith.constant dense<0.000000e+00> : vector<64x288xf32>
    %49 = tpu.matmul %46, %48, %cst_28 {dimension_numbers = #tpu.dot_dimension_numbers<[1], [0], [0], [1], [0, 0, 1, 1], [], []>} : vector<64x144xbf16>, vector<144x288xbf16>, vector<64x288xf32> -> vector<64x288xf32>
    %50 = arith.addf %44, %49 : vector<64x288xf32>
    %51 = vector.extract_strided_slice %1 {offsets = [2, 2, 0], sizes = [8, 8, 144], strides = [1, 1, 1]} : vector<10x10x144xbf16> to vector<8x8x144xbf16>
    %52 = vector.shape_cast %51 : vector<8x8x144xbf16> to vector<64x144xbf16>
    %c8 = arith.constant 8 : index
    %c0_29 = arith.constant 0 : index
    %c0_30 = arith.constant 0 : index
    %53 = vector.load %arg3[%c8, %c0_29, %c0_30] : memref<9x144x288xbf16, #tpu.memory_space<vmem>>, vector<1x144x288xbf16>
    %54 = vector.shape_cast %53 : vector<1x144x288xbf16> to vector<144x288xbf16>
    %cst_31 = arith.constant dense<0.000000e+00> : vector<64x288xf32>
    %55 = tpu.matmul %52, %54, %cst_31 {dimension_numbers = #tpu.dot_dimension_numbers<[1], [0], [0], [1], [0, 0, 1, 1], [], []>} : vector<64x144xbf16>, vector<144x288xbf16>, vector<64x288xf32> -> vector<64x288xf32>
    %56 = arith.addf %50, %55 : vector<64x288xf32>
    %c0_32 = arith.constant 0 : index
    %c0_33 = arith.constant 0 : index
    %57 = vector.load %arg4[%c0_32, %c0_33] : memref<1x288xf32, #tpu.memory_space<vmem>>, vector<1x288xf32>
    %58 = vector.broadcast %57 : vector<1x288xf32> to vector<64x288xf32>
    %59 = arith.mulf %56, %58 : vector<64x288xf32>
    %c0_34 = arith.constant 0 : index
    %c0_35 = arith.constant 0 : index
    %60 = vector.load %arg5[%c0_34, %c0_35] : memref<1x288xf32, #tpu.memory_space<vmem>>, vector<1x288xf32>
    %61 = vector.broadcast %60 : vector<1x288xf32> to vector<64x288xf32>
    %62 = arith.addf %59, %61 : vector<64x288xf32>
    %cst_36 = arith.constant 0.000000e+00 : f32
    %63 = vector.broadcast %cst_36 : f32 to vector<64x288xf32>
    %64 = arith.maximumf %62, %63 : vector<64x288xf32>
    %65 = arith.truncf %64 : vector<64x288xf32> to vector<64x288xbf16>
    %66 = vector.shape_cast %65 : vector<64x288xbf16> to vector<1x1x8x8x288xbf16>
    %c0_37 = arith.constant 0 : index
    %c0_38 = arith.constant 0 : index
    %c0_39 = arith.constant 0 : index
    %c0_40 = arith.constant 0 : index
    %c0_41 = arith.constant 0 : index
    %67 = vector.load %arg6[%c0_37, %c0_38, %c0_39, %c0_40, %c0_41] : memref<1x1x8x8x288xbf16, #tpu.memory_space<vmem>>, vector<1x1x8x8x288xbf16>
    tpu.vector_store %arg6[%c0_37, %c0_38, %c0_39, %c0_40, %c0_41], %66 {strides = array<i32>} : memref<1x1x8x8x288xbf16, #tpu.memory_space<vmem>>, vector<1x1x8x8x288xbf16>,
    return
  }
  func.func @transform_0(%arg0: i32, %arg1: i32) -> (i32, i32, i32, i32, i32) {
    %c0_i32 = arith.constant 0 : i32
    %c0_i32_0 = arith.constant 0 : i32
    %c0_i32_1 = arith.constant 0 : i32
    %c0_i32_2 = arith.constant 0 : i32
    return %arg0, %arg1, %c0_i32, %c0_i32_0, %c0_i32_1 : i32, i32, i32, i32, i32
  }
  func.func @transform_1(%arg0: i32, %arg1: i32) -> (i32, i32, i32) {
    %c0_i32 = arith.constant 0 : i32
    %c0_i32_0 = arith.constant 0 : i32
    %c0_i32_1 = arith.constant 0 : i32
    %c0_i32_2 = arith.constant 0 : i32
    return %c0_i32, %c0_i32_0, %c0_i32_1 : i32, i32, i32
  }
  func.func @transform_2(%arg0: i32, %arg1: i32) -> (i32, i32) {
    %c0_i32 = arith.constant 0 : i32
    %c0_i32_0 = arith.constant 0 : i32
    %c0_i32_1 = arith.constant 0 : i32
    return %c0_i32, %c0_i32_0 : i32, i32
  }
  func.func @transform_3(%arg0: i32, %arg1: i32) -> (i32, i32) {
    %c0_i32 = arith.constant 0 : i32
    %c0_i32_0 = arith.constant 0 : i32
    %c0_i32_1 = arith.constant 0 : i32
    return %c0_i32, %c0_i32_0 : i32, i32
  }
  func.func @transform_4(%arg0: i32, %arg1: i32) -> (i32, i32, i32, i32, i32) {
    %c0_i32 = arith.constant 0 : i32
    %c0_i32_0 = arith.constant 0 : i32
    %c0_i32_1 = arith.constant 0 : i32
    %c0_i32_2 = arith.constant 0 : i32
    return %arg0, %arg1, %c0_i32, %c0_i32_0, %c0_i32_1 : i32, i32, i32, i32, i32
  }
}

module attributes {stable_mosaic.version = 11 : i64} {
  func.func @_sep_temporal_kernel(%arg0: i32, %arg1: i32, %arg2: i32, %arg3: memref<1x1x8x8x288xbf16, #tpu.memory_space<vmem>>, %arg4: memref<1x288x288xbf16, #tpu.memory_space<vmem>>, %arg5: memref<1x288xf32, #tpu.memory_space<vmem>>, %arg6: memref<1x288xf32, #tpu.memory_space<vmem>>, %arg7: memref<1x1x8x8x288xbf16, #tpu.memory_space<vmem>>, %arg8: memref<64x288xf32, #tpu.memory_space<vmem>>) attributes {dimension_semantics = [#tpu.dimension_semantics<parallel>, #tpu.dimension_semantics<parallel>, #tpu.dimension_semantics<arbitrary>], iteration_bounds = array<i64: 1, 4, 3>, scalar_prefetch = 0 : i64, scratch_operands = 1 : i64, tpu.core_type = #tpu.core_type<tc>, window_params = [{transform_indices = @transform_0, window_bounds = array<i64: 1, 1, 8, 8, 288>}, {transform_indices = @transform_1, window_bounds = array<i64: 1, 288, 288>}, {pipeline_mode = #tpu.pipeline_mode<synchronous>, transform_indices = @transform_2, window_bounds = array<i64: 1, 288>}, {pipeline_mode = #tpu.pipeline_mode<synchronous>, transform_indices = @transform_3, window_bounds = array<i64: 1, 288>}, {transform_indices = @transform_4, window_bounds = array<i64: 1, 1, 8, 8, 288>}]} {
    %c0_i32 = arith.constant 0 : i32
    %0 = arith.cmpi eq, %arg2, %c0_i32 : i32
    %1 = arith.extui %0 : i1 to i32
    %c0_i32_0 = arith.constant 0 : i32
    %2 = arith.cmpi ne, %1, %c0_i32_0 : i32
    scf.if %2 {
      %cst_13 = arith.constant 0.000000e+00 : f32
      %15 = vector.broadcast %cst_13 : f32 to vector<64x288xf32>
      %c0_14 = arith.constant 0 : index
      %c0_15 = arith.constant 0 : index
      %16 = vector.load %arg8[%c0_14, %c0_15] : memref<64x288xf32, #tpu.memory_space<vmem>>, vector<64x288xf32>
      tpu.vector_store %arg8[%c0_14, %c0_15], %15 {strides = array<i32>} : memref<64x288xf32, #tpu.memory_space<vmem>>, vector<64x288xf32>,
    } else {
    }
    %c0 = arith.constant 0 : index
    %c0_1 = arith.constant 0 : index
    %c0_2 = arith.constant 0 : index
    %c0_3 = arith.constant 0 : index
    %c0_4 = arith.constant 0 : index
    %3 = vector.load %arg3[%c0, %c0_1, %c0_2, %c0_3, %c0_4] : memref<1x1x8x8x288xbf16, #tpu.memory_space<vmem>>, vector<1x1x8x8x288xbf16>
    %4 = vector.shape_cast %3 : vector<1x1x8x8x288xbf16> to vector<8x8x288xbf16>
    %c0_5 = arith.constant 0 : index
    %c0_6 = arith.constant 0 : index
    %5 = vector.load %arg8[%c0_5, %c0_6] : memref<64x288xf32, #tpu.memory_space<vmem>>, vector<64x288xf32>
    %6 = vector.shape_cast %4 : vector<8x8x288xbf16> to vector<64x288xbf16>
    %c0_7 = arith.constant 0 : index
    %c0_8 = arith.constant 0 : index
    %c0_9 = arith.constant 0 : index
    %7 = vector.load %arg4[%c0_7, %c0_8, %c0_9] : memref<1x288x288xbf16, #tpu.memory_space<vmem>>, vector<1x288x288xbf16>
    %8 = vector.shape_cast %7 : vector<1x288x288xbf16> to vector<288x288xbf16>
    %cst = arith.constant dense<0.000000e+00> : vector<64x288xf32>
    %9 = tpu.matmul %6, %8, %cst {dimension_numbers = #tpu.dot_dimension_numbers<[1], [0], [0], [1], [0, 0, 1, 1], [], []>} : vector<64x288xbf16>, vector<288x288xbf16>, vector<64x288xf32> -> vector<64x288xf32>
    %10 = arith.addf %5, %9 : vector<64x288xf32>
    %c0_10 = arith.constant 0 : index
    %c0_11 = arith.constant 0 : index
    %11 = vector.load %arg8[%c0_10, %c0_11] : memref<64x288xf32, #tpu.memory_space<vmem>>, vector<64x288xf32>
    tpu.vector_store %arg8[%c0_10, %c0_11], %10 {strides = array<i32>} : memref<64x288xf32, #tpu.memory_space<vmem>>, vector<64x288xf32>,
    %c2_i32 = arith.constant 2 : i32
    %12 = arith.cmpi eq, %arg2, %c2_i32 : i32
    %13 = arith.extui %12 : i1 to i32
    %c0_i32_12 = arith.constant 0 : i32
    %14 = arith.cmpi ne, %13, %c0_i32_12 : i32
    scf.if %14 {
      %c0_13 = arith.constant 0 : index
      %c0_14 = arith.constant 0 : index
      %15 = vector.load %arg8[%c0_13, %c0_14] : memref<64x288xf32, #tpu.memory_space<vmem>>, vector<64x288xf32>
      %c0_15 = arith.constant 0 : index
      %c0_16 = arith.constant 0 : index
      %16 = vector.load %arg5[%c0_15, %c0_16] : memref<1x288xf32, #tpu.memory_space<vmem>>, vector<1x288xf32>
      %17 = vector.broadcast %16 : vector<1x288xf32> to vector<64x288xf32>
      %18 = arith.mulf %15, %17 : vector<64x288xf32>
      %c0_17 = arith.constant 0 : index
      %c0_18 = arith.constant 0 : index
      %19 = vector.load %arg6[%c0_17, %c0_18] : memref<1x288xf32, #tpu.memory_space<vmem>>, vector<1x288xf32>
      %20 = vector.broadcast %19 : vector<1x288xf32> to vector<64x288xf32>
      %21 = arith.addf %18, %20 : vector<64x288xf32>
      %cst_19 = arith.constant 0.000000e+00 : f32
      %22 = vector.broadcast %cst_19 : f32 to vector<64x288xf32>
      %23 = arith.maximumf %21, %22 : vector<64x288xf32>
      %24 = arith.truncf %23 : vector<64x288xf32> to vector<64x288xbf16>
      %25 = vector.shape_cast %24 : vector<64x288xbf16> to vector<1x1x8x8x288xbf16>
      %c0_20 = arith.constant 0 : index
      %c0_21 = arith.constant 0 : index
      %c0_22 = arith.constant 0 : index
      %c0_23 = arith.constant 0 : index
      %c0_24 = arith.constant 0 : index
      %26 = vector.load %arg7[%c0_20, %c0_21, %c0_22, %c0_23, %c0_24] : memref<1x1x8x8x288xbf16, #tpu.memory_space<vmem>>, vector<1x1x8x8x288xbf16>
      tpu.vector_store %arg7[%c0_20, %c0_21, %c0_22, %c0_23, %c0_24], %25 {strides = array<i32>} : memref<1x1x8x8x288xbf16, #tpu.memory_space<vmem>>, vector<1x1x8x8x288xbf16>,
    } else {
    }
    return
  }
  func.func @transform_0(%arg0: i32, %arg1: i32, %arg2: i32) -> (i32, i32, i32, i32, i32) {
    %0 = arith.addi %arg1, %arg2 : i32
    %c0_i32 = arith.constant 0 : i32
    %c0_i32_0 = arith.constant 0 : i32
    %c0_i32_1 = arith.constant 0 : i32
    %c0_i32_2 = arith.constant 0 : i32
    return %arg0, %0, %c0_i32, %c0_i32_0, %c0_i32_1 : i32, i32, i32, i32, i32
  }
  func.func @transform_1(%arg0: i32, %arg1: i32, %arg2: i32) -> (i32, i32, i32) {
    %c0_i32 = arith.constant 0 : i32
    %c0_i32_0 = arith.constant 0 : i32
    %c0_i32_1 = arith.constant 0 : i32
    return %arg2, %c0_i32, %c0_i32_0 : i32, i32, i32
  }
  func.func @transform_2(%arg0: i32, %arg1: i32, %arg2: i32) -> (i32, i32) {
    %c0_i32 = arith.constant 0 : i32
    %c0_i32_0 = arith.constant 0 : i32
    %c0_i32_1 = arith.constant 0 : i32
    return %c0_i32, %c0_i32_0 : i32, i32
  }
  func.func @transform_3(%arg0: i32, %arg1: i32, %arg2: i32) -> (i32, i32) {
    %c0_i32 = arith.constant 0 : i32
    %c0_i32_0 = arith.constant 0 : i32
    %c0_i32_1 = arith.constant 0 : i32
    return %c0_i32, %c0_i32_0 : i32, i32
  }
  func.func @transform_4(%arg0: i32, %arg1: i32, %arg2: i32) -> (i32, i32, i32, i32, i32) {
    %c0_i32 = arith.constant 0 : i32
    %c0_i32_0 = arith.constant 0 : i32
    %c0_i32_1 = arith.constant 0 : i32
    %c0_i32_2 = arith.constant 0 : i32
    return %arg0, %arg1, %c0_i32, %c0_i32_0, %c0_i32_1 : i32, i32, i32, i32, i32
  }
}

</mosaic_0001>

<llo_original>
// kernel: mixed_4e_forward.11
$region0: #{mixed_4e_forward.11}
  #allocation0 [shape = 'u32[]', space=smem, size = 0x4, offset = 0x4, fixed_abs, tag = 'smem constant byte address 0x4 - core index']
  #allocation1 [shape = 'u32[144,128]{1,0:T(1,128)}', space=vmem, size = 0x12000, scoped, tag = 'internal scratch']
  #allocation2 [shape = 'bf16[8,8,512]{2,1,0:T(8,128)(2,1)}', space=vmem, size = 0x10000, scoped, tag = 'scratch operand']
  %s0 = inlined_call_operand.vmem [shape: bf16[1,6,10,10,512], index: 0, kind: input, shape index: {}]
  %s1 = inlined_call_operand.vmem [shape: bf16[512,64], index: 1, kind: input, shape index: {}]
  %s2 = inlined_call_operand.vmem [shape: f32[1,64], index: 2, kind: input, shape index: {}]
  %s3 = inlined_call_operand.vmem [shape: f32[1,64], index: 3, kind: input, shape index: {}]
  %s4 = inlined_call_operand.vmem [shape: bf16[1,4,8,8,64], index: 4, kind: output, shape index: {}]
  %s5 = sld [smem:[#allocation0]]
  $region57: #{mixed_4e_forward.11} parent=0
    _
  %s7 = ssub.s32 1, %s5
  %s8 = scalar_select 0, %s7, %s5
  loop: start=0, step=1, limit=14
  $region2: #{mixed_4e_forward.11} parent=0 // loop_pre_header
    _
  $region3: #{mixed_4e_forward.11} parent=0 // loop_header
    %s10 = sphi 0, %s14
    %p11 = scmp.ge.s32.totalorder %s10, 14
    %s17 = sphi 0, %s36
    %s18 = sphi 0, %s32
    %s19 = sphi 0, %s28
    %s20 = sphi 0, %s17
    %s21 = sphi 0, %s18
    %s22 = sphi 0, %s19
    %s23 = sphi 0, %s20
    %s24 = sphi 0, %s21
    %s25 = sphi 0, %s22
    %s43 = sphi 0, %s45
    %s46 = sphi 0, %s43
    %s47 = sphi 0, %s46
    %s63 = sphi 0, %s47
    %s67 = sphi 0, %s67
    %s69 = sphi 0, %s67
    %s70 = sphi 0, %s69
    %s84 = sphi 0, %s70
    %s88 = sphi 0, %s88
    %s90 = sphi 0, %s88
    %s91 = sphi 0, %s90
    %s105 = sphi 0, %s91
    %s109 = sphi 0, %s109
    %s111 = sphi 0, %s109
    %s112 = sphi 0, %s111
    %s126 = sphi 0, %s112
    %s134 = sphi 0, %s136
    %s137 = sphi 0, %s134
    %s138 = sphi 0, %s137
    %s154 = sphi 0, %s138
  $region4: #{mixed_4e_forward.11} parent=0 // loop_header_branch
    %13 = sbr.rel (%p11) target = $region8
  $region5: #{mixed_4e_forward.11} parent=0 // loop_body
    %s15 = ssub.s32 %s10, 1
    %s16 = ssub.s32 %s10, 2
    %s26 = sadd.s32 1, %s19
    %p27 = scmp.ge.s32.totalorder %s26, 3
    %s28 = scalar_select %p27, 0, %s26
    %s29 = sadd.s32 1, %s18
    %s30 = scalar_select %p27, %s29, %s18
    %p31 = scmp.ge.s32.totalorder %s30, 4
    %s32 = scalar_select %p31, 0, %s30
    %s33 = sadd.s32 1, %s17
    %s34 = scalar_select %p31, %s33, %s17
    %p35 = scmp.ge.s32.totalorder %s34, 1
    %s36 = scalar_select %p35, 0, %s34
    %s37 = sadd.s32 %s18, %s19
    %s38 = sadd.s32 %s32, %s28
    %s39 = ssub.s32 %s17, %s36
    %s40 = ssub.s32 %s37, %s38
    %s41 = sor.u32 %s39, %s40
    %p42 = scmp.eq.s32.totalorder %s41, 0
    %s44 = sadd.s32 %s43, 1
    %s45 = scalar_select %p42, %s43, %s44
    %p48 = pneg %p42
    %p49 = scmp.eq.s32.totalorder %s10, 11
    %p50 = por %p48, %p49
    %p51 = scmp.ne.s32.totalorder %s43, %s46
    %p52 = scmp.eq.s32.totalorder %s10, 0
    %p53 = por %p51, %p52
    %p54 = scmp.ne.s32.totalorder %s43, %s46
    %p55 = scmp.eq.s32.totalorder %s15, 11
    %p56 = por %p54, %p55
    %p57 = scmp.ne.s32.totalorder %s46, %s47
    %p58 = scmp.eq.s32.totalorder %s15, 0
    %p59 = por %p57, %p58
    %p60 = scmp.ne.s32.totalorder %s46, %s47
    %p61 = scmp.eq.s32.totalorder %s16, 11
    %p62 = por %p60, %p61
    %p64 = scmp.ne.s32.totalorder %s47, %s63
    %p65 = scmp.eq.s32.totalorder %s16, 0
    %p66 = por %p64, %p65
    %s68 = sadd.s32 %s67, 1
    %p71 = scmp.eq.s32.totalorder %s10, 11
    %p72 = scmp.ne.s32.totalorder %s67, %s69
    %p73 = scmp.eq.s32.totalorder %s10, 0
    %p74 = por %p72, %p73
    %p75 = scmp.ne.s32.totalorder %s67, %s69
    %p76 = scmp.eq.s32.totalorder %s15, 11
    %p77 = por %p75, %p76
    %p78 = scmp.ne.s32.totalorder %s69, %s70
    %p79 = scmp.eq.s32.totalorder %s15, 0
    %p80 = por %p78, %p79
    %p81 = scmp.ne.s32.totalorder %s69, %s70
    %p82 = scmp.eq.s32.totalorder %s16, 11
    %p83 = por %p81, %p82
    %p85 = scmp.ne.s32.totalorder %s70, %s84
    %p86 = scmp.eq.s32.totalorder %s16, 0
    %p87 = por %p85, %p86
    %s89 = sadd.s32 %s88, 1
    %p92 = scmp.eq.s32.totalorder %s10, 11
    %p93 = scmp.ne.s32.totalorder %s88, %s90
    %p94 = scmp.eq.s32.totalorder %s10, 0
    %p95 = por %p93, %p94
    %p96 = scmp.ne.s32.totalorder %s88, %s90
    %p97 = scmp.eq.s32.totalorder %s15, 11
    %p98 = por %p96, %p97
    %p99 = scmp.ne.s32.totalorder %s90, %s91
    %p100 = scmp.eq.s32.totalorder %s15, 0
    %p101 = por %p99, %p100
    %p102 = scmp.ne.s32.totalorder %s90, %s91
    %p103 = scmp.eq.s32.totalorder %s16, 11
    %p104 = por %p102, %p103
    %p106 = scmp.ne.s32.totalorder %s91, %s105
    %p107 = scmp.eq.s32.totalorder %s16, 0
    %p108 = por %p106, %p107
    %s110 = sadd.s32 %s109, 1
    %p113 = scmp.eq.s32.totalorder %s10, 11
    %p114 = scmp.ne.s32.totalorder %s109, %s111
    %p115 = scmp.eq.s32.totalorder %s10, 0
    %p116 = por %p114, %p115
    %p117 = scmp.ne.s32.totalorder %s109, %s111
    %p118 = scmp.eq.s32.totalorder %s15, 11
    %p119 = por %p117, %p118
    %p120 = scmp.ne.s32.totalorder %s111, %s112
    %p121 = scmp.eq.s32.totalorder %s15, 0
    %p122 = por %p120, %p121
    %p123 = scmp.ne.s32.totalorder %s111, %s112
    %p124 = scmp.eq.s32.totalorder %s16, 11
    %p125 = por %p123, %p124
    %p127 = scmp.ne.s32.totalorder %s112, %s126
    %p128 = scmp.eq.s32.totalorder %s16, 0
    %p129 = por %p127, %p128
    %s130 = ssub.s32 %s17, %s36
    %s131 = ssub.s32 %s18, %s32
    %s132 = sor.u32 %s130, %s131
    %p133 = scmp.eq.s32.totalorder %s132, 0
    %s135 = sadd.s32 %s134, 1
    %s136 = scalar_select %p133, %s134, %s135
    %p139 = pneg %p133
    %p140 = scmp.eq.s32.totalorder %s10, 11
    %p141 = por %p139, %p140
    %p142 = scmp.ne.s32.totalorder %s134, %s137
    %p143 = scmp.eq.s32.totalorder %s10, 0
    %p144 = por %p142, %p143
    %p145 = scmp.ne.s32.totalorder %s134, %s137
    %p146 = scmp.eq.s32.totalorder %s15, 11
    %p147 = por %p145, %p146
    %p148 = scmp.ne.s32.totalorder %s137, %s138
    %p149 = scmp.eq.s32.totalorder %s15, 0
    %p150 = por %p148, %p149
    %p151 = scmp.ne.s32.totalorder %s137, %s138
    %p152 = scmp.eq.s32.totalorder %s16, 11
    %p153 = por %p151, %p152
    %p155 = scmp.ne.s32.totalorder %s138, %s154
    %p156 = scmp.eq.s32.totalorder %s16, 0
    %p157 = por %p155, %p156
    %p158 = scmp.le.s32.totalorder 1, %s10
    %p159 = scmp.lt.s32.totalorder %s10, 13
    %p160 = pnand %p158, %p159
    %p161 = pneg %p160
    // Predicated region
    $region9: #{mixed_4e_forward.11} parent=5 // pred_check
      _
    $region10: #{mixed_4e_forward.11} parent=5 // pred_check_branch
      %163 = sbr.rel (%p160) target = $region12
    $region11: #{mixed_4e_forward.11} parent=5 // pred_region
      %s164 = ssub.s32 %s10, 1
      // Predicated region
      $region13: #{mixed_4e_forward.11} parent=11 // pred_check
        %p165 = pneg %p80
      $region14: #{mixed_4e_forward.11} parent=11 // pred_check_branch
        %167 = sbr.rel (%p165) target = $region16
      $region15: #{mixed_4e_forward.11} parent=11 // pred_region
        _
      $region16: #{mixed_4e_forward.11} parent=11 // pred_fallthru
        _
      // Predicated region
      $region17: #{mixed_4e_forward.11} parent=11 // pred_check
        %p168 = pneg %p101
      $region18: #{mixed_4e_forward.11} parent=11 // pred_check_branch
        %170 = sbr.rel (%p168) target = $region20
      $region19: #{mixed_4e_forward.11} parent=11 // pred_region
        _
      $region20: #{mixed_4e_forward.11} parent=11 // pred_fallthru
        _
      // Predicated region
      $region21: #{mixed_4e_forward.11} parent=11 // pred_check
        %p171 = pneg %p122
      $region22: #{mixed_4e_forward.11} parent=11 // pred_check_branch
        %173 = sbr.rel (%p171) target = $region24
      $region23: #{mixed_4e_forward.11} parent=11 // pred_region
        _
      $region24: #{mixed_4e_forward.11} parent=11 // pred_fallthru
        _
    $region12: #{mixed_4e_forward.11} parent=5 // pred_fallthru
      _
    %p174 = scmp.lt.s32.totalorder %s10, 12
    // Predicated region
    $region25: #{mixed_4e_forward.11} parent=5 // pred_check
      %p175 = pneg %p174
    $region26: #{mixed_4e_forward.11} parent=5 // pred_check_branch
      %177 = sbr.rel (%p175) target = $region28
    $region27: #{mixed_4e_forward.11} parent=5 // pred_region
      // Predicated region
      $region29: #{mixed_4e_forward.11} parent=27 // pred_check
        %p178 = pneg %p53
      $region30: #{mixed_4e_forward.11} parent=27 // pred_check_branch
        %180 = sbr.rel (%p178) target = $region32
      $region31: #{mixed_4e_forward.11} parent=27 // pred_region
        %s181 = sadd.s32 %s18, %s19
        %p182 = scmp.lt.s32.totalorder %s17, 0
        %s183 = scalar_select %p182, %s17, 0
        %p184 = scmp.lt.s32.totalorder %s181, 5
        %s185 = scalar_select %p184, %s181, 5
        %s186 = smul.addr %s185, 80
        %s187 = smul.addr %s183, 480
        %s188 = sadd.s32 %s186, %s187
        %s189 = smul.addr %s188, 4
        %s190 = scalar_lea.vmem %s0, %s189
        %s191 = sadd.s32 %s18, %s19
      $region32: #{mixed_4e_forward.11} parent=27 // pred_fallthru
        _
    $region28: #{mixed_4e_forward.11} parent=5 // pred_fallthru
      _
    %p192 = scmp.le.s32.totalorder 1, %s10
    %p193 = scmp.lt.s32.totalorder %s10, 13
    %p194 = pnand %p192, %p193
    %p195 = pneg %p194
    // Predicated region
    $region33: #{mixed_4e_forward.11} parent=5 // pred_check
      _
    $region34: #{mixed_4e_forward.11} parent=5 // pred_check_branch
      %197 = sbr.rel (%p194) target = $region36
    $region35: #{mixed_4e_forward.11} parent=5 // pred_region
      %s198 = ssub.s32 %s10, 1
      %s199 = sadd.s32 %s21, %s22
      %p200 = scmp.lt.s32.totalorder %s20, 0
      %s201 = scalar_select %p200, %s20, 0
      %p202 = scmp.lt.s32.totalorder %s199, 5
      %s203 = scalar_select %p202, %s199, 5
      %s204 = smul.addr %s203, 80
      %s205 = smul.addr %s201, 480
      %s206 = sadd.s32 %s204, %s205
      %s207 = smul.addr %s206, 4
      %s208 = scalar_lea.vmem %s0, %s207
      %p209 = pneg %p59
      %p210 = pneg %p56
      %p211 = pneg %p80
      %p212 = pneg %p77
      %p213 = pneg %p101
      %p214 = pneg %p98
      %p215 = pneg %p122
      %p216 = pneg %p119
      %p217 = pneg %p150
      %p218 = pneg %p147
      %p219 = scmp.lt.s32.totalorder %s20, 0
      %s220 = scalar_select %p219, %s20, 0
      %p221 = scmp.lt.s32.totalorder %s21, 3
      %s222 = scalar_select %p221, %s21, 3
      %s223 = smul.addr %s222, 8
      %s224 = smul.addr %s220, 32
      %s225 = sadd.s32 %s223, %s224
      %s226 = smul.addr %s225, 4
      %s227 = scalar_lea.vmem %s4, %s226
      %s228 = sadd.s32 %s21, %s22
      %p229 = scmp.lt.s32.totalorder %s20, 0
      %s230 = scalar_select %p229, %s20, 0
      %p231 = scmp.lt.s32.totalorder %s228, 5
      %s232 = scalar_select %p231, %s228, 5
      %s233 = smul.addr %s232, 80
      %s234 = smul.addr %s230, 480
      %s235 = sadd.s32 %s233, %s234
      %s236 = smul.addr %s235, 4
      %s237 = scalar_lea.vmem %s0, %s236
      %s238 = sadd.s32 %s21, %s22
      %p239 = scmp.lt.s32.totalorder %s20, 0
      %s240 = scalar_select %p239, %s20, 0
      %p241 = scmp.lt.s32.totalorder %s21, 3
      %s242 = scalar_select %p241, %s21, 3
      %s243 = smul.addr %s242, 8
      %s244 = smul.addr %s240, 32
      %s245 = sadd.s32 %s243, %s244
      %s246 = smul.addr %s245, 4
      %s247 = scalar_lea.vmem %s4, %s246
      %v250 = vld [vmem:[%s237] sm:$0xff]
      %v251 = vld [vmem:[%s237 + $0x8] sm:$0xff]
      %v252 = vld [vmem:[%s237 + $0x10] sm:$0x11]
      %v253 = vld [vmem:[%s237 + $0x18] sm:$0x11]
      %v254 = vld [vmem:[%s237 + $0x20] sm:$0xff]
      %v255 = vld [vmem:[%s237 + $0x28] sm:$0xff]
      %v256 = vld [vmem:[%s237 + $0x30] sm:$0x11]
      %v257 = vld [vmem:[%s237 + $0x38] sm:$0x11]
      %v258 = vld [vmem:[%s237 + $0x40] sm:$0xff]
      %v259 = vld [vmem:[%s237 + $0x48] sm:$0xff]
      %v260 = vld [vmem:[%s237 + $0x50] sm:$0x11]
      %v261 = vld [vmem:[%s237 + $0x58] sm:$0x11]
      %v262 = vld [vmem:[%s237 + $0x60] sm:$0xff]
      %v263 = vld [vmem:[%s237 + $0x68] sm:$0xff]
      %v264 = vld [vmem:[%s237 + $0x70] sm:$0x11]
      %v265 = vld [vmem:[%s237 + $0x78] sm:$0x11]
      %v266 = vld [vmem:[%s237 + $0x80] sm:$0xff]
      %v267 = vld [vmem:[%s237 + $0x88] sm:$0xff]
      %v268 = vld [vmem:[%s237 + $0x90] sm:$0x11]
      %v269 = vld [vmem:[%s237 + $0x98] sm:$0x11]
      %v270 = vld [vmem:[%s237 + $0xa0] sm:$0xff]
      %v271 = vld [vmem:[%s237 + $0xa8] sm:$0xff]
      %v272 = vld [vmem:[%s237 + $0xb0] sm:$0x11]
      %v273 = vld [vmem:[%s237 + $0xb8] sm:$0x11]
      %v274 = vld [vmem:[%s237 + $0xc0] sm:$0xff]
      %v275 = vld [vmem:[%s237 + $0xc8] sm:$0xff]
      %v276 = vld [vmem:[%s237 + $0xd0] sm:$0x11]
      %v277 = vld [vmem:[%s237 + $0xd8] sm:$0x11]
      %v278 = vld [vmem:[%s237 + $0xe0] sm:$0xff]
      %v279 = vld [vmem:[%s237 + $0xe8] sm:$0xff]
      %v280 = vld [vmem:[%s237 + $0xf0] sm:$0x11]
      %v281 = vld [vmem:[%s237 + $0xf8] sm:$0x11]
      %v282 = vld [vmem:[%s237 + $0x100] sm:$0xff]
      %v283 = vld [vmem:[%s237 + $0x108] sm:$0xff]
      %v284 = vld [vmem:[%s237 + $0x110] sm:$0x11]
      %v285 = vld [vmem:[%s237 + $0x118] sm:$0x11]
      %v286 = vld [vmem:[%s237 + $0x120] sm:$0xff]
      %v287 = vld [vmem:[%s237 + $0x128] sm:$0xff]
      %v288 = vld [vmem:[%s237 + $0x130] sm:$0x11]
      %v289 = vld [vmem:[%s237 + $0x138] sm:$0x11]
      %vm290 = vsmask.f32 3328
      %vm291 = vsmask.f32 7440
      %vm292 = vmor %vm290, %vm291
      %v294 = vshrl.u32 %v250, 16
      %v296 = vrot.slane %v294, 4
      %v297 = vshll.u32 %v250, 16
      %v299 = vrot.slane %v297, 5
      %v300 = vor.u32 %v296, %v299
      %v301 = vrot.slane %v300, 4
      %v303 = vshll.u32 %v252, 16
      %v305 = vrot.slane %v303, 5
      %v306 = vsel %vm292, %v301, %v305
      %v308 = vshrl.u32 %v251, 16
      %v310 = vrot.slane %v308, 4
      %v311 = vshll.u32 %v251, 16
      %v313 = vrot.slane %v311, 5
      %v314 = vor.u32 %v310, %v313
      %v315 = vrot.slane %v314, 4
      %v317 = vshll.u32 %v253, 16
      %v319 = vrot.slane %v317, 5
      %v320 = vsel %vm292, %v315, %v319
      %v322 = vshrl.u32 %v254, 16
      %v324 = vrot.slane %v322, 4
      %v325 = vshll.u32 %v254, 16
      %v327 = vrot.slane %v325, 5
      %v328 = vor.u32 %v324, %v327
      %v329 = vrot.slane %v328, 4
      %v331 = vshll.u32 %v256, 16
      %v333 = vrot.slane %v331, 5
      %v334 = vsel %vm292, %v329, %v333
      %v336 = vshrl.u32 %v255, 16
      %v338 = vrot.slane %v336, 4
      %v339 = vshll.u32 %v255, 16
      %v341 = vrot.slane %v339, 5
      %v342 = vor.u32 %v338, %v341
      %v343 = vrot.slane %v342, 4
      %v345 = vshll.u32 %v257, 16
      %v347 = vrot.slane %v345, 5
      %v348 = vsel %vm292, %v343, %v347
      %v350 = vshrl.u32 %v258, 16
      %v352 = vrot.slane %v350, 4
      %v353 = vshll.u32 %v258, 16
      %v355 = vrot.slane %v353, 5
      %v356 = vor.u32 %v352, %v355
      %v357 = vrot.slane %v356, 4
      %v359 = vshll.u32 %v260, 16
      %v361 = vrot.slane %v359, 5
      %v362 = vsel %vm292, %v357, %v361
      %v364 = vshrl.u32 %v259, 16
      %v366 = vrot.slane %v364, 4
      %v367 = vshll.u32 %v259, 16
      %v369 = vrot.slane %v367, 5
      %v370 = vor.u32 %v366, %v369
      %v371 = vrot.slane %v370, 4
      %v373 = vshll.u32 %v261, 16
      %v375 = vrot.slane %v373, 5
      %v376 = vsel %vm292, %v371, %v375
      %v378 = vshrl.u32 %v262, 16
      %v380 = vrot.slane %v378, 4
      %v381 = vshll.u32 %v262, 16
      %v383 = vrot.slane %v381, 5
      %v384 = vor.u32 %v380, %v383
      %v385 = vrot.slane %v384, 4
      %v387 = vshll.u32 %v264, 16
      %v389 = vrot.slane %v387, 5
      %v390 = vsel %vm292, %v385, %v389
      %v392 = vshrl.u32 %v263, 16
      %v394 = vrot.slane %v392, 4
      %v395 = vshll.u32 %v263, 16
      %v397 = vrot.slane %v395, 5
      %v398 = vor.u32 %v394, %v397
      %v399 = vrot.slane %v398, 4
      %v401 = vshll.u32 %v265, 16
      %v403 = vrot.slane %v401, 5
      %v404 = vsel %vm292, %v399, %v403
      %v406 = vshrl.u32 %v266, 16
      %v408 = vrot.slane %v406, 4
      %v409 = vshll.u32 %v266, 16
      %v411 = vrot.slane %v409, 5
      %v412 = vor.u32 %v408, %v411
      %v413 = vrot.slane %v412, 4
      %v415 = vshll.u32 %v268, 16
      %v417 = vrot.slane %v415, 5
      %v418 = vsel %vm292, %v413, %v417
      %v420 = vshrl.u32 %v267, 16
      %v422 = vrot.slane %v420, 4
      %v423 = vshll.u32 %v267, 16
      %v425 = vrot.slane %v423, 5
      %v426 = vor.u32 %v422, %v425
      %v427 = vrot.slane %v426, 4
      %v429 = vshll.u32 %v269, 16
      %v431 = vrot.slane %v429, 5
      %v432 = vsel %vm292, %v427, %v431
      %v434 = vshrl.u32 %v270, 16
      %v436 = vrot.slane %v434, 4
      %v437 = vshll.u32 %v270, 16
      %v439 = vrot.slane %v437, 5
      %v440 = vor.u32 %v436, %v439
      %v441 = vrot.slane %v440, 4
      %v443 = vshll.u32 %v272, 16
      %v445 = vrot.slane %v443, 5
      %v446 = vsel %vm292, %v441, %v445
      %v448 = vshrl.u32 %v271, 16
      %v450 = vrot.slane %v448, 4
      %v451 = vshll.u32 %v271, 16
      %v453 = vrot.slane %v451, 5
      %v454 = vor.u32 %v450, %v453
      %v455 = vrot.slane %v454, 4
      %v457 = vshll.u32 %v273, 16
      %v459 = vrot.slane %v457, 5
      %v460 = vsel %vm292, %v455, %v459
      %v462 = vshrl.u32 %v274, 16
      %v464 = vrot.slane %v462, 4
      %v465 = vshll.u32 %v274, 16
      %v467 = vrot.slane %v465, 5
      %v468 = vor.u32 %v464, %v467
      %v469 = vrot.slane %v468, 4
      %v471 = vshll.u32 %v276, 16
      %v473 = vrot.slane %v471, 5
      %v474 = vsel %vm292, %v469, %v473
      %v476 = vshrl.u32 %v275, 16
      %v478 = vrot.slane %v476, 4
      %v479 = vshll.u32 %v275, 16
      %v481 = vrot.slane %v479, 5
      %v482 = vor.u32 %v478, %v481
      %v483 = vrot.slane %v482, 4
      %v485 = vshll.u32 %v277, 16
      %v487 = vrot.slane %v485, 5
      %v488 = vsel %vm292, %v483, %v487
      %v490 = vshrl.u32 %v278, 16
      %v492 = vrot.slane %v490, 4
      %v493 = vshll.u32 %v278, 16
      %v495 = vrot.slane %v493, 5
      %v496 = vor.u32 %v492, %v495
      %v497 = vrot.slane %v496, 4
      %v499 = vshll.u32 %v280, 16
      %v501 = vrot.slane %v499, 5
      %v502 = vsel %vm292, %v497, %v501
      %v504 = vshrl.u32 %v279, 16
      %v506 = vrot.slane %v504, 4
      %v507 = vshll.u32 %v279, 16
      %v509 = vrot.slane %v507, 5
      %v510 = vor.u32 %v506, %v509
      %v511 = vrot.slane %v510, 4
      %v513 = vshll.u32 %v281, 16
      %v515 = vrot.slane %v513, 5
      %v516 = vsel %vm292, %v511, %v515
      %v533 = vmax.bf16 %v250, %v306
      %v534 = vmax.bf16 %v251, %v320
      %v535 = vmax.bf16 %v254, %v334
      %v536 = vmax.bf16 %v255, %v348
      %v537 = vmax.bf16 %v258, %v362
      %v538 = vmax.bf16 %v259, %v376
      %v539 = vmax.bf16 %v262, %v390
      %v540 = vmax.bf16 %v263, %v404
      %v541 = vmax.bf16 %v266, %v418
      %v542 = vmax.bf16 %v267, %v432
      %v543 = vmax.bf16 %v270, %v446
      %v544 = vmax.bf16 %v271, %v460
      %v545 = vmax.bf16 %v274, %v474
      %v546 = vmax.bf16 %v275, %v488
      %v547 = vmax.bf16 %v278, %v502
      %v548 = vmax.bf16 %v279, %v516
      %vm581 = vcmask 1042432
      %vm582 = vcmask 1046532
      %vm583 = vmor %vm581, %vm582
      %v584 = vrot.slane %v250, 5
      %v585 = vrot.slane %v584, 4
      %v586 = vrot.slane %v252, 5
      %v587 = vsel %vm583, %v585, %v586
      %v588 = vrot.slane %v251, 5
      %v589 = vrot.slane %v588, 4
      %v590 = vrot.slane %v253, 5
      %v591 = vsel %vm583, %v589, %v590
      %v592 = vrot.slane %v254, 5
      %v593 = vrot.slane %v592, 4
      %v594 = vrot.slane %v256, 5
      %v595 = vsel %vm583, %v593, %v594
      %v596 = vrot.slane %v255, 5
      %v597 = vrot.slane %v596, 4
      %v598 = vrot.slane %v257, 5
      %v599 = vsel %vm583, %v597, %v598
      %v600 = vrot.slane %v258, 5
      %v601 = vrot.slane %v600, 4
      %v602 = vrot.slane %v260, 5
      %v603 = vsel %vm583, %v601, %v602
      %v604 = vrot.slane %v259, 5
      %v605 = vrot.slane %v604, 4
      %v606 = vrot.slane %v261, 5
      %v607 = vsel %vm583, %v605, %v606
      %v608 = vrot.slane %v262, 5
      %v609 = vrot.slane %v608, 4
      %v610 = vrot.slane %v264, 5
      %v611 = vsel %vm583, %v609, %v610
      %v612 = vrot.slane %v263, 5
      %v613 = vrot.slane %v612, 4
      %v614 = vrot.slane %v265, 5
      %v615 = vsel %vm583, %v613, %v614
      %v616 = vrot.slane %v266, 5
      %v617 = vrot.slane %v616, 4
      %v618 = vrot.slane %v268, 5
      %v619 = vsel %vm583, %v617, %v618
      %v620 = vrot.slane %v267, 5
      %v621 = vrot.slane %v620, 4
      %v622 = vrot.slane %v269, 5
      %v623 = vsel %vm583, %v621, %v622
      %v624 = vrot.slane %v270, 5
      %v625 = vrot.slane %v624, 4
      %v626 = vrot.slane %v272, 5
      %v627 = vsel %vm583, %v625, %v626
      %v628 = vrot.slane %v271, 5
      %v629 = vrot.slane %v628, 4
      %v630 = vrot.slane %v273, 5
      %v631 = vsel %vm583, %v629, %v630
      %v632 = vrot.slane %v274, 5
      %v633 = vrot.slane %v632, 4
      %v634 = vrot.slane %v276, 5
      %v635 = vsel %vm583, %v633, %v634
      %v636 = vrot.slane %v275, 5
      %v637 = vrot.slane %v636, 4
      %v638 = vrot.slane %v277, 5
      %v639 = vsel %vm583, %v637, %v638
      %v640 = vrot.slane %v278, 5
      %v641 = vrot.slane %v640, 4
      %v642 = vrot.slane %v280, 5
      %v643 = vsel %vm583, %v641, %v642
      %v644 = vrot.slane %v279, 5
      %v645 = vrot.slane %v644, 4
      %v646 = vrot.slane %v281, 5
      %v647 = vsel %vm583, %v645, %v646
      %v664 = vmax.bf16 %v533, %v587
      %v665 = vmax.bf16 %v534, %v591
      %v666 = vmax.bf16 %v535, %v595
      %v667 = vmax.bf16 %v536, %v599
      %v668 = vmax.bf16 %v537, %v603
      %v669 = vmax.bf16 %v538, %v607
      %v670 = vmax.bf16 %v539, %v611
      %v671 = vmax.bf16 %v540, %v615
      %v672 = vmax.bf16 %v541, %v619
      %v673 = vmax.bf16 %v542, %v623
      %v674 = vmax.bf16 %v543, %v627
      %v675 = vmax.bf16 %v544, %v631
      %v676 = vmax.bf16 %v545, %v635
      %v677 = vmax.bf16 %v546, %v639
      %v678 = vmax.bf16 %v547, %v643
      %v679 = vmax.bf16 %v548, %v647
      %v680 = vmax.bf16 %v664, %v254
      %v681 = vmax.bf16 %v665, %v255
      %v682 = vmax.bf16 %v666, %v258
      %v683 = vmax.bf16 %v667, %v259
      %v684 = vmax.bf16 %v668, %v262
      %v685 = vmax.bf16 %v669, %v263
      %v686 = vmax.bf16 %v670, %v266
      %v687 = vmax.bf16 %v671, %v267
      %v688 = vmax.bf16 %v672, %v270
      %v689 = vmax.bf16 %v673, %v271
      %v690 = vmax.bf16 %v674, %v274
      %v691 = vmax.bf16 %v675, %v275
      %v692 = vmax.bf16 %v676, %v278
      %v693 = vmax.bf16 %v677, %v279
      %v694 = vmax.bf16 %v678, %v282
      %v695 = vmax.bf16 %v679, %v283
      %v697 = vshrl.u32 %v282, 16
      %v699 = vrot.slane %v697, 4
      %v700 = vshll.u32 %v282, 16
      %v702 = vrot.slane %v700, 5
      %v703 = vor.u32 %v699, %v702
      %v704 = vrot.slane %v703, 4
      %v706 = vshll.u32 %v284, 16
      %v708 = vrot.slane %v706, 5
      %v709 = vsel %vm292, %v704, %v708
      %v711 = vshrl.u32 %v283, 16
      %v713 = vrot.slane %v711, 4
      %v714 = vshll.u32 %v283, 16
      %v716 = vrot.slane %v714, 5
      %v717 = vor.u32 %v713, %v716
      %v718 = vrot.slane %v717, 4
      %v720 = vshll.u32 %v285, 16
      %v722 = vrot.slane %v720, 5
      %v723 = vsel %vm292, %v718, %v722
      %v726 = vmax.bf16 %v680, %v334
      %v727 = vmax.bf16 %v681, %v348
      %v728 = vmax.bf16 %v682, %v362
      %v729 = vmax.bf16 %v683, %v376
      %v730 = vmax.bf16 %v684, %v390
      %v731 = vmax.bf16 %v685, %v404
      %v732 = vmax.bf16 %v686, %v418
      %v733 = vmax.bf16 %v687, %v432
      %v734 = vmax.bf16 %v688, %v446
      %v735 = vmax.bf16 %v689, %v460
      %v736 = vmax.bf16 %v690, %v474
      %v737 = vmax.bf16 %v691, %v488
      %v738 = vmax.bf16 %v692, %v502
      %v739 = vmax.bf16 %v693, %v516
      %v740 = vmax.bf16 %v694, %v709
      %v741 = vmax.bf16 %v695, %v723
      %v746 = vrot.slane %v282, 5
      %v747 = vrot.slane %v746, 4
      %v748 = vrot.slane %v284, 5
      %v749 = vsel %vm583, %v747, %v748
      %v750 = vrot.slane %v283, 5
      %v751 = vrot.slane %v750, 4
      %v752 = vrot.slane %v285, 5
      %v753 = vsel %vm583, %v751, %v752
      %v756 = vmax.bf16 %v726, %v595
      %v757 = vmax.bf16 %v727, %v599
      %v758 = vmax.bf16 %v728, %v603
      %v759 = vmax.bf16 %v729, %v607
      %v760 = vmax.bf16 %v730, %v611
      %v761 = vmax.bf16 %v731, %v615
      %v762 = vmax.bf16 %v732, %v619
      %v763 = vmax.bf16 %v733, %v623
      %v764 = vmax.bf16 %v734, %v627
      %v765 = vmax.bf16 %v735, %v631
      %v766 = vmax.bf16 %v736, %v635
      %v767 = vmax.bf16 %v737, %v639
      %v768 = vmax.bf16 %v738, %v643
      %v769 = vmax.bf16 %v739, %v647
      %v770 = vmax.bf16 %v740, %v749
      %v771 = vmax.bf16 %v741, %v753
      %v772 = vmax.bf16 %v756, %v258
      %v773 = vmax.bf16 %v757, %v259
      %v774 = vmax.bf16 %v758, %v262
      %v775 = vmax.bf16 %v759, %v263
      %v776 = vmax.bf16 %v760, %v266
      %v777 = vmax.bf16 %v761, %v267
      %v778 = vmax.bf16 %v762, %v270
      %v779 = vmax.bf16 %v763, %v271
      %v780 = vmax.bf16 %v764, %v274
      %v781 = vmax.bf16 %v765, %v275
      %v782 = vmax.bf16 %v766, %v278
      %v783 = vmax.bf16 %v767, %v279
      %v784 = vmax.bf16 %v768, %v282
      %v785 = vmax.bf16 %v769, %v283
      %v786 = vmax.bf16 %v770, %v286
      %v787 = vmax.bf16 %v771, %v287
      %v789 = vshrl.u32 %v286, 16
      %v791 = vrot.slane %v789, 4
      %v792 = vshll.u32 %v286, 16
      %v794 = vrot.slane %v792, 5
      %v795 = vor.u32 %v791, %v794
      %v796 = vrot.slane %v795, 4
      %v798 = vshll.u32 %v288, 16
      %v800 = vrot.slane %v798, 5
      %v801 = vsel %vm292, %v796, %v800
      %v803 = vshrl.u32 %v287, 16
      %v805 = vrot.slane %v803, 4
      %v806 = vshll.u32 %v287, 16
      %v808 = vrot.slane %v806, 5
      %v809 = vor.u32 %v805, %v808
      %v810 = vrot.slane %v809, 4
      %v812 = vshll.u32 %v289, 16
      %v814 = vrot.slane %v812, 5
      %v815 = vsel %vm292, %v810, %v814
      %v818 = vmax.bf16 %v772, %v362
      %v819 = vmax.bf16 %v773, %v376
      %v820 = vmax.bf16 %v774, %v390
      %v821 = vmax.bf16 %v775, %v404
      %v822 = vmax.bf16 %v776, %v418
      %v823 = vmax.bf16 %v777, %v432
      %v824 = vmax.bf16 %v778, %v446
      %v825 = vmax.bf16 %v779, %v460
      %v826 = vmax.bf16 %v780, %v474
      %v827 = vmax.bf16 %v781, %v488
      %v828 = vmax.bf16 %v782, %v502
      %v829 = vmax.bf16 %v783, %v516
      %v830 = vmax.bf16 %v784, %v709
      %v831 = vmax.bf16 %v785, %v723
      %v832 = vmax.bf16 %v786, %v801
      %v833 = vmax.bf16 %v787, %v815
      %v838 = vrot.slane %v286, 5
      %v839 = vrot.slane %v838, 4
      %v840 = vrot.slane %v288, 5
      %v841 = vsel %vm583, %v839, %v840
      %v842 = vrot.slane %v287, 5
      %v843 = vrot.slane %v842, 4
      %v844 = vrot.slane %v289, 5
      %v845 = vsel %vm583, %v843, %v844
      %v848 = vmax.bf16 %v818, %v603
      %v849 = vmax.bf16 %v819, %v607
      %v850 = vmax.bf16 %v820, %v611
      %v851 = vmax.bf16 %v821, %v615
      %v852 = vmax.bf16 %v822, %v619
      %v853 = vmax.bf16 %v823, %v623
      %v854 = vmax.bf16 %v824, %v627
      %v855 = vmax.bf16 %v825, %v631
      %v856 = vmax.bf16 %v826, %v635
      %v857 = vmax.bf16 %v827, %v639
      %v858 = vmax.bf16 %v828, %v643
      %v859 = vmax.bf16 %v829, %v647
      %v860 = vmax.bf16 %v830, %v749
      %v861 = vmax.bf16 %v831, %v753
      %v862 = vmax.bf16 %v832, %v841
      %v863 = vmax.bf16 %v833, %v845
      %p864 = scmp.eq.s32.totalorder %s22, 0
      // Predicated region
      $region37: #{mixed_4e_forward.11} parent=35 // pred_check
        %p865 = pneg %p864
      $region38: #{mixed_4e_forward.11} parent=35 // pred_check_branch
        %867 = sbr.rel (%p865) target = $region40
      $region39: #{mixed_4e_forward.11} parent=35 // pred_region
        %868 = vst [vmem:[#allocation2] sm:$0xff] 4286644096
        %869 = vst [vmem:[#allocation2 + $0x8] sm:$0xff] 4286644096
        %870 = vst [vmem:[#allocation2 + $0x10] sm:$0xff] 4286644096
        %871 = vst [vmem:[#allocation2 + $0x18] sm:$0xff] 4286644096
        %872 = vst [vmem:[#allocation2 + $0x20] sm:$0xff] 4286644096
        %873 = vst [vmem:[#allocation2 + $0x28] sm:$0xff] 4286644096
        %874 = vst [vmem:[#allocation2 + $0x30] sm:$0xff] 4286644096
        %875 = vst [vmem:[#allocation2 + $0x38] sm:$0xff] 4286644096
        %876 = vst [vmem:[#allocation2 + $0x40] sm:$0xff] 4286644096
        %877 = vst [vmem:[#allocation2 + $0x48] sm:$0xff] 4286644096
        %878 = vst [vmem:[#allocation2 + $0x50] sm:$0xff] 4286644096
        %879 = vst [vmem:[#allocation2 + $0x58] sm:$0xff] 4286644096
        %880 = vst [vmem:[#allocation2 + $0x60] sm:$0xff] 4286644096
        %881 = vst [vmem:[#allocation2 + $0x68] sm:$0xff] 4286644096
        %882 = vst [vmem:[#allocation2 + $0x70] sm:$0xff] 4286644096
        %883 = vst [vmem:[#allocation2 + $0x78] sm:$0xff] 4286644096
      $region40: #{mixed_4e_forward.11} parent=35 // pred_fallthru
        _
      %v884 = vld [vmem:[#allocation2] sm:$0xff]
      %v885 = vld [vmem:[#allocation2 + $0x8] sm:$0xff]
      %v886 = vld [vmem:[#allocation2 + $0x10] sm:$0xff]
      %v887 = vld [vmem:[#allocation2 + $0x18] sm:$0xff]
      %v888 = vld [vmem:[#allocation2 + $0x20] sm:$0xff]
      %v889 = vld [vmem:[#allocation2 + $0x28] sm:$0xff]
      %v890 = vld [vmem:[#allocation2 + $0x30] sm:$0xff]
      %v891 = vld [vmem:[#allocation2 + $0x38] sm:$0xff]
      %v892 = vld [vmem:[#allocation2 + $0x40] sm:$0xff]
      %v893 = vld [vmem:[#allocation2 + $0x48] sm:$0xff]
      %v894 = vld [vmem:[#allocation2 + $0x50] sm:$0xff]
      %v895 = vld [vmem:[#allocation2 + $0x58] sm:$0xff]
      %v896 = vld [vmem:[#allocation2 + $0x60] sm:$0xff]
      %v897 = vld [vmem:[#allocation2 + $0x68] sm:$0xff]
      %v898 = vld [vmem:[#allocation2 + $0x70] sm:$0xff]
      %v899 = vld [vmem:[#allocation2 + $0x78] sm:$0xff]
      %v900 = vmax.bf16 %v884, %v848
      %v901 = vmax.bf16 %v885, %v849
      %v902 = vmax.bf16 %v886, %v850
      %v903 = vmax.bf16 %v887, %v851
      %v904 = vmax.bf16 %v888, %v852
      %v905 = vmax.bf16 %v889, %v853
      %v906 = vmax.bf16 %v890, %v854
      %v907 = vmax.bf16 %v891, %v855
      %v908 = vmax.bf16 %v892, %v856
      %v909 = vmax.bf16 %v893, %v857
      %v910 = vmax.bf16 %v894, %v858
      %v911 = vmax.bf16 %v895, %v859
      %v912 = vmax.bf16 %v896, %v860
      %v913 = vmax.bf16 %v897, %v861
      %v914 = vmax.bf16 %v898, %v862
      %v915 = vmax.bf16 %v899, %v863
      %916 = vst [vmem:[#allocation2] sm:$0xff] %v900
      %917 = vst [vmem:[#allocation2 + $0x8] sm:$0xff] %v901
      %918 = vst [vmem:[#allocation2 + $0x10] sm:$0xff] %v902
      %919 = vst [vmem:[#allocation2 + $0x18] sm:$0xff] %v903
      %920 = vst [vmem:[#allocation2 + $0x20] sm:$0xff] %v904
      %921 = vst [vmem:[#allocation2 + $0x28] sm:$0xff] %v905
      %922 = vst [vmem:[#allocation2 + $0x30] sm:$0xff] %v906
      %923 = vst [vmem:[#allocation2 + $0x38] sm:$0xff] %v907
      %924 = vst [vmem:[#allocation2 + $0x40] sm:$0xff] %v908
      %925 = vst [vmem:[#allocation2 + $0x48] sm:$0xff] %v909
      %926 = vst [vmem:[#allocation2 + $0x50] sm:$0xff] %v910
      %927 = vst [vmem:[#allocation2 + $0x58] sm:$0xff] %v911
      %928 = vst [vmem:[#allocation2 + $0x60] sm:$0xff] %v912
      %929 = vst [vmem:[#allocation2 + $0x68] sm:$0xff] %v913
      %930 = vst [vmem:[#allocation2 + $0x70] sm:$0xff] %v914
      %931 = vst [vmem:[#allocation2 + $0x78] sm:$0xff] %v915
      %p932 = scmp.eq.s32.totalorder %s22, 2
      // Predicated region
      $region41: #{mixed_4e_forward.11} parent=35 // pred_check
        %p933 = pneg %p932
      $region42: #{mixed_4e_forward.11} parent=35 // pred_check_branch
        %935 = sbr.rel (%p933) target = $region44
      $region43: #{mixed_4e_forward.11} parent=35 // pred_region
        %v936 = vld [vmem:[#allocation2] sm:$0xff]
        %v937 = vld [vmem:[#allocation2 + $0x8] sm:$0xff]
        %v938 = vld [vmem:[#allocation2 + $0x10] sm:$0xff]
        %v939 = vld [vmem:[#allocation2 + $0x18] sm:$0xff]
        %v940 = vld [vmem:[#allocation2 + $0x20] sm:$0xff]
        %v941 = vld [vmem:[#allocation2 + $0x28] sm:$0xff]
        %v942 = vld [vmem:[#allocation2 + $0x30] sm:$0xff]
        %v943 = vld [vmem:[#allocation2 + $0x38] sm:$0xff]
        %v944 = vld [vmem:[#allocation2 + $0x40] sm:$0xff]
        %v945 = vld [vmem:[#allocation2 + $0x48] sm:$0xff]
        %v946 = vld [vmem:[#allocation2 + $0x50] sm:$0xff]
        %v947 = vld [vmem:[#allocation2 + $0x58] sm:$0xff]
        %v948 = vld [vmem:[#allocation2 + $0x60] sm:$0xff]
        %v949 = vld [vmem:[#allocation2 + $0x68] sm:$0xff]
        %v950 = vld [vmem:[#allocation2 + $0x70] sm:$0xff]
        %v951 = vld [vmem:[#allocation2 + $0x78] sm:$0xff]
        %v952 = vld [vmem:[%s1] sm:$0xf]
        %v953 = vld [vmem:[%s1 + $0x4] sm:$0xf]
        %v954 = vld [vmem:[%s1 + $0x8] sm:$0xf]
        %v955 = vld [vmem:[%s1 + $0xc] sm:$0xf]
        %v956 = vld [vmem:[%s1 + $0x10] sm:$0xf]
        %v957 = vld [vmem:[%s1 + $0x14] sm:$0xf]
        %v958 = vld [vmem:[%s1 + $0x18] sm:$0xf]
        %v959 = vld [vmem:[%s1 + $0x1c] sm:$0xf]
        %v960 = vld [vmem:[%s1 + $0x20] sm:$0xf]
        %v961 = vld [vmem:[%s1 + $0x24] sm:$0xf]
        %v962 = vld [vmem:[%s1 + $0x28] sm:$0xf]
        %v963 = vld [vmem:[%s1 + $0x2c] sm:$0xf]
        %v964 = vld [vmem:[%s1 + $0x30] sm:$0xf]
        %v965 = vld [vmem:[%s1 + $0x34] sm:$0xf]
        %v966 = vld [vmem:[%s1 + $0x38] sm:$0xf]
        %v967 = vld [vmem:[%s1 + $0x3c] sm:$0xf]
        %v968 = vld [vmem:[%s1 + $0x40] sm:$0xf]
        %v969 = vld [vmem:[%s1 + $0x44] sm:$0xf]
        %v970 = vld [vmem:[%s1 + $0x48] sm:$0xf]
        %v971 = vld [vmem:[%s1 + $0x4c] sm:$0xf]
        %v972 = vld [vmem:[%s1 + $0x50] sm:$0xf]
        %v973 = vld [vmem:[%s1 + $0x54] sm:$0xf]
        %v974 = vld [vmem:[%s1 + $0x58] sm:$0xf]
        %v975 = vld [vmem:[%s1 + $0x5c] sm:$0xf]
        %v976 = vld [vmem:[%s1 + $0x60] sm:$0xf]
        %v977 = vld [vmem:[%s1 + $0x64] sm:$0xf]
        %v978 = vld [vmem:[%s1 + $0x68] sm:$0xf]
        %v979 = vld [vmem:[%s1 + $0x6c] sm:$0xf]
        %v980 = vld [vmem:[%s1 + $0x70] sm:$0xf]
        %v981 = vld [vmem:[%s1 + $0x74] sm:$0xf]
        %v982 = vld [vmem:[%s1 + $0x78] sm:$0xf]
        %v983 = vld [vmem:[%s1 + $0x7c] sm:$0xf]
        %v984 = vld [vmem:[%s1 + $0x80] sm:$0xf]
        %v985 = vld [vmem:[%s1 + $0x84] sm:$0xf]
        %v986 = vld [vmem:[%s1 + $0x88] sm:$0xf]
        %v987 = vld [vmem:[%s1 + $0x8c] sm:$0xf]
        %v988 = vld [vmem:[%s1 + $0x90] sm:$0xf]
        %v989 = vld [vmem:[%s1 + $0x94] sm:$0xf]
        %v990 = vld [vmem:[%s1 + $0x98] sm:$0xf]
        %v991 = vld [vmem:[%s1 + $0x9c] sm:$0xf]
        %v992 = vld [vmem:[%s1 + $0xa0] sm:$0xf]
        %v993 = vld [vmem:[%s1 + $0xa4] sm:$0xf]
        %v994 = vld [vmem:[%s1 + $0xa8] sm:$0xf]
        %v995 = vld [vmem:[%s1 + $0xac] sm:$0xf]
        %v996 = vld [vmem:[%s1 + $0xb0] sm:$0xf]
        %v997 = vld [vmem:[%s1 + $0xb4] sm:$0xf]
        %v998 = vld [vmem:[%s1 + $0xb8] sm:$0xf]
        %v999 = vld [vmem:[%s1 + $0xbc] sm:$0xf]
        %v1000 = vld [vmem:[%s1 + $0xc0] sm:$0xf]
        %v1001 = vld [vmem:[%s1 + $0xc4] sm:$0xf]
        %v1002 = vld [vmem:[%s1 + $0xc8] sm:$0xf]
        %v1003 = vld [vmem:[%s1 + $0xcc] sm:$0xf]
        %v1004 = vld [vmem:[%s1 + $0xd0] sm:$0xf]
        %v1005 = vld [vmem:[%s1 + $0xd4] sm:$0xf]
        %v1006 = vld [vmem:[%s1 + $0xd8] sm:$0xf]
        %v1007 = vld [vmem:[%s1 + $0xdc] sm:$0xf]
        %v1008 = vld [vmem:[%s1 + $0xe0] sm:$0xf]
        %v1009 = vld [vmem:[%s1 + $0xe4] sm:$0xf]
        %v1010 = vld [vmem:[%s1 + $0xe8] sm:$0xf]
        %v1011 = vld [vmem:[%s1 + $0xec] sm:$0xf]
        %v1012 = vld [vmem:[%s1 + $0xf0] sm:$0xf]
        %v1013 = vld [vmem:[%s1 + $0xf4] sm:$0xf]
        %v1014 = vld [vmem:[%s1 + $0xf8] sm:$0xf]
        %v1015 = vld [vmem:[%s1 + $0xfc] sm:$0xf]
        %v1032 = vunpack.c.l.b16 %v936
        %v1033 = vunpack.c.h.b16 %v936
        %v1034 = vunpack.c.l.b16 %v937
        %v1035 = vunpack.c.h.b16 %v937
        %v1036 = vunpack.c.l.b16 %v938
        %v1037 = vunpack.c.h.b16 %v938
        %v1038 = vunpack.c.l.b16 %v939
        %v1039 = vunpack.c.h.b16 %v939
        %v1040 = vunpack.c.l.b16 %v940
        %v1041 = vunpack.c.h.b16 %v940
        %v1042 = vunpack.c.l.b16 %v941
        %v1043 = vunpack.c.h.b16 %v941
        %v1044 = vunpack.c.l.b16 %v942
        %v1045 = vunpack.c.h.b16 %v942
        %v1046 = vunpack.c.l.b16 %v943
        %v1047 = vunpack.c.h.b16 %v943
        %v1048 = vunpack.c.l.b16 %v944
        %v1049 = vunpack.c.h.b16 %v944
        %v1050 = vunpack.c.l.b16 %v945
        %v1051 = vunpack.c.h.b16 %v945
        %v1052 = vunpack.c.l.b16 %v946
        %v1053 = vunpack.c.h.b16 %v946
        %v1054 = vunpack.c.l.b16 %v947
        %v1055 = vunpack.c.h.b16 %v947
        %v1056 = vunpack.c.l.b16 %v948
        %v1057 = vunpack.c.h.b16 %v948
        %v1058 = vunpack.c.l.b16 %v949
        %v1059 = vunpack.c.h.b16 %v949
        %v1060 = vunpack.c.l.b16 %v950
        %v1061 = vunpack.c.h.b16 %v950
        %v1062 = vunpack.c.l.b16 %v951
        %v1063 = vunpack.c.h.b16 %v951
        %v1064 = vpack.c.b16 %v1036, %v1032
        %v1065 = vpack.c.b16 %v1037, %v1033
        %v1066 = vpack.c.b16 %v1038, %v1034
        %v1067 = vpack.c.b16 %v1039, %v1035
        %v1068 = vpack.c.b16 %v1044, %v1040
        %v1069 = vpack.c.b16 %v1045, %v1041
        %v1070 = vpack.c.b16 %v1046, %v1042
        %v1071 = vpack.c.b16 %v1047, %v1043
        %v1072 = vpack.c.b16 %v1052, %v1048
        %v1073 = vpack.c.b16 %v1053, %v1049
        %v1074 = vpack.c.b16 %v1054, %v1050
        %v1075 = vpack.c.b16 %v1055, %v1051
        %v1076 = vpack.c.b16 %v1060, %v1056
        %v1077 = vpack.c.b16 %v1061, %v1057
        %v1078 = vpack.c.b16 %v1062, %v1058
        %v1079 = vpack.c.b16 %v1063, %v1059
        %v1160 = vunpack.c.l.b16 %v952
        %v1161 = vunpack.c.l.b16 %v953
        %v1162 = vunpack.c.l.b16 %v954
        %v1163 = vunpack.c.l.b16 %v955
        %v1164 = vunpack.c.l.b16 %v956
        %v1165 = vunpack.c.l.b16 %v957
        %v1166 = vunpack.c.l.b16 %v958
        %v1167 = vunpack.c.l.b16 %v959
        %v1168 = vunpack.c.l.b16 %v960
        %v1169 = vunpack.c.l.b16 %v961
        %v1170 = vunpack.c.l.b16 %v962
        %v1171 = vunpack.c.l.b16 %v963
        %v1172 = vunpack.c.l.b16 %v964
        %v1173 = vunpack.c.l.b16 %v965
        %v1174 = vunpack.c.l.b16 %v966
        %v1175 = vunpack.c.l.b16 %v967
        %v1176 = vunpack.c.l.b16 %v968
        %v1177 = vunpack.c.l.b16 %v969
        %v1178 = vunpack.c.l.b16 %v970
        %v1179 = vunpack.c.l.b16 %v971
        %v1180 = vunpack.c.l.b16 %v972
        %v1181 = vunpack.c.l.b16 %v973
        %v1182 = vunpack.c.l.b16 %v974
        %v1183 = vunpack.c.l.b16 %v975
        %v1184 = vunpack.c.l.b16 %v976
        %v1185 = vunpack.c.l.b16 %v977
        %v1186 = vunpack.c.l.b16 %v978
        %v1187 = vunpack.c.l.b16 %v979
        %v1188 = vunpack.c.l.b16 %v980
        %v1189 = vunpack.c.l.b16 %v981
        %v1190 = vunpack.c.l.b16 %v982
        %v1191 = vunpack.c.l.b16 %v983
        %v1192 = vunpack.c.l.b16 %v984
        %v1193 = vunpack.c.l.b16 %v985
        %v1194 = vunpack.c.l.b16 %v986
        %v1195 = vunpack.c.l.b16 %v987
        %v1196 = vunpack.c.l.b16 %v988
        %v1197 = vunpack.c.l.b16 %v989
        %v1198 = vunpack.c.l.b16 %v990
        %v1199 = vunpack.c.l.b16 %v991
        %v1200 = vunpack.c.l.b16 %v992
        %v1201 = vunpack.c.l.b16 %v993
        %v1202 = vunpack.c.l.b16 %v994
        %v1203 = vunpack.c.l.b16 %v995
        %v1204 = vunpack.c.l.b16 %v996
        %v1205 = vunpack.c.l.b16 %v997
        %v1206 = vunpack.c.l.b16 %v998
        %v1207 = vunpack.c.l.b16 %v999
        %v1208 = vunpack.c.l.b16 %v1000
        %v1209 = vunpack.c.l.b16 %v1001
        %v1210 = vunpack.c.l.b16 %v1002
        %v1211 = vunpack.c.l.b16 %v1003
        %v1212 = vunpack.c.l.b16 %v1004
        %v1213 = vunpack.c.l.b16 %v1005
        %v1214 = vunpack.c.l.b16 %v1006
        %v1215 = vunpack.c.l.b16 %v1007
        %v1216 = vunpack.c.l.b16 %v1008
        %v1217 = vunpack.c.l.b16 %v1009
        %v1218 = vunpack.c.l.b16 %v1010
        %v1219 = vunpack.c.l.b16 %v1011
        %v1220 = vunpack.c.l.b16 %v1012
        %v1221 = vunpack.c.l.b16 %v1013
        %v1222 = vunpack.c.l.b16 %v1014
        %v1223 = vunpack.c.l.b16 %v1015
        %v1224 = vpack.c.b16 %v1161, %v1160
        %v1225 = vpack.c.b16 %v1163, %v1162
        %v1226 = vpack.c.b16 %v1165, %v1164
        %v1227 = vpack.c.b16 %v1167, %v1166
        %v1228 = vpack.c.b16 %v1169, %v1168
        %v1229 = vpack.c.b16 %v1171, %v1170
        %v1230 = vpack.c.b16 %v1173, %v1172
        %v1231 = vpack.c.b16 %v1175, %v1174
        %v1232 = vpack.c.b16 %v1177, %v1176
        %v1233 = vpack.c.b16 %v1179, %v1178
        %v1234 = vpack.c.b16 %v1181, %v1180
        %v1235 = vpack.c.b16 %v1183, %v1182
        %v1236 = vpack.c.b16 %v1185, %v1184
        %v1237 = vpack.c.b16 %v1187, %v1186
        %v1238 = vpack.c.b16 %v1189, %v1188
        %v1239 = vpack.c.b16 %v1191, %v1190
        %v1240 = vpack.c.b16 %v1193, %v1192
        %v1241 = vpack.c.b16 %v1195, %v1194
        %v1242 = vpack.c.b16 %v1197, %v1196
        %v1243 = vpack.c.b16 %v1199, %v1198
        %v1244 = vpack.c.b16 %v1201, %v1200
        %v1245 = vpack.c.b16 %v1203, %v1202
        %v1246 = vpack.c.b16 %v1205, %v1204
        %v1247 = vpack.c.b16 %v1207, %v1206
        %v1248 = vpack.c.b16 %v1209, %v1208
        %v1249 = vpack.c.b16 %v1211, %v1210
        %v1250 = vpack.c.b16 %v1213, %v1212
        %v1251 = vpack.c.b16 %v1215, %v1214
        %v1252 = vpack.c.b16 %v1217, %v1216
        %v1253 = vpack.c.b16 %v1219, %v1218
        %v1254 = vpack.c.b16 %v1221, %v1220
        %v1255 = vpack.c.b16 %v1223, %v1222
        %1288 = vmatprep.subr.bf16.mxu0 0
        %1289 = vmatpush1.bf16.msra.mxu0 %v1231
        %1290 = vmatprep.subr.bf16.mxu0 0
        %1291 = vmatpush1.bf16.msra.mxu0 %v1230
        %1292 = vmatprep.subr.bf16.mxu0 0
        %1293 = vmatpush1.bf16.msra.mxu0 %v1229
        %1294 = vmatprep.subr.bf16.mxu0 0
        %1295 = vmatpush1.bf16.msra.mxu0 %v1228
        %1296 = vmatprep.subr.bf16.mxu0 0
        %1297 = vmatpush1.bf16.msra.mxu0 %v1227
        %1298 = vmatprep.subr.bf16.mxu0 0
        %1299 = vmatpush1.bf16.msra.mxu0 %v1226
        %1300 = vmatprep.subr.bf16.mxu0 0
        %1301 = vmatpush1.bf16.msra.mxu0 %v1225
        %1302 = vmatprep.subr.bf16.mxu0 0
        %1303 = vmatpush1.bf16.msra.mxu0 %v1224
        %1304 = vmatprep.subr.bf16.mxu0 0
        %1305 = vmatpush2.bf16.msra.mxu0 %v1239
        %1306 = vmatprep.subr.bf16.mxu0 0
        %1307 = vmatpush2.bf16.msra.mxu0 %v1238
        %1308 = vmatprep.subr.bf16.mxu0 0
        %1309 = vmatpush2.bf16.msra.mxu0 %v1237
        %1310 = vmatprep.subr.bf16.mxu0 0
        %1311 = vmatpush2.bf16.msra.mxu0 %v1236
        %1312 = vmatprep.subr.bf16.mxu0 0
        %1313 = vmatpush2.bf16.msra.mxu0 %v1235
        %1314 = vmatprep.subr.bf16.mxu0 0
        %1315 = vmatpush2.bf16.msra.mxu0 %v1234
        %1316 = vmatprep.subr.bf16.mxu0 0
        %1317 = vmatpush2.bf16.msra.mxu0 %v1233
        %1318 = vmatprep.subr.bf16.mxu0 0
        %1319 = vmatpush2.bf16.msra.mxu0 %v1232
        %1320 = vmatprep.mubr.bf16.mxu0 %v1065
        %1321 = vmatmul.mubr.bf16.gmra.mxu0 %v1064
        %v1322 = vpop.f32.mrf.mxu0
        %v1323 = vadd.f32 0.0, %v1322
        %v1324 = vpop.f32.mrf.mxu0
        %v1325 = vpop.f32.mrf.mxu0
        %v1326 = vadd.f32 0.0, %v1325
        %v1327 = vpop.f32.mrf.mxu0
        %1328 = vmatprep.mubr.bf16.mxu0 %v1069
        %1329 = vmatmul.mubr.bf16.gmra.mxu0 %v1068
        %v1330 = vpop.f32.mrf.mxu0
        %v1331 = vadd.f32 0.0, %v1330
        %v1332 = vpop.f32.mrf.mxu0
        %v1333 = vpop.f32.mrf.mxu0
        %v1334 = vadd.f32 0.0, %v1333
        %v1335 = vpop.f32.mrf.mxu0
        %1336 = vmatprep.mubr.bf16.mxu0 %v1073
        %1337 = vmatmul.mubr.bf16.gmra.mxu0 %v1072
        %v1338 = vpop.f32.mrf.mxu0
        %v1339 = vadd.f32 0.0, %v1338
        %v1340 = vpop.f32.mrf.mxu0
        %v1341 = vpop.f32.mrf.mxu0
        %v1342 = vadd.f32 0.0, %v1341
        %v1343 = vpop.f32.mrf.mxu0
        %1344 = vmatprep.mubr.bf16.mxu0 %v1077
        %1345 = vmatmul.mubr.bf16.gmra.mxu0 %v1076
        %v1346 = vpop.f32.mrf.mxu0
        %v1347 = vadd.f32 0.0, %v1346
        %v1348 = vpop.f32.mrf.mxu0
        %v1349 = vpop.f32.mrf.mxu0
        %v1350 = vadd.f32 0.0, %v1349
        %v1351 = vpop.f32.mrf.mxu0
        %1352 = vdwg.mxu0
        %1353 = vmatprep.subr.bf16.mxu0 0
        %1354 = vmatpush1.bf16.msra.mxu0 %v1247
        %1355 = vmatprep.subr.bf16.mxu0 0
        %1356 = vmatpush1.bf16.msra.mxu0 %v1246
        %1357 = vmatprep.subr.bf16.mxu0 0
        %1358 = vmatpush1.bf16.msra.mxu0 %v1245
        %1359 = vmatprep.subr.bf16.mxu0 0
        %1360 = vmatpush1.bf16.msra.mxu0 %v1244
        %1361 = vmatprep.subr.bf16.mxu0 0
        %1362 = vmatpush1.bf16.msra.mxu0 %v1243
        %1363 = vmatprep.subr.bf16.mxu0 0
        %1364 = vmatpush1.bf16.msra.mxu0 %v1242
        %1365 = vmatprep.subr.bf16.mxu0 0
        %1366 = vmatpush1.bf16.msra.mxu0 %v1241
        %1367 = vmatprep.subr.bf16.mxu0 0
        %1368 = vmatpush1.bf16.msra.mxu0 %v1240
        %1369 = vmatprep.subr.bf16.mxu0 0
        %1370 = vmatpush2.bf16.msra.mxu0 %v1255
        %1371 = vmatprep.subr.bf16.mxu0 0
        %1372 = vmatpush2.bf16.msra.mxu0 %v1254
        %1373 = vmatprep.subr.bf16.mxu0 0
        %1374 = vmatpush2.bf16.msra.mxu0 %v1253
        %1375 = vmatprep.subr.bf16.mxu0 0
        %1376 = vmatpush2.bf16.msra.mxu0 %v1252
        %1377 = vmatprep.subr.bf16.mxu0 0
        %1378 = vmatpush2.bf16.msra.mxu0 %v1251
        %1379 = vmatprep.subr.bf16.mxu0 0
        %1380 = vmatpush2.bf16.msra.mxu0 %v1250
        %1381 = vmatprep.subr.bf16.mxu0 0
        %1382 = vmatpush2.bf16.msra.mxu0 %v1249
        %1383 = vmatprep.subr.bf16.mxu0 0
        %1384 = vmatpush2.bf16.msra.mxu0 %v1248
        %1385 = vmatprep.mubr.bf16.mxu0 %v1067
        %1386 = vmatmul.mubr.bf16.gmra.mxu0 %v1066
        %v1387 = vpop.f32.mrf.mxu0
        %v1388 = vadd.f32 %v1323, %v1387
        %v1389 = vpop.f32.mrf.mxu0
        %v1390 = vpop.f32.mrf.mxu0
        %v1391 = vadd.f32 %v1326, %v1390
        %v1392 = vpop.f32.mrf.mxu0
        %1393 = vmatprep.mubr.bf16.mxu0 %v1071
        %1394 = vmatmul.mubr.bf16.gmra.mxu0 %v1070
        %v1395 = vpop.f32.mrf.mxu0
        %v1396 = vadd.f32 %v1331, %v1395
        %v1397 = vpop.f32.mrf.mxu0
        %v1398 = vpop.f32.mrf.mxu0
        %v1399 = vadd.f32 %v1334, %v1398
        %v1400 = vpop.f32.mrf.mxu0
        %1401 = vmatprep.mubr.bf16.mxu0 %v1075
        %1402 = vmatmul.mubr.bf16.gmra.mxu0 %v1074
        %v1403 = vpop.f32.mrf.mxu0
        %v1404 = vadd.f32 %v1339, %v1403
        %v1405 = vpop.f32.mrf.mxu0
        %v1406 = vpop.f32.mrf.mxu0
        %v1407 = vadd.f32 %v1342, %v1406
        %v1408 = vpop.f32.mrf.mxu0
        %1409 = vmatprep.mubr.bf16.mxu0 %v1079
        %1410 = vmatmul.mubr.bf16.gmra.mxu0 %v1078
        %v1411 = vpop.f32.mrf.mxu0
        %v1412 = vadd.f32 %v1347, %v1411
        %v1413 = vpop.f32.mrf.mxu0
        %v1414 = vpop.f32.mrf.mxu0
        %v1415 = vadd.f32 %v1350, %v1414
        %v1416 = vpop.f32.mrf.mxu0
        %1417 = vdwg.mxu0
        %v1418 = vld [vmem:[%s2] sm:$0x1]
        %v1420 = vlaneseq
        %v1421 = vshrl.u32 %v1420, 7
        %v1422 = vsub.s32 0, %v1421
        %v1423 = vrot.slane %v1418, %v1422
        %v1425 = vmul.f32 %v1388, %v1423
        %v1426 = vmul.f32 %v1391, %v1423
        %v1427 = vmul.f32 %v1396, %v1423
        %v1428 = vmul.f32 %v1399, %v1423
        %v1429 = vmul.f32 %v1404, %v1423
        %v1430 = vmul.f32 %v1407, %v1423
        %v1431 = vmul.f32 %v1412, %v1423
        %v1432 = vmul.f32 %v1415, %v1423
        %v1433 = vld [vmem:[%s3] sm:$0x1]
        %v1435 = vlaneseq
        %v1436 = vshrl.u32 %v1435, 7
        %v1437 = vsub.s32 0, %v1436
        %v1438 = vrot.slane %v1433, %v1437
        %v1440 = vadd.f32 %v1425, %v1438
        %v1441 = vadd.f32 %v1426, %v1438
        %v1442 = vadd.f32 %v1427, %v1438
        %v1443 = vadd.f32 %v1428, %v1438
        %v1444 = vadd.f32 %v1429, %v1438
        %v1445 = vadd.f32 %v1430, %v1438
        %v1446 = vadd.f32 %v1431, %v1438
        %v1447 = vadd.f32 %v1432, %v1438
        %v1448 = vmax.f32 %v1440, 0.0
        %v1449 = vmax.f32 %v1441, 0.0
        %v1450 = vmax.f32 %v1442, 0.0
        %v1451 = vmax.f32 %v1443, 0.0
        %v1452 = vmax.f32 %v1444, 0.0
        %v1453 = vmax.f32 %v1445, 0.0
        %v1454 = vmax.f32 %v1446, 0.0
        %v1455 = vmax.f32 %v1447, 0.0
        %v1456 = vpack.c.bf16 %v1449, %v1448
        %v1457 = vpack.c.bf16 %v1451, %v1450
        %v1458 = vpack.c.bf16 %v1453, %v1452
        %v1459 = vpack.c.bf16 %v1455, %v1454
        %v1464 = vunpack.c.l.b16 %v1456
        %v1465 = vunpack.c.h.b16 %v1456
        %v1466 = vunpack.c.l.b16 %v1457
        %v1467 = vunpack.c.h.b16 %v1457
        %v1468 = vunpack.c.l.b16 %v1458
        %v1469 = vunpack.c.h.b16 %v1458
        %v1470 = vunpack.c.l.b16 %v1459
        %v1471 = vunpack.c.h.b16 %v1459
        %v1472 = vpack.c.b16 %v1464, %v1464
        %v1473 = vpack.c.b16 %v1465, %v1465
        %v1474 = vpack.c.b16 %v1466, %v1466
        %v1475 = vpack.c.b16 %v1467, %v1467
        %v1476 = vpack.c.b16 %v1468, %v1468
        %v1477 = vpack.c.b16 %v1469, %v1469
        %v1478 = vpack.c.b16 %v1470, %v1470
        %v1479 = vpack.c.b16 %v1471, %v1471
        %vm1488 = vcmask 519168
        %1489 = vst.msk [vmem:[%s247] sm:$0xf] %vm1488, %v1472
        %1490 = vst.msk [vmem:[%s247 + $0x4] sm:$0xf] %vm1488, %v1473
        %1491 = vst.msk [vmem:[%s247 + $0x8] sm:$0xf] %vm1488, %v1474
        %1492 = vst.msk [vmem:[%s247 + $0xc] sm:$0xf] %vm1488, %v1475
        %1493 = vst.msk [vmem:[%s247 + $0x10] sm:$0xf] %vm1488, %v1476
        %1494 = vst.msk [vmem:[%s247 + $0x14] sm:$0xf] %vm1488, %v1477
        %1495 = vst.msk [vmem:[%s247 + $0x18] sm:$0xf] %vm1488, %v1478
        %1496 = vst.msk [vmem:[%s247 + $0x1c] sm:$0xf] %vm1488, %v1479
      $region44: #{mixed_4e_forward.11} parent=35 // pred_fallthru
        _
      %p1497 = scmp.lt.s32.totalorder %s20, 0
      %s1498 = scalar_select %p1497, %s20, 0
      %p1499 = scmp.lt.s32.totalorder %s21, 3
      %s1500 = scalar_select %p1499, %s21, 3
      %s1501 = smul.addr %s1500, 8
      %s1502 = smul.addr %s1498, 32
      %s1503 = sadd.s32 %s1501, %s1502
      %s1504 = smul.addr %s1503, 4
      %s1505 = scalar_lea.vmem %s4, %s1504
      // Predicated region
      $region45: #{mixed_4e_forward.11} parent=35 // pred_check
        %p1506 = pneg %p147
      $region46: #{mixed_4e_forward.11} parent=35 // pred_check_branch
        %1508 = sbr.rel (%p1506) target = $region48
      $region47: #{mixed_4e_forward.11} parent=35 // pred_region
        _
      $region48: #{mixed_4e_forward.11} parent=35 // pred_fallthru
        _
    $region36: #{mixed_4e_forward.11} parent=5 // pred_fallthru
      _
    %p1509 = scmp.le.s32.totalorder 2, %s10
    // Predicated region
    $region49: #{mixed_4e_forward.11} parent=5 // pred_check
      %p1510 = pneg %p1509
    $region50: #{mixed_4e_forward.11} parent=5 // pred_check_branch
      %1512 = sbr.rel (%p1510) target = $region52
    $region51: #{mixed_4e_forward.11} parent=5 // pred_region
      %s1513 = ssub.s32 %s10, 2
      // Predicated region
      $region53: #{mixed_4e_forward.11} parent=51 // pred_check
        %p1514 = pneg %p153
      $region54: #{mixed_4e_forward.11} parent=51 // pred_check_branch
        %1516 = sbr.rel (%p1514) target = $region56
      $region55: #{mixed_4e_forward.11} parent=51 // pred_region
        %p1517 = scmp.lt.s32.totalorder %s23, 0
        %s1518 = scalar_select %p1517, %s23, 0
        %p1519 = scmp.lt.s32.totalorder %s24, 3
        %s1520 = scalar_select %p1519, %s24, 3
        %s1521 = smul.addr %s1520, 8
        %s1522 = smul.addr %s1518, 32
        %s1523 = sadd.s32 %s1521, %s1522
        %s1524 = smul.addr %s1523, 4
        %s1525 = scalar_lea.vmem %s4, %s1524
      $region56: #{mixed_4e_forward.11} parent=51 // pred_fallthru
        _
    $region52: #{mixed_4e_forward.11} parent=5 // pred_fallthru
      _
  $region6: #{mixed_4e_forward.11} parent=0 // loop_footer
    %s14 = sadd.s32 1, %s10
  $region7: #{mixed_4e_forward.11} parent=0 // loop_footer_branch
    %9 = sbr.rel target = $region3
  $region8: #{mixed_4e_forward.11} parent=0 // loop_exit
    _

// kernel: mixed_4e_forward.10
$region0: #{mixed_4e_forward.10}
  #allocation0 [shape = 'u32[]', space=smem, size = 0x4, offset = 0x4, fixed_abs, tag = 'smem constant byte address 0x4 - core index']
  #allocation1 [shape = 'u32[144,128]{1,0:T(1,128)}', space=vmem, size = 0x12000, scoped, tag = 'internal scratch']
  #allocation2 [shape = 'f32[64,64]{1,0:T(8,128)}', space=vmem, size = 0x8000, scoped, tag = 'scratch operand']
  %s0 = inlined_call_operand.vmem [shape: bf16[1,6,8,8,64], index: 0, kind: input, shape index: {}]
  %s1 = inlined_call_operand.vmem [shape: bf16[3,64,64], index: 1, kind: input, shape index: {}]
  %s2 = inlined_call_operand.vmem [shape: f32[1,64], index: 2, kind: input, shape index: {}]
  %s3 = inlined_call_operand.vmem [shape: f32[1,64], index: 3, kind: input, shape index: {}]
  %s4 = inlined_call_operand.vmem [shape: bf16[1,4,8,8,64], index: 4, kind: output, shape index: {}]
  %s5 = sld [smem:[#allocation0]]
  $region57: #{mixed_4e_forward.10} parent=0
    _
  %s7 = ssub.s32 1, %s5
  %s8 = scalar_select 0, %s7, %s5
  loop: start=0, step=1, limit=14
  $region2: #{mixed_4e_forward.10} parent=0 // loop_pre_header
    _
  $region3: #{mixed_4e_forward.10} parent=0 // loop_header
    %s10 = sphi 0, %s14
    %p11 = scmp.ge.s32.totalorder %s10, 14
    %s17 = sphi 0, %s36
    %s18 = sphi 0, %s32
    %s19 = sphi 0, %s28
    %s20 = sphi 0, %s17
    %s21 = sphi 0, %s18
    %s22 = sphi 0, %s19
    %s23 = sphi 0, %s20
    %s24 = sphi 0, %s21
    %s25 = sphi 0, %s22
    %s43 = sphi 0, %s45
    %s46 = sphi 0, %s43
    %s47 = sphi 0, %s46
    %s63 = sphi 0, %s47
    %s69 = sphi 0, %s71
    %s72 = sphi 0, %s69
    %s73 = sphi 0, %s72
    %s89 = sphi 0, %s73
    %s93 = sphi 0, %s93
    %s95 = sphi 0, %s93
    %s96 = sphi 0, %s95
    %s110 = sphi 0, %s96
    %s114 = sphi 0, %s114
    %s116 = sphi 0, %s114
    %s117 = sphi 0, %s116
    %s131 = sphi 0, %s117
    %s139 = sphi 0, %s141
    %s142 = sphi 0, %s139
    %s143 = sphi 0, %s142
    %s159 = sphi 0, %s143
  $region4: #{mixed_4e_forward.10} parent=0 // loop_header_branch
    %13 = sbr.rel (%p11) target = $region8
  $region5: #{mixed_4e_forward.10} parent=0 // loop_body
    %s15 = ssub.s32 %s10, 1
    %s16 = ssub.s32 %s10, 2
    %s26 = sadd.s32 1, %s19
    %p27 = scmp.ge.s32.totalorder %s26, 3
    %s28 = scalar_select %p27, 0, %s26
    %s29 = sadd.s32 1, %s18
    %s30 = scalar_select %p27, %s29, %s18
    %p31 = scmp.ge.s32.totalorder %s30, 4
    %s32 = scalar_select %p31, 0, %s30
    %s33 = sadd.s32 1, %s17
    %s34 = scalar_select %p31, %s33, %s17
    %p35 = scmp.ge.s32.totalorder %s34, 1
    %s36 = scalar_select %p35, 0, %s34
    %s37 = sadd.s32 %s18, %s19
    %s38 = sadd.s32 %s32, %s28
    %s39 = ssub.s32 %s17, %s36
    %s40 = ssub.s32 %s37, %s38
    %s41 = sor.u32 %s39, %s40
    %p42 = scmp.eq.s32.totalorder %s41, 0
    %s44 = sadd.s32 %s43, 1
    %s45 = scalar_select %p42, %s43, %s44
    %p48 = pneg %p42
    %p49 = scmp.eq.s32.totalorder %s10, 11
    %p50 = por %p48, %p49
    %p51 = scmp.ne.s32.totalorder %s43, %s46
    %p52 = scmp.eq.s32.totalorder %s10, 0
    %p53 = por %p51, %p52
    %p54 = scmp.ne.s32.totalorder %s43, %s46
    %p55 = scmp.eq.s32.totalorder %s15, 11
    %p56 = por %p54, %p55
    %p57 = scmp.ne.s32.totalorder %s46, %s47
    %p58 = scmp.eq.s32.totalorder %s15, 0
    %p59 = por %p57, %p58
    %p60 = scmp.ne.s32.totalorder %s46, %s47
    %p61 = scmp.eq.s32.totalorder %s16, 11
    %p62 = por %p60, %p61
    %p64 = scmp.ne.s32.totalorder %s47, %s63
    %p65 = scmp.eq.s32.totalorder %s16, 0
    %p66 = por %p64, %p65
    %s67 = ssub.s32 %s19, %s28
    %p68 = scmp.eq.s32.totalorder %s67, 0
    %s70 = sadd.s32 %s69, 1
    %s71 = scalar_select %p68, %s69, %s70
    %p74 = pneg %p68
    %p75 = scmp.eq.s32.totalorder %s10, 11
    %p76 = por %p74, %p75
    %p77 = scmp.ne.s32.totalorder %s69, %s72
    %p78 = scmp.eq.s32.totalorder %s10, 0
    %p79 = por %p77, %p78
    %p80 = scmp.ne.s32.totalorder %s69, %s72
    %p81 = scmp.eq.s32.totalorder %s15, 11
    %p82 = por %p80, %p81
    %p83 = scmp.ne.s32.totalorder %s72, %s73
    %p84 = scmp.eq.s32.totalorder %s15, 0
    %p85 = por %p83, %p84
    %p86 = scmp.ne.s32.totalorder %s72, %s73
    %p87 = scmp.eq.s32.totalorder %s16, 11
    %p88 = por %p86, %p87
    %p90 = scmp.ne.s32.totalorder %s73, %s89
    %p91 = scmp.eq.s32.totalorder %s16, 0
    %p92 = por %p90, %p91
    %s94 = sadd.s32 %s93, 1
    %p97 = scmp.eq.s32.totalorder %s10, 11
    %p98 = scmp.ne.s32.totalorder %s93, %s95
    %p99 = scmp.eq.s32.totalorder %s10, 0
    %p100 = por %p98, %p99
    %p101 = scmp.ne.s32.totalorder %s93, %s95
    %p102 = scmp.eq.s32.totalorder %s15, 11
    %p103 = por %p101, %p102
    %p104 = scmp.ne.s32.totalorder %s95, %s96
    %p105 = scmp.eq.s32.totalorder %s15, 0
    %p106 = por %p104, %p105
    %p107 = scmp.ne.s32.totalorder %s95, %s96
    %p108 = scmp.eq.s32.totalorder %s16, 11
    %p109 = por %p107, %p108
    %p111 = scmp.ne.s32.totalorder %s96, %s110
    %p112 = scmp.eq.s32.totalorder %s16, 0
    %p113 = por %p111, %p112
    %s115 = sadd.s32 %s114, 1
    %p118 = scmp.eq.s32.totalorder %s10, 11
    %p119 = scmp.ne.s32.totalorder %s114, %s116
    %p120 = scmp.eq.s32.totalorder %s10, 0
    %p121 = por %p119, %p120
    %p122 = scmp.ne.s32.totalorder %s114, %s116
    %p123 = scmp.eq.s32.totalorder %s15, 11
    %p124 = por %p122, %p123
    %p125 = scmp.ne.s32.totalorder %s116, %s117
    %p126 = scmp.eq.s32.totalorder %s15, 0
    %p127 = por %p125, %p126
    %p128 = scmp.ne.s32.totalorder %s116, %s117
    %p129 = scmp.eq.s32.totalorder %s16, 11
    %p130 = por %p128, %p129
    %p132 = scmp.ne.s32.totalorder %s117, %s131
    %p133 = scmp.eq.s32.totalorder %s16, 0
    %p134 = por %p132, %p133
    %s135 = ssub.s32 %s17, %s36
    %s136 = ssub.s32 %s18, %s32
    %s137 = sor.u32 %s135, %s136
    %p138 = scmp.eq.s32.totalorder %s137, 0
    %s140 = sadd.s32 %s139, 1
    %s141 = scalar_select %p138, %s139, %s140
    %p144 = pneg %p138
    %p145 = scmp.eq.s32.totalorder %s10, 11
    %p146 = por %p144, %p145
    %p147 = scmp.ne.s32.totalorder %s139, %s142
    %p148 = scmp.eq.s32.totalorder %s10, 0
    %p149 = por %p147, %p148
    %p150 = scmp.ne.s32.totalorder %s139, %s142
    %p151 = scmp.eq.s32.totalorder %s15, 11
    %p152 = por %p150, %p151
    %p153 = scmp.ne.s32.totalorder %s142, %s143
    %p154 = scmp.eq.s32.totalorder %s15, 0
    %p155 = por %p153, %p154
    %p156 = scmp.ne.s32.totalorder %s142, %s143
    %p157 = scmp.eq.s32.totalorder %s16, 11
    %p158 = por %p156, %p157
    %p160 = scmp.ne.s32.totalorder %s143, %s159
    %p161 = scmp.eq.s32.totalorder %s16, 0
    %p162 = por %p160, %p161
    %p163 = scmp.le.s32.totalorder 1, %s10
    %p164 = scmp.lt.s32.totalorder %s10, 13
    %p165 = pnand %p163, %p164
    %p166 = pneg %p165
    // Predicated region
    $region9: #{mixed_4e_forward.10} parent=5 // pred_check
      _
    $region10: #{mixed_4e_forward.10} parent=5 // pred_check_branch
      %168 = sbr.rel (%p165) target = $region12
    $region11: #{mixed_4e_forward.10} parent=5 // pred_region
      %s169 = ssub.s32 %s10, 1
      // Predicated region
      $region13: #{mixed_4e_forward.10} parent=11 // pred_check
        %p170 = pneg %p106
      $region14: #{mixed_4e_forward.10} parent=11 // pred_check_branch
        %172 = sbr.rel (%p170) target = $region16
      $region15: #{mixed_4e_forward.10} parent=11 // pred_region
        _
      $region16: #{mixed_4e_forward.10} parent=11 // pred_fallthru
        _
      // Predicated region
      $region17: #{mixed_4e_forward.10} parent=11 // pred_check
        %p173 = pneg %p127
      $region18: #{mixed_4e_forward.10} parent=11 // pred_check_branch
        %175 = sbr.rel (%p173) target = $region20
      $region19: #{mixed_4e_forward.10} parent=11 // pred_region
        _
      $region20: #{mixed_4e_forward.10} parent=11 // pred_fallthru
        _
    $region12: #{mixed_4e_forward.10} parent=5 // pred_fallthru
      _
    %p176 = scmp.lt.s32.totalorder %s10, 12
    // Predicated region
    $region21: #{mixed_4e_forward.10} parent=5 // pred_check
      %p177 = pneg %p176
    $region22: #{mixed_4e_forward.10} parent=5 // pred_check_branch
      %179 = sbr.rel (%p177) target = $region24
    $region23: #{mixed_4e_forward.10} parent=5 // pred_region
      // Predicated region
      $region25: #{mixed_4e_forward.10} parent=23 // pred_check
        %p180 = pneg %p53
      $region26: #{mixed_4e_forward.10} parent=23 // pred_check_branch
        %182 = sbr.rel (%p180) target = $region28
      $region27: #{mixed_4e_forward.10} parent=23 // pred_region
        %s183 = sadd.s32 %s18, %s19
        %p184 = scmp.lt.s32.totalorder %s17, 0
        %s185 = scalar_select %p184, %s17, 0
        %p186 = scmp.lt.s32.totalorder %s183, 5
        %s187 = scalar_select %p186, %s183, 5
        %s188 = smul.addr %s187, 8
        %s189 = smul.addr %s185, 48
        %s190 = sadd.s32 %s188, %s189
        %s191 = smul.addr %s190, 4
        %s192 = scalar_lea.vmem %s0, %s191
        %s193 = sadd.s32 %s18, %s19
      $region28: #{mixed_4e_forward.10} parent=23 // pred_fallthru
        _
      // Predicated region
      $region29: #{mixed_4e_forward.10} parent=23 // pred_check
        %p194 = pneg %p79
      $region30: #{mixed_4e_forward.10} parent=23 // pred_check_branch
        %196 = sbr.rel (%p194) target = $region32
      $region31: #{mixed_4e_forward.10} parent=23 // pred_region
        %p197 = scmp.lt.s32.totalorder %s19, 2
        %s198 = scalar_select %p197, %s19, 2
        %s199 = smul.addr %s198, 8
        %s200 = smul.addr %s199, 4
        %s201 = scalar_lea.vmem %s1, %s200
      $region32: #{mixed_4e_forward.10} parent=23 // pred_fallthru
        _
    $region24: #{mixed_4e_forward.10} parent=5 // pred_fallthru
      _
    %p202 = scmp.le.s32.totalorder 1, %s10
    %p203 = scmp.lt.s32.totalorder %s10, 13
    %p204 = pnand %p202, %p203
    %p205 = pneg %p204
    // Predicated region
    $region33: #{mixed_4e_forward.10} parent=5 // pred_check
      _
    $region34: #{mixed_4e_forward.10} parent=5 // pred_check_branch
      %207 = sbr.rel (%p204) target = $region36
    $region35: #{mixed_4e_forward.10} parent=5 // pred_region
      %s208 = ssub.s32 %s10, 1
      %s209 = sadd.s32 %s21, %s22
      %p210 = scmp.lt.s32.totalorder %s20, 0
      %s211 = scalar_select %p210, %s20, 0
      %p212 = scmp.lt.s32.totalorder %s209, 5
      %s213 = scalar_select %p212, %s209, 5
      %s214 = smul.addr %s213, 8
      %s215 = smul.addr %s211, 48
      %s216 = sadd.s32 %s214, %s215
      %s217 = smul.addr %s216, 4
      %s218 = scalar_lea.vmem %s0, %s217
      %p219 = pneg %p59
      %p220 = pneg %p56
      %p221 = scmp.lt.s32.totalorder %s22, 2
      %s222 = scalar_select %p221, %s22, 2
      %s223 = smul.addr %s222, 8
      %s224 = smul.addr %s223, 4
      %s225 = scalar_lea.vmem %s1, %s224
      %p226 = pneg %p85
      %p227 = pneg %p82
      %p228 = pneg %p106
      %p229 = pneg %p103
      %p230 = pneg %p127
      %p231 = pneg %p124
      %p232 = pneg %p155
      %p233 = pneg %p152
      %p234 = scmp.lt.s32.totalorder %s20, 0
      %s235 = scalar_select %p234, %s20, 0
      %p236 = scmp.lt.s32.totalorder %s21, 3
      %s237 = scalar_select %p236, %s21, 3
      %s238 = smul.addr %s237, 8
      %s239 = smul.addr %s235, 32
      %s240 = sadd.s32 %s238, %s239
      %s241 = smul.addr %s240, 4
      %s242 = scalar_lea.vmem %s4, %s241
      %s243 = sadd.s32 %s21, %s22
      %p244 = scmp.lt.s32.totalorder %s20, 0
      %s245 = scalar_select %p244, %s20, 0
      %p246 = scmp.lt.s32.totalorder %s243, 5
      %s247 = scalar_select %p246, %s243, 5
      %s248 = smul.addr %s247, 8
      %s249 = smul.addr %s245, 48
      %s250 = sadd.s32 %s248, %s249
      %s251 = smul.addr %s250, 4
      %s252 = scalar_lea.vmem %s0, %s251
      %s253 = sadd.s32 %s21, %s22
      %p254 = scmp.lt.s32.totalorder %s22, 2
      %s255 = scalar_select %p254, %s22, 2
      %s256 = smul.addr %s255, 8
      %s257 = smul.addr %s256, 4
      %s258 = scalar_lea.vmem %s1, %s257
      %p259 = scmp.lt.s32.totalorder %s20, 0
      %s260 = scalar_select %p259, %s20, 0
      %p261 = scmp.lt.s32.totalorder %s21, 3
      %s262 = scalar_select %p261, %s21, 3
      %s263 = smul.addr %s262, 8
      %s264 = smul.addr %s260, 32
      %s265 = sadd.s32 %s263, %s264
      %s266 = smul.addr %s265, 4
      %s267 = scalar_lea.vmem %s4, %s266
      %p269 = scmp.eq.s32.totalorder %s22, 0
      // Predicated region
      $region37: #{mixed_4e_forward.10} parent=35 // pred_check
        %p270 = pneg %p269
      $region38: #{mixed_4e_forward.10} parent=35 // pred_check_branch
        %272 = sbr.rel (%p270) target = $region40
      $region39: #{mixed_4e_forward.10} parent=35 // pred_region
        %vm273 = vcmask 523264
        %274 = vst.msk [vmem:[#allocation2] sm:$0xff] %vm273, 0.0
        %275 = vst.msk [vmem:[#allocation2 + $0x8] sm:$0xff] %vm273, 0.0
        %276 = vst.msk [vmem:[#allocation2 + $0x10] sm:$0xff] %vm273, 0.0
        %277 = vst.msk [vmem:[#allocation2 + $0x18] sm:$0xff] %vm273, 0.0
        %278 = vst.msk [vmem:[#allocation2 + $0x20] sm:$0xff] %vm273, 0.0
        %279 = vst.msk [vmem:[#allocation2 + $0x28] sm:$0xff] %vm273, 0.0
        %280 = vst.msk [vmem:[#allocation2 + $0x30] sm:$0xff] %vm273, 0.0
        %281 = vst.msk [vmem:[#allocation2 + $0x38] sm:$0xff] %vm273, 0.0
      $region40: #{mixed_4e_forward.10} parent=35 // pred_fallthru
        _
      %v282 = vld [vmem:[%s252] sm:$0xf]
      %v283 = vld [vmem:[%s252 + $0x4] sm:$0xf]
      %v284 = vld [vmem:[%s252 + $0x8] sm:$0xf]
      %v285 = vld [vmem:[%s252 + $0xc] sm:$0xf]
      %v286 = vld [vmem:[%s252 + $0x10] sm:$0xf]
      %v287 = vld [vmem:[%s252 + $0x14] sm:$0xf]
      %v288 = vld [vmem:[%s252 + $0x18] sm:$0xf]
      %v289 = vld [vmem:[%s252 + $0x1c] sm:$0xf]
      %v290 = vld [vmem:[#allocation2] sm:$0xff]
      %v291 = vld [vmem:[#allocation2 + $0x8] sm:$0xff]
      %v292 = vld [vmem:[#allocation2 + $0x10] sm:$0xff]
      %v293 = vld [vmem:[#allocation2 + $0x18] sm:$0xff]
      %v294 = vld [vmem:[#allocation2 + $0x20] sm:$0xff]
      %v295 = vld [vmem:[#allocation2 + $0x28] sm:$0xff]
      %v296 = vld [vmem:[#allocation2 + $0x30] sm:$0xff]
      %v297 = vld [vmem:[#allocation2 + $0x38] sm:$0xff]
      %v298 = vld [vmem:[%s258] sm:$0xf]
      %v299 = vld [vmem:[%s258 + $0x4] sm:$0xf]
      %v300 = vld [vmem:[%s258 + $0x8] sm:$0xf]
      %v301 = vld [vmem:[%s258 + $0xc] sm:$0xf]
      %v302 = vld [vmem:[%s258 + $0x10] sm:$0xf]
      %v303 = vld [vmem:[%s258 + $0x14] sm:$0xf]
      %v304 = vld [vmem:[%s258 + $0x18] sm:$0xf]
      %v305 = vld [vmem:[%s258 + $0x1c] sm:$0xf]
      %v314 = vunpack.c.l.b16 %v282
      %v315 = vunpack.c.l.b16 %v283
      %v316 = vunpack.c.l.b16 %v284
      %v317 = vunpack.c.l.b16 %v285
      %v318 = vunpack.c.l.b16 %v286
      %v319 = vunpack.c.l.b16 %v287
      %v320 = vunpack.c.l.b16 %v288
      %v321 = vunpack.c.l.b16 %v289
      %v322 = vpack.c.b16 %v315, %v314
      %v323 = vpack.c.b16 %v317, %v316
      %v324 = vpack.c.b16 %v319, %v318
      %v325 = vpack.c.b16 %v321, %v320
      %v334 = vunpack.c.l.b16 %v298
      %v335 = vunpack.c.l.b16 %v299
      %v336 = vunpack.c.l.b16 %v300
      %v337 = vunpack.c.l.b16 %v301
      %v338 = vunpack.c.l.b16 %v302
      %v339 = vunpack.c.l.b16 %v303
      %v340 = vunpack.c.l.b16 %v304
      %v341 = vunpack.c.l.b16 %v305
      %v342 = vpack.c.b16 %v335, %v334
      %v343 = vpack.c.b16 %v337, %v336
      %v344 = vpack.c.b16 %v339, %v338
      %v345 = vpack.c.b16 %v341, %v340
      %vm350 = vcmask 523264
      %v352 = vsel %vm350, %v322, 0
      %v355 = vsel %vm350, %v323, 0
      %v358 = vsel %vm350, %v324, 0
      %v361 = vsel %vm350, %v325, 0
      %363 = vmatprep.subr.bf16.mxu0 0
      %364 = vmatpush1.bf16.msra.mxu0 0
      %365 = vmatprep.subr.bf16.mxu0 0
      %366 = vmatpush1.bf16.msra.mxu0 0
      %367 = vmatprep.subr.bf16.mxu0 0
      %368 = vmatpush1.bf16.msra.mxu0 0
      %369 = vmatprep.subr.bf16.mxu0 0
      %370 = vmatpush1.bf16.msra.mxu0 0
      %371 = vmatprep.subr.bf16.mxu0 0
      %372 = vmatpush1.bf16.msra.mxu0 %v345
      %373 = vmatprep.subr.bf16.mxu0 0
      %374 = vmatpush1.bf16.msra.mxu0 %v344
      %375 = vmatprep.subr.bf16.mxu0 0
      %376 = vmatpush1.bf16.msra.mxu0 %v343
      %377 = vmatprep.subr.bf16.mxu0 0
      %378 = vmatpush1.bf16.msra.mxu0 %v342
      %379 = vmatprep.subr.bf16.mxu0 0
      %380 = vmatpush2.bf16.msra.mxu0 0
      %381 = vmatprep.subr.bf16.mxu0 0
      %382 = vmatpush2.bf16.msra.mxu0 0
      %383 = vmatprep.subr.bf16.mxu0 0
      %384 = vmatpush2.bf16.msra.mxu0 0
      %385 = vmatprep.subr.bf16.mxu0 0
      %386 = vmatpush2.bf16.msra.mxu0 0
      %387 = vmatprep.subr.bf16.mxu0 0
      %388 = vmatpush2.bf16.msra.mxu0 0
      %389 = vmatprep.subr.bf16.mxu0 0
      %390 = vmatpush2.bf16.msra.mxu0 0
      %391 = vmatprep.subr.bf16.mxu0 0
      %392 = vmatpush2.bf16.msra.mxu0 0
      %393 = vmatprep.subr.bf16.mxu0 0
      %394 = vmatpush2.bf16.msra.mxu0 0
      %395 = vmatprep.mubr.bf16.mxu0 0
      %396 = vmatmul.mubr.bf16.gmra.mxu0 %v352
      %v397 = vpop.f32.mrf.mxu0
      %v398 = vadd.f32 0.0, %v397
      %v399 = vpop.f32.mrf.mxu0
      %v400 = vpop.f32.mrf.mxu0
      %v401 = vadd.f32 0.0, %v400
      %v402 = vpop.f32.mrf.mxu0
      %403 = vmatprep.mubr.bf16.mxu0 0
      %404 = vmatmul.mubr.bf16.gmra.mxu0 %v355
      %v405 = vpop.f32.mrf.mxu0
      %v406 = vadd.f32 0.0, %v405
      %v407 = vpop.f32.mrf.mxu0
      %v408 = vpop.f32.mrf.mxu0
      %v409 = vadd.f32 0.0, %v408
      %v410 = vpop.f32.mrf.mxu0
      %411 = vmatprep.mubr.bf16.mxu0 0
      %412 = vmatmul.mubr.bf16.gmra.mxu0 %v358
      %v413 = vpop.f32.mrf.mxu0
      %v414 = vadd.f32 0.0, %v413
      %v415 = vpop.f32.mrf.mxu0
      %v416 = vpop.f32.mrf.mxu0
      %v417 = vadd.f32 0.0, %v416
      %v418 = vpop.f32.mrf.mxu0
      %419 = vmatprep.mubr.bf16.mxu0 0
      %420 = vmatmul.mubr.bf16.gmra.mxu0 %v361
      %v421 = vpop.f32.mrf.mxu0
      %v422 = vadd.f32 0.0, %v421
      %v423 = vpop.f32.mrf.mxu0
      %v424 = vpop.f32.mrf.mxu0
      %v425 = vadd.f32 0.0, %v424
      %v426 = vpop.f32.mrf.mxu0
      %427 = vdwg.mxu0
      %v428 = vadd.f32 %v290, %v398
      %v429 = vadd.f32 %v291, %v401
      %v430 = vadd.f32 %v292, %v406
      %v431 = vadd.f32 %v293, %v409
      %v432 = vadd.f32 %v294, %v414
      %v433 = vadd.f32 %v295, %v417
      %v434 = vadd.f32 %v296, %v422
      %v435 = vadd.f32 %v297, %v425
      %436 = vst.msk [vmem:[#allocation2] sm:$0xff] %vm350, %v428
      %437 = vst.msk [vmem:[#allocation2 + $0x8] sm:$0xff] %vm350, %v429
      %438 = vst.msk [vmem:[#allocation2 + $0x10] sm:$0xff] %vm350, %v430
      %439 = vst.msk [vmem:[#allocation2 + $0x18] sm:$0xff] %vm350, %v431
      %440 = vst.msk [vmem:[#allocation2 + $0x20] sm:$0xff] %vm350, %v432
      %441 = vst.msk [vmem:[#allocation2 + $0x28] sm:$0xff] %vm350, %v433
      %442 = vst.msk [vmem:[#allocation2 + $0x30] sm:$0xff] %vm350, %v434
      %443 = vst.msk [vmem:[#allocation2 + $0x38] sm:$0xff] %vm350, %v435
      %p444 = scmp.eq.s32.totalorder %s22, 2
      // Predicated region
      $region41: #{mixed_4e_forward.10} parent=35 // pred_check
        %p445 = pneg %p444
      $region42: #{mixed_4e_forward.10} parent=35 // pred_check_branch
        %447 = sbr.rel (%p445) target = $region44
      $region43: #{mixed_4e_forward.10} parent=35 // pred_region
        %v448 = vld [vmem:[#allocation2] sm:$0xff]
        %v449 = vld [vmem:[#allocation2 + $0x8] sm:$0xff]
        %v450 = vld [vmem:[#allocation2 + $0x10] sm:$0xff]
        %v451 = vld [vmem:[#allocation2 + $0x18] sm:$0xff]
        %v452 = vld [vmem:[#allocation2 + $0x20] sm:$0xff]
        %v453 = vld [vmem:[#allocation2 + $0x28] sm:$0xff]
        %v454 = vld [vmem:[#allocation2 + $0x30] sm:$0xff]
        %v455 = vld [vmem:[#allocation2 + $0x38] sm:$0xff]
        %v456 = vld [vmem:[%s2] sm:$0x1]
        %v458 = vlaneseq
        %v459 = vshrl.u32 %v458, 7
        %v460 = vsub.s32 0, %v459
        %v461 = vrot.slane %v456, %v460
        %v463 = vmul.f32 %v448, %v461
        %v464 = vmul.f32 %v449, %v461
        %v465 = vmul.f32 %v450, %v461
        %v466 = vmul.f32 %v451, %v461
        %v467 = vmul.f32 %v452, %v461
        %v468 = vmul.f32 %v453, %v461
        %v469 = vmul.f32 %v454, %v461
        %v470 = vmul.f32 %v455, %v461
        %v471 = vld [vmem:[%s3] sm:$0x1]
        %v473 = vlaneseq
        %v474 = vshrl.u32 %v473, 7
        %v475 = vsub.s32 0, %v474
        %v476 = vrot.slane %v471, %v475
        %v478 = vadd.f32 %v463, %v476
        %v479 = vadd.f32 %v464, %v476
        %v480 = vadd.f32 %v465, %v476
        %v481 = vadd.f32 %v466, %v476
        %v482 = vadd.f32 %v467, %v476
        %v483 = vadd.f32 %v468, %v476
        %v484 = vadd.f32 %v469, %v476
        %v485 = vadd.f32 %v470, %v476
        %v486 = vmax.f32 %v478, 0.0
        %v487 = vmax.f32 %v479, 0.0
        %v488 = vmax.f32 %v480, 0.0
        %v489 = vmax.f32 %v481, 0.0
        %v490 = vmax.f32 %v482, 0.0
        %v491 = vmax.f32 %v483, 0.0
        %v492 = vmax.f32 %v484, 0.0
        %v493 = vmax.f32 %v485, 0.0
        %v494 = vpack.c.bf16 %v487, %v486
        %v495 = vpack.c.bf16 %v489, %v488
        %v496 = vpack.c.bf16 %v491, %v490
        %v497 = vpack.c.bf16 %v493, %v492
        %v502 = vunpack.c.l.b16 %v494
        %v503 = vunpack.c.h.b16 %v494
        %v504 = vunpack.c.l.b16 %v495
        %v505 = vunpack.c.h.b16 %v495
        %v506 = vunpack.c.l.b16 %v496
        %v507 = vunpack.c.h.b16 %v496
        %v508 = vunpack.c.l.b16 %v497
        %v509 = vunpack.c.h.b16 %v497
        %v510 = vpack.c.b16 %v502, %v502
        %v511 = vpack.c.b16 %v503, %v503
        %v512 = vpack.c.b16 %v504, %v504
        %v513 = vpack.c.b16 %v505, %v505
        %v514 = vpack.c.b16 %v506, %v506
        %v515 = vpack.c.b16 %v507, %v507
        %v516 = vpack.c.b16 %v508, %v508
        %v517 = vpack.c.b16 %v509, %v509
        %vm526 = vcmask 519168
        %527 = vst.msk [vmem:[%s267] sm:$0xf] %vm526, %v510
        %528 = vst.msk [vmem:[%s267 + $0x4] sm:$0xf] %vm526, %v511
        %529 = vst.msk [vmem:[%s267 + $0x8] sm:$0xf] %vm526, %v512
        %530 = vst.msk [vmem:[%s267 + $0xc] sm:$0xf] %vm526, %v513
        %531 = vst.msk [vmem:[%s267 + $0x10] sm:$0xf] %vm526, %v514
        %532 = vst.msk [vmem:[%s267 + $0x14] sm:$0xf] %vm526, %v515
        %533 = vst.msk [vmem:[%s267 + $0x18] sm:$0xf] %vm526, %v516
        %534 = vst.msk [vmem:[%s267 + $0x1c] sm:$0xf] %vm526, %v517
      $region44: #{mixed_4e_forward.10} parent=35 // pred_fallthru
        _
      %p535 = scmp.lt.s32.totalorder %s20, 0
      %s536 = scalar_select %p535, %s20, 0
      %p537 = scmp.lt.s32.totalorder %s21, 3
      %s538 = scalar_select %p537, %s21, 3
      %s539 = smul.addr %s538, 8
      %s540 = smul.addr %s536, 32
      %s541 = sadd.s32 %s539, %s540
      %s542 = smul.addr %s541, 4
      %s543 = scalar_lea.vmem %s4, %s542
      // Predicated region
      $region45: #{mixed_4e_forward.10} parent=35 // pred_check
        %p544 = pneg %p152
      $region46: #{mixed_4e_forward.10} parent=35 // pred_check_branch
        %546 = sbr.rel (%p544) target = $region48
      $region47: #{mixed_4e_forward.10} parent=35 // pred_region
        _
      $region48: #{mixed_4e_forward.10} parent=35 // pred_fallthru
        _
    $region36: #{mixed_4e_forward.10} parent=5 // pred_fallthru
      _
    %p547 = scmp.le.s32.totalorder 2, %s10
    // Predicated region
    $region49: #{mixed_4e_forward.10} parent=5 // pred_check
      %p548 = pneg %p547
    $region50: #{mixed_4e_forward.10} parent=5 // pred_check_branch
      %550 = sbr.rel (%p548) target = $region52
    $region51: #{mixed_4e_forward.10} parent=5 // pred_region
      %s551 = ssub.s32 %s10, 2
      // Predicated region
      $region53: #{mixed_4e_forward.10} parent=51 // pred_check
        %p552 = pneg %p158
      $region54: #{mixed_4e_forward.10} parent=51 // pred_check_branch
        %554 = sbr.rel (%p552) target = $region56
      $region55: #{mixed_4e_forward.10} parent=51 // pred_region
        %p555 = scmp.lt.s32.totalorder %s23, 0
        %s556 = scalar_select %p555, %s23, 0
        %p557 = scmp.lt.s32.totalorder %s24, 3
        %s558 = scalar_select %p557, %s24, 3
        %s559 = smul.addr %s558, 8
        %s560 = smul.addr %s556, 32
        %s561 = sadd.s32 %s559, %s560
        %s562 = smul.addr %s561, 4
        %s563 = scalar_lea.vmem %s4, %s562
      $region56: #{mixed_4e_forward.10} parent=51 // pred_fallthru
        _
    $region52: #{mixed_4e_forward.10} parent=5 // pred_fallthru
      _
  $region6: #{mixed_4e_forward.10} parent=0 // loop_footer
    %s14 = sadd.s32 1, %s10
  $region7: #{mixed_4e_forward.10} parent=0 // loop_footer_branch
    %9 = sbr.rel target = $region3
  $region8: #{mixed_4e_forward.10} parent=0 // loop_exit
    _

// kernel: mixed_4e_forward.9
$region0: #{mixed_4e_forward.9}
  #allocation0 [shape = 'u32[]', space=smem, size = 0x4, offset = 0x4, fixed_abs, tag = 'smem constant byte address 0x4 - core index']
  #allocation1 [shape = 'u32[144,128]{1,0:T(1,128)}', space=vmem, size = 0x12000, scoped, tag = 'internal scratch']
  %s0 = inlined_call_operand.vmem [shape: bf16[1,4,10,10,32], index: 0, kind: input, shape index: {}]
  %s1 = inlined_call_operand.vmem [shape: bf16[9,32,64], index: 1, kind: input, shape index: {}]
  %s2 = inlined_call_operand.vmem [shape: f32[1,64], index: 2, kind: input, shape index: {}]
  %s3 = inlined_call_operand.vmem [shape: f32[1,64], index: 3, kind: input, shape index: {}]
  %s4 = inlined_call_operand.vmem [shape: bf16[1,4,8,8,64], index: 4, kind: output, shape index: {}]
  %s5 = sld [smem:[#allocation0]]
  $region49: #{mixed_4e_forward.9} parent=0
    _
  %s7 = ssub.s32 1, %s5
  %s8 = scalar_select 0, %s7, %s5
  loop: start=0, step=1, limit=6
  $region2: #{mixed_4e_forward.9} parent=0 // loop_pre_header
    _
  $region3: #{mixed_4e_forward.9} parent=0 // loop_header
    %s10 = sphi 0, %s14
    %p11 = scmp.ge.s32.totalorder %s10, 6
    %s17 = sphi 0, %s29
    %s18 = sphi 0, %s25
    %s19 = sphi 0, %s17
    %s20 = sphi 0, %s18
    %s21 = sphi 0, %s19
    %s22 = sphi 0, %s20
    %s34 = sphi 0, %s36
    %s37 = sphi 0, %s34
    %s38 = sphi 0, %s37
    %s54 = sphi 0, %s38
    %s58 = sphi 0, %s58
    %s60 = sphi 0, %s58
    %s61 = sphi 0, %s60
    %s75 = sphi 0, %s61
    %s79 = sphi 0, %s79
    %s81 = sphi 0, %s79
    %s82 = sphi 0, %s81
    %s96 = sphi 0, %s82
    %s100 = sphi 0, %s100
    %s102 = sphi 0, %s100
    %s103 = sphi 0, %s102
    %s117 = sphi 0, %s103
    %s125 = sphi 0, %s127
    %s128 = sphi 0, %s125
    %s129 = sphi 0, %s128
    %s145 = sphi 0, %s129
  $region4: #{mixed_4e_forward.9} parent=0 // loop_header_branch
    %13 = sbr.rel (%p11) target = $region8
  $region5: #{mixed_4e_forward.9} parent=0 // loop_body
    %s15 = ssub.s32 %s10, 1
    %s16 = ssub.s32 %s10, 2
    %s23 = sadd.s32 1, %s18
    %p24 = scmp.ge.s32.totalorder %s23, 4
    %s25 = scalar_select %p24, 0, %s23
    %s26 = sadd.s32 1, %s17
    %s27 = scalar_select %p24, %s26, %s17
    %p28 = scmp.ge.s32.totalorder %s27, 1
    %s29 = scalar_select %p28, 0, %s27
    %s30 = ssub.s32 %s17, %s29
    %s31 = ssub.s32 %s18, %s25
    %s32 = sor.u32 %s30, %s31
    %p33 = scmp.eq.s32.totalorder %s32, 0
    %s35 = sadd.s32 %s34, 1
    %s36 = scalar_select %p33, %s34, %s35
    %p39 = pneg %p33
    %p40 = scmp.eq.s32.totalorder %s10, 3
    %p41 = por %p39, %p40
    %p42 = scmp.ne.s32.totalorder %s34, %s37
    %p43 = scmp.eq.s32.totalorder %s10, 0
    %p44 = por %p42, %p43
    %p45 = scmp.ne.s32.totalorder %s34, %s37
    %p46 = scmp.eq.s32.totalorder %s15, 3
    %p47 = por %p45, %p46
    %p48 = scmp.ne.s32.totalorder %s37, %s38
    %p49 = scmp.eq.s32.totalorder %s15, 0
    %p50 = por %p48, %p49
    %p51 = scmp.ne.s32.totalorder %s37, %s38
    %p52 = scmp.eq.s32.totalorder %s16, 3
    %p53 = por %p51, %p52
    %p55 = scmp.ne.s32.totalorder %s38, %s54
    %p56 = scmp.eq.s32.totalorder %s16, 0
    %p57 = por %p55, %p56
    %s59 = sadd.s32 %s58, 1
    %p62 = scmp.eq.s32.totalorder %s10, 3
    %p63 = scmp.ne.s32.totalorder %s58, %s60
    %p64 = scmp.eq.s32.totalorder %s10, 0
    %p65 = por %p63, %p64
    %p66 = scmp.ne.s32.totalorder %s58, %s60
    %p67 = scmp.eq.s32.totalorder %s15, 3
    %p68 = por %p66, %p67
    %p69 = scmp.ne.s32.totalorder %s60, %s61
    %p70 = scmp.eq.s32.totalorder %s15, 0
    %p71 = por %p69, %p70
    %p72 = scmp.ne.s32.totalorder %s60, %s61
    %p73 = scmp.eq.s32.totalorder %s16, 3
    %p74 = por %p72, %p73
    %p76 = scmp.ne.s32.totalorder %s61, %s75
    %p77 = scmp.eq.s32.totalorder %s16, 0
    %p78 = por %p76, %p77
    %s80 = sadd.s32 %s79, 1
    %p83 = scmp.eq.s32.totalorder %s10, 3
    %p84 = scmp.ne.s32.totalorder %s79, %s81
    %p85 = scmp.eq.s32.totalorder %s10, 0
    %p86 = por %p84, %p85
    %p87 = scmp.ne.s32.totalorder %s79, %s81
    %p88 = scmp.eq.s32.totalorder %s15, 3
    %p89 = por %p87, %p88
    %p90 = scmp.ne.s32.totalorder %s81, %s82
    %p91 = scmp.eq.s32.totalorder %s15, 0
    %p92 = por %p90, %p91
    %p93 = scmp.ne.s32.totalorder %s81, %s82
    %p94 = scmp.eq.s32.totalorder %s16, 3
    %p95 = por %p93, %p94
    %p97 = scmp.ne.s32.totalorder %s82, %s96
    %p98 = scmp.eq.s32.totalorder %s16, 0
    %p99 = por %p97, %p98
    %s101 = sadd.s32 %s100, 1
    %p104 = scmp.eq.s32.totalorder %s10, 3
    %p105 = scmp.ne.s32.totalorder %s100, %s102
    %p106 = scmp.eq.s32.totalorder %s10, 0
    %p107 = por %p105, %p106
    %p108 = scmp.ne.s32.totalorder %s100, %s102
    %p109 = scmp.eq.s32.totalorder %s15, 3
    %p110 = por %p108, %p109
    %p111 = scmp.ne.s32.totalorder %s102, %s103
    %p112 = scmp.eq.s32.totalorder %s15, 0
    %p113 = por %p111, %p112
    %p114 = scmp.ne.s32.totalorder %s102, %s103
    %p115 = scmp.eq.s32.totalorder %s16, 3
    %p116 = por %p114, %p115
    %p118 = scmp.ne.s32.totalorder %s103, %s117
    %p119 = scmp.eq.s32.totalorder %s16, 0
    %p120 = por %p118, %p119
    %s121 = ssub.s32 %s17, %s29
    %s122 = ssub.s32 %s18, %s25
    %s123 = sor.u32 %s121, %s122
    %p124 = scmp.eq.s32.totalorder %s123, 0
    %s126 = sadd.s32 %s125, 1
    %s127 = scalar_select %p124, %s125, %s126
    %p130 = pneg %p124
    %p131 = scmp.eq.s32.totalorder %s10, 3
    %p132 = por %p130, %p131
    %p133 = scmp.ne.s32.totalorder %s125, %s128
    %p134 = scmp.eq.s32.totalorder %s10, 0
    %p135 = por %p133, %p134
    %p136 = scmp.ne.s32.totalorder %s125, %s128
    %p137 = scmp.eq.s32.totalorder %s15, 3
    %p138 = por %p136, %p137
    %p139 = scmp.ne.s32.totalorder %s128, %s129
    %p140 = scmp.eq.s32.totalorder %s15, 0
    %p141 = por %p139, %p140
    %p142 = scmp.ne.s32.totalorder %s128, %s129
    %p143 = scmp.eq.s32.totalorder %s16, 3
    %p144 = por %p142, %p143
    %p146 = scmp.ne.s32.totalorder %s129, %s145
    %p147 = scmp.eq.s32.totalorder %s16, 0
    %p148 = por %p146, %p147
    %p149 = scmp.le.s32.totalorder 1, %s10
    %p150 = scmp.lt.s32.totalorder %s10, 5
    %p151 = pnand %p149, %p150
    %p152 = pneg %p151
    // Predicated region
    $region9: #{mixed_4e_forward.9} parent=5 // pred_check
      _
    $region10: #{mixed_4e_forward.9} parent=5 // pred_check_branch
      %154 = sbr.rel (%p151) target = $region12
    $region11: #{mixed_4e_forward.9} parent=5 // pred_region
      %s155 = ssub.s32 %s10, 1
      // Predicated region
      $region13: #{mixed_4e_forward.9} parent=11 // pred_check
        %p156 = pneg %p71
      $region14: #{mixed_4e_forward.9} parent=11 // pred_check_branch
        %158 = sbr.rel (%p156) target = $region16
      $region15: #{mixed_4e_forward.9} parent=11 // pred_region
        _
      $region16: #{mixed_4e_forward.9} parent=11 // pred_fallthru
        _
      // Predicated region
      $region17: #{mixed_4e_forward.9} parent=11 // pred_check
        %p159 = pneg %p92
      $region18: #{mixed_4e_forward.9} parent=11 // pred_check_branch
        %161 = sbr.rel (%p159) target = $region20
      $region19: #{mixed_4e_forward.9} parent=11 // pred_region
        _
      $region20: #{mixed_4e_forward.9} parent=11 // pred_fallthru
        _
      // Predicated region
      $region21: #{mixed_4e_forward.9} parent=11 // pred_check
        %p162 = pneg %p113
      $region22: #{mixed_4e_forward.9} parent=11 // pred_check_branch
        %164 = sbr.rel (%p162) target = $region24
      $region23: #{mixed_4e_forward.9} parent=11 // pred_region
        _
      $region24: #{mixed_4e_forward.9} parent=11 // pred_fallthru
        _
    $region12: #{mixed_4e_forward.9} parent=5 // pred_fallthru
      _
    %p165 = scmp.lt.s32.totalorder %s10, 4
    // Predicated region
    $region25: #{mixed_4e_forward.9} parent=5 // pred_check
      %p166 = pneg %p165
    $region26: #{mixed_4e_forward.9} parent=5 // pred_check_branch
      %168 = sbr.rel (%p166) target = $region28
    $region27: #{mixed_4e_forward.9} parent=5 // pred_region
      // Predicated region
      $region29: #{mixed_4e_forward.9} parent=27 // pred_check
        %p169 = pneg %p44
      $region30: #{mixed_4e_forward.9} parent=27 // pred_check_branch
        %171 = sbr.rel (%p169) target = $region32
      $region31: #{mixed_4e_forward.9} parent=27 // pred_region
        %p172 = scmp.lt.s32.totalorder %s17, 0
        %s173 = scalar_select %p172, %s17, 0
        %p174 = scmp.lt.s32.totalorder %s18, 3
        %s175 = scalar_select %p174, %s18, 3
        %s176 = smul.addr %s175, 20
        %s177 = smul.addr %s173, 80
        %s178 = sadd.s32 %s176, %s177
        %s179 = smul.addr %s178, 4
        %s180 = scalar_lea.vmem %s0, %s179
      $region32: #{mixed_4e_forward.9} parent=27 // pred_fallthru
        _
    $region28: #{mixed_4e_forward.9} parent=5 // pred_fallthru
      _
    %p181 = scmp.le.s32.totalorder 1, %s10
    %p182 = scmp.lt.s32.totalorder %s10, 5
    %p183 = pnand %p181, %p182
    %p184 = pneg %p183
    // Predicated region
    $region33: #{mixed_4e_forward.9} parent=5 // pred_check
      _
    $region34: #{mixed_4e_forward.9} parent=5 // pred_check_branch
      %186 = sbr.rel (%p183) target = $region36
    $region35: #{mixed_4e_forward.9} parent=5 // pred_region
      %s187 = ssub.s32 %s10, 1
      %p188 = scmp.lt.s32.totalorder %s19, 0
      %s189 = scalar_select %p188, %s19, 0
      %p190 = scmp.lt.s32.totalorder %s20, 3
      %s191 = scalar_select %p190, %s20, 3
      %s192 = smul.addr %s191, 20
      %s193 = smul.addr %s189, 80
      %s194 = sadd.s32 %s192, %s193
      %s195 = smul.addr %s194, 4
      %s196 = scalar_lea.vmem %s0, %s195
      %p197 = pneg %p50
      %p198 = pneg %p47
      %p199 = pneg %p71
      %p200 = pneg %p68
      %p201 = pneg %p92
      %p202 = pneg %p89
      %p203 = pneg %p113
      %p204 = pneg %p110
      %p205 = pneg %p141
      %p206 = pneg %p138
      %p207 = scmp.lt.s32.totalorder %s19, 0
      %s208 = scalar_select %p207, %s19, 0
      %p209 = scmp.lt.s32.totalorder %s20, 3
      %s210 = scalar_select %p209, %s20, 3
      %s211 = smul.addr %s210, 8
      %s212 = smul.addr %s208, 32
      %s213 = sadd.s32 %s211, %s212
      %s214 = smul.addr %s213, 4
      %s215 = scalar_lea.vmem %s4, %s214
      %p216 = scmp.lt.s32.totalorder %s19, 0
      %s217 = scalar_select %p216, %s19, 0
      %p218 = scmp.lt.s32.totalorder %s20, 3
      %s219 = scalar_select %p218, %s20, 3
      %s220 = smul.addr %s219, 20
      %s221 = smul.addr %s217, 80
      %s222 = sadd.s32 %s220, %s221
      %s223 = smul.addr %s222, 4
      %s224 = scalar_lea.vmem %s0, %s223
      %p225 = scmp.lt.s32.totalorder %s19, 0
      %s226 = scalar_select %p225, %s19, 0
      %p227 = scmp.lt.s32.totalorder %s20, 3
      %s228 = scalar_select %p227, %s20, 3
      %s229 = smul.addr %s228, 8
      %s230 = smul.addr %s226, 32
      %s231 = sadd.s32 %s229, %s230
      %s232 = smul.addr %s231, 4
      %s233 = scalar_lea.vmem %s4, %s232
      %v235 = vld [vmem:[%s224] sm:$0xf]
      %v236 = vld [vmem:[%s224 + $0x4] sm:$0x1]
      %v237 = vld [vmem:[%s224 + $0x8] sm:$0xf]
      %v238 = vld [vmem:[%s224 + $0xc] sm:$0x1]
      %v239 = vld [vmem:[%s224 + $0x10] sm:$0xf]
      %v240 = vld [vmem:[%s224 + $0x14] sm:$0x1]
      %v241 = vld [vmem:[%s224 + $0x18] sm:$0xf]
      %v242 = vld [vmem:[%s224 + $0x1c] sm:$0x1]
      %v243 = vld [vmem:[%s224 + $0x20] sm:$0xf]
      %v244 = vld [vmem:[%s224 + $0x24] sm:$0x1]
      %v245 = vld [vmem:[%s224 + $0x28] sm:$0xf]
      %v246 = vld [vmem:[%s224 + $0x2c] sm:$0x1]
      %v247 = vld [vmem:[%s224 + $0x30] sm:$0xf]
      %v248 = vld [vmem:[%s224 + $0x34] sm:$0x1]
      %v249 = vld [vmem:[%s224 + $0x38] sm:$0xf]
      %v250 = vld [vmem:[%s224 + $0x3c] sm:$0x1]
      %v251 = vld [vmem:[%s224 + $0x40] sm:$0xf]
      %v252 = vld [vmem:[%s224 + $0x44] sm:$0x1]
      %v253 = vld [vmem:[%s224 + $0x48] sm:$0xf]
      %v254 = vld [vmem:[%s224 + $0x4c] sm:$0x1]
      %v255 = vld [vmem:[%s1] sm:$0xf]
      %v256 = vld [vmem:[%s1 + $0x4] sm:$0xf]
      %v257 = vld [vmem:[%s1 + $0x8] sm:$0xf]
      %v258 = vld [vmem:[%s1 + $0xc] sm:$0xf]
      %vm259 = vsmask.f32 3328
      %vm260 = vsmask.f32 7440
      %vm261 = vmor %vm259, %vm260
      %v263 = vshrl.u32 %v235, 16
      %v265 = vrot.slane %v263, 4
      %v266 = vshll.u32 %v235, 16
      %v268 = vrot.slane %v266, 5
      %v269 = vor.u32 %v265, %v268
      %v270 = vrot.slane %v269, 4
      %v272 = vshll.u32 %v236, 16
      %v274 = vrot.slane %v272, 5
      %v275 = vsel %vm261, %v270, %v274
      %v277 = vshrl.u32 %v237, 16
      %v279 = vrot.slane %v277, 4
      %v280 = vshll.u32 %v237, 16
      %v282 = vrot.slane %v280, 5
      %v283 = vor.u32 %v279, %v282
      %v284 = vrot.slane %v283, 4
      %v286 = vshll.u32 %v238, 16
      %v288 = vrot.slane %v286, 5
      %v289 = vsel %vm261, %v284, %v288
      %v291 = vshrl.u32 %v239, 16
      %v293 = vrot.slane %v291, 4
      %v294 = vshll.u32 %v239, 16
      %v296 = vrot.slane %v294, 5
      %v297 = vor.u32 %v293, %v296
      %v298 = vrot.slane %v297, 4
      %v300 = vshll.u32 %v240, 16
      %v302 = vrot.slane %v300, 5
      %v303 = vsel %vm261, %v298, %v302
      %v305 = vshrl.u32 %v241, 16
      %v307 = vrot.slane %v305, 4
      %v308 = vshll.u32 %v241, 16
      %v310 = vrot.slane %v308, 5
      %v311 = vor.u32 %v307, %v310
      %v312 = vrot.slane %v311, 4
      %v314 = vshll.u32 %v242, 16
      %v316 = vrot.slane %v314, 5
      %v317 = vsel %vm261, %v312, %v316
      %v319 = vshrl.u32 %v243, 16
      %v321 = vrot.slane %v319, 4
      %v322 = vshll.u32 %v243, 16
      %v324 = vrot.slane %v322, 5
      %v325 = vor.u32 %v321, %v324
      %v326 = vrot.slane %v325, 4
      %v328 = vshll.u32 %v244, 16
      %v330 = vrot.slane %v328, 5
      %v331 = vsel %vm261, %v326, %v330
      %v333 = vshrl.u32 %v245, 16
      %v335 = vrot.slane %v333, 4
      %v336 = vshll.u32 %v245, 16
      %v338 = vrot.slane %v336, 5
      %v339 = vor.u32 %v335, %v338
      %v340 = vrot.slane %v339, 4
      %v342 = vshll.u32 %v246, 16
      %v344 = vrot.slane %v342, 5
      %v345 = vsel %vm261, %v340, %v344
      %v347 = vshrl.u32 %v247, 16
      %v349 = vrot.slane %v347, 4
      %v350 = vshll.u32 %v247, 16
      %v352 = vrot.slane %v350, 5
      %v353 = vor.u32 %v349, %v352
      %v354 = vrot.slane %v353, 4
      %v356 = vshll.u32 %v248, 16
      %v358 = vrot.slane %v356, 5
      %v359 = vsel %vm261, %v354, %v358
      %v361 = vshrl.u32 %v249, 16
      %v363 = vrot.slane %v361, 4
      %v364 = vshll.u32 %v249, 16
      %v366 = vrot.slane %v364, 5
      %v367 = vor.u32 %v363, %v366
      %v368 = vrot.slane %v367, 4
      %v370 = vshll.u32 %v250, 16
      %v372 = vrot.slane %v370, 5
      %v373 = vsel %vm261, %v368, %v372
      %s374 = scalar_lea.vmem %s1, 16
      %v375 = vld [vmem:[%s374] sm:$0xf]
      %v376 = vld [vmem:[%s374 + $0x4] sm:$0xf]
      %v377 = vld [vmem:[%s374 + $0x8] sm:$0xf]
      %v378 = vld [vmem:[%s374 + $0xc] sm:$0xf]
      %v379 = vunpack.c.l.b16 %v275
      %v380 = vunpack.c.l.b16 %v289
      %v381 = vunpack.c.l.b16 %v303
      %v382 = vunpack.c.l.b16 %v317
      %v383 = vunpack.c.l.b16 %v331
      %v384 = vunpack.c.l.b16 %v345
      %v385 = vunpack.c.l.b16 %v359
      %v386 = vunpack.c.l.b16 %v373
      %v387 = vpack.c.b16 %v380, %v379
      %v388 = vpack.c.b16 %v382, %v381
      %v389 = vpack.c.b16 %v384, %v383
      %v390 = vpack.c.b16 %v386, %v385
      %v395 = vunpack.c.l.b16 %v375
      %v396 = vunpack.c.l.b16 %v376
      %v397 = vunpack.c.l.b16 %v377
      %v398 = vunpack.c.l.b16 %v378
      %v399 = vpack.c.b16 %v396, %v395
      %v400 = vpack.c.b16 %v398, %v397
      %vm403 = vcmask 261120
      %v405 = vsel %vm403, %v387, 0
      %v408 = vsel %vm403, %v388, 0
      %v411 = vsel %vm403, %v389, 0
      %v414 = vsel %vm403, %v390, 0
      %416 = vmatprep.subr.bf16.mxu0 0
      %417 = vmatpush1.bf16.msra.mxu0 0
      %418 = vmatprep.subr.bf16.mxu0 0
      %419 = vmatpush1.bf16.msra.mxu0 0
      %420 = vmatprep.subr.bf16.mxu0 0
      %421 = vmatpush1.bf16.msra.mxu0 0
      %422 = vmatprep.subr.bf16.mxu0 0
      %423 = vmatpush1.bf16.msra.mxu0 0
      %424 = vmatprep.subr.bf16.mxu0 0
      %425 = vmatpush1.bf16.msra.mxu0 0
      %426 = vmatprep.subr.bf16.mxu0 0
      %427 = vmatpush1.bf16.msra.mxu0 0
      %428 = vmatprep.subr.bf16.mxu0 0
      %429 = vmatpush1.bf16.msra.mxu0 %v400
      %430 = vmatprep.subr.bf16.mxu0 0
      %431 = vmatpush1.bf16.msra.mxu0 %v399
      %432 = vmatprep.subr.bf16.mxu0 0
      %433 = vmatpush2.bf16.msra.mxu0 0
      %434 = vmatprep.subr.bf16.mxu0 0
      %435 = vmatpush2.bf16.msra.mxu0 0
      %436 = vmatprep.subr.bf16.mxu0 0
      %437 = vmatpush2.bf16.msra.mxu0 0
      %438 = vmatprep.subr.bf16.mxu0 0
      %439 = vmatpush2.bf16.msra.mxu0 0
      %440 = vmatprep.subr.bf16.mxu0 0
      %441 = vmatpush2.bf16.msra.mxu0 0
      %442 = vmatprep.subr.bf16.mxu0 0
      %443 = vmatpush2.bf16.msra.mxu0 0
      %444 = vmatprep.subr.bf16.mxu0 0
      %445 = vmatpush2.bf16.msra.mxu0 0
      %446 = vmatprep.subr.bf16.mxu0 0
      %447 = vmatpush2.bf16.msra.mxu0 0
      %448 = vmatprep.mubr.bf16.mxu0 0
      %449 = vmatmul.mubr.bf16.gmra.mxu0 %v405
      %v450 = vpop.f32.mrf.mxu0
      %v451 = vadd.f32 0.0, %v450
      %v452 = vpop.f32.mrf.mxu0
      %v453 = vpop.f32.mrf.mxu0
      %v454 = vadd.f32 0.0, %v453
      %v455 = vpop.f32.mrf.mxu0
      %456 = vmatprep.mubr.bf16.mxu0 0
      %457 = vmatmul.mubr.bf16.gmra.mxu0 %v408
      %v458 = vpop.f32.mrf.mxu0
      %v459 = vadd.f32 0.0, %v458
      %v460 = vpop.f32.mrf.mxu0
      %v461 = vpop.f32.mrf.mxu0
      %v462 = vadd.f32 0.0, %v461
      %v463 = vpop.f32.mrf.mxu0
      %464 = vmatprep.mubr.bf16.mxu0 0
      %465 = vmatmul.mubr.bf16.gmra.mxu0 %v411
      %v466 = vpop.f32.mrf.mxu0
      %v467 = vadd.f32 0.0, %v466
      %v468 = vpop.f32.mrf.mxu0
      %v469 = vpop.f32.mrf.mxu0
      %v470 = vadd.f32 0.0, %v469
      %v471 = vpop.f32.mrf.mxu0
      %472 = vmatprep.mubr.bf16.mxu0 0
      %473 = vmatmul.mubr.bf16.gmra.mxu0 %v414
      %v474 = vpop.f32.mrf.mxu0
      %v475 = vadd.f32 0.0, %v474
      %v476 = vpop.f32.mrf.mxu0
      %v477 = vpop.f32.mrf.mxu0
      %v478 = vadd.f32 0.0, %v477
      %v479 = vpop.f32.mrf.mxu0
      %480 = vdwg.mxu0
      %v489 = vunpack.c.l.b16 %v235
      %v490 = vunpack.c.l.b16 %v237
      %v491 = vunpack.c.l.b16 %v239
      %v492 = vunpack.c.l.b16 %v241
      %v493 = vunpack.c.l.b16 %v243
      %v494 = vunpack.c.l.b16 %v245
      %v495 = vunpack.c.l.b16 %v247
      %v496 = vunpack.c.l.b16 %v249
      %v497 = vpack.c.b16 %v490, %v489
      %v498 = vpack.c.b16 %v492, %v491
      %v499 = vpack.c.b16 %v494, %v493
      %v500 = vpack.c.b16 %v496, %v495
      %v505 = vunpack.c.l.b16 %v255
      %v506 = vunpack.c.l.b16 %v256
      %v507 = vunpack.c.l.b16 %v257
      %v508 = vunpack.c.l.b16 %v258
      %v509 = vpack.c.b16 %v506, %v505
      %v510 = vpack.c.b16 %v508, %v507
      %v514 = vsel %vm403, %v497, 0
      %v517 = vsel %vm403, %v498, 0
      %v520 = vsel %vm403, %v499, 0
      %v523 = vsel %vm403, %v500, 0
      %525 = vmatprep.subr.bf16.mxu0 0
      %526 = vmatpush1.bf16.msra.mxu0 0
      %527 = vmatprep.subr.bf16.mxu0 0
      %528 = vmatpush1.bf16.msra.mxu0 0
      %529 = vmatprep.subr.bf16.mxu0 0
      %530 = vmatpush1.bf16.msra.mxu0 0
      %531 = vmatprep.subr.bf16.mxu0 0
      %532 = vmatpush1.bf16.msra.mxu0 0
      %533 = vmatprep.subr.bf16.mxu0 0
      %534 = vmatpush1.bf16.msra.mxu0 0
      %535 = vmatprep.subr.bf16.mxu0 0
      %536 = vmatpush1.bf16.msra.mxu0 0
      %537 = vmatprep.subr.bf16.mxu0 0
      %538 = vmatpush1.bf16.msra.mxu0 %v510
      %539 = vmatprep.subr.bf16.mxu0 0
      %540 = vmatpush1.bf16.msra.mxu0 %v509
      %541 = vmatprep.subr.bf16.mxu0 0
      %542 = vmatpush2.bf16.msra.mxu0 0
      %543 = vmatprep.subr.bf16.mxu0 0
      %544 = vmatpush2.bf16.msra.mxu0 0
      %545 = vmatprep.subr.bf16.mxu0 0
      %546 = vmatpush2.bf16.msra.mxu0 0
      %547 = vmatprep.subr.bf16.mxu0 0
      %548 = vmatpush2.bf16.msra.mxu0 0
      %549 = vmatprep.subr.bf16.mxu0 0
      %550 = vmatpush2.bf16.msra.mxu0 0
      %551 = vmatprep.subr.bf16.mxu0 0
      %552 = vmatpush2.bf16.msra.mxu0 0
      %553 = vmatprep.subr.bf16.mxu0 0
      %554 = vmatpush2.bf16.msra.mxu0 0
      %555 = vmatprep.subr.bf16.mxu0 0
      %556 = vmatpush2.bf16.msra.mxu0 0
      %557 = vmatprep.mubr.bf16.mxu0 0
      %558 = vmatmul.mubr.bf16.gmra.mxu0 %v514
      %v559 = vpop.f32.mrf.mxu0
      %v560 = vadd.f32 %v451, %v559
      %v561 = vpop.f32.mrf.mxu0
      %v562 = vpop.f32.mrf.mxu0
      %v563 = vadd.f32 %v454, %v562
      %v564 = vpop.f32.mrf.mxu0
      %565 = vmatprep.mubr.bf16.mxu0 0
      %566 = vmatmul.mubr.bf16.gmra.mxu0 %v517
      %v567 = vpop.f32.mrf.mxu0
      %v568 = vadd.f32 %v459, %v567
      %v569 = vpop.f32.mrf.mxu0
      %v570 = vpop.f32.mrf.mxu0
      %v571 = vadd.f32 %v462, %v570
      %v572 = vpop.f32.mrf.mxu0
      %573 = vmatprep.mubr.bf16.mxu0 0
      %574 = vmatmul.mubr.bf16.gmra.mxu0 %v520
      %v575 = vpop.f32.mrf.mxu0
      %v576 = vadd.f32 %v467, %v575
      %v577 = vpop.f32.mrf.mxu0
      %v578 = vpop.f32.mrf.mxu0
      %v579 = vadd.f32 %v470, %v578
      %v580 = vpop.f32.mrf.mxu0
      %581 = vmatprep.mubr.bf16.mxu0 0
      %582 = vmatmul.mubr.bf16.gmra.mxu0 %v523
      %v583 = vpop.f32.mrf.mxu0
      %v584 = vadd.f32 %v475, %v583
      %v585 = vpop.f32.mrf.mxu0
      %v586 = vpop.f32.mrf.mxu0
      %v587 = vadd.f32 %v478, %v586
      %v588 = vpop.f32.mrf.mxu0
      %589 = vdwg.mxu0
      %vm598 = vcmask 1042432
      %vm599 = vcmask 1046532
      %vm600 = vmor %vm598, %vm599
      %v601 = vrot.slane %v235, 5
      %v602 = vrot.slane %v601, 4
      %v603 = vrot.slane %v236, 5
      %v604 = vsel %vm600, %v602, %v603
      %v605 = vrot.slane %v237, 5
      %v606 = vrot.slane %v605, 4
      %v607 = vrot.slane %v238, 5
      %v608 = vsel %vm600, %v606, %v607
      %v609 = vrot.slane %v239, 5
      %v610 = vrot.slane %v609, 4
      %v611 = vrot.slane %v240, 5
      %v612 = vsel %vm600, %v610, %v611
      %v613 = vrot.slane %v241, 5
      %v614 = vrot.slane %v613, 4
      %v615 = vrot.slane %v242, 5
      %v616 = vsel %vm600, %v614, %v615
      %v617 = vrot.slane %v243, 5
      %v618 = vrot.slane %v617, 4
      %v619 = vrot.slane %v244, 5
      %v620 = vsel %vm600, %v618, %v619
      %v621 = vrot.slane %v245, 5
      %v622 = vrot.slane %v621, 4
      %v623 = vrot.slane %v246, 5
      %v624 = vsel %vm600, %v622, %v623
      %v625 = vrot.slane %v247, 5
      %v626 = vrot.slane %v625, 4
      %v627 = vrot.slane %v248, 5
      %v628 = vsel %vm600, %v626, %v627
      %v629 = vrot.slane %v249, 5
      %v630 = vrot.slane %v629, 4
      %v631 = vrot.slane %v250, 5
      %v632 = vsel %vm600, %v630, %v631
      %s633 = scalar_lea.vmem %s1, 32
      %v634 = vld [vmem:[%s633] sm:$0xf]
      %v635 = vld [vmem:[%s633 + $0x4] sm:$0xf]
      %v636 = vld [vmem:[%s633 + $0x8] sm:$0xf]
      %v637 = vld [vmem:[%s633 + $0xc] sm:$0xf]
      %v638 = vunpack.c.l.b16 %v604
      %v639 = vunpack.c.l.b16 %v608
      %v640 = vunpack.c.l.b16 %v612
      %v641 = vunpack.c.l.b16 %v616
      %v642 = vunpack.c.l.b16 %v620
      %v643 = vunpack.c.l.b16 %v624
      %v644 = vunpack.c.l.b16 %v628
      %v645 = vunpack.c.l.b16 %v632
      %v646 = vpack.c.b16 %v639, %v638
      %v647 = vpack.c.b16 %v641, %v640
      %v648 = vpack.c.b16 %v643, %v642
      %v649 = vpack.c.b16 %v645, %v644
      %v654 = vunpack.c.l.b16 %v634
      %v655 = vunpack.c.l.b16 %v635
      %v656 = vunpack.c.l.b16 %v636
      %v657 = vunpack.c.l.b16 %v637
      %v658 = vpack.c.b16 %v655, %v654
      %v659 = vpack.c.b16 %v657, %v656
      %v663 = vsel %vm403, %v646, 0
      %v666 = vsel %vm403, %v647, 0
      %v669 = vsel %vm403, %v648, 0
      %v672 = vsel %vm403, %v649, 0
      %674 = vmatprep.subr.bf16.mxu0 0
      %675 = vmatpush1.bf16.msra.mxu0 0
      %676 = vmatprep.subr.bf16.mxu0 0
      %677 = vmatpush1.bf16.msra.mxu0 0
      %678 = vmatprep.subr.bf16.mxu0 0
      %679 = vmatpush1.bf16.msra.mxu0 0
      %680 = vmatprep.subr.bf16.mxu0 0
      %681 = vmatpush1.bf16.msra.mxu0 0
      %682 = vmatprep.subr.bf16.mxu0 0
      %683 = vmatpush1.bf16.msra.mxu0 0
      %684 = vmatprep.subr.bf16.mxu0 0
      %685 = vmatpush1.bf16.msra.mxu0 0
      %686 = vmatprep.subr.bf16.mxu0 0
      %687 = vmatpush1.bf16.msra.mxu0 %v659
      %688 = vmatprep.subr.bf16.mxu0 0
      %689 = vmatpush1.bf16.msra.mxu0 %v658
      %690 = vmatprep.subr.bf16.mxu0 0
      %691 = vmatpush2.bf16.msra.mxu0 0
      %692 = vmatprep.subr.bf16.mxu0 0
      %693 = vmatpush2.bf16.msra.mxu0 0
      %694 = vmatprep.subr.bf16.mxu0 0
      %695 = vmatpush2.bf16.msra.mxu0 0
      %696 = vmatprep.subr.bf16.mxu0 0
      %697 = vmatpush2.bf16.msra.mxu0 0
      %698 = vmatprep.subr.bf16.mxu0 0
      %699 = vmatpush2.bf16.msra.mxu0 0
      %700 = vmatprep.subr.bf16.mxu0 0
      %701 = vmatpush2.bf16.msra.mxu0 0
      %702 = vmatprep.subr.bf16.mxu0 0
      %703 = vmatpush2.bf16.msra.mxu0 0
      %704 = vmatprep.subr.bf16.mxu0 0
      %705 = vmatpush2.bf16.msra.mxu0 0
      %706 = vmatprep.mubr.bf16.mxu0 0
      %707 = vmatmul.mubr.bf16.gmra.mxu0 %v663
      %v708 = vpop.f32.mrf.mxu0
      %v709 = vadd.f32 0.0, %v708
      %v710 = vpop.f32.mrf.mxu0
      %v711 = vpop.f32.mrf.mxu0
      %v712 = vadd.f32 0.0, %v711
      %v713 = vpop.f32.mrf.mxu0
      %714 = vmatprep.mubr.bf16.mxu0 0
      %715 = vmatmul.mubr.bf16.gmra.mxu0 %v666
      %v716 = vpop.f32.mrf.mxu0
      %v717 = vadd.f32 0.0, %v716
      %v718 = vpop.f32.mrf.mxu0
      %v719 = vpop.f32.mrf.mxu0
      %v720 = vadd.f32 0.0, %v719
      %v721 = vpop.f32.mrf.mxu0
      %722 = vmatprep.mubr.bf16.mxu0 0
      %723 = vmatmul.mubr.bf16.gmra.mxu0 %v669
      %v724 = vpop.f32.mrf.mxu0
      %v725 = vadd.f32 0.0, %v724
      %v726 = vpop.f32.mrf.mxu0
      %v727 = vpop.f32.mrf.mxu0
      %v728 = vadd.f32 0.0, %v727
      %v729 = vpop.f32.mrf.mxu0
      %730 = vmatprep.mubr.bf16.mxu0 0
      %731 = vmatmul.mubr.bf16.gmra.mxu0 %v672
      %v732 = vpop.f32.mrf.mxu0
      %v733 = vadd.f32 0.0, %v732
      %v734 = vpop.f32.mrf.mxu0
      %v735 = vpop.f32.mrf.mxu0
      %v736 = vadd.f32 0.0, %v735
      %v737 = vpop.f32.mrf.mxu0
      %738 = vdwg.mxu0
      %v739 = vadd.f32 %v560, %v709
      %v740 = vadd.f32 %v563, %v712
      %v741 = vadd.f32 %v568, %v717
      %v742 = vadd.f32 %v571, %v720
      %v743 = vadd.f32 %v576, %v725
      %v744 = vadd.f32 %v579, %v728
      %v745 = vadd.f32 %v584, %v733
      %v746 = vadd.f32 %v587, %v736
      %s747 = scalar_lea.vmem %s1, 48
      %v748 = vld [vmem:[%s747] sm:$0xf]
      %v749 = vld [vmem:[%s747 + $0x4] sm:$0xf]
      %v750 = vld [vmem:[%s747 + $0x8] sm:$0xf]
      %v751 = vld [vmem:[%s747 + $0xc] sm:$0xf]
      %v753 = vunpack.c.l.b16 %v251
      %v754 = vpack.c.b16 %v491, %v490
      %v755 = vpack.c.b16 %v493, %v492
      %v756 = vpack.c.b16 %v495, %v494
      %v757 = vpack.c.b16 %v753, %v496
      %v762 = vunpack.c.l.b16 %v748
      %v763 = vunpack.c.l.b16 %v749
      %v764 = vunpack.c.l.b16 %v750
      %v765 = vunpack.c.l.b16 %v751
      %v766 = vpack.c.b16 %v763, %v762
      %v767 = vpack.c.b16 %v765, %v764
      %v771 = vsel %vm403, %v754, 0
      %v774 = vsel %vm403, %v755, 0
      %v777 = vsel %vm403, %v756, 0
      %v780 = vsel %vm403, %v757, 0
      %782 = vmatprep.subr.bf16.mxu0 0
      %783 = vmatpush1.bf16.msra.mxu0 0
      %784 = vmatprep.subr.bf16.mxu0 0
      %785 = vmatpush1.bf16.msra.mxu0 0
      %786 = vmatprep.subr.bf16.mxu0 0
      %787 = vmatpush1.bf16.msra.mxu0 0
      %788 = vmatprep.subr.bf16.mxu0 0
      %789 = vmatpush1.bf16.msra.mxu0 0
      %790 = vmatprep.subr.bf16.mxu0 0
      %791 = vmatpush1.bf16.msra.mxu0 0
      %792 = vmatprep.subr.bf16.mxu0 0
      %793 = vmatpush1.bf16.msra.mxu0 0
      %794 = vmatprep.subr.bf16.mxu0 0
      %795 = vmatpush1.bf16.msra.mxu0 %v767
      %796 = vmatprep.subr.bf16.mxu0 0
      %797 = vmatpush1.bf16.msra.mxu0 %v766
      %798 = vmatprep.subr.bf16.mxu0 0
      %799 = vmatpush2.bf16.msra.mxu0 0
      %800 = vmatprep.subr.bf16.mxu0 0
      %801 = vmatpush2.bf16.msra.mxu0 0
      %802 = vmatprep.subr.bf16.mxu0 0
      %803 = vmatpush2.bf16.msra.mxu0 0
      %804 = vmatprep.subr.bf16.mxu0 0
      %805 = vmatpush2.bf16.msra.mxu0 0
      %806 = vmatprep.subr.bf16.mxu0 0
      %807 = vmatpush2.bf16.msra.mxu0 0
      %808 = vmatprep.subr.bf16.mxu0 0
      %809 = vmatpush2.bf16.msra.mxu0 0
      %810 = vmatprep.subr.bf16.mxu0 0
      %811 = vmatpush2.bf16.msra.mxu0 0
      %812 = vmatprep.subr.bf16.mxu0 0
      %813 = vmatpush2.bf16.msra.mxu0 0
      %814 = vmatprep.mubr.bf16.mxu0 0
      %815 = vmatmul.mubr.bf16.gmra.mxu0 %v771
      %v816 = vpop.f32.mrf.mxu0
      %v817 = vadd.f32 0.0, %v816
      %v818 = vpop.f32.mrf.mxu0
      %v819 = vpop.f32.mrf.mxu0
      %v820 = vadd.f32 0.0, %v819
      %v821 = vpop.f32.mrf.mxu0
      %822 = vmatprep.mubr.bf16.mxu0 0
      %823 = vmatmul.mubr.bf16.gmra.mxu0 %v774
      %v824 = vpop.f32.mrf.mxu0
      %v825 = vadd.f32 0.0, %v824
      %v826 = vpop.f32.mrf.mxu0
      %v827 = vpop.f32.mrf.mxu0
      %v828 = vadd.f32 0.0, %v827
      %v829 = vpop.f32.mrf.mxu0
      %830 = vmatprep.mubr.bf16.mxu0 0
      %831 = vmatmul.mubr.bf16.gmra.mxu0 %v777
      %v832 = vpop.f32.mrf.mxu0
      %v833 = vadd.f32 0.0, %v832
      %v834 = vpop.f32.mrf.mxu0
      %v835 = vpop.f32.mrf.mxu0
      %v836 = vadd.f32 0.0, %v835
      %v837 = vpop.f32.mrf.mxu0
      %838 = vmatprep.mubr.bf16.mxu0 0
      %839 = vmatmul.mubr.bf16.gmra.mxu0 %v780
      %v840 = vpop.f32.mrf.mxu0
      %v841 = vadd.f32 0.0, %v840
      %v842 = vpop.f32.mrf.mxu0
      %v843 = vpop.f32.mrf.mxu0
      %v844 = vadd.f32 0.0, %v843
      %v845 = vpop.f32.mrf.mxu0
      %846 = vdwg.mxu0
      %v847 = vadd.f32 %v739, %v817
      %v848 = vadd.f32 %v740, %v820
      %v849 = vadd.f32 %v741, %v825
      %v850 = vadd.f32 %v742, %v828
      %v851 = vadd.f32 %v743, %v833
      %v852 = vadd.f32 %v744, %v836
      %v853 = vadd.f32 %v745, %v841
      %v854 = vadd.f32 %v746, %v844
      %v856 = vshrl.u32 %v251, 16
      %v858 = vrot.slane %v856, 4
      %v859 = vshll.u32 %v251, 16
      %v861 = vrot.slane %v859, 5
      %v862 = vor.u32 %v858, %v861
      %v863 = vrot.slane %v862, 4
      %v865 = vshll.u32 %v252, 16
      %v867 = vrot.slane %v865, 5
      %v868 = vsel %vm261, %v863, %v867
      %s869 = scalar_lea.vmem %s1, 64
      %v870 = vld [vmem:[%s869] sm:$0xf]
      %v871 = vld [vmem:[%s869 + $0x4] sm:$0xf]
      %v872 = vld [vmem:[%s869 + $0x8] sm:$0xf]
      %v873 = vld [vmem:[%s869 + $0xc] sm:$0xf]
      %v874 = vunpack.c.l.b16 %v868
      %v875 = vpack.c.b16 %v381, %v380
      %v876 = vpack.c.b16 %v383, %v382
      %v877 = vpack.c.b16 %v385, %v384
      %v878 = vpack.c.b16 %v874, %v386
      %v883 = vunpack.c.l.b16 %v870
      %v884 = vunpack.c.l.b16 %v871
      %v885 = vunpack.c.l.b16 %v872
      %v886 = vunpack.c.l.b16 %v873
      %v887 = vpack.c.b16 %v884, %v883
      %v888 = vpack.c.b16 %v886, %v885
      %v892 = vsel %vm403, %v875, 0
      %v895 = vsel %vm403, %v876, 0
      %v898 = vsel %vm403, %v877, 0
      %v901 = vsel %vm403, %v878, 0
      %903 = vmatprep.subr.bf16.mxu0 0
      %904 = vmatpush1.bf16.msra.mxu0 0
      %905 = vmatprep.subr.bf16.mxu0 0
      %906 = vmatpush1.bf16.msra.mxu0 0
      %907 = vmatprep.subr.bf16.mxu0 0
      %908 = vmatpush1.bf16.msra.mxu0 0
      %909 = vmatprep.subr.bf16.mxu0 0
      %910 = vmatpush1.bf16.msra.mxu0 0
      %911 = vmatprep.subr.bf16.mxu0 0
      %912 = vmatpush1.bf16.msra.mxu0 0
      %913 = vmatprep.subr.bf16.mxu0 0
      %914 = vmatpush1.bf16.msra.mxu0 0
      %915 = vmatprep.subr.bf16.mxu0 0
      %916 = vmatpush1.bf16.msra.mxu0 %v888
      %917 = vmatprep.subr.bf16.mxu0 0
      %918 = vmatpush1.bf16.msra.mxu0 %v887
      %919 = vmatprep.subr.bf16.mxu0 0
      %920 = vmatpush2.bf16.msra.mxu0 0
      %921 = vmatprep.subr.bf16.mxu0 0
      %922 = vmatpush2.bf16.msra.mxu0 0
      %923 = vmatprep.subr.bf16.mxu0 0
      %924 = vmatpush2.bf16.msra.mxu0 0
      %925 = vmatprep.subr.bf16.mxu0 0
      %926 = vmatpush2.bf16.msra.mxu0 0
      %927 = vmatprep.subr.bf16.mxu0 0
      %928 = vmatpush2.bf16.msra.mxu0 0
      %929 = vmatprep.subr.bf16.mxu0 0
      %930 = vmatpush2.bf16.msra.mxu0 0
      %931 = vmatprep.subr.bf16.mxu0 0
      %932 = vmatpush2.bf16.msra.mxu0 0
      %933 = vmatprep.subr.bf16.mxu0 0
      %934 = vmatpush2.bf16.msra.mxu0 0
      %935 = vmatprep.mubr.bf16.mxu0 0
      %936 = vmatmul.mubr.bf16.gmra.mxu0 %v892
      %v937 = vpop.f32.mrf.mxu0
      %v938 = vadd.f32 0.0, %v937
      %v939 = vpop.f32.mrf.mxu0
      %v940 = vpop.f32.mrf.mxu0
      %v941 = vadd.f32 0.0, %v940
      %v942 = vpop.f32.mrf.mxu0
      %943 = vmatprep.mubr.bf16.mxu0 0
      %944 = vmatmul.mubr.bf16.gmra.mxu0 %v895
      %v945 = vpop.f32.mrf.mxu0
      %v946 = vadd.f32 0.0, %v945
      %v947 = vpop.f32.mrf.mxu0
      %v948 = vpop.f32.mrf.mxu0
      %v949 = vadd.f32 0.0, %v948
      %v950 = vpop.f32.mrf.mxu0
      %951 = vmatprep.mubr.bf16.mxu0 0
      %952 = vmatmul.mubr.bf16.gmra.mxu0 %v898
      %v953 = vpop.f32.mrf.mxu0
      %v954 = vadd.f32 0.0, %v953
      %v955 = vpop.f32.mrf.mxu0
      %v956 = vpop.f32.mrf.mxu0
      %v957 = vadd.f32 0.0, %v956
      %v958 = vpop.f32.mrf.mxu0
      %959 = vmatprep.mubr.bf16.mxu0 0
      %960 = vmatmul.mubr.bf16.gmra.mxu0 %v901
      %v961 = vpop.f32.mrf.mxu0
      %v962 = vadd.f32 0.0, %v961
      %v963 = vpop.f32.mrf.mxu0
      %v964 = vpop.f32.mrf.mxu0
      %v965 = vadd.f32 0.0, %v964
      %v966 = vpop.f32.mrf.mxu0
      %967 = vdwg.mxu0
      %v968 = vadd.f32 %v847, %v938
      %v969 = vadd.f32 %v848, %v941
      %v970 = vadd.f32 %v849, %v946
      %v971 = vadd.f32 %v850, %v949
      %v972 = vadd.f32 %v851, %v954
      %v973 = vadd.f32 %v852, %v957
      %v974 = vadd.f32 %v853, %v962
      %v975 = vadd.f32 %v854, %v965
      %v977 = vrot.slane %v251, 5
      %v978 = vrot.slane %v977, 4
      %v979 = vrot.slane %v252, 5
      %v980 = vsel %vm600, %v978, %v979
      %s981 = scalar_lea.vmem %s1, 80
      %v982 = vld [vmem:[%s981] sm:$0xf]
      %v983 = vld [vmem:[%s981 + $0x4] sm:$0xf]
      %v984 = vld [vmem:[%s981 + $0x8] sm:$0xf]
      %v985 = vld [vmem:[%s981 + $0xc] sm:$0xf]
      %v986 = vunpack.c.l.b16 %v980
      %v987 = vpack.c.b16 %v640, %v639
      %v988 = vpack.c.b16 %v642, %v641
      %v989 = vpack.c.b16 %v644, %v643
      %v990 = vpack.c.b16 %v986, %v645
      %v995 = vunpack.c.l.b16 %v982
      %v996 = vunpack.c.l.b16 %v983
      %v997 = vunpack.c.l.b16 %v984
      %v998 = vunpack.c.l.b16 %v985
      %v999 = vpack.c.b16 %v996, %v995
      %v1000 = vpack.c.b16 %v998, %v997
      %v1004 = vsel %vm403, %v987, 0
      %v1007 = vsel %vm403, %v988, 0
      %v1010 = vsel %vm403, %v989, 0
      %v1013 = vsel %vm403, %v990, 0
      %1015 = vmatprep.subr.bf16.mxu0 0
      %1016 = vmatpush1.bf16.msra.mxu0 0
      %1017 = vmatprep.subr.bf16.mxu0 0
      %1018 = vmatpush1.bf16.msra.mxu0 0
      %1019 = vmatprep.subr.bf16.mxu0 0
      %1020 = vmatpush1.bf16.msra.mxu0 0
      %1021 = vmatprep.subr.bf16.mxu0 0
      %1022 = vmatpush1.bf16.msra.mxu0 0
      %1023 = vmatprep.subr.bf16.mxu0 0
      %1024 = vmatpush1.bf16.msra.mxu0 0
      %1025 = vmatprep.subr.bf16.mxu0 0
      %1026 = vmatpush1.bf16.msra.mxu0 0
      %1027 = vmatprep.subr.bf16.mxu0 0
      %1028 = vmatpush1.bf16.msra.mxu0 %v1000
      %1029 = vmatprep.subr.bf16.mxu0 0
      %1030 = vmatpush1.bf16.msra.mxu0 %v999
      %1031 = vmatprep.subr.bf16.mxu0 0
      %1032 = vmatpush2.bf16.msra.mxu0 0
      %1033 = vmatprep.subr.bf16.mxu0 0
      %1034 = vmatpush2.bf16.msra.mxu0 0
      %1035 = vmatprep.subr.bf16.mxu0 0
      %1036 = vmatpush2.bf16.msra.mxu0 0
      %1037 = vmatprep.subr.bf16.mxu0 0
      %1038 = vmatpush2.bf16.msra.mxu0 0
      %1039 = vmatprep.subr.bf16.mxu0 0
      %1040 = vmatpush2.bf16.msra.mxu0 0
      %1041 = vmatprep.subr.bf16.mxu0 0
      %1042 = vmatpush2.bf16.msra.mxu0 0
      %1043 = vmatprep.subr.bf16.mxu0 0
      %1044 = vmatpush2.bf16.msra.mxu0 0
      %1045 = vmatprep.subr.bf16.mxu0 0
      %1046 = vmatpush2.bf16.msra.mxu0 0
      %1047 = vmatprep.mubr.bf16.mxu0 0
      %1048 = vmatmul.mubr.bf16.gmra.mxu0 %v1004
      %v1049 = vpop.f32.mrf.mxu0
      %v1050 = vadd.f32 0.0, %v1049
      %v1051 = vpop.f32.mrf.mxu0
      %v1052 = vpop.f32.mrf.mxu0
      %v1053 = vadd.f32 0.0, %v1052
      %v1054 = vpop.f32.mrf.mxu0
      %1055 = vmatprep.mubr.bf16.mxu0 0
      %1056 = vmatmul.mubr.bf16.gmra.mxu0 %v1007
      %v1057 = vpop.f32.mrf.mxu0
      %v1058 = vadd.f32 0.0, %v1057
      %v1059 = vpop.f32.mrf.mxu0
      %v1060 = vpop.f32.mrf.mxu0
      %v1061 = vadd.f32 0.0, %v1060
      %v1062 = vpop.f32.mrf.mxu0
      %1063 = vmatprep.mubr.bf16.mxu0 0
      %1064 = vmatmul.mubr.bf16.gmra.mxu0 %v1010
      %v1065 = vpop.f32.mrf.mxu0
      %v1066 = vadd.f32 0.0, %v1065
      %v1067 = vpop.f32.mrf.mxu0
      %v1068 = vpop.f32.mrf.mxu0
      %v1069 = vadd.f32 0.0, %v1068
      %v1070 = vpop.f32.mrf.mxu0
      %1071 = vmatprep.mubr.bf16.mxu0 0
      %1072 = vmatmul.mubr.bf16.gmra.mxu0 %v1013
      %v1073 = vpop.f32.mrf.mxu0
      %v1074 = vadd.f32 0.0, %v1073
      %v1075 = vpop.f32.mrf.mxu0
      %v1076 = vpop.f32.mrf.mxu0
      %v1077 = vadd.f32 0.0, %v1076
      %v1078 = vpop.f32.mrf.mxu0
      %1079 = vdwg.mxu0
      %v1080 = vadd.f32 %v968, %v1050
      %v1081 = vadd.f32 %v969, %v1053
      %v1082 = vadd.f32 %v970, %v1058
      %v1083 = vadd.f32 %v971, %v1061
      %v1084 = vadd.f32 %v972, %v1066
      %v1085 = vadd.f32 %v973, %v1069
      %v1086 = vadd.f32 %v974, %v1074
      %v1087 = vadd.f32 %v975, %v1077
      %s1088 = scalar_lea.vmem %s1, 96
      %v1089 = vld [vmem:[%s1088] sm:$0xf]
      %v1090 = vld [vmem:[%s1088 + $0x4] sm:$0xf]
      %v1091 = vld [vmem:[%s1088 + $0x8] sm:$0xf]
      %v1092 = vld [vmem:[%s1088 + $0xc] sm:$0xf]
      %v1094 = vunpack.c.l.b16 %v253
      %v1095 = vpack.c.b16 %v1094, %v753
      %v1100 = vunpack.c.l.b16 %v1089
      %v1101 = vunpack.c.l.b16 %v1090
      %v1102 = vunpack.c.l.b16 %v1091
      %v1103 = vunpack.c.l.b16 %v1092
      %v1104 = vpack.c.b16 %v1101, %v1100
      %v1105 = vpack.c.b16 %v1103, %v1102
      %v1109 = vsel %vm403, %v1095, 0
      %1111 = vmatprep.subr.bf16.mxu0 0
      %1112 = vmatpush1.bf16.msra.mxu0 0
      %1113 = vmatprep.subr.bf16.mxu0 0
      %1114 = vmatpush1.bf16.msra.mxu0 0
      %1115 = vmatprep.subr.bf16.mxu0 0
      %1116 = vmatpush1.bf16.msra.mxu0 0
      %1117 = vmatprep.subr.bf16.mxu0 0
      %1118 = vmatpush1.bf16.msra.mxu0 0
      %1119 = vmatprep.subr.bf16.mxu0 0
      %1120 = vmatpush1.bf16.msra.mxu0 0
      %1121 = vmatprep.subr.bf16.mxu0 0
      %1122 = vmatpush1.bf16.msra.mxu0 0
      %1123 = vmatprep.subr.bf16.mxu0 0
      %1124 = vmatpush1.bf16.msra.mxu0 %v1105
      %1125 = vmatprep.subr.bf16.mxu0 0
      %1126 = vmatpush1.bf16.msra.mxu0 %v1104
      %1127 = vmatprep.subr.bf16.mxu0 0
      %1128 = vmatpush2.bf16.msra.mxu0 0
      %1129 = vmatprep.subr.bf16.mxu0 0
      %1130 = vmatpush2.bf16.msra.mxu0 0
      %1131 = vmatprep.subr.bf16.mxu0 0
      %1132 = vmatpush2.bf16.msra.mxu0 0
      %1133 = vmatprep.subr.bf16.mxu0 0
      %1134 = vmatpush2.bf16.msra.mxu0 0
      %1135 = vmatprep.subr.bf16.mxu0 0
      %1136 = vmatpush2.bf16.msra.mxu0 0
      %1137 = vmatprep.subr.bf16.mxu0 0
      %1138 = vmatpush2.bf16.msra.mxu0 0
      %1139 = vmatprep.subr.bf16.mxu0 0
      %1140 = vmatpush2.bf16.msra.mxu0 0
      %1141 = vmatprep.subr.bf16.mxu0 0
      %1142 = vmatpush2.bf16.msra.mxu0 0
      %1143 = vmatprep.mubr.bf16.mxu0 0
      %1144 = vmatmul.mubr.bf16.gmra.mxu0 %v517
      %v1145 = vpop.f32.mrf.mxu0
      %v1146 = vadd.f32 0.0, %v1145
      %v1147 = vpop.f32.mrf.mxu0
      %v1148 = vpop.f32.mrf.mxu0
      %v1149 = vadd.f32 0.0, %v1148
      %v1150 = vpop.f32.mrf.mxu0
      %1151 = vmatprep.mubr.bf16.mxu0 0
      %1152 = vmatmul.mubr.bf16.gmra.mxu0 %v520
      %v1153 = vpop.f32.mrf.mxu0
      %v1154 = vadd.f32 0.0, %v1153
      %v1155 = vpop.f32.mrf.mxu0
      %v1156 = vpop.f32.mrf.mxu0
      %v1157 = vadd.f32 0.0, %v1156
      %v1158 = vpop.f32.mrf.mxu0
      %1159 = vmatprep.mubr.bf16.mxu0 0
      %1160 = vmatmul.mubr.bf16.gmra.mxu0 %v523
      %v1161 = vpop.f32.mrf.mxu0
      %v1162 = vadd.f32 0.0, %v1161
      %v1163 = vpop.f32.mrf.mxu0
      %v1164 = vpop.f32.mrf.mxu0
      %v1165 = vadd.f32 0.0, %v1164
      %v1166 = vpop.f32.mrf.mxu0
      %1167 = vmatprep.mubr.bf16.mxu0 0
      %1168 = vmatmul.mubr.bf16.gmra.mxu0 %v1109
      %v1169 = vpop.f32.mrf.mxu0
      %v1170 = vadd.f32 0.0, %v1169
      %v1171 = vpop.f32.mrf.mxu0
      %v1172 = vpop.f32.mrf.mxu0
      %v1173 = vadd.f32 0.0, %v1172
      %v1174 = vpop.f32.mrf.mxu0
      %1175 = vdwg.mxu0
      %v1176 = vadd.f32 %v1080, %v1146
      %v1177 = vadd.f32 %v1081, %v1149
      %v1178 = vadd.f32 %v1082, %v1154
      %v1179 = vadd.f32 %v1083, %v1157
      %v1180 = vadd.f32 %v1084, %v1162
      %v1181 = vadd.f32 %v1085, %v1165
      %v1182 = vadd.f32 %v1086, %v1170
      %v1183 = vadd.f32 %v1087, %v1173
      %v1185 = vshrl.u32 %v253, 16
      %v1187 = vrot.slane %v1185, 4
      %v1188 = vshll.u32 %v253, 16
      %v1190 = vrot.slane %v1188, 5
      %v1191 = vor.u32 %v1187, %v1190
      %v1192 = vrot.slane %v1191, 4
      %v1194 = vshll.u32 %v254, 16
      %v1196 = vrot.slane %v1194, 5
      %v1197 = vsel %vm261, %v1192, %v1196
      %s1198 = scalar_lea.vmem %s1, 112
      %v1199 = vld [vmem:[%s1198] sm:$0xf]
      %v1200 = vld [vmem:[%s1198 + $0x4] sm:$0xf]
      %v1201 = vld [vmem:[%s1198 + $0x8] sm:$0xf]
      %v1202 = vld [vmem:[%s1198 + $0xc] sm:$0xf]
      %v1203 = vunpack.c.l.b16 %v1197
      %v1204 = vpack.c.b16 %v1203, %v874
      %v1209 = vunpack.c.l.b16 %v1199
      %v1210 = vunpack.c.l.b16 %v1200
      %v1211 = vunpack.c.l.b16 %v1201
      %v1212 = vunpack.c.l.b16 %v1202
      %v1213 = vpack.c.b16 %v1210, %v1209
      %v1214 = vpack.c.b16 %v1212, %v1211
      %v1218 = vsel %vm403, %v1204, 0
      %1220 = vmatprep.subr.bf16.mxu0 0
      %1221 = vmatpush1.bf16.msra.mxu0 0
      %1222 = vmatprep.subr.bf16.mxu0 0
      %1223 = vmatpush1.bf16.msra.mxu0 0
      %1224 = vmatprep.subr.bf16.mxu0 0
      %1225 = vmatpush1.bf16.msra.mxu0 0
      %1226 = vmatprep.subr.bf16.mxu0 0
      %1227 = vmatpush1.bf16.msra.mxu0 0
      %1228 = vmatprep.subr.bf16.mxu0 0
      %1229 = vmatpush1.bf16.msra.mxu0 0
      %1230 = vmatprep.subr.bf16.mxu0 0
      %1231 = vmatpush1.bf16.msra.mxu0 0
      %1232 = vmatprep.subr.bf16.mxu0 0
      %1233 = vmatpush1.bf16.msra.mxu0 %v1214
      %1234 = vmatprep.subr.bf16.mxu0 0
      %1235 = vmatpush1.bf16.msra.mxu0 %v1213
      %1236 = vmatprep.subr.bf16.mxu0 0
      %1237 = vmatpush2.bf16.msra.mxu0 0
      %1238 = vmatprep.subr.bf16.mxu0 0
      %1239 = vmatpush2.bf16.msra.mxu0 0
      %1240 = vmatprep.subr.bf16.mxu0 0
      %1241 = vmatpush2.bf16.msra.mxu0 0
      %1242 = vmatprep.subr.bf16.mxu0 0
      %1243 = vmatpush2.bf16.msra.mxu0 0
      %1244 = vmatprep.subr.bf16.mxu0 0
      %1245 = vmatpush2.bf16.msra.mxu0 0
      %1246 = vmatprep.subr.bf16.mxu0 0
      %1247 = vmatpush2.bf16.msra.mxu0 0
      %1248 = vmatprep.subr.bf16.mxu0 0
      %1249 = vmatpush2.bf16.msra.mxu0 0
      %1250 = vmatprep.subr.bf16.mxu0 0
      %1251 = vmatpush2.bf16.msra.mxu0 0
      %1252 = vmatprep.mubr.bf16.mxu0 0
      %1253 = vmatmul.mubr.bf16.gmra.mxu0 %v408
      %v1254 = vpop.f32.mrf.mxu0
      %v1255 = vadd.f32 0.0, %v1254
      %v1256 = vpop.f32.mrf.mxu0
      %v1257 = vpop.f32.mrf.mxu0
      %v1258 = vadd.f32 0.0, %v1257
      %v1259 = vpop.f32.mrf.mxu0
      %1260 = vmatprep.mubr.bf16.mxu0 0
      %1261 = vmatmul.mubr.bf16.gmra.mxu0 %v411
      %v1262 = vpop.f32.mrf.mxu0
      %v1263 = vadd.f32 0.0, %v1262
      %v1264 = vpop.f32.mrf.mxu0
      %v1265 = vpop.f32.mrf.mxu0
      %v1266 = vadd.f32 0.0, %v1265
      %v1267 = vpop.f32.mrf.mxu0
      %1268 = vmatprep.mubr.bf16.mxu0 0
      %1269 = vmatmul.mubr.bf16.gmra.mxu0 %v414
      %v1270 = vpop.f32.mrf.mxu0
      %v1271 = vadd.f32 0.0, %v1270
      %v1272 = vpop.f32.mrf.mxu0
      %v1273 = vpop.f32.mrf.mxu0
      %v1274 = vadd.f32 0.0, %v1273
      %v1275 = vpop.f32.mrf.mxu0
      %1276 = vmatprep.mubr.bf16.mxu0 0
      %1277 = vmatmul.mubr.bf16.gmra.mxu0 %v1218
      %v1278 = vpop.f32.mrf.mxu0
      %v1279 = vadd.f32 0.0, %v1278
      %v1280 = vpop.f32.mrf.mxu0
      %v1281 = vpop.f32.mrf.mxu0
      %v1282 = vadd.f32 0.0, %v1281
      %v1283 = vpop.f32.mrf.mxu0
      %1284 = vdwg.mxu0
      %v1285 = vadd.f32 %v1176, %v1255
      %v1286 = vadd.f32 %v1177, %v1258
      %v1287 = vadd.f32 %v1178, %v1263
      %v1288 = vadd.f32 %v1179, %v1266
      %v1289 = vadd.f32 %v1180, %v1271
      %v1290 = vadd.f32 %v1181, %v1274
      %v1291 = vadd.f32 %v1182, %v1279
      %v1292 = vadd.f32 %v1183, %v1282
      %v1294 = vrot.slane %v253, 5
      %v1295 = vrot.slane %v1294, 4
      %v1296 = vrot.slane %v254, 5
      %v1297 = vsel %vm600, %v1295, %v1296
      %s1298 = scalar_lea.vmem %s1, 128
      %v1299 = vld [vmem:[%s1298] sm:$0xf]
      %v1300 = vld [vmem:[%s1298 + $0x4] sm:$0xf]
      %v1301 = vld [vmem:[%s1298 + $0x8] sm:$0xf]
      %v1302 = vld [vmem:[%s1298 + $0xc] sm:$0xf]
      %v1303 = vunpack.c.l.b16 %v1297
      %v1304 = vpack.c.b16 %v1303, %v986
      %v1309 = vunpack.c.l.b16 %v1299
      %v1310 = vunpack.c.l.b16 %v1300
      %v1311 = vunpack.c.l.b16 %v1301
      %v1312 = vunpack.c.l.b16 %v1302
      %v1313 = vpack.c.b16 %v1310, %v1309
      %v1314 = vpack.c.b16 %v1312, %v1311
      %v1318 = vsel %vm403, %v1304, 0
      %1320 = vmatprep.subr.bf16.mxu0 0
      %1321 = vmatpush1.bf16.msra.mxu0 0
      %1322 = vmatprep.subr.bf16.mxu0 0
      %1323 = vmatpush1.bf16.msra.mxu0 0
      %1324 = vmatprep.subr.bf16.mxu0 0
      %1325 = vmatpush1.bf16.msra.mxu0 0
      %1326 = vmatprep.subr.bf16.mxu0 0
      %1327 = vmatpush1.bf16.msra.mxu0 0
      %1328 = vmatprep.subr.bf16.mxu0 0
      %1329 = vmatpush1.bf16.msra.mxu0 0
      %1330 = vmatprep.subr.bf16.mxu0 0
      %1331 = vmatpush1.bf16.msra.mxu0 0
      %1332 = vmatprep.subr.bf16.mxu0 0
      %1333 = vmatpush1.bf16.msra.mxu0 %v1314
      %1334 = vmatprep.subr.bf16.mxu0 0
      %1335 = vmatpush1.bf16.msra.mxu0 %v1313
      %1336 = vmatprep.subr.bf16.mxu0 0
      %1337 = vmatpush2.bf16.msra.mxu0 0
      %1338 = vmatprep.subr.bf16.mxu0 0
      %1339 = vmatpush2.bf16.msra.mxu0 0
      %1340 = vmatprep.subr.bf16.mxu0 0
      %1341 = vmatpush2.bf16.msra.mxu0 0
      %1342 = vmatprep.subr.bf16.mxu0 0
      %1343 = vmatpush2.bf16.msra.mxu0 0
      %1344 = vmatprep.subr.bf16.mxu0 0
      %1345 = vmatpush2.bf16.msra.mxu0 0
      %1346 = vmatprep.subr.bf16.mxu0 0
      %1347 = vmatpush2.bf16.msra.mxu0 0
      %1348 = vmatprep.subr.bf16.mxu0 0
      %1349 = vmatpush2.bf16.msra.mxu0 0
      %1350 = vmatprep.subr.bf16.mxu0 0
      %1351 = vmatpush2.bf16.msra.mxu0 0
      %1352 = vmatprep.mubr.bf16.mxu0 0
      %1353 = vmatmul.mubr.bf16.gmra.mxu0 %v666
      %v1354 = vpop.f32.mrf.mxu0
      %v1355 = vadd.f32 0.0, %v1354
      %v1356 = vpop.f32.mrf.mxu0
      %v1357 = vpop.f32.mrf.mxu0
      %v1358 = vadd.f32 0.0, %v1357
      %v1359 = vpop.f32.mrf.mxu0
      %1360 = vmatprep.mubr.bf16.mxu0 0
      %1361 = vmatmul.mubr.bf16.gmra.mxu0 %v669
      %v1362 = vpop.f32.mrf.mxu0
      %v1363 = vadd.f32 0.0, %v1362
      %v1364 = vpop.f32.mrf.mxu0
      %v1365 = vpop.f32.mrf.mxu0
      %v1366 = vadd.f32 0.0, %v1365
      %v1367 = vpop.f32.mrf.mxu0
      %1368 = vmatprep.mubr.bf16.mxu0 0
      %1369 = vmatmul.mubr.bf16.gmra.mxu0 %v672
      %v1370 = vpop.f32.mrf.mxu0
      %v1371 = vadd.f32 0.0, %v1370
      %v1372 = vpop.f32.mrf.mxu0
      %v1373 = vpop.f32.mrf.mxu0
      %v1374 = vadd.f32 0.0, %v1373
      %v1375 = vpop.f32.mrf.mxu0
      %1376 = vmatprep.mubr.bf16.mxu0 0
      %1377 = vmatmul.mubr.bf16.gmra.mxu0 %v1318
      %v1378 = vpop.f32.mrf.mxu0
      %v1379 = vadd.f32 0.0, %v1378
      %v1380 = vpop.f32.mrf.mxu0
      %v1381 = vpop.f32.mrf.mxu0
      %v1382 = vadd.f32 0.0, %v1381
      %v1383 = vpop.f32.mrf.mxu0
      %1384 = vdwg.mxu0
      %v1385 = vadd.f32 %v1285, %v1355
      %v1386 = vadd.f32 %v1286, %v1358
      %v1387 = vadd.f32 %v1287, %v1363
      %v1388 = vadd.f32 %v1288, %v1366
      %v1389 = vadd.f32 %v1289, %v1371
      %v1390 = vadd.f32 %v1290, %v1374
      %v1391 = vadd.f32 %v1291, %v1379
      %v1392 = vadd.f32 %v1292, %v1382
      %v1393 = vld [vmem:[%s2] sm:$0x1]
      %v1395 = vlaneseq
      %v1396 = vshrl.u32 %v1395, 7
      %v1397 = vsub.s32 0, %v1396
      %v1398 = vrot.slane %v1393, %v1397
      %v1400 = vmul.f32 %v1385, %v1398
      %v1401 = vmul.f32 %v1386, %v1398
      %v1402 = vmul.f32 %v1387, %v1398
      %v1403 = vmul.f32 %v1388, %v1398
      %v1404 = vmul.f32 %v1389, %v1398
      %v1405 = vmul.f32 %v1390, %v1398
      %v1406 = vmul.f32 %v1391, %v1398
      %v1407 = vmul.f32 %v1392, %v1398
      %v1408 = vld [vmem:[%s3] sm:$0x1]
      %v1410 = vlaneseq
      %v1411 = vshrl.u32 %v1410, 7
      %v1412 = vsub.s32 0, %v1411
      %v1413 = vrot.slane %v1408, %v1412
      %v1415 = vadd.f32 %v1400, %v1413
      %v1416 = vadd.f32 %v1401, %v1413
      %v1417 = vadd.f32 %v1402, %v1413
      %v1418 = vadd.f32 %v1403, %v1413
      %v1419 = vadd.f32 %v1404, %v1413
      %v1420 = vadd.f32 %v1405, %v1413
      %v1421 = vadd.f32 %v1406, %v1413
      %v1422 = vadd.f32 %v1407, %v1413
      %v1423 = vmax.f32 %v1415, 0.0
      %v1424 = vmax.f32 %v1416, 0.0
      %v1425 = vmax.f32 %v1417, 0.0
      %v1426 = vmax.f32 %v1418, 0.0
      %v1427 = vmax.f32 %v1419, 0.0
      %v1428 = vmax.f32 %v1420, 0.0
      %v1429 = vmax.f32 %v1421, 0.0
      %v1430 = vmax.f32 %v1422, 0.0
      %v1431 = vpack.c.bf16 %v1424, %v1423
      %v1432 = vpack.c.bf16 %v1426, %v1425
      %v1433 = vpack.c.bf16 %v1428, %v1427
      %v1434 = vpack.c.bf16 %v1430, %v1429
      %v1439 = vunpack.c.l.b16 %v1431
      %v1440 = vunpack.c.h.b16 %v1431
      %v1441 = vunpack.c.l.b16 %v1432
      %v1442 = vunpack.c.h.b16 %v1432
      %v1443 = vunpack.c.l.b16 %v1433
      %v1444 = vunpack.c.h.b16 %v1433
      %v1445 = vunpack.c.l.b16 %v1434
      %v1446 = vunpack.c.h.b16 %v1434
      %v1447 = vpack.c.b16 %v1439, %v1439
      %v1448 = vpack.c.b16 %v1440, %v1440
      %v1449 = vpack.c.b16 %v1441, %v1441
      %v1450 = vpack.c.b16 %v1442, %v1442
      %v1451 = vpack.c.b16 %v1443, %v1443
      %v1452 = vpack.c.b16 %v1444, %v1444
      %v1453 = vpack.c.b16 %v1445, %v1445
      %v1454 = vpack.c.b16 %v1446, %v1446
      %vm1463 = vcmask 519168
      %1464 = vst.msk [vmem:[%s233] sm:$0xf] %vm1463, %v1447
      %1465 = vst.msk [vmem:[%s233 + $0x4] sm:$0xf] %vm1463, %v1448
      %1466 = vst.msk [vmem:[%s233 + $0x8] sm:$0xf] %vm1463, %v1449
      %1467 = vst.msk [vmem:[%s233 + $0xc] sm:$0xf] %vm1463, %v1450
      %1468 = vst.msk [vmem:[%s233 + $0x10] sm:$0xf] %vm1463, %v1451
      %1469 = vst.msk [vmem:[%s233 + $0x14] sm:$0xf] %vm1463, %v1452
      %1470 = vst.msk [vmem:[%s233 + $0x18] sm:$0xf] %vm1463, %v1453
      %1471 = vst.msk [vmem:[%s233 + $0x1c] sm:$0xf] %vm1463, %v1454
      %p1472 = scmp.lt.s32.totalorder %s19, 0
      %s1473 = scalar_select %p1472, %s19, 0
      %p1474 = scmp.lt.s32.totalorder %s20, 3
      %s1475 = scalar_select %p1474, %s20, 3
      %s1476 = smul.addr %s1475, 8
      %s1477 = smul.addr %s1473, 32
      %s1478 = sadd.s32 %s1476, %s1477
      %s1479 = smul.addr %s1478, 4
      %s1480 = scalar_lea.vmem %s4, %s1479
      // Predicated region
      $region37: #{mixed_4e_forward.9} parent=35 // pred_check
        %p1481 = pneg %p138
      $region38: #{mixed_4e_forward.9} parent=35 // pred_check_branch
        %1483 = sbr.rel (%p1481) target = $region40
      $region39: #{mixed_4e_forward.9} parent=35 // pred_region
        _
      $region40: #{mixed_4e_forward.9} parent=35 // pred_fallthru
        _
    $region36: #{mixed_4e_forward.9} parent=5 // pred_fallthru
      _
    %p1484 = scmp.le.s32.totalorder 2, %s10
    // Predicated region
    $region41: #{mixed_4e_forward.9} parent=5 // pred_check
      %p1485 = pneg %p1484
    $region42: #{mixed_4e_forward.9} parent=5 // pred_check_branch
      %1487 = sbr.rel (%p1485) target = $region44
    $region43: #{mixed_4e_forward.9} parent=5 // pred_region
      %s1488 = ssub.s32 %s10, 2
      // Predicated region
      $region45: #{mixed_4e_forward.9} parent=43 // pred_check
        %p1489 = pneg %p144
      $region46: #{mixed_4e_forward.9} parent=43 // pred_check_branch
        %1491 = sbr.rel (%p1489) target = $region48
      $region47: #{mixed_4e_forward.9} parent=43 // pred_region
        %p1492 = scmp.lt.s32.totalorder %s21, 0
        %s1493 = scalar_select %p1492, %s21, 0
        %p1494 = scmp.lt.s32.totalorder %s22, 3
        %s1495 = scalar_select %p1494, %s22, 3
        %s1496 = smul.addr %s1495, 8
        %s1497 = smul.addr %s1493, 32
        %s1498 = sadd.s32 %s1496, %s1497
        %s1499 = smul.addr %s1498, 4
        %s1500 = scalar_lea.vmem %s4, %s1499
      $region48: #{mixed_4e_forward.9} parent=43 // pred_fallthru
        _
    $region44: #{mixed_4e_forward.9} parent=5 // pred_fallthru
      _
  $region6: #{mixed_4e_forward.9} parent=0 // loop_footer
    %s14 = sadd.s32 1, %s10
  $region7: #{mixed_4e_forward.9} parent=0 // loop_footer_branch
    %9 = sbr.rel target = $region3
  $region8: #{mixed_4e_forward.9} parent=0 // loop_exit
    _

// kernel: mixed_4e_forward.6
$region0: #{mixed_4e_forward.6}
  #allocation0 [shape = 'u32[]', space=smem, size = 0x4, offset = 0x4, fixed_abs, tag = 'smem constant byte address 0x4 - core index']
  #allocation1 [shape = 'u32[144,128]{1,0:T(1,128)}', space=vmem, size = 0x12000, scoped, tag = 'internal scratch']
  %s0 = inlined_call_operand.vmem [shape: bf16[256,512], index: 0, kind: input, shape index: {}]
  %s1 = inlined_call_operand.vmem [shape: bf16[512,288], index: 1, kind: input, shape index: {}]
  %s2 = inlined_call_operand.vmem [shape: f32[1,288], index: 2, kind: input, shape index: {}]
  %s3 = inlined_call_operand.vmem [shape: f32[1,288], index: 3, kind: input, shape index: {}]
  %s4 = inlined_call_operand.vmem [shape: bf16[256,288], index: 4, kind: output, shape index: {}]
  %s5 = sld [smem:[#allocation0]]
  $region26: #{mixed_4e_forward.6} parent=0
    _
  %s7 = ssub.s32 1, %s5
  %s8 = scalar_select 0, %s7, %s5
  // Predicated region
  $region2: #{mixed_4e_forward.6} parent=0 // pred_check
    _
  $region3: #{mixed_4e_forward.6} parent=0 // pred_check_branch
    %10 = sbr.rel (0) target = $region5
  $region4: #{mixed_4e_forward.6} parent=0 // pred_region
    _
  $region5: #{mixed_4e_forward.6} parent=0 // pred_fallthru
    _
  // Predicated region
  $region6: #{mixed_4e_forward.6} parent=0 // pred_check
    _
  $region7: #{mixed_4e_forward.6} parent=0 // pred_check_branch
    %12 = sbr.rel (0) target = $region9
  $region8: #{mixed_4e_forward.6} parent=0 // pred_region
    _
  $region9: #{mixed_4e_forward.6} parent=0 // pred_fallthru
    _
  // Predicated region
  $region10: #{mixed_4e_forward.6} parent=0 // pred_check
    _
  $region11: #{mixed_4e_forward.6} parent=0 // pred_check_branch
    %14 = sbr.rel (0) target = $region13
  $region12: #{mixed_4e_forward.6} parent=0 // pred_region
    _
  $region13: #{mixed_4e_forward.6} parent=0 // pred_fallthru
    _
  // Predicated region
  $region14: #{mixed_4e_forward.6} parent=0 // pred_check
    _
  $region15: #{mixed_4e_forward.6} parent=0 // pred_check_branch
    %16 = sbr.rel (0) target = $region17
  $region16: #{mixed_4e_forward.6} parent=0 // pred_region
    _
  $region17: #{mixed_4e_forward.6} parent=0 // pred_fallthru
    _
  %v18 = vld [vmem:[%s0] sm:$0xff]
  %v19 = vld [vmem:[%s0 + $0x8] sm:$0xff]
  %v20 = vld [vmem:[%s0 + $0x10] sm:$0xff]
  %v21 = vld [vmem:[%s0 + $0x18] sm:$0xff]
  %v22 = vld [vmem:[%s0 + $0x20] sm:$0xff]
  %v23 = vld [vmem:[%s0 + $0x28] sm:$0xff]
  %v24 = vld [vmem:[%s0 + $0x30] sm:$0xff]
  %v25 = vld [vmem:[%s0 + $0x38] sm:$0xff]
  %v26 = vld [vmem:[%s0 + $0x40] sm:$0xff]
  %v27 = vld [vmem:[%s0 + $0x48] sm:$0xff]
  %v28 = vld [vmem:[%s0 + $0x50] sm:$0xff]
  %v29 = vld [vmem:[%s0 + $0x58] sm:$0xff]
  %v30 = vld [vmem:[%s0 + $0x60] sm:$0xff]
  %v31 = vld [vmem:[%s0 + $0x68] sm:$0xff]
  %v32 = vld [vmem:[%s0 + $0x70] sm:$0xff]
  %v33 = vld [vmem:[%s0 + $0x78] sm:$0xff]
  %v34 = vld [vmem:[%s0 + $0x80] sm:$0xff]
  %v35 = vld [vmem:[%s0 + $0x88] sm:$0xff]
  %v36 = vld [vmem:[%s0 + $0x90] sm:$0xff]
  %v37 = vld [vmem:[%s0 + $0x98] sm:$0xff]
  %v38 = vld [vmem:[%s0 + $0xa0] sm:$0xff]
  %v39 = vld [vmem:[%s0 + $0xa8] sm:$0xff]
  %v40 = vld [vmem:[%s0 + $0xb0] sm:$0xff]
  %v41 = vld [vmem:[%s0 + $0xb8] sm:$0xff]
  %v42 = vld [vmem:[%s0 + $0xc0] sm:$0xff]
  %v43 = vld [vmem:[%s0 + $0xc8] sm:$0xff]
  %v44 = vld [vmem:[%s0 + $0xd0] sm:$0xff]
  %v45 = vld [vmem:[%s0 + $0xd8] sm:$0xff]
  %v46 = vld [vmem:[%s0 + $0xe0] sm:$0xff]
  %v47 = vld [vmem:[%s0 + $0xe8] sm:$0xff]
  %v48 = vld [vmem:[%s0 + $0xf0] sm:$0xff]
  %v49 = vld [vmem:[%s0 + $0xf8] sm:$0xff]
  %v50 = vld [vmem:[%s0 + $0x100] sm:$0xff]
  %v51 = vld [vmem:[%s0 + $0x108] sm:$0xff]
  %v52 = vld [vmem:[%s0 + $0x110] sm:$0xff]
  %v53 = vld [vmem:[%s0 + $0x118] sm:$0xff]
  %v54 = vld [vmem:[%s0 + $0x120] sm:$0xff]
  %v55 = vld [vmem:[%s0 + $0x128] sm:$0xff]
  %v56 = vld [vmem:[%s0 + $0x130] sm:$0xff]
  %v57 = vld [vmem:[%s0 + $0x138] sm:$0xff]
  %v58 = vld [vmem:[%s0 + $0x140] sm:$0xff]
  %v59 = vld [vmem:[%s0 + $0x148] sm:$0xff]
  %v60 = vld [vmem:[%s0 + $0x150] sm:$0xff]
  %v61 = vld [vmem:[%s0 + $0x158] sm:$0xff]
  %v62 = vld [vmem:[%s0 + $0x160] sm:$0xff]
  %v63 = vld [vmem:[%s0 + $0x168] sm:$0xff]
  %v64 = vld [vmem:[%s0 + $0x170] sm:$0xff]
  %v65 = vld [vmem:[%s0 + $0x178] sm:$0xff]
  %v66 = vld [vmem:[%s0 + $0x180] sm:$0xff]
  %v67 = vld [vmem:[%s0 + $0x188] sm:$0xff]
  %v68 = vld [vmem:[%s0 + $0x190] sm:$0xff]
  %v69 = vld [vmem:[%s0 + $0x198] sm:$0xff]
  %v70 = vld [vmem:[%s0 + $0x1a0] sm:$0xff]
  %v71 = vld [vmem:[%s0 + $0x1a8] sm:$0xff]
  %v72 = vld [vmem:[%s0 + $0x1b0] sm:$0xff]
  %v73 = vld [vmem:[%s0 + $0x1b8] sm:$0xff]
  %v74 = vld [vmem:[%s0 + $0x1c0] sm:$0xff]
  %v75 = vld [vmem:[%s0 + $0x1c8] sm:$0xff]
  %v76 = vld [vmem:[%s0 + $0x1d0] sm:$0xff]
  %v77 = vld [vmem:[%s0 + $0x1d8] sm:$0xff]
  %v78 = vld [vmem:[%s0 + $0x1e0] sm:$0xff]
  %v79 = vld [vmem:[%s0 + $0x1e8] sm:$0xff]
  %v80 = vld [vmem:[%s0 + $0x1f0] sm:$0xff]
  %v81 = vld [vmem:[%s0 + $0x1f8] sm:$0xff]
  %v82 = vld [vmem:[%s1] sm:$0xff]
  %v83 = vld [vmem:[%s1 + $0x8] sm:$0xf]
  %v84 = vld [vmem:[%s1 + $0xc] sm:$0xff]
  %v85 = vld [vmem:[%s1 + $0x14] sm:$0xf]
  %v86 = vld [vmem:[%s1 + $0x18] sm:$0xff]
  %v87 = vld [vmem:[%s1 + $0x20] sm:$0xf]
  %v88 = vld [vmem:[%s1 + $0x24] sm:$0xff]
  %v89 = vld [vmem:[%s1 + $0x2c] sm:$0xf]
  %v90 = vld [vmem:[%s1 + $0x30] sm:$0xff]
  %v91 = vld [vmem:[%s1 + $0x38] sm:$0xf]
  %v92 = vld [vmem:[%s1 + $0x3c] sm:$0xff]
  %v93 = vld [vmem:[%s1 + $0x44] sm:$0xf]
  %v94 = vld [vmem:[%s1 + $0x48] sm:$0xff]
  %v95 = vld [vmem:[%s1 + $0x50] sm:$0xf]
  %v96 = vld [vmem:[%s1 + $0x54] sm:$0xff]
  %v97 = vld [vmem:[%s1 + $0x5c] sm:$0xf]
  %v98 = vld [vmem:[%s1 + $0x60] sm:$0xff]
  %v99 = vld [vmem:[%s1 + $0x68] sm:$0xf]
  %v100 = vld [vmem:[%s1 + $0x6c] sm:$0xff]
  %v101 = vld [vmem:[%s1 + $0x74] sm:$0xf]
  %v102 = vld [vmem:[%s1 + $0x78] sm:$0xff]
  %v103 = vld [vmem:[%s1 + $0x80] sm:$0xf]
  %v104 = vld [vmem:[%s1 + $0x84] sm:$0xff]
  %v105 = vld [vmem:[%s1 + $0x8c] sm:$0xf]
  %v106 = vld [vmem:[%s1 + $0x90] sm:$0xff]
  %v107 = vld [vmem:[%s1 + $0x98] sm:$0xf]
  %v108 = vld [vmem:[%s1 + $0x9c] sm:$0xff]
  %v109 = vld [vmem:[%s1 + $0xa4] sm:$0xf]
  %v110 = vld [vmem:[%s1 + $0xa8] sm:$0xff]
  %v111 = vld [vmem:[%s1 + $0xb0] sm:$0xf]
  %v112 = vld [vmem:[%s1 + $0xb4] sm:$0xff]
  %v113 = vld [vmem:[%s1 + $0xbc] sm:$0xf]
  %v114 = vld [vmem:[%s1 + $0xc0] sm:$0xff]
  %v115 = vld [vmem:[%s1 + $0xc8] sm:$0xf]
  %v116 = vld [vmem:[%s1 + $0xcc] sm:$0xff]
  %v117 = vld [vmem:[%s1 + $0xd4] sm:$0xf]
  %v118 = vld [vmem:[%s1 + $0xd8] sm:$0xff]
  %v119 = vld [vmem:[%s1 + $0xe0] sm:$0xf]
  %v120 = vld [vmem:[%s1 + $0xe4] sm:$0xff]
  %v121 = vld [vmem:[%s1 + $0xec] sm:$0xf]
  %v122 = vld [vmem:[%s1 + $0xf0] sm:$0xff]
  %v123 = vld [vmem:[%s1 + $0xf8] sm:$0xf]
  %v124 = vld [vmem:[%s1 + $0xfc] sm:$0xff]
  %v125 = vld [vmem:[%s1 + $0x104] sm:$0xf]
  %v126 = vld [vmem:[%s1 + $0x108] sm:$0xff]
  %v127 = vld [vmem:[%s1 + $0x110] sm:$0xf]
  %v128 = vld [vmem:[%s1 + $0x114] sm:$0xff]
  %v129 = vld [vmem:[%s1 + $0x11c] sm:$0xf]
  %v130 = vld [vmem:[%s1 + $0x120] sm:$0xff]
  %v131 = vld [vmem:[%s1 + $0x128] sm:$0xf]
  %v132 = vld [vmem:[%s1 + $0x12c] sm:$0xff]
  %v133 = vld [vmem:[%s1 + $0x134] sm:$0xf]
  %v134 = vld [vmem:[%s1 + $0x138] sm:$0xff]
  %v135 = vld [vmem:[%s1 + $0x140] sm:$0xf]
  %v136 = vld [vmem:[%s1 + $0x144] sm:$0xff]
  %v137 = vld [vmem:[%s1 + $0x14c] sm:$0xf]
  %v138 = vld [vmem:[%s1 + $0x150] sm:$0xff]
  %v139 = vld [vmem:[%s1 + $0x158] sm:$0xf]
  %v140 = vld [vmem:[%s1 + $0x15c] sm:$0xff]
  %v141 = vld [vmem:[%s1 + $0x164] sm:$0xf]
  %v142 = vld [vmem:[%s1 + $0x168] sm:$0xff]
  %v143 = vld [vmem:[%s1 + $0x170] sm:$0xf]
  %v144 = vld [vmem:[%s1 + $0x174] sm:$0xff]
  %v145 = vld [vmem:[%s1 + $0x17c] sm:$0xf]
  %v146 = vld [vmem:[%s1 + $0x180] sm:$0xff]
  %v147 = vld [vmem:[%s1 + $0x188] sm:$0xf]
  %v148 = vld [vmem:[%s1 + $0x18c] sm:$0xff]
  %v149 = vld [vmem:[%s1 + $0x194] sm:$0xf]
  %v150 = vld [vmem:[%s1 + $0x198] sm:$0xff]
  %v151 = vld [vmem:[%s1 + $0x1a0] sm:$0xf]
  %v152 = vld [vmem:[%s1 + $0x1a4] sm:$0xff]
  %v153 = vld [vmem:[%s1 + $0x1ac] sm:$0xf]
  %v154 = vld [vmem:[%s1 + $0x1b0] sm:$0xff]
  %v155 = vld [vmem:[%s1 + $0x1b8] sm:$0xf]
  %v156 = vld [vmem:[%s1 + $0x1bc] sm:$0xff]
  %v157 = vld [vmem:[%s1 + $0x1c4] sm:$0xf]
  %v158 = vld [vmem:[%s1 + $0x1c8] sm:$0xff]
  %v159 = vld [vmem:[%s1 + $0x1d0] sm:$0xf]
  %v160 = vld [vmem:[%s1 + $0x1d4] sm:$0xff]
  %v161 = vld [vmem:[%s1 + $0x1dc] sm:$0xf]
  %v162 = vld [vmem:[%s1 + $0x1e0] sm:$0xff]
  %v163 = vld [vmem:[%s1 + $0x1e8] sm:$0xf]
  %v164 = vld [vmem:[%s1 + $0x1ec] sm:$0xff]
  %v165 = vld [vmem:[%s1 + $0x1f4] sm:$0xf]
  %v166 = vld [vmem:[%s1 + $0x1f8] sm:$0xff]
  %v167 = vld [vmem:[%s1 + $0x200] sm:$0xf]
  %v168 = vld [vmem:[%s1 + $0x204] sm:$0xff]
  %v169 = vld [vmem:[%s1 + $0x20c] sm:$0xf]
  %v170 = vld [vmem:[%s1 + $0x210] sm:$0xff]
  %v171 = vld [vmem:[%s1 + $0x218] sm:$0xf]
  %v172 = vld [vmem:[%s1 + $0x21c] sm:$0xff]
  %v173 = vld [vmem:[%s1 + $0x224] sm:$0xf]
  %v174 = vld [vmem:[%s1 + $0x228] sm:$0xff]
  %v175 = vld [vmem:[%s1 + $0x230] sm:$0xf]
  %v176 = vld [vmem:[%s1 + $0x234] sm:$0xff]
  %v177 = vld [vmem:[%s1 + $0x23c] sm:$0xf]
  %v178 = vld [vmem:[%s1 + $0x240] sm:$0xff]
  %v179 = vld [vmem:[%s1 + $0x248] sm:$0xf]
  %v180 = vld [vmem:[%s1 + $0x24c] sm:$0xff]
  %v181 = vld [vmem:[%s1 + $0x254] sm:$0xf]
  %v182 = vld [vmem:[%s1 + $0x258] sm:$0xff]
  %v183 = vld [vmem:[%s1 + $0x260] sm:$0xf]
  %v184 = vld [vmem:[%s1 + $0x264] sm:$0xff]
  %v185 = vld [vmem:[%s1 + $0x26c] sm:$0xf]
  %v186 = vld [vmem:[%s1 + $0x270] sm:$0xff]
  %v187 = vld [vmem:[%s1 + $0x278] sm:$0xf]
  %v188 = vld [vmem:[%s1 + $0x27c] sm:$0xff]
  %v189 = vld [vmem:[%s1 + $0x284] sm:$0xf]
  %v190 = vld [vmem:[%s1 + $0x288] sm:$0xff]
  %v191 = vld [vmem:[%s1 + $0x290] sm:$0xf]
  %v192 = vld [vmem:[%s1 + $0x294] sm:$0xff]
  %v193 = vld [vmem:[%s1 + $0x29c] sm:$0xf]
  %v194 = vld [vmem:[%s1 + $0x2a0] sm:$0xff]
  %v195 = vld [vmem:[%s1 + $0x2a8] sm:$0xf]
  %v196 = vld [vmem:[%s1 + $0x2ac] sm:$0xff]
  %v197 = vld [vmem:[%s1 + $0x2b4] sm:$0xf]
  %v198 = vld [vmem:[%s1 + $0x2b8] sm:$0xff]
  %v199 = vld [vmem:[%s1 + $0x2c0] sm:$0xf]
  %v200 = vld [vmem:[%s1 + $0x2c4] sm:$0xff]
  %v201 = vld [vmem:[%s1 + $0x2cc] sm:$0xf]
  %v202 = vld [vmem:[%s1 + $0x2d0] sm:$0xff]
  %v203 = vld [vmem:[%s1 + $0x2d8] sm:$0xf]
  %v204 = vld [vmem:[%s1 + $0x2dc] sm:$0xff]
  %v205 = vld [vmem:[%s1 + $0x2e4] sm:$0xf]
  %v206 = vld [vmem:[%s1 + $0x2e8] sm:$0xff]
  %v207 = vld [vmem:[%s1 + $0x2f0] sm:$0xf]
  %v208 = vld [vmem:[%s1 + $0x2f4] sm:$0xff]
  %v209 = vld [vmem:[%s1 + $0x2fc] sm:$0xf]
  %v274 = vunpack.c.l.b16 %v18
  %v275 = vunpack.c.h.b16 %v18
  %v276 = vunpack.c.l.b16 %v19
  %v277 = vunpack.c.h.b16 %v19
  %v278 = vunpack.c.l.b16 %v20
  %v279 = vunpack.c.h.b16 %v20
  %v280 = vunpack.c.l.b16 %v21
  %v281 = vunpack.c.h.b16 %v21
  %v282 = vunpack.c.l.b16 %v22
  %v283 = vunpack.c.h.b16 %v22
  %v284 = vunpack.c.l.b16 %v23
  %v285 = vunpack.c.h.b16 %v23
  %v286 = vunpack.c.l.b16 %v24
  %v287 = vunpack.c.h.b16 %v24
  %v288 = vunpack.c.l.b16 %v25
  %v289 = vunpack.c.h.b16 %v25
  %v290 = vunpack.c.l.b16 %v26
  %v291 = vunpack.c.h.b16 %v26
  %v292 = vunpack.c.l.b16 %v27
  %v293 = vunpack.c.h.b16 %v27
  %v294 = vunpack.c.l.b16 %v28
  %v295 = vunpack.c.h.b16 %v28
  %v296 = vunpack.c.l.b16 %v29
  %v297 = vunpack.c.h.b16 %v29
  %v298 = vunpack.c.l.b16 %v30
  %v299 = vunpack.c.h.b16 %v30
  %v300 = vunpack.c.l.b16 %v31
  %v301 = vunpack.c.h.b16 %v31
  %v302 = vunpack.c.l.b16 %v32
  %v303 = vunpack.c.h.b16 %v32
  %v304 = vunpack.c.l.b16 %v33
  %v305 = vunpack.c.h.b16 %v33
  %v306 = vunpack.c.l.b16 %v34
  %v307 = vunpack.c.h.b16 %v34
  %v308 = vunpack.c.l.b16 %v35
  %v309 = vunpack.c.h.b16 %v35
  %v310 = vunpack.c.l.b16 %v36
  %v311 = vunpack.c.h.b16 %v36
  %v312 = vunpack.c.l.b16 %v37
  %v313 = vunpack.c.h.b16 %v37
  %v314 = vunpack.c.l.b16 %v38
  %v315 = vunpack.c.h.b16 %v38
  %v316 = vunpack.c.l.b16 %v39
  %v317 = vunpack.c.h.b16 %v39
  %v318 = vunpack.c.l.b16 %v40
  %v319 = vunpack.c.h.b16 %v40
  %v320 = vunpack.c.l.b16 %v41
  %v321 = vunpack.c.h.b16 %v41
  %v322 = vunpack.c.l.b16 %v42
  %v323 = vunpack.c.h.b16 %v42
  %v324 = vunpack.c.l.b16 %v43
  %v325 = vunpack.c.h.b16 %v43
  %v326 = vunpack.c.l.b16 %v44
  %v327 = vunpack.c.h.b16 %v44
  %v328 = vunpack.c.l.b16 %v45
  %v329 = vunpack.c.h.b16 %v45
  %v330 = vunpack.c.l.b16 %v46
  %v331 = vunpack.c.h.b16 %v46
  %v332 = vunpack.c.l.b16 %v47
  %v333 = vunpack.c.h.b16 %v47
  %v334 = vunpack.c.l.b16 %v48
  %v335 = vunpack.c.h.b16 %v48
  %v336 = vunpack.c.l.b16 %v49
  %v337 = vunpack.c.h.b16 %v49
  %v338 = vunpack.c.l.b16 %v50
  %v339 = vunpack.c.h.b16 %v50
  %v340 = vunpack.c.l.b16 %v51
  %v341 = vunpack.c.h.b16 %v51
  %v342 = vunpack.c.l.b16 %v52
  %v343 = vunpack.c.h.b16 %v52
  %v344 = vunpack.c.l.b16 %v53
  %v345 = vunpack.c.h.b16 %v53
  %v346 = vunpack.c.l.b16 %v54
  %v347 = vunpack.c.h.b16 %v54
  %v348 = vunpack.c.l.b16 %v55
  %v349 = vunpack.c.h.b16 %v55
  %v350 = vunpack.c.l.b16 %v56
  %v351 = vunpack.c.h.b16 %v56
  %v352 = vunpack.c.l.b16 %v57
  %v353 = vunpack.c.h.b16 %v57
  %v354 = vunpack.c.l.b16 %v58
  %v355 = vunpack.c.h.b16 %v58
  %v356 = vunpack.c.l.b16 %v59
  %v357 = vunpack.c.h.b16 %v59
  %v358 = vunpack.c.l.b16 %v60
  %v359 = vunpack.c.h.b16 %v60
  %v360 = vunpack.c.l.b16 %v61
  %v361 = vunpack.c.h.b16 %v61
  %v362 = vunpack.c.l.b16 %v62
  %v363 = vunpack.c.h.b16 %v62
  %v364 = vunpack.c.l.b16 %v63
  %v365 = vunpack.c.h.b16 %v63
  %v366 = vunpack.c.l.b16 %v64
  %v367 = vunpack.c.h.b16 %v64
  %v368 = vunpack.c.l.b16 %v65
  %v369 = vunpack.c.h.b16 %v65
  %v370 = vunpack.c.l.b16 %v66
  %v371 = vunpack.c.h.b16 %v66
  %v372 = vunpack.c.l.b16 %v67
  %v373 = vunpack.c.h.b16 %v67
  %v374 = vunpack.c.l.b16 %v68
  %v375 = vunpack.c.h.b16 %v68
  %v376 = vunpack.c.l.b16 %v69
  %v377 = vunpack.c.h.b16 %v69
  %v378 = vunpack.c.l.b16 %v70
  %v379 = vunpack.c.h.b16 %v70
  %v380 = vunpack.c.l.b16 %v71
  %v381 = vunpack.c.h.b16 %v71
  %v382 = vunpack.c.l.b16 %v72
  %v383 = vunpack.c.h.b16 %v72
  %v384 = vunpack.c.l.b16 %v73
  %v385 = vunpack.c.h.b16 %v73
  %v386 = vunpack.c.l.b16 %v74
  %v387 = vunpack.c.h.b16 %v74
  %v388 = vunpack.c.l.b16 %v75
  %v389 = vunpack.c.h.b16 %v75
  %v390 = vunpack.c.l.b16 %v76
  %v391 = vunpack.c.h.b16 %v76
  %v392 = vunpack.c.l.b16 %v77
  %v393 = vunpack.c.h.b16 %v77
  %v394 = vunpack.c.l.b16 %v78
  %v395 = vunpack.c.h.b16 %v78
  %v396 = vunpack.c.l.b16 %v79
  %v397 = vunpack.c.h.b16 %v79
  %v398 = vunpack.c.l.b16 %v80
  %v399 = vunpack.c.h.b16 %v80
  %v400 = vunpack.c.l.b16 %v81
  %v401 = vunpack.c.h.b16 %v81
  %v402 = vpack.c.b16 %v278, %v274
  %v403 = vpack.c.b16 %v279, %v275
  %v404 = vpack.c.b16 %v280, %v276
  %v405 = vpack.c.b16 %v281, %v277
  %v406 = vpack.c.b16 %v286, %v282
  %v407 = vpack.c.b16 %v287, %v283
  %v408 = vpack.c.b16 %v288, %v284
  %v409 = vpack.c.b16 %v289, %v285
  %v410 = vpack.c.b16 %v294, %v290
  %v411 = vpack.c.b16 %v295, %v291
  %v412 = vpack.c.b16 %v296, %v292
  %v413 = vpack.c.b16 %v297, %v293
  %v414 = vpack.c.b16 %v302, %v298
  %v415 = vpack.c.b16 %v303, %v299
  %v416 = vpack.c.b16 %v304, %v300
  %v417 = vpack.c.b16 %v305, %v301
  %v418 = vpack.c.b16 %v310, %v306
  %v419 = vpack.c.b16 %v311, %v307
  %v420 = vpack.c.b16 %v312, %v308
  %v421 = vpack.c.b16 %v313, %v309
  %v422 = vpack.c.b16 %v318, %v314
  %v423 = vpack.c.b16 %v319, %v315
  %v424 = vpack.c.b16 %v320, %v316
  %v425 = vpack.c.b16 %v321, %v317
  %v426 = vpack.c.b16 %v326, %v322
  %v427 = vpack.c.b16 %v327, %v323
  %v428 = vpack.c.b16 %v328, %v324
  %v429 = vpack.c.b16 %v329, %v325
  %v430 = vpack.c.b16 %v334, %v330
  %v431 = vpack.c.b16 %v335, %v331
  %v432 = vpack.c.b16 %v336, %v332
  %v433 = vpack.c.b16 %v337, %v333
  %v434 = vpack.c.b16 %v342, %v338
  %v435 = vpack.c.b16 %v343, %v339
  %v436 = vpack.c.b16 %v344, %v340
  %v437 = vpack.c.b16 %v345, %v341
  %v438 = vpack.c.b16 %v350, %v346
  %v439 = vpack.c.b16 %v351, %v347
  %v440 = vpack.c.b16 %v352, %v348
  %v441 = vpack.c.b16 %v353, %v349
  %v442 = vpack.c.b16 %v358, %v354
  %v443 = vpack.c.b16 %v359, %v355
  %v444 = vpack.c.b16 %v360, %v356
  %v445 = vpack.c.b16 %v361, %v357
  %v446 = vpack.c.b16 %v366, %v362
  %v447 = vpack.c.b16 %v367, %v363
  %v448 = vpack.c.b16 %v368, %v364
  %v449 = vpack.c.b16 %v369, %v365
  %v450 = vpack.c.b16 %v374, %v370
  %v451 = vpack.c.b16 %v375, %v371
  %v452 = vpack.c.b16 %v376, %v372
  %v453 = vpack.c.b16 %v377, %v373
  %v454 = vpack.c.b16 %v382, %v378
  %v455 = vpack.c.b16 %v383, %v379
  %v456 = vpack.c.b16 %v384, %v380
  %v457 = vpack.c.b16 %v385, %v381
  %v458 = vpack.c.b16 %v390, %v386
  %v459 = vpack.c.b16 %v391, %v387
  %v460 = vpack.c.b16 %v392, %v388
  %v461 = vpack.c.b16 %v393, %v389
  %v462 = vpack.c.b16 %v398, %v394
  %v463 = vpack.c.b16 %v399, %v395
  %v464 = vpack.c.b16 %v400, %v396
  %v465 = vpack.c.b16 %v401, %v397
  %v658 = vunpack.c.l.b16 %v82
  %v659 = vunpack.c.h.b16 %v82
  %v660 = vunpack.c.l.b16 %v83
  %v661 = vunpack.c.l.b16 %v84
  %v662 = vunpack.c.h.b16 %v84
  %v663 = vunpack.c.l.b16 %v85
  %v664 = vunpack.c.l.b16 %v86
  %v665 = vunpack.c.h.b16 %v86
  %v666 = vunpack.c.l.b16 %v87
  %v667 = vunpack.c.l.b16 %v88
  %v668 = vunpack.c.h.b16 %v88
  %v669 = vunpack.c.l.b16 %v89
  %v670 = vunpack.c.l.b16 %v90
  %v671 = vunpack.c.h.b16 %v90
  %v672 = vunpack.c.l.b16 %v91
  %v673 = vunpack.c.l.b16 %v92
  %v674 = vunpack.c.h.b16 %v92
  %v675 = vunpack.c.l.b16 %v93
  %v676 = vunpack.c.l.b16 %v94
  %v677 = vunpack.c.h.b16 %v94
  %v678 = vunpack.c.l.b16 %v95
  %v679 = vunpack.c.l.b16 %v96
  %v680 = vunpack.c.h.b16 %v96
  %v681 = vunpack.c.l.b16 %v97
  %v682 = vunpack.c.l.b16 %v98
  %v683 = vunpack.c.h.b16 %v98
  %v684 = vunpack.c.l.b16 %v99
  %v685 = vunpack.c.l.b16 %v100
  %v686 = vunpack.c.h.b16 %v100
  %v687 = vunpack.c.l.b16 %v101
  %v688 = vunpack.c.l.b16 %v102
  %v689 = vunpack.c.h.b16 %v102
  %v690 = vunpack.c.l.b16 %v103
  %v691 = vunpack.c.l.b16 %v104
  %v692 = vunpack.c.h.b16 %v104
  %v693 = vunpack.c.l.b16 %v105
  %v694 = vunpack.c.l.b16 %v106
  %v695 = vunpack.c.h.b16 %v106
  %v696 = vunpack.c.l.b16 %v107
  %v697 = vunpack.c.l.b16 %v108
  %v698 = vunpack.c.h.b16 %v108
  %v699 = vunpack.c.l.b16 %v109
  %v700 = vunpack.c.l.b16 %v110
  %v701 = vunpack.c.h.b16 %v110
  %v702 = vunpack.c.l.b16 %v111
  %v703 = vunpack.c.l.b16 %v112
  %v704 = vunpack.c.h.b16 %v112
  %v705 = vunpack.c.l.b16 %v113
  %v706 = vunpack.c.l.b16 %v114
  %v707 = vunpack.c.h.b16 %v114
  %v708 = vunpack.c.l.b16 %v115
  %v709 = vunpack.c.l.b16 %v116
  %v710 = vunpack.c.h.b16 %v116
  %v711 = vunpack.c.l.b16 %v117
  %v712 = vunpack.c.l.b16 %v118
  %v713 = vunpack.c.h.b16 %v118
  %v714 = vunpack.c.l.b16 %v119
  %v715 = vunpack.c.l.b16 %v120
  %v716 = vunpack.c.h.b16 %v120
  %v717 = vunpack.c.l.b16 %v121
  %v718 = vunpack.c.l.b16 %v122
  %v719 = vunpack.c.h.b16 %v122
  %v720 = vunpack.c.l.b16 %v123
  %v721 = vunpack.c.l.b16 %v124
  %v722 = vunpack.c.h.b16 %v124
  %v723 = vunpack.c.l.b16 %v125
  %v724 = vunpack.c.l.b16 %v126
  %v725 = vunpack.c.h.b16 %v126
  %v726 = vunpack.c.l.b16 %v127
  %v727 = vunpack.c.l.b16 %v128
  %v728 = vunpack.c.h.b16 %v128
  %v729 = vunpack.c.l.b16 %v129
  %v730 = vunpack.c.l.b16 %v130
  %v731 = vunpack.c.h.b16 %v130
  %v732 = vunpack.c.l.b16 %v131
  %v733 = vunpack.c.l.b16 %v132
  %v734 = vunpack.c.h.b16 %v132
  %v735 = vunpack.c.l.b16 %v133
  %v736 = vunpack.c.l.b16 %v134
  %v737 = vunpack.c.h.b16 %v134
  %v738 = vunpack.c.l.b16 %v135
  %v739 = vunpack.c.l.b16 %v136
  %v740 = vunpack.c.h.b16 %v136
  %v741 = vunpack.c.l.b16 %v137
  %v742 = vunpack.c.l.b16 %v138
  %v743 = vunpack.c.h.b16 %v138
  %v744 = vunpack.c.l.b16 %v139
  %v745 = vunpack.c.l.b16 %v140
  %v746 = vunpack.c.h.b16 %v140
  %v747 = vunpack.c.l.b16 %v141
  %v748 = vunpack.c.l.b16 %v142
  %v749 = vunpack.c.h.b16 %v142
  %v750 = vunpack.c.l.b16 %v143
  %v751 = vunpack.c.l.b16 %v144
  %v752 = vunpack.c.h.b16 %v144
  %v753 = vunpack.c.l.b16 %v145
  %v754 = vunpack.c.l.b16 %v146
  %v755 = vunpack.c.h.b16 %v146
  %v756 = vunpack.c.l.b16 %v147
  %v757 = vunpack.c.l.b16 %v148
  %v758 = vunpack.c.h.b16 %v148
  %v759 = vunpack.c.l.b16 %v149
  %v760 = vunpack.c.l.b16 %v150
  %v761 = vunpack.c.h.b16 %v150
  %v762 = vunpack.c.l.b16 %v151
  %v763 = vunpack.c.l.b16 %v152
  %v764 = vunpack.c.h.b16 %v152
  %v765 = vunpack.c.l.b16 %v153
  %v766 = vunpack.c.l.b16 %v154
  %v767 = vunpack.c.h.b16 %v154
  %v768 = vunpack.c.l.b16 %v155
  %v769 = vunpack.c.l.b16 %v156
  %v770 = vunpack.c.h.b16 %v156
  %v771 = vunpack.c.l.b16 %v157
  %v772 = vunpack.c.l.b16 %v158
  %v773 = vunpack.c.h.b16 %v158
  %v774 = vunpack.c.l.b16 %v159
  %v775 = vunpack.c.l.b16 %v160
  %v776 = vunpack.c.h.b16 %v160
  %v777 = vunpack.c.l.b16 %v161
  %v778 = vunpack.c.l.b16 %v162
  %v779 = vunpack.c.h.b16 %v162
  %v780 = vunpack.c.l.b16 %v163
  %v781 = vunpack.c.l.b16 %v164
  %v782 = vunpack.c.h.b16 %v164
  %v783 = vunpack.c.l.b16 %v165
  %v784 = vunpack.c.l.b16 %v166
  %v785 = vunpack.c.h.b16 %v166
  %v786 = vunpack.c.l.b16 %v167
  %v787 = vunpack.c.l.b16 %v168
  %v788 = vunpack.c.h.b16 %v168
  %v789 = vunpack.c.l.b16 %v169
  %v790 = vunpack.c.l.b16 %v170
  %v791 = vunpack.c.h.b16 %v170
  %v792 = vunpack.c.l.b16 %v171
  %v793 = vunpack.c.l.b16 %v172
  %v794 = vunpack.c.h.b16 %v172
  %v795 = vunpack.c.l.b16 %v173
  %v796 = vunpack.c.l.b16 %v174
  %v797 = vunpack.c.h.b16 %v174
  %v798 = vunpack.c.l.b16 %v175
  %v799 = vunpack.c.l.b16 %v176
  %v800 = vunpack.c.h.b16 %v176
  %v801 = vunpack.c.l.b16 %v177
  %v802 = vunpack.c.l.b16 %v178
  %v803 = vunpack.c.h.b16 %v178
  %v804 = vunpack.c.l.b16 %v179
  %v805 = vunpack.c.l.b16 %v180
  %v806 = vunpack.c.h.b16 %v180
  %v807 = vunpack.c.l.b16 %v181
  %v808 = vunpack.c.l.b16 %v182
  %v809 = vunpack.c.h.b16 %v182
  %v810 = vunpack.c.l.b16 %v183
  %v811 = vunpack.c.l.b16 %v184
  %v812 = vunpack.c.h.b16 %v184
  %v813 = vunpack.c.l.b16 %v185
  %v814 = vunpack.c.l.b16 %v186
  %v815 = vunpack.c.h.b16 %v186
  %v816 = vunpack.c.l.b16 %v187
  %v817 = vunpack.c.l.b16 %v188
  %v818 = vunpack.c.h.b16 %v188
  %v819 = vunpack.c.l.b16 %v189
  %v820 = vunpack.c.l.b16 %v190
  %v821 = vunpack.c.h.b16 %v190
  %v822 = vunpack.c.l.b16 %v191
  %v823 = vunpack.c.l.b16 %v192
  %v824 = vunpack.c.h.b16 %v192
  %v825 = vunpack.c.l.b16 %v193
  %v826 = vunpack.c.l.b16 %v194
  %v827 = vunpack.c.h.b16 %v194
  %v828 = vunpack.c.l.b16 %v195
  %v829 = vunpack.c.l.b16 %v196
  %v830 = vunpack.c.h.b16 %v196
  %v831 = vunpack.c.l.b16 %v197
  %v832 = vunpack.c.l.b16 %v198
  %v833 = vunpack.c.h.b16 %v198
  %v834 = vunpack.c.l.b16 %v199
  %v835 = vunpack.c.l.b16 %v200
  %v836 = vunpack.c.h.b16 %v200
  %v837 = vunpack.c.l.b16 %v201
  %v838 = vunpack.c.l.b16 %v202
  %v839 = vunpack.c.h.b16 %v202
  %v840 = vunpack.c.l.b16 %v203
  %v841 = vunpack.c.l.b16 %v204
  %v842 = vunpack.c.h.b16 %v204
  %v843 = vunpack.c.l.b16 %v205
  %v844 = vunpack.c.l.b16 %v206
  %v845 = vunpack.c.h.b16 %v206
  %v846 = vunpack.c.l.b16 %v207
  %v847 = vunpack.c.l.b16 %v208
  %v848 = vunpack.c.h.b16 %v208
  %v849 = vunpack.c.l.b16 %v209
  %v850 = vpack.c.b16 %v661, %v658
  %v851 = vpack.c.b16 %v662, %v659
  %v852 = vpack.c.b16 %v663, %v660
  %v853 = vpack.c.b16 %v667, %v664
  %v854 = vpack.c.b16 %v668, %v665
  %v855 = vpack.c.b16 %v669, %v666
  %v856 = vpack.c.b16 %v673, %v670
  %v857 = vpack.c.b16 %v674, %v671
  %v858 = vpack.c.b16 %v675, %v672
  %v859 = vpack.c.b16 %v679, %v676
  %v860 = vpack.c.b16 %v680, %v677
  %v861 = vpack.c.b16 %v681, %v678
  %v862 = vpack.c.b16 %v685, %v682
  %v863 = vpack.c.b16 %v686, %v683
  %v864 = vpack.c.b16 %v687, %v684
  %v865 = vpack.c.b16 %v691, %v688
  %v866 = vpack.c.b16 %v692, %v689
  %v867 = vpack.c.b16 %v693, %v690
  %v868 = vpack.c.b16 %v697, %v694
  %v869 = vpack.c.b16 %v698, %v695
  %v870 = vpack.c.b16 %v699, %v696
  %v871 = vpack.c.b16 %v703, %v700
  %v872 = vpack.c.b16 %v704, %v701
  %v873 = vpack.c.b16 %v705, %v702
  %v874 = vpack.c.b16 %v709, %v706
  %v875 = vpack.c.b16 %v710, %v707
  %v876 = vpack.c.b16 %v711, %v708
  %v877 = vpack.c.b16 %v715, %v712
  %v878 = vpack.c.b16 %v716, %v713
  %v879 = vpack.c.b16 %v717, %v714
  %v880 = vpack.c.b16 %v721, %v718
  %v881 = vpack.c.b16 %v722, %v719
  %v882 = vpack.c.b16 %v723, %v720
  %v883 = vpack.c.b16 %v727, %v724
  %v884 = vpack.c.b16 %v728, %v725
  %v885 = vpack.c.b16 %v729, %v726
  %v886 = vpack.c.b16 %v733, %v730
  %v887 = vpack.c.b16 %v734, %v731
  %v888 = vpack.c.b16 %v735, %v732
  %v889 = vpack.c.b16 %v739, %v736
  %v890 = vpack.c.b16 %v740, %v737
  %v891 = vpack.c.b16 %v741, %v738
  %v892 = vpack.c.b16 %v745, %v742
  %v893 = vpack.c.b16 %v746, %v743
  %v894 = vpack.c.b16 %v747, %v744
  %v895 = vpack.c.b16 %v751, %v748
  %v896 = vpack.c.b16 %v752, %v749
  %v897 = vpack.c.b16 %v753, %v750
  %v898 = vpack.c.b16 %v757, %v754
  %v899 = vpack.c.b16 %v758, %v755
  %v900 = vpack.c.b16 %v759, %v756
  %v901 = vpack.c.b16 %v763, %v760
  %v902 = vpack.c.b16 %v764, %v761
  %v903 = vpack.c.b16 %v765, %v762
  %v904 = vpack.c.b16 %v769, %v766
  %v905 = vpack.c.b16 %v770, %v767
  %v906 = vpack.c.b16 %v771, %v768
  %v907 = vpack.c.b16 %v775, %v772
  %v908 = vpack.c.b16 %v776, %v773
  %v909 = vpack.c.b16 %v777, %v774
  %v910 = vpack.c.b16 %v781, %v778
  %v911 = vpack.c.b16 %v782, %v779
  %v912 = vpack.c.b16 %v783, %v780
  %v913 = vpack.c.b16 %v787, %v784
  %v914 = vpack.c.b16 %v788, %v785
  %v915 = vpack.c.b16 %v789, %v786
  %v916 = vpack.c.b16 %v793, %v790
  %v917 = vpack.c.b16 %v794, %v791
  %v918 = vpack.c.b16 %v795, %v792
  %v919 = vpack.c.b16 %v799, %v796
  %v920 = vpack.c.b16 %v800, %v797
  %v921 = vpack.c.b16 %v801, %v798
  %v922 = vpack.c.b16 %v805, %v802
  %v923 = vpack.c.b16 %v806, %v803
  %v924 = vpack.c.b16 %v807, %v804
  %v925 = vpack.c.b16 %v811, %v808
  %v926 = vpack.c.b16 %v812, %v809
  %v927 = vpack.c.b16 %v813, %v810
  %v928 = vpack.c.b16 %v817, %v814
  %v929 = vpack.c.b16 %v818, %v815
  %v930 = vpack.c.b16 %v819, %v816
  %v931 = vpack.c.b16 %v823, %v820
  %v932 = vpack.c.b16 %v824, %v821
  %v933 = vpack.c.b16 %v825, %v822
  %v934 = vpack.c.b16 %v829, %v826
  %v935 = vpack.c.b16 %v830, %v827
  %v936 = vpack.c.b16 %v831, %v828
  %v937 = vpack.c.b16 %v835, %v832
  %v938 = vpack.c.b16 %v836, %v833
  %v939 = vpack.c.b16 %v837, %v834
  %v940 = vpack.c.b16 %v841, %v838
  %v941 = vpack.c.b16 %v842, %v839
  %v942 = vpack.c.b16 %v843, %v840
  %v943 = vpack.c.b16 %v847, %v844
  %v944 = vpack.c.b16 %v848, %v845
  %v945 = vpack.c.b16 %v849, %v846
  %1042 = vmatprep.subr.bf16.mxu0 %v872
  %1043 = vmatpush1.bf16.msra.mxu0 %v871
  %1044 = vmatprep.subr.bf16.mxu0 %v869
  %1045 = vmatpush1.bf16.msra.mxu0 %v868
  %1046 = vmatprep.subr.bf16.mxu0 %v866
  %1047 = vmatpush1.bf16.msra.mxu0 %v865
  %1048 = vmatprep.subr.bf16.mxu0 %v863
  %1049 = vmatpush1.bf16.msra.mxu0 %v862
  %1050 = vmatprep.subr.bf16.mxu0 %v860
  %1051 = vmatpush1.bf16.msra.mxu0 %v859
  %1052 = vmatprep.subr.bf16.mxu0 %v857
  %1053 = vmatpush1.bf16.msra.mxu0 %v856
  %1054 = vmatprep.subr.bf16.mxu0 %v854
  %1055 = vmatpush1.bf16.msra.mxu0 %v853
  %1056 = vmatprep.subr.bf16.mxu0 %v851
  %1057 = vmatpush1.bf16.msra.mxu0 %v850
  %1058 = vmatprep.subr.bf16.mxu0 %v896
  %1059 = vmatpush2.bf16.msra.mxu0 %v895
  %1060 = vmatprep.subr.bf16.mxu0 %v893
  %1061 = vmatpush2.bf16.msra.mxu0 %v892
  %1062 = vmatprep.subr.bf16.mxu0 %v890
  %1063 = vmatpush2.bf16.msra.mxu0 %v889
  %1064 = vmatprep.subr.bf16.mxu0 %v887
  %1065 = vmatpush2.bf16.msra.mxu0 %v886
  %1066 = vmatprep.subr.bf16.mxu0 %v884
  %1067 = vmatpush2.bf16.msra.mxu0 %v883
  %1068 = vmatprep.subr.bf16.mxu0 %v881
  %1069 = vmatpush2.bf16.msra.mxu0 %v880
  %1070 = vmatprep.subr.bf16.mxu0 %v878
  %1071 = vmatpush2.bf16.msra.mxu0 %v877
  %1072 = vmatprep.subr.bf16.mxu0 %v875
  %1073 = vmatpush2.bf16.msra.mxu0 %v874
  %1074 = vmatprep.mubr.bf16.mxu0 %v403
  %1075 = vmatmul.mubr.bf16.gmra.mxu0 %v402
  %v1076 = vpop.f32.mrf.mxu0
  %v1077 = vadd.f32 0.0, %v1076
  %v1078 = vpop.f32.mrf.mxu0
  %v1079 = vadd.f32 0.0, %v1078
  %v1080 = vpop.f32.mrf.mxu0
  %v1081 = vadd.f32 0.0, %v1080
  %v1082 = vpop.f32.mrf.mxu0
  %v1083 = vadd.f32 0.0, %v1082
  %1084 = vmatprep.mubr.bf16.mxu0 %v407
  %1085 = vmatmul.mubr.bf16.gmra.mxu0 %v406
  %v1086 = vpop.f32.mrf.mxu0
  %v1087 = vadd.f32 0.0, %v1086
  %v1088 = vpop.f32.mrf.mxu0
  %v1089 = vadd.f32 0.0, %v1088
  %v1090 = vpop.f32.mrf.mxu0
  %v1091 = vadd.f32 0.0, %v1090
  %v1092 = vpop.f32.mrf.mxu0
  %v1093 = vadd.f32 0.0, %v1092
  %1094 = vmatprep.mubr.bf16.mxu0 %v411
  %1095 = vmatmul.mubr.bf16.gmra.mxu0 %v410
  %v1096 = vpop.f32.mrf.mxu0
  %v1097 = vadd.f32 0.0, %v1096
  %v1098 = vpop.f32.mrf.mxu0
  %v1099 = vadd.f32 0.0, %v1098
  %v1100 = vpop.f32.mrf.mxu0
  %v1101 = vadd.f32 0.0, %v1100
  %v1102 = vpop.f32.mrf.mxu0
  %v1103 = vadd.f32 0.0, %v1102
  %1104 = vmatprep.mubr.bf16.mxu0 %v415
  %1105 = vmatmul.mubr.bf16.gmra.mxu0 %v414
  %v1106 = vpop.f32.mrf.mxu0
  %v1107 = vadd.f32 0.0, %v1106
  %v1108 = vpop.f32.mrf.mxu0
  %v1109 = vadd.f32 0.0, %v1108
  %v1110 = vpop.f32.mrf.mxu0
  %v1111 = vadd.f32 0.0, %v1110
  %v1112 = vpop.f32.mrf.mxu0
  %v1113 = vadd.f32 0.0, %v1112
  %1114 = vmatprep.mubr.bf16.mxu0 %v419
  %1115 = vmatmul.mubr.bf16.gmra.mxu0 %v418
  %v1116 = vpop.f32.mrf.mxu0
  %v1117 = vadd.f32 0.0, %v1116
  %v1118 = vpop.f32.mrf.mxu0
  %v1119 = vadd.f32 0.0, %v1118
  %v1120 = vpop.f32.mrf.mxu0
  %v1121 = vadd.f32 0.0, %v1120
  %v1122 = vpop.f32.mrf.mxu0
  %v1123 = vadd.f32 0.0, %v1122
  %1124 = vmatprep.mubr.bf16.mxu0 %v423
  %1125 = vmatmul.mubr.bf16.gmra.mxu0 %v422
  %v1126 = vpop.f32.mrf.mxu0
  %v1127 = vadd.f32 0.0, %v1126
  %v1128 = vpop.f32.mrf.mxu0
  %v1129 = vadd.f32 0.0, %v1128
  %v1130 = vpop.f32.mrf.mxu0
  %v1131 = vadd.f32 0.0, %v1130
  %v1132 = vpop.f32.mrf.mxu0
  %v1133 = vadd.f32 0.0, %v1132
  %1134 = vmatprep.mubr.bf16.mxu0 %v427
  %1135 = vmatmul.mubr.bf16.gmra.mxu0 %v426
  %v1136 = vpop.f32.mrf.mxu0
  %v1137 = vadd.f32 0.0, %v1136
  %v1138 = vpop.f32.mrf.mxu0
  %v1139 = vadd.f32 0.0, %v1138
  %v1140 = vpop.f32.mrf.mxu0
  %v1141 = vadd.f32 0.0, %v1140
  %v1142 = vpop.f32.mrf.mxu0
  %v1143 = vadd.f32 0.0, %v1142
  %1144 = vmatprep.mubr.bf16.mxu0 %v431
  %1145 = vmatmul.mubr.bf16.gmra.mxu0 %v430
  %v1146 = vpop.f32.mrf.mxu0
  %v1147 = vadd.f32 0.0, %v1146
  %v1148 = vpop.f32.mrf.mxu0
  %v1149 = vadd.f32 0.0, %v1148
  %v1150 = vpop.f32.mrf.mxu0
  %v1151 = vadd.f32 0.0, %v1150
  %v1152 = vpop.f32.mrf.mxu0
  %v1153 = vadd.f32 0.0, %v1152
  %1154 = vmatprep.mubr.bf16.mxu0 %v435
  %1155 = vmatmul.mubr.bf16.gmra.mxu0 %v434
  %v1156 = vpop.f32.mrf.mxu0
  %v1157 = vadd.f32 0.0, %v1156
  %v1158 = vpop.f32.mrf.mxu0
  %v1159 = vadd.f32 0.0, %v1158
  %v1160 = vpop.f32.mrf.mxu0
  %v1161 = vadd.f32 0.0, %v1160
  %v1162 = vpop.f32.mrf.mxu0
  %v1163 = vadd.f32 0.0, %v1162
  %1164 = vmatprep.mubr.bf16.mxu0 %v439
  %1165 = vmatmul.mubr.bf16.gmra.mxu0 %v438
  %v1166 = vpop.f32.mrf.mxu0
  %v1167 = vadd.f32 0.0, %v1166
  %v1168 = vpop.f32.mrf.mxu0
  %v1169 = vadd.f32 0.0, %v1168
  %v1170 = vpop.f32.mrf.mxu0
  %v1171 = vadd.f32 0.0, %v1170
  %v1172 = vpop.f32.mrf.mxu0
  %v1173 = vadd.f32 0.0, %v1172
  %1174 = vmatprep.mubr.bf16.mxu0 %v443
  %1175 = vmatmul.mubr.bf16.gmra.mxu0 %v442
  %v1176 = vpop.f32.mrf.mxu0
  %v1177 = vadd.f32 0.0, %v1176
  %v1178 = vpop.f32.mrf.mxu0
  %v1179 = vadd.f32 0.0, %v1178
  %v1180 = vpop.f32.mrf.mxu0
  %v1181 = vadd.f32 0.0, %v1180
  %v1182 = vpop.f32.mrf.mxu0
  %v1183 = vadd.f32 0.0, %v1182
  %1184 = vmatprep.mubr.bf16.mxu0 %v447
  %1185 = vmatmul.mubr.bf16.gmra.mxu0 %v446
  %v1186 = vpop.f32.mrf.mxu0
  %v1187 = vadd.f32 0.0, %v1186
  %v1188 = vpop.f32.mrf.mxu0
  %v1189 = vadd.f32 0.0, %v1188
  %v1190 = vpop.f32.mrf.mxu0
  %v1191 = vadd.f32 0.0, %v1190
  %v1192 = vpop.f32.mrf.mxu0
  %v1193 = vadd.f32 0.0, %v1192
  %1194 = vmatprep.mubr.bf16.mxu0 %v451
  %1195 = vmatmul.mubr.bf16.gmra.mxu0 %v450
  %v1196 = vpop.f32.mrf.mxu0
  %v1197 = vadd.f32 0.0, %v1196
  %v1198 = vpop.f32.mrf.mxu0
  %v1199 = vadd.f32 0.0, %v1198
  %v1200 = vpop.f32.mrf.mxu0
  %v1201 = vadd.f32 0.0, %v1200
  %v1202 = vpop.f32.mrf.mxu0
  %v1203 = vadd.f32 0.0, %v1202
  %1204 = vmatprep.mubr.bf16.mxu0 %v455
  %1205 = vmatmul.mubr.bf16.gmra.mxu0 %v454
  %v1206 = vpop.f32.mrf.mxu0
  %v1207 = vadd.f32 0.0, %v1206
  %v1208 = vpop.f32.mrf.mxu0
  %v1209 = vadd.f32 0.0, %v1208
  %v1210 = vpop.f32.mrf.mxu0
  %v1211 = vadd.f32 0.0, %v1210
  %v1212 = vpop.f32.mrf.mxu0
  %v1213 = vadd.f32 0.0, %v1212
  %1214 = vmatprep.mubr.bf16.mxu0 %v459
  %1215 = vmatmul.mubr.bf16.gmra.mxu0 %v458
  %v1216 = vpop.f32.mrf.mxu0
  %v1217 = vadd.f32 0.0, %v1216
  %v1218 = vpop.f32.mrf.mxu0
  %v1219 = vadd.f32 0.0, %v1218
  %v1220 = vpop.f32.mrf.mxu0
  %v1221 = vadd.f32 0.0, %v1220
  %v1222 = vpop.f32.mrf.mxu0
  %v1223 = vadd.f32 0.0, %v1222
  %1224 = vmatprep.mubr.bf16.mxu0 %v463
  %1225 = vmatmul.mubr.bf16.gmra.mxu0 %v462
  %v1226 = vpop.f32.mrf.mxu0
  %v1227 = vadd.f32 0.0, %v1226
  %v1228 = vpop.f32.mrf.mxu0
  %v1229 = vadd.f32 0.0, %v1228
  %v1230 = vpop.f32.mrf.mxu0
  %v1231 = vadd.f32 0.0, %v1230
  %v1232 = vpop.f32.mrf.mxu0
  %v1233 = vadd.f32 0.0, %v1232
  %1234 = vdwg.mxu0
  %1235 = vmatprep.subr.bf16.mxu0 %v920
  %1236 = vmatpush1.bf16.msra.mxu0 %v919
  %1237 = vmatprep.subr.bf16.mxu0 %v917
  %1238 = vmatpush1.bf16.msra.mxu0 %v916
  %1239 = vmatprep.subr.bf16.mxu0 %v914
  %1240 = vmatpush1.bf16.msra.mxu0 %v913
  %1241 = vmatprep.subr.bf16.mxu0 %v911
  %1242 = vmatpush1.bf16.msra.mxu0 %v910
  %1243 = vmatprep.subr.bf16.mxu0 %v908
  %1244 = vmatpush1.bf16.msra.mxu0 %v907
  %1245 = vmatprep.subr.bf16.mxu0 %v905
  %1246 = vmatpush1.bf16.msra.mxu0 %v904
  %1247 = vmatprep.subr.bf16.mxu0 %v902
  %1248 = vmatpush1.bf16.msra.mxu0 %v901
  %1249 = vmatprep.subr.bf16.mxu0 %v899
  %1250 = vmatpush1.bf16.msra.mxu0 %v898
  %1251 = vmatprep.subr.bf16.mxu0 %v944
  %1252 = vmatpush2.bf16.msra.mxu0 %v943
  %1253 = vmatprep.subr.bf16.mxu0 %v941
  %1254 = vmatpush2.bf16.msra.mxu0 %v940
  %1255 = vmatprep.subr.bf16.mxu0 %v938
  %1256 = vmatpush2.bf16.msra.mxu0 %v937
  %1257 = vmatprep.subr.bf16.mxu0 %v935
  %1258 = vmatpush2.bf16.msra.mxu0 %v934
  %1259 = vmatprep.subr.bf16.mxu0 %v932
  %1260 = vmatpush2.bf16.msra.mxu0 %v931
  %1261 = vmatprep.subr.bf16.mxu0 %v929
  %1262 = vmatpush2.bf16.msra.mxu0 %v928
  %1263 = vmatprep.subr.bf16.mxu0 %v926
  %1264 = vmatpush2.bf16.msra.mxu0 %v925
  %1265 = vmatprep.subr.bf16.mxu0 %v923
  %1266 = vmatpush2.bf16.msra.mxu0 %v922
  %1267 = vmatprep.mubr.bf16.mxu0 %v405
  %1268 = vmatmul.mubr.bf16.gmra.mxu0 %v404
  %v1269 = vpop.f32.mrf.mxu0
  %v1270 = vadd.f32 %v1077, %v1269
  %v1271 = vpop.f32.mrf.mxu0
  %v1272 = vadd.f32 %v1079, %v1271
  %v1273 = vpop.f32.mrf.mxu0
  %v1274 = vadd.f32 %v1081, %v1273
  %v1275 = vpop.f32.mrf.mxu0
  %v1276 = vadd.f32 %v1083, %v1275
  %1277 = vmatprep.mubr.bf16.mxu0 %v409
  %1278 = vmatmul.mubr.bf16.gmra.mxu0 %v408
  %v1279 = vpop.f32.mrf.mxu0
  %v1280 = vadd.f32 %v1087, %v1279
  %v1281 = vpop.f32.mrf.mxu0
  %v1282 = vadd.f32 %v1089, %v1281
  %v1283 = vpop.f32.mrf.mxu0
  %v1284 = vadd.f32 %v1091, %v1283
  %v1285 = vpop.f32.mrf.mxu0
  %v1286 = vadd.f32 %v1093, %v1285
  %1287 = vmatprep.mubr.bf16.mxu0 %v413
  %1288 = vmatmul.mubr.bf16.gmra.mxu0 %v412
  %v1289 = vpop.f32.mrf.mxu0
  %v1290 = vadd.f32 %v1097, %v1289
  %v1291 = vpop.f32.mrf.mxu0
  %v1292 = vadd.f32 %v1099, %v1291
  %v1293 = vpop.f32.mrf.mxu0
  %v1294 = vadd.f32 %v1101, %v1293
  %v1295 = vpop.f32.mrf.mxu0
  %v1296 = vadd.f32 %v1103, %v1295
  %1297 = vmatprep.mubr.bf16.mxu0 %v417
  %1298 = vmatmul.mubr.bf16.gmra.mxu0 %v416
  %v1299 = vpop.f32.mrf.mxu0
  %v1300 = vadd.f32 %v1107, %v1299
  %v1301 = vpop.f32.mrf.mxu0
  %v1302 = vadd.f32 %v1109, %v1301
  %v1303 = vpop.f32.mrf.mxu0
  %v1304 = vadd.f32 %v1111, %v1303
  %v1305 = vpop.f32.mrf.mxu0
  %v1306 = vadd.f32 %v1113, %v1305
  %1307 = vmatprep.mubr.bf16.mxu0 %v421
  %1308 = vmatmul.mubr.bf16.gmra.mxu0 %v420
  %v1309 = vpop.f32.mrf.mxu0
  %v1310 = vadd.f32 %v1117, %v1309
  %v1311 = vpop.f32.mrf.mxu0
  %v1312 = vadd.f32 %v1119, %v1311
  %v1313 = vpop.f32.mrf.mxu0
  %v1314 = vadd.f32 %v1121, %v1313
  %v1315 = vpop.f32.mrf.mxu0
  %v1316 = vadd.f32 %v1123, %v1315
  %1317 = vmatprep.mubr.bf16.mxu0 %v425
  %1318 = vmatmul.mubr.bf16.gmra.mxu0 %v424
  %v1319 = vpop.f32.mrf.mxu0
  %v1320 = vadd.f32 %v1127, %v1319
  %v1321 = vpop.f32.mrf.mxu0
  %v1322 = vadd.f32 %v1129, %v1321
  %v1323 = vpop.f32.mrf.mxu0
  %v1324 = vadd.f32 %v1131, %v1323
  %v1325 = vpop.f32.mrf.mxu0
  %v1326 = vadd.f32 %v1133, %v1325
  %1327 = vmatprep.mubr.bf16.mxu0 %v429
  %1328 = vmatmul.mubr.bf16.gmra.mxu0 %v428
  %v1329 = vpop.f32.mrf.mxu0
  %v1330 = vadd.f32 %v1137, %v1329
  %v1331 = vpop.f32.mrf.mxu0
  %v1332 = vadd.f32 %v1139, %v1331
  %v1333 = vpop.f32.mrf.mxu0
  %v1334 = vadd.f32 %v1141, %v1333
  %v1335 = vpop.f32.mrf.mxu0
  %v1336 = vadd.f32 %v1143, %v1335
  %1337 = vmatprep.mubr.bf16.mxu0 %v433
  %1338 = vmatmul.mubr.bf16.gmra.mxu0 %v432
  %v1339 = vpop.f32.mrf.mxu0
  %v1340 = vadd.f32 %v1147, %v1339
  %v1341 = vpop.f32.mrf.mxu0
  %v1342 = vadd.f32 %v1149, %v1341
  %v1343 = vpop.f32.mrf.mxu0
  %v1344 = vadd.f32 %v1151, %v1343
  %v1345 = vpop.f32.mrf.mxu0
  %v1346 = vadd.f32 %v1153, %v1345
  %1347 = vmatprep.mubr.bf16.mxu0 %v437
  %1348 = vmatmul.mubr.bf16.gmra.mxu0 %v436
  %v1349 = vpop.f32.mrf.mxu0
  %v1350 = vadd.f32 %v1157, %v1349
  %v1351 = vpop.f32.mrf.mxu0
  %v1352 = vadd.f32 %v1159, %v1351
  %v1353 = vpop.f32.mrf.mxu0
  %v1354 = vadd.f32 %v1161, %v1353
  %v1355 = vpop.f32.mrf.mxu0
  %v1356 = vadd.f32 %v1163, %v1355
  %1357 = vmatprep.mubr.bf16.mxu0 %v441
  %1358 = vmatmul.mubr.bf16.gmra.mxu0 %v440
  %v1359 = vpop.f32.mrf.mxu0
  %v1360 = vadd.f32 %v1167, %v1359
  %v1361 = vpop.f32.mrf.mxu0
  %v1362 = vadd.f32 %v1169, %v1361
  %v1363 = vpop.f32.mrf.mxu0
  %v1364 = vadd.f32 %v1171, %v1363
  %v1365 = vpop.f32.mrf.mxu0
  %v1366 = vadd.f32 %v1173, %v1365
  %1367 = vmatprep.mubr.bf16.mxu0 %v445
  %1368 = vmatmul.mubr.bf16.gmra.mxu0 %v444
  %v1369 = vpop.f32.mrf.mxu0
  %v1370 = vadd.f32 %v1177, %v1369
  %v1371 = vpop.f32.mrf.mxu0
  %v1372 = vadd.f32 %v1179, %v1371
  %v1373 = vpop.f32.mrf.mxu0
  %v1374 = vadd.f32 %v1181, %v1373
  %v1375 = vpop.f32.mrf.mxu0
  %v1376 = vadd.f32 %v1183, %v1375
  %1377 = vmatprep.mubr.bf16.mxu0 %v449
  %1378 = vmatmul.mubr.bf16.gmra.mxu0 %v448
  %v1379 = vpop.f32.mrf.mxu0
  %v1380 = vadd.f32 %v1187, %v1379
  %v1381 = vpop.f32.mrf.mxu0
  %v1382 = vadd.f32 %v1189, %v1381
  %v1383 = vpop.f32.mrf.mxu0
  %v1384 = vadd.f32 %v1191, %v1383
  %v1385 = vpop.f32.mrf.mxu0
  %v1386 = vadd.f32 %v1193, %v1385
  %1387 = vmatprep.mubr.bf16.mxu0 %v453
  %1388 = vmatmul.mubr.bf16.gmra.mxu0 %v452
  %v1389 = vpop.f32.mrf.mxu0
  %v1390 = vadd.f32 %v1197, %v1389
  %v1391 = vpop.f32.mrf.mxu0
  %v1392 = vadd.f32 %v1199, %v1391
  %v1393 = vpop.f32.mrf.mxu0
  %v1394 = vadd.f32 %v1201, %v1393
  %v1395 = vpop.f32.mrf.mxu0
  %v1396 = vadd.f32 %v1203, %v1395
  %1397 = vmatprep.mubr.bf16.mxu0 %v457
  %1398 = vmatmul.mubr.bf16.gmra.mxu0 %v456
  %v1399 = vpop.f32.mrf.mxu0
  %v1400 = vadd.f32 %v1207, %v1399
  %v1401 = vpop.f32.mrf.mxu0
  %v1402 = vadd.f32 %v1209, %v1401
  %v1403 = vpop.f32.mrf.mxu0
  %v1404 = vadd.f32 %v1211, %v1403
  %v1405 = vpop.f32.mrf.mxu0
  %v1406 = vadd.f32 %v1213, %v1405
  %1407 = vmatprep.mubr.bf16.mxu0 %v461
  %1408 = vmatmul.mubr.bf16.gmra.mxu0 %v460
  %v1409 = vpop.f32.mrf.mxu0
  %v1410 = vadd.f32 %v1217, %v1409
  %v1411 = vpop.f32.mrf.mxu0
  %v1412 = vadd.f32 %v1219, %v1411
  %v1413 = vpop.f32.mrf.mxu0
  %v1414 = vadd.f32 %v1221, %v1413
  %v1415 = vpop.f32.mrf.mxu0
  %v1416 = vadd.f32 %v1223, %v1415
  %1417 = vmatprep.mubr.bf16.mxu0 %v465
  %1418 = vmatmul.mubr.bf16.gmra.mxu0 %v464
  %v1419 = vpop.f32.mrf.mxu0
  %v1420 = vadd.f32 %v1227, %v1419
  %v1421 = vpop.f32.mrf.mxu0
  %v1422 = vadd.f32 %v1229, %v1421
  %v1423 = vpop.f32.mrf.mxu0
  %v1424 = vadd.f32 %v1231, %v1423
  %v1425 = vpop.f32.mrf.mxu0
  %v1426 = vadd.f32 %v1233, %v1425
  %1427 = vdwg.mxu0
  %1428 = vmatprep.subr.bf16.mxu0 0
  %1429 = vmatpush1.bf16.msra.mxu0 %v873
  %1430 = vmatprep.subr.bf16.mxu0 0
  %1431 = vmatpush1.bf16.msra.mxu0 %v870
  %1432 = vmatprep.subr.bf16.mxu0 0
  %1433 = vmatpush1.bf16.msra.mxu0 %v867
  %1434 = vmatprep.subr.bf16.mxu0 0
  %1435 = vmatpush1.bf16.msra.mxu0 %v864
  %1436 = vmatprep.subr.bf16.mxu0 0
  %1437 = vmatpush1.bf16.msra.mxu0 %v861
  %1438 = vmatprep.subr.bf16.mxu0 0
  %1439 = vmatpush1.bf16.msra.mxu0 %v858
  %1440 = vmatprep.subr.bf16.mxu0 0
  %1441 = vmatpush1.bf16.msra.mxu0 %v855
  %1442 = vmatprep.subr.bf16.mxu0 0
  %1443 = vmatpush1.bf16.msra.mxu0 %v852
  %1444 = vmatprep.subr.bf16.mxu0 0
  %1445 = vmatpush2.bf16.msra.mxu0 %v897
  %1446 = vmatprep.subr.bf16.mxu0 0
  %1447 = vmatpush2.bf16.msra.mxu0 %v894
  %1448 = vmatprep.subr.bf16.mxu0 0
  %1449 = vmatpush2.bf16.msra.mxu0 %v891
  %1450 = vmatprep.subr.bf16.mxu0 0
  %1451 = vmatpush2.bf16.msra.mxu0 %v888
  %1452 = vmatprep.subr.bf16.mxu0 0
  %1453 = vmatpush2.bf16.msra.mxu0 %v885
  %1454 = vmatprep.subr.bf16.mxu0 0
  %1455 = vmatpush2.bf16.msra.mxu0 %v882
  %1456 = vmatprep.subr.bf16.mxu0 0
  %1457 = vmatpush2.bf16.msra.mxu0 %v879
  %1458 = vmatprep.subr.bf16.mxu0 0
  %1459 = vmatpush2.bf16.msra.mxu0 %v876
  %1460 = vmatprep.mubr.bf16.mxu0 %v403
  %1461 = vmatmul.mubr.bf16.gmra.mxu0 %v402
  %v1462 = vpop.f32.mrf.mxu0
  %v1463 = vadd.f32 0.0, %v1462
  %v1464 = vpop.f32.mrf.mxu0
  %v1465 = vpop.f32.mrf.mxu0
  %v1466 = vadd.f32 0.0, %v1465
  %v1467 = vpop.f32.mrf.mxu0
  %1468 = vmatprep.mubr.bf16.mxu0 %v407
  %1469 = vmatmul.mubr.bf16.gmra.mxu0 %v406
  %v1470 = vpop.f32.mrf.mxu0
  %v1471 = vadd.f32 0.0, %v1470
  %v1472 = vpop.f32.mrf.mxu0
  %v1473 = vpop.f32.mrf.mxu0
  %v1474 = vadd.f32 0.0, %v1473
  %v1475 = vpop.f32.mrf.mxu0
  %1476 = vmatprep.mubr.bf16.mxu0 %v411
  %1477 = vmatmul.mubr.bf16.gmra.mxu0 %v410
  %v1478 = vpop.f32.mrf.mxu0
  %v1479 = vadd.f32 0.0, %v1478
  %v1480 = vpop.f32.mrf.mxu0
  %v1481 = vpop.f32.mrf.mxu0
  %v1482 = vadd.f32 0.0, %v1481
  %v1483 = vpop.f32.mrf.mxu0
  %1484 = vmatprep.mubr.bf16.mxu0 %v415
  %1485 = vmatmul.mubr.bf16.gmra.mxu0 %v414
  %v1486 = vpop.f32.mrf.mxu0
  %v1487 = vadd.f32 0.0, %v1486
  %v1488 = vpop.f32.mrf.mxu0
  %v1489 = vpop.f32.mrf.mxu0
  %v1490 = vadd.f32 0.0, %v1489
  %v1491 = vpop.f32.mrf.mxu0
  %1492 = vmatprep.mubr.bf16.mxu0 %v419
  %1493 = vmatmul.mubr.bf16.gmra.mxu0 %v418
  %v1494 = vpop.f32.mrf.mxu0
  %v1495 = vadd.f32 0.0, %v1494
  %v1496 = vpop.f32.mrf.mxu0
  %v1497 = vpop.f32.mrf.mxu0
  %v1498 = vadd.f32 0.0, %v1497
  %v1499 = vpop.f32.mrf.mxu0
  %1500 = vmatprep.mubr.bf16.mxu0 %v423
  %1501 = vmatmul.mubr.bf16.gmra.mxu0 %v422
  %v1502 = vpop.f32.mrf.mxu0
  %v1503 = vadd.f32 0.0, %v1502
  %v1504 = vpop.f32.mrf.mxu0
  %v1505 = vpop.f32.mrf.mxu0
  %v1506 = vadd.f32 0.0, %v1505
  %v1507 = vpop.f32.mrf.mxu0
  %1508 = vmatprep.mubr.bf16.mxu0 %v427
  %1509 = vmatmul.mubr.bf16.gmra.mxu0 %v426
  %v1510 = vpop.f32.mrf.mxu0
  %v1511 = vadd.f32 0.0, %v1510
  %v1512 = vpop.f32.mrf.mxu0
  %v1513 = vpop.f32.mrf.mxu0
  %v1514 = vadd.f32 0.0, %v1513
  %v1515 = vpop.f32.mrf.mxu0
  %1516 = vmatprep.mubr.bf16.mxu0 %v431
  %1517 = vmatmul.mubr.bf16.gmra.mxu0 %v430
  %v1518 = vpop.f32.mrf.mxu0
  %v1519 = vadd.f32 0.0, %v1518
  %v1520 = vpop.f32.mrf.mxu0
  %v1521 = vpop.f32.mrf.mxu0
  %v1522 = vadd.f32 0.0, %v1521
  %v1523 = vpop.f32.mrf.mxu0
  %1524 = vmatprep.mubr.bf16.mxu0 %v435
  %1525 = vmatmul.mubr.bf16.gmra.mxu0 %v434
  %v1526 = vpop.f32.mrf.mxu0
  %v1527 = vadd.f32 0.0, %v1526
  %v1528 = vpop.f32.mrf.mxu0
  %v1529 = vpop.f32.mrf.mxu0
  %v1530 = vadd.f32 0.0, %v1529
  %v1531 = vpop.f32.mrf.mxu0
  %1532 = vmatprep.mubr.bf16.mxu0 %v439
  %1533 = vmatmul.mubr.bf16.gmra.mxu0 %v438
  %v1534 = vpop.f32.mrf.mxu0
  %v1535 = vadd.f32 0.0, %v1534
  %v1536 = vpop.f32.mrf.mxu0
  %v1537 = vpop.f32.mrf.mxu0
  %v1538 = vadd.f32 0.0, %v1537
  %v1539 = vpop.f32.mrf.mxu0
  %1540 = vmatprep.mubr.bf16.mxu0 %v443
  %1541 = vmatmul.mubr.bf16.gmra.mxu0 %v442
  %v1542 = vpop.f32.mrf.mxu0
  %v1543 = vadd.f32 0.0, %v1542
  %v1544 = vpop.f32.mrf.mxu0
  %v1545 = vpop.f32.mrf.mxu0
  %v1546 = vadd.f32 0.0, %v1545
  %v1547 = vpop.f32.mrf.mxu0
  %1548 = vmatprep.mubr.bf16.mxu0 %v447
  %1549 = vmatmul.mubr.bf16.gmra.mxu0 %v446
  %v1550 = vpop.f32.mrf.mxu0
  %v1551 = vadd.f32 0.0, %v1550
  %v1552 = vpop.f32.mrf.mxu0
  %v1553 = vpop.f32.mrf.mxu0
  %v1554 = vadd.f32 0.0, %v1553
  %v1555 = vpop.f32.mrf.mxu0
  %1556 = vmatprep.mubr.bf16.mxu0 %v451
  %1557 = vmatmul.mubr.bf16.gmra.mxu0 %v450
  %v1558 = vpop.f32.mrf.mxu0
  %v1559 = vadd.f32 0.0, %v1558
  %v1560 = vpop.f32.mrf.mxu0
  %v1561 = vpop.f32.mrf.mxu0
  %v1562 = vadd.f32 0.0, %v1561
  %v1563 = vpop.f32.mrf.mxu0
  %1564 = vmatprep.mubr.bf16.mxu0 %v455
  %1565 = vmatmul.mubr.bf16.gmra.mxu0 %v454
  %v1566 = vpop.f32.mrf.mxu0
  %v1567 = vadd.f32 0.0, %v1566
  %v1568 = vpop.f32.mrf.mxu0
  %v1569 = vpop.f32.mrf.mxu0
  %v1570 = vadd.f32 0.0, %v1569
  %v1571 = vpop.f32.mrf.mxu0
  %1572 = vmatprep.mubr.bf16.mxu0 %v459
  %1573 = vmatmul.mubr.bf16.gmra.mxu0 %v458
  %v1574 = vpop.f32.mrf.mxu0
  %v1575 = vadd.f32 0.0, %v1574
  %v1576 = vpop.f32.mrf.mxu0
  %v1577 = vpop.f32.mrf.mxu0
  %v1578 = vadd.f32 0.0, %v1577
  %v1579 = vpop.f32.mrf.mxu0
  %1580 = vmatprep.mubr.bf16.mxu0 %v463
  %1581 = vmatmul.mubr.bf16.gmra.mxu0 %v462
  %v1582 = vpop.f32.mrf.mxu0
  %v1583 = vadd.f32 0.0, %v1582
  %v1584 = vpop.f32.mrf.mxu0
  %v1585 = vpop.f32.mrf.mxu0
  %v1586 = vadd.f32 0.0, %v1585
  %v1587 = vpop.f32.mrf.mxu0
  %1588 = vdwg.mxu0
  %1589 = vmatprep.subr.bf16.mxu0 0
  %1590 = vmatpush1.bf16.msra.mxu0 %v921
  %1591 = vmatprep.subr.bf16.mxu0 0
  %1592 = vmatpush1.bf16.msra.mxu0 %v918
  %1593 = vmatprep.subr.bf16.mxu0 0
  %1594 = vmatpush1.bf16.msra.mxu0 %v915
  %1595 = vmatprep.subr.bf16.mxu0 0
  %1596 = vmatpush1.bf16.msra.mxu0 %v912
  %1597 = vmatprep.subr.bf16.mxu0 0
  %1598 = vmatpush1.bf16.msra.mxu0 %v909
  %1599 = vmatprep.subr.bf16.mxu0 0
  %1600 = vmatpush1.bf16.msra.mxu0 %v906
  %1601 = vmatprep.subr.bf16.mxu0 0
  %1602 = vmatpush1.bf16.msra.mxu0 %v903
  %1603 = vmatprep.subr.bf16.mxu0 0
  %1604 = vmatpush1.bf16.msra.mxu0 %v900
  %1605 = vmatprep.subr.bf16.mxu0 0
  %1606 = vmatpush2.bf16.msra.mxu0 %v945
  %1607 = vmatprep.subr.bf16.mxu0 0
  %1608 = vmatpush2.bf16.msra.mxu0 %v942
  %1609 = vmatprep.subr.bf16.mxu0 0
  %1610 = vmatpush2.bf16.msra.mxu0 %v939
  %1611 = vmatprep.subr.bf16.mxu0 0
  %1612 = vmatpush2.bf16.msra.mxu0 %v936
  %1613 = vmatprep.subr.bf16.mxu0 0
  %1614 = vmatpush2.bf16.msra.mxu0 %v933
  %1615 = vmatprep.subr.bf16.mxu0 0
  %1616 = vmatpush2.bf16.msra.mxu0 %v930
  %1617 = vmatprep.subr.bf16.mxu0 0
  %1618 = vmatpush2.bf16.msra.mxu0 %v927
  %1619 = vmatprep.subr.bf16.mxu0 0
  %1620 = vmatpush2.bf16.msra.mxu0 %v924
  %1621 = vmatprep.mubr.bf16.mxu0 %v405
  %1622 = vmatmul.mubr.bf16.gmra.mxu0 %v404
  %v1623 = vpop.f32.mrf.mxu0
  %v1624 = vadd.f32 %v1463, %v1623
  %v1625 = vpop.f32.mrf.mxu0
  %v1626 = vpop.f32.mrf.mxu0
  %v1627 = vadd.f32 %v1466, %v1626
  %v1628 = vpop.f32.mrf.mxu0
  %1629 = vmatprep.mubr.bf16.mxu0 %v409
  %1630 = vmatmul.mubr.bf16.gmra.mxu0 %v408
  %v1631 = vpop.f32.mrf.mxu0
  %v1632 = vadd.f32 %v1471, %v1631
  %v1633 = vpop.f32.mrf.mxu0
  %v1634 = vpop.f32.mrf.mxu0
  %v1635 = vadd.f32 %v1474, %v1634
  %v1636 = vpop.f32.mrf.mxu0
  %1637 = vmatprep.mubr.bf16.mxu0 %v413
  %1638 = vmatmul.mubr.bf16.gmra.mxu0 %v412
  %v1639 = vpop.f32.mrf.mxu0
  %v1640 = vadd.f32 %v1479, %v1639
  %v1641 = vpop.f32.mrf.mxu0
  %v1642 = vpop.f32.mrf.mxu0
  %v1643 = vadd.f32 %v1482, %v1642
  %v1644 = vpop.f32.mrf.mxu0
  %1645 = vmatprep.mubr.bf16.mxu0 %v417
  %1646 = vmatmul.mubr.bf16.gmra.mxu0 %v416
  %v1647 = vpop.f32.mrf.mxu0
  %v1648 = vadd.f32 %v1487, %v1647
  %v1649 = vpop.f32.mrf.mxu0
  %v1650 = vpop.f32.mrf.mxu0
  %v1651 = vadd.f32 %v1490, %v1650
  %v1652 = vpop.f32.mrf.mxu0
  %1653 = vmatprep.mubr.bf16.mxu0 %v421
  %1654 = vmatmul.mubr.bf16.gmra.mxu0 %v420
  %v1655 = vpop.f32.mrf.mxu0
  %v1656 = vadd.f32 %v1495, %v1655
  %v1657 = vpop.f32.mrf.mxu0
  %v1658 = vpop.f32.mrf.mxu0
  %v1659 = vadd.f32 %v1498, %v1658
  %v1660 = vpop.f32.mrf.mxu0
  %1661 = vmatprep.mubr.bf16.mxu0 %v425
  %1662 = vmatmul.mubr.bf16.gmra.mxu0 %v424
  %v1663 = vpop.f32.mrf.mxu0
  %v1664 = vadd.f32 %v1503, %v1663
  %v1665 = vpop.f32.mrf.mxu0
  %v1666 = vpop.f32.mrf.mxu0
  %v1667 = vadd.f32 %v1506, %v1666
  %v1668 = vpop.f32.mrf.mxu0
  %1669 = vmatprep.mubr.bf16.mxu0 %v429
  %1670 = vmatmul.mubr.bf16.gmra.mxu0 %v428
  %v1671 = vpop.f32.mrf.mxu0
  %v1672 = vadd.f32 %v1511, %v1671
  %v1673 = vpop.f32.mrf.mxu0
  %v1674 = vpop.f32.mrf.mxu0
  %v1675 = vadd.f32 %v1514, %v1674
  %v1676 = vpop.f32.mrf.mxu0
  %1677 = vmatprep.mubr.bf16.mxu0 %v433
  %1678 = vmatmul.mubr.bf16.gmra.mxu0 %v432
  %v1679 = vpop.f32.mrf.mxu0
  %v1680 = vadd.f32 %v1519, %v1679
  %v1681 = vpop.f32.mrf.mxu0
  %v1682 = vpop.f32.mrf.mxu0
  %v1683 = vadd.f32 %v1522, %v1682
  %v1684 = vpop.f32.mrf.mxu0
  %1685 = vmatprep.mubr.bf16.mxu0 %v437
  %1686 = vmatmul.mubr.bf16.gmra.mxu0 %v436
  %v1687 = vpop.f32.mrf.mxu0
  %v1688 = vadd.f32 %v1527, %v1687
  %v1689 = vpop.f32.mrf.mxu0
  %v1690 = vpop.f32.mrf.mxu0
  %v1691 = vadd.f32 %v1530, %v1690
  %v1692 = vpop.f32.mrf.mxu0
  %1693 = vmatprep.mubr.bf16.mxu0 %v441
  %1694 = vmatmul.mubr.bf16.gmra.mxu0 %v440
  %v1695 = vpop.f32.mrf.mxu0
  %v1696 = vadd.f32 %v1535, %v1695
  %v1697 = vpop.f32.mrf.mxu0
  %v1698 = vpop.f32.mrf.mxu0
  %v1699 = vadd.f32 %v1538, %v1698
  %v1700 = vpop.f32.mrf.mxu0
  %1701 = vmatprep.mubr.bf16.mxu0 %v445
  %1702 = vmatmul.mubr.bf16.gmra.mxu0 %v444
  %v1703 = vpop.f32.mrf.mxu0
  %v1704 = vadd.f32 %v1543, %v1703
  %v1705 = vpop.f32.mrf.mxu0
  %v1706 = vpop.f32.mrf.mxu0
  %v1707 = vadd.f32 %v1546, %v1706
  %v1708 = vpop.f32.mrf.mxu0
  %1709 = vmatprep.mubr.bf16.mxu0 %v449
  %1710 = vmatmul.mubr.bf16.gmra.mxu0 %v448
  %v1711 = vpop.f32.mrf.mxu0
  %v1712 = vadd.f32 %v1551, %v1711
  %v1713 = vpop.f32.mrf.mxu0
  %v1714 = vpop.f32.mrf.mxu0
  %v1715 = vadd.f32 %v1554, %v1714
  %v1716 = vpop.f32.mrf.mxu0
  %1717 = vmatprep.mubr.bf16.mxu0 %v453
  %1718 = vmatmul.mubr.bf16.gmra.mxu0 %v452
  %v1719 = vpop.f32.mrf.mxu0
  %v1720 = vadd.f32 %v1559, %v1719
  %v1721 = vpop.f32.mrf.mxu0
  %v1722 = vpop.f32.mrf.mxu0
  %v1723 = vadd.f32 %v1562, %v1722
  %v1724 = vpop.f32.mrf.mxu0
  %1725 = vmatprep.mubr.bf16.mxu0 %v457
  %1726 = vmatmul.mubr.bf16.gmra.mxu0 %v456
  %v1727 = vpop.f32.mrf.mxu0
  %v1728 = vadd.f32 %v1567, %v1727
  %v1729 = vpop.f32.mrf.mxu0
  %v1730 = vpop.f32.mrf.mxu0
  %v1731 = vadd.f32 %v1570, %v1730
  %v1732 = vpop.f32.mrf.mxu0
  %1733 = vmatprep.mubr.bf16.mxu0 %v461
  %1734 = vmatmul.mubr.bf16.gmra.mxu0 %v460
  %v1735 = vpop.f32.mrf.mxu0
  %v1736 = vadd.f32 %v1575, %v1735
  %v1737 = vpop.f32.mrf.mxu0
  %v1738 = vpop.f32.mrf.mxu0
  %v1739 = vadd.f32 %v1578, %v1738
  %v1740 = vpop.f32.mrf.mxu0
  %1741 = vmatprep.mubr.bf16.mxu0 %v465
  %1742 = vmatmul.mubr.bf16.gmra.mxu0 %v464
  %v1743 = vpop.f32.mrf.mxu0
  %v1744 = vadd.f32 %v1583, %v1743
  %v1745 = vpop.f32.mrf.mxu0
  %v1746 = vpop.f32.mrf.mxu0
  %v1747 = vadd.f32 %v1586, %v1746
  %v1748 = vpop.f32.mrf.mxu0
  %1749 = vdwg.mxu0
  %v1750 = vld [vmem:[%s2] sm:$0x7]
  %v1752 = vlaneseq
  %v1753 = vshrl.u32 %v1752, 7
  %v1754 = vsub.s32 0, %v1753
  %v1755 = vrot.slane %v1750, %v1754
  %v1756 = vlaneseq
  %v1757 = vshrl.u32 %v1756, 7
  %v1758 = vsub.s32 1, %v1757
  %v1759 = vrot.slane %v1750, %v1758
  %v1760 = vlaneseq
  %v1761 = vshrl.u32 %v1760, 7
  %v1762 = vsub.s32 2, %v1761
  %v1763 = vrot.slane %v1750, %v1762
  %v1767 = vmul.f32 %v1270, %v1755
  %v1768 = vmul.f32 %v1272, %v1759
  %v1769 = vmul.f32 %v1624, %v1763
  %v1770 = vmul.f32 %v1274, %v1755
  %v1771 = vmul.f32 %v1276, %v1759
  %v1772 = vmul.f32 %v1627, %v1763
  %v1773 = vmul.f32 %v1280, %v1755
  %v1774 = vmul.f32 %v1282, %v1759
  %v1775 = vmul.f32 %v1632, %v1763
  %v1776 = vmul.f32 %v1284, %v1755
  %v1777 = vmul.f32 %v1286, %v1759
  %v1778 = vmul.f32 %v1635, %v1763
  %v1779 = vmul.f32 %v1290, %v1755
  %v1780 = vmul.f32 %v1292, %v1759
  %v1781 = vmul.f32 %v1640, %v1763
  %v1782 = vmul.f32 %v1294, %v1755
  %v1783 = vmul.f32 %v1296, %v1759
  %v1784 = vmul.f32 %v1643, %v1763
  %v1785 = vmul.f32 %v1300, %v1755
  %v1786 = vmul.f32 %v1302, %v1759
  %v1787 = vmul.f32 %v1648, %v1763
  %v1788 = vmul.f32 %v1304, %v1755
  %v1789 = vmul.f32 %v1306, %v1759
  %v1790 = vmul.f32 %v1651, %v1763
  %v1791 = vmul.f32 %v1310, %v1755
  %v1792 = vmul.f32 %v1312, %v1759
  %v1793 = vmul.f32 %v1656, %v1763
  %v1794 = vmul.f32 %v1314, %v1755
  %v1795 = vmul.f32 %v1316, %v1759
  %v1796 = vmul.f32 %v1659, %v1763
  %v1797 = vmul.f32 %v1320, %v1755
  %v1798 = vmul.f32 %v1322, %v1759
  %v1799 = vmul.f32 %v1664, %v1763
  %v1800 = vmul.f32 %v1324, %v1755
  %v1801 = vmul.f32 %v1326, %v1759
  %v1802 = vmul.f32 %v1667, %v1763
  %v1803 = vmul.f32 %v1330, %v1755
  %v1804 = vmul.f32 %v1332, %v1759
  %v1805 = vmul.f32 %v1672, %v1763
  %v1806 = vmul.f32 %v1334, %v1755
  %v1807 = vmul.f32 %v1336, %v1759
  %v1808 = vmul.f32 %v1675, %v1763
  %v1809 = vmul.f32 %v1340, %v1755
  %v1810 = vmul.f32 %v1342, %v1759
  %v1811 = vmul.f32 %v1680, %v1763
  %v1812 = vmul.f32 %v1344, %v1755
  %v1813 = vmul.f32 %v1346, %v1759
  %v1814 = vmul.f32 %v1683, %v1763
  %v1815 = vmul.f32 %v1350, %v1755
  %v1816 = vmul.f32 %v1352, %v1759
  %v1817 = vmul.f32 %v1688, %v1763
  %v1818 = vmul.f32 %v1354, %v1755
  %v1819 = vmul.f32 %v1356, %v1759
  %v1820 = vmul.f32 %v1691, %v1763
  %v1821 = vmul.f32 %v1360, %v1755
  %v1822 = vmul.f32 %v1362, %v1759
  %v1823 = vmul.f32 %v1696, %v1763
  %v1824 = vmul.f32 %v1364, %v1755
  %v1825 = vmul.f32 %v1366, %v1759
  %v1826 = vmul.f32 %v1699, %v1763
  %v1827 = vmul.f32 %v1370, %v1755
  %v1828 = vmul.f32 %v1372, %v1759
  %v1829 = vmul.f32 %v1704, %v1763
  %v1830 = vmul.f32 %v1374, %v1755
  %v1831 = vmul.f32 %v1376, %v1759
  %v1832 = vmul.f32 %v1707, %v1763
  %v1833 = vmul.f32 %v1380, %v1755
  %v1834 = vmul.f32 %v1382, %v1759
  %v1835 = vmul.f32 %v1712, %v1763
  %v1836 = vmul.f32 %v1384, %v1755
  %v1837 = vmul.f32 %v1386, %v1759
  %v1838 = vmul.f32 %v1715, %v1763
  %v1839 = vmul.f32 %v1390, %v1755
  %v1840 = vmul.f32 %v1392, %v1759
  %v1841 = vmul.f32 %v1720, %v1763
  %v1842 = vmul.f32 %v1394, %v1755
  %v1843 = vmul.f32 %v1396, %v1759
  %v1844 = vmul.f32 %v1723, %v1763
  %v1845 = vmul.f32 %v1400, %v1755
  %v1846 = vmul.f32 %v1402, %v1759
  %v1847 = vmul.f32 %v1728, %v1763
  %v1848 = vmul.f32 %v1404, %v1755
  %v1849 = vmul.f32 %v1406, %v1759
  %v1850 = vmul.f32 %v1731, %v1763
  %v1851 = vmul.f32 %v1410, %v1755
  %v1852 = vmul.f32 %v1412, %v1759
  %v1853 = vmul.f32 %v1736, %v1763
  %v1854 = vmul.f32 %v1414, %v1755
  %v1855 = vmul.f32 %v1416, %v1759
  %v1856 = vmul.f32 %v1739, %v1763
  %v1857 = vmul.f32 %v1420, %v1755
  %v1858 = vmul.f32 %v1422, %v1759
  %v1859 = vmul.f32 %v1744, %v1763
  %v1860 = vmul.f32 %v1424, %v1755
  %v1861 = vmul.f32 %v1426, %v1759
  %v1862 = vmul.f32 %v1747, %v1763
  %v1863 = vld [vmem:[%s3] sm:$0x7]
  %v1865 = vlaneseq
  %v1866 = vshrl.u32 %v1865, 7
  %v1867 = vsub.s32 0, %v1866
  %v1868 = vrot.slane %v1863, %v1867
  %v1869 = vlaneseq
  %v1870 = vshrl.u32 %v1869, 7
  %v1871 = vsub.s32 1, %v1870
  %v1872 = vrot.slane %v1863, %v1871
  %v1873 = vlaneseq
  %v1874 = vshrl.u32 %v1873, 7
  %v1875 = vsub.s32 2, %v1874
  %v1876 = vrot.slane %v1863, %v1875
  %v1880 = vadd.f32 %v1767, %v1868
  %v1881 = vadd.f32 %v1768, %v1872
  %v1882 = vadd.f32 %v1769, %v1876
  %v1883 = vadd.f32 %v1770, %v1868
  %v1884 = vadd.f32 %v1771, %v1872
  %v1885 = vadd.f32 %v1772, %v1876
  %v1886 = vadd.f32 %v1773, %v1868
  %v1887 = vadd.f32 %v1774, %v1872
  %v1888 = vadd.f32 %v1775, %v1876
  %v1889 = vadd.f32 %v1776, %v1868
  %v1890 = vadd.f32 %v1777, %v1872
  %v1891 = vadd.f32 %v1778, %v1876
  %v1892 = vadd.f32 %v1779, %v1868
  %v1893 = vadd.f32 %v1780, %v1872
  %v1894 = vadd.f32 %v1781, %v1876
  %v1895 = vadd.f32 %v1782, %v1868
  %v1896 = vadd.f32 %v1783, %v1872
  %v1897 = vadd.f32 %v1784, %v1876
  %v1898 = vadd.f32 %v1785, %v1868
  %v1899 = vadd.f32 %v1786, %v1872
  %v1900 = vadd.f32 %v1787, %v1876
  %v1901 = vadd.f32 %v1788, %v1868
  %v1902 = vadd.f32 %v1789, %v1872
  %v1903 = vadd.f32 %v1790, %v1876
  %v1904 = vadd.f32 %v1791, %v1868
  %v1905 = vadd.f32 %v1792, %v1872
  %v1906 = vadd.f32 %v1793, %v1876
  %v1907 = vadd.f32 %v1794, %v1868
  %v1908 = vadd.f32 %v1795, %v1872
  %v1909 = vadd.f32 %v1796, %v1876
  %v1910 = vadd.f32 %v1797, %v1868
  %v1911 = vadd.f32 %v1798, %v1872
  %v1912 = vadd.f32 %v1799, %v1876
  %v1913 = vadd.f32 %v1800, %v1868
  %v1914 = vadd.f32 %v1801, %v1872
  %v1915 = vadd.f32 %v1802, %v1876
  %v1916 = vadd.f32 %v1803, %v1868
  %v1917 = vadd.f32 %v1804, %v1872
  %v1918 = vadd.f32 %v1805, %v1876
  %v1919 = vadd.f32 %v1806, %v1868
  %v1920 = vadd.f32 %v1807, %v1872
  %v1921 = vadd.f32 %v1808, %v1876
  %v1922 = vadd.f32 %v1809, %v1868
  %v1923 = vadd.f32 %v1810, %v1872
  %v1924 = vadd.f32 %v1811, %v1876
  %v1925 = vadd.f32 %v1812, %v1868
  %v1926 = vadd.f32 %v1813, %v1872
  %v1927 = vadd.f32 %v1814, %v1876
  %v1928 = vadd.f32 %v1815, %v1868
  %v1929 = vadd.f32 %v1816, %v1872
  %v1930 = vadd.f32 %v1817, %v1876
  %v1931 = vadd.f32 %v1818, %v1868
  %v1932 = vadd.f32 %v1819, %v1872
  %v1933 = vadd.f32 %v1820, %v1876
  %v1934 = vadd.f32 %v1821, %v1868
  %v1935 = vadd.f32 %v1822, %v1872
  %v1936 = vadd.f32 %v1823, %v1876
  %v1937 = vadd.f32 %v1824, %v1868
  %v1938 = vadd.f32 %v1825, %v1872
  %v1939 = vadd.f32 %v1826, %v1876
  %v1940 = vadd.f32 %v1827, %v1868
  %v1941 = vadd.f32 %v1828, %v1872
  %v1942 = vadd.f32 %v1829, %v1876
  %v1943 = vadd.f32 %v1830, %v1868
  %v1944 = vadd.f32 %v1831, %v1872
  %v1945 = vadd.f32 %v1832, %v1876
  %v1946 = vadd.f32 %v1833, %v1868
  %v1947 = vadd.f32 %v1834, %v1872
  %v1948 = vadd.f32 %v1835, %v1876
  %v1949 = vadd.f32 %v1836, %v1868
  %v1950 = vadd.f32 %v1837, %v1872
  %v1951 = vadd.f32 %v1838, %v1876
  %v1952 = vadd.f32 %v1839, %v1868
  %v1953 = vadd.f32 %v1840, %v1872
  %v1954 = vadd.f32 %v1841, %v1876
  %v1955 = vadd.f32 %v1842, %v1868
  %v1956 = vadd.f32 %v1843, %v1872
  %v1957 = vadd.f32 %v1844, %v1876
  %v1958 = vadd.f32 %v1845, %v1868
  %v1959 = vadd.f32 %v1846, %v1872
  %v1960 = vadd.f32 %v1847, %v1876
  %v1961 = vadd.f32 %v1848, %v1868
  %v1962 = vadd.f32 %v1849, %v1872
  %v1963 = vadd.f32 %v1850, %v1876
  %v1964 = vadd.f32 %v1851, %v1868
  %v1965 = vadd.f32 %v1852, %v1872
  %v1966 = vadd.f32 %v1853, %v1876
  %v1967 = vadd.f32 %v1854, %v1868
  %v1968 = vadd.f32 %v1855, %v1872
  %v1969 = vadd.f32 %v1856, %v1876
  %v1970 = vadd.f32 %v1857, %v1868
  %v1971 = vadd.f32 %v1858, %v1872
  %v1972 = vadd.f32 %v1859, %v1876
  %v1973 = vadd.f32 %v1860, %v1868
  %v1974 = vadd.f32 %v1861, %v1872
  %v1975 = vadd.f32 %v1862, %v1876
  %v1976 = vmax.f32 %v1880, 0.0
  %v1977 = vmax.f32 %v1881, 0.0
  %v1978 = vmax.f32 %v1882, 0.0
  %v1979 = vmax.f32 %v1883, 0.0
  %v1980 = vmax.f32 %v1884, 0.0
  %v1981 = vmax.f32 %v1885, 0.0
  %v1982 = vmax.f32 %v1886, 0.0
  %v1983 = vmax.f32 %v1887, 0.0
  %v1984 = vmax.f32 %v1888, 0.0
  %v1985 = vmax.f32 %v1889, 0.0
  %v1986 = vmax.f32 %v1890, 0.0
  %v1987 = vmax.f32 %v1891, 0.0
  %v1988 = vmax.f32 %v1892, 0.0
  %v1989 = vmax.f32 %v1893, 0.0
  %v1990 = vmax.f32 %v1894, 0.0
  %v1991 = vmax.f32 %v1895, 0.0
  %v1992 = vmax.f32 %v1896, 0.0
  %v1993 = vmax.f32 %v1897, 0.0
  %v1994 = vmax.f32 %v1898, 0.0
  %v1995 = vmax.f32 %v1899, 0.0
  %v1996 = vmax.f32 %v1900, 0.0
  %v1997 = vmax.f32 %v1901, 0.0
  %v1998 = vmax.f32 %v1902, 0.0
  %v1999 = vmax.f32 %v1903, 0.0
  %v2000 = vmax.f32 %v1904, 0.0
  %v2001 = vmax.f32 %v1905, 0.0
  %v2002 = vmax.f32 %v1906, 0.0
  %v2003 = vmax.f32 %v1907, 0.0
  %v2004 = vmax.f32 %v1908, 0.0
  %v2005 = vmax.f32 %v1909, 0.0
  %v2006 = vmax.f32 %v1910, 0.0
  %v2007 = vmax.f32 %v1911, 0.0
  %v2008 = vmax.f32 %v1912, 0.0
  %v2009 = vmax.f32 %v1913, 0.0
  %v2010 = vmax.f32 %v1914, 0.0
  %v2011 = vmax.f32 %v1915, 0.0
  %v2012 = vmax.f32 %v1916, 0.0
  %v2013 = vmax.f32 %v1917, 0.0
  %v2014 = vmax.f32 %v1918, 0.0
  %v2015 = vmax.f32 %v1919, 0.0
  %v2016 = vmax.f32 %v1920, 0.0
  %v2017 = vmax.f32 %v1921, 0.0
  %v2018 = vmax.f32 %v1922, 0.0
  %v2019 = vmax.f32 %v1923, 0.0
  %v2020 = vmax.f32 %v1924, 0.0
  %v2021 = vmax.f32 %v1925, 0.0
  %v2022 = vmax.f32 %v1926, 0.0
  %v2023 = vmax.f32 %v1927, 0.0
  %v2024 = vmax.f32 %v1928, 0.0
  %v2025 = vmax.f32 %v1929, 0.0
  %v2026 = vmax.f32 %v1930, 0.0
  %v2027 = vmax.f32 %v1931, 0.0
  %v2028 = vmax.f32 %v1932, 0.0
  %v2029 = vmax.f32 %v1933, 0.0
  %v2030 = vmax.f32 %v1934, 0.0
  %v2031 = vmax.f32 %v1935, 0.0
  %v2032 = vmax.f32 %v1936, 0.0
  %v2033 = vmax.f32 %v1937, 0.0
  %v2034 = vmax.f32 %v1938, 0.0
  %v2035 = vmax.f32 %v1939, 0.0
  %v2036 = vmax.f32 %v1940, 0.0
  %v2037 = vmax.f32 %v1941, 0.0
  %v2038 = vmax.f32 %v1942, 0.0
  %v2039 = vmax.f32 %v1943, 0.0
  %v2040 = vmax.f32 %v1944, 0.0
  %v2041 = vmax.f32 %v1945, 0.0
  %v2042 = vmax.f32 %v1946, 0.0
  %v2043 = vmax.f32 %v1947, 0.0
  %v2044 = vmax.f32 %v1948, 0.0
  %v2045 = vmax.f32 %v1949, 0.0
  %v2046 = vmax.f32 %v1950, 0.0
  %v2047 = vmax.f32 %v1951, 0.0
  %v2048 = vmax.f32 %v1952, 0.0
  %v2049 = vmax.f32 %v1953, 0.0
  %v2050 = vmax.f32 %v1954, 0.0
  %v2051 = vmax.f32 %v1955, 0.0
  %v2052 = vmax.f32 %v1956, 0.0
  %v2053 = vmax.f32 %v1957, 0.0
  %v2054 = vmax.f32 %v1958, 0.0
  %v2055 = vmax.f32 %v1959, 0.0
  %v2056 = vmax.f32 %v1960, 0.0
  %v2057 = vmax.f32 %v1961, 0.0
  %v2058 = vmax.f32 %v1962, 0.0
  %v2059 = vmax.f32 %v1963, 0.0
  %v2060 = vmax.f32 %v1964, 0.0
  %v2061 = vmax.f32 %v1965, 0.0
  %v2062 = vmax.f32 %v1966, 0.0
  %v2063 = vmax.f32 %v1967, 0.0
  %v2064 = vmax.f32 %v1968, 0.0
  %v2065 = vmax.f32 %v1969, 0.0
  %v2066 = vmax.f32 %v1970, 0.0
  %v2067 = vmax.f32 %v1971, 0.0
  %v2068 = vmax.f32 %v1972, 0.0
  %v2069 = vmax.f32 %v1973, 0.0
  %v2070 = vmax.f32 %v1974, 0.0
  %v2071 = vmax.f32 %v1975, 0.0
  %v2072 = vpack.c.bf16 %v1979, %v1976
  %v2073 = vpack.c.bf16 %v1980, %v1977
  %v2074 = vpack.c.bf16 %v1981, %v1978
  %v2075 = vpack.c.bf16 %v1985, %v1982
  %v2076 = vpack.c.bf16 %v1986, %v1983
  %v2077 = vpack.c.bf16 %v1987, %v1984
  %v2078 = vpack.c.bf16 %v1991, %v1988
  %v2079 = vpack.c.bf16 %v1992, %v1989
  %v2080 = vpack.c.bf16 %v1993, %v1990
  %v2081 = vpack.c.bf16 %v1997, %v1994
  %v2082 = vpack.c.bf16 %v1998, %v1995
  %v2083 = vpack.c.bf16 %v1999, %v1996
  %v2084 = vpack.c.bf16 %v2003, %v2000
  %v2085 = vpack.c.bf16 %v2004, %v2001
  %v2086 = vpack.c.bf16 %v2005, %v2002
  %v2087 = vpack.c.bf16 %v2009, %v2006
  %v2088 = vpack.c.bf16 %v2010, %v2007
  %v2089 = vpack.c.bf16 %v2011, %v2008
  %v2090 = vpack.c.bf16 %v2015, %v2012
  %v2091 = vpack.c.bf16 %v2016, %v2013
  %v2092 = vpack.c.bf16 %v2017, %v2014
  %v2093 = vpack.c.bf16 %v2021, %v2018
  %v2094 = vpack.c.bf16 %v2022, %v2019
  %v2095 = vpack.c.bf16 %v2023, %v2020
  %v2096 = vpack.c.bf16 %v2027, %v2024
  %v2097 = vpack.c.bf16 %v2028, %v2025
  %v2098 = vpack.c.bf16 %v2029, %v2026
  %v2099 = vpack.c.bf16 %v2033, %v2030
  %v2100 = vpack.c.bf16 %v2034, %v2031
  %v2101 = vpack.c.bf16 %v2035, %v2032
  %v2102 = vpack.c.bf16 %v2039, %v2036
  %v2103 = vpack.c.bf16 %v2040, %v2037
  %v2104 = vpack.c.bf16 %v2041, %v2038
  %v2105 = vpack.c.bf16 %v2045, %v2042
  %v2106 = vpack.c.bf16 %v2046, %v2043
  %v2107 = vpack.c.bf16 %v2047, %v2044
  %v2108 = vpack.c.bf16 %v2051, %v2048
  %v2109 = vpack.c.bf16 %v2052, %v2049
  %v2110 = vpack.c.bf16 %v2053, %v2050
  %v2111 = vpack.c.bf16 %v2057, %v2054
  %v2112 = vpack.c.bf16 %v2058, %v2055
  %v2113 = vpack.c.bf16 %v2059, %v2056
  %v2114 = vpack.c.bf16 %v2063, %v2060
  %v2115 = vpack.c.bf16 %v2064, %v2061
  %v2116 = vpack.c.bf16 %v2065, %v2062
  %v2117 = vpack.c.bf16 %v2069, %v2066
  %v2118 = vpack.c.bf16 %v2070, %v2067
  %v2119 = vpack.c.bf16 %v2071, %v2068
  %v2168 = vunpack.c.l.b16 %v2072
  %v2169 = vunpack.c.l.b16 %v2073
  %v2170 = vunpack.c.l.b16 %v2074
  %v2171 = vunpack.c.h.b16 %v2072
  %v2172 = vunpack.c.h.b16 %v2073
  %v2173 = vunpack.c.h.b16 %v2074
  %v2174 = vunpack.c.l.b16 %v2075
  %v2175 = vunpack.c.l.b16 %v2076
  %v2176 = vunpack.c.l.b16 %v2077
  %v2177 = vunpack.c.h.b16 %v2075
  %v2178 = vunpack.c.h.b16 %v2076
  %v2179 = vunpack.c.h.b16 %v2077
  %v2180 = vunpack.c.l.b16 %v2078
  %v2181 = vunpack.c.l.b16 %v2079
  %v2182 = vunpack.c.l.b16 %v2080
  %v2183 = vunpack.c.h.b16 %v2078
  %v2184 = vunpack.c.h.b16 %v2079
  %v2185 = vunpack.c.h.b16 %v2080
  %v2186 = vunpack.c.l.b16 %v2081
  %v2187 = vunpack.c.l.b16 %v2082
  %v2188 = vunpack.c.l.b16 %v2083
  %v2189 = vunpack.c.h.b16 %v2081
  %v2190 = vunpack.c.h.b16 %v2082
  %v2191 = vunpack.c.h.b16 %v2083
  %v2192 = vunpack.c.l.b16 %v2084
  %v2193 = vunpack.c.l.b16 %v2085
  %v2194 = vunpack.c.l.b16 %v2086
  %v2195 = vunpack.c.h.b16 %v2084
  %v2196 = vunpack.c.h.b16 %v2085
  %v2197 = vunpack.c.h.b16 %v2086
  %v2198 = vunpack.c.l.b16 %v2087
  %v2199 = vunpack.c.l.b16 %v2088
  %v2200 = vunpack.c.l.b16 %v2089
  %v2201 = vunpack.c.h.b16 %v2087
  %v2202 = vunpack.c.h.b16 %v2088
  %v2203 = vunpack.c.h.b16 %v2089
  %v2204 = vunpack.c.l.b16 %v2090
  %v2205 = vunpack.c.l.b16 %v2091
  %v2206 = vunpack.c.l.b16 %v2092
  %v2207 = vunpack.c.h.b16 %v2090
  %v2208 = vunpack.c.h.b16 %v2091
  %v2209 = vunpack.c.h.b16 %v2092
  %v2210 = vunpack.c.l.b16 %v2093
  %v2211 = vunpack.c.l.b16 %v2094
  %v2212 = vunpack.c.l.b16 %v2095
  %v2213 = vunpack.c.h.b16 %v2093
  %v2214 = vunpack.c.h.b16 %v2094
  %v2215 = vunpack.c.h.b16 %v2095
  %v2216 = vunpack.c.l.b16 %v2096
  %v2217 = vunpack.c.l.b16 %v2097
  %v2218 = vunpack.c.l.b16 %v2098
  %v2219 = vunpack.c.h.b16 %v2096
  %v2220 = vunpack.c.h.b16 %v2097
  %v2221 = vunpack.c.h.b16 %v2098
  %v2222 = vunpack.c.l.b16 %v2099
  %v2223 = vunpack.c.l.b16 %v2100
  %v2224 = vunpack.c.l.b16 %v2101
  %v2225 = vunpack.c.h.b16 %v2099
  %v2226 = vunpack.c.h.b16 %v2100
  %v2227 = vunpack.c.h.b16 %v2101
  %v2228 = vunpack.c.l.b16 %v2102
  %v2229 = vunpack.c.l.b16 %v2103
  %v2230 = vunpack.c.l.b16 %v2104
  %v2231 = vunpack.c.h.b16 %v2102
  %v2232 = vunpack.c.h.b16 %v2103
  %v2233 = vunpack.c.h.b16 %v2104
  %v2234 = vunpack.c.l.b16 %v2105
  %v2235 = vunpack.c.l.b16 %v2106
  %v2236 = vunpack.c.l.b16 %v2107
  %v2237 = vunpack.c.h.b16 %v2105
  %v2238 = vunpack.c.h.b16 %v2106
  %v2239 = vunpack.c.h.b16 %v2107
  %v2240 = vunpack.c.l.b16 %v2108
  %v2241 = vunpack.c.l.b16 %v2109
  %v2242 = vunpack.c.l.b16 %v2110
  %v2243 = vunpack.c.h.b16 %v2108
  %v2244 = vunpack.c.h.b16 %v2109
  %v2245 = vunpack.c.h.b16 %v2110
  %v2246 = vunpack.c.l.b16 %v2111
  %v2247 = vunpack.c.l.b16 %v2112
  %v2248 = vunpack.c.l.b16 %v2113
  %v2249 = vunpack.c.h.b16 %v2111
  %v2250 = vunpack.c.h.b16 %v2112
  %v2251 = vunpack.c.h.b16 %v2113
  %v2252 = vunpack.c.l.b16 %v2114
  %v2253 = vunpack.c.l.b16 %v2115
  %v2254 = vunpack.c.l.b16 %v2116
  %v2255 = vunpack.c.h.b16 %v2114
  %v2256 = vunpack.c.h.b16 %v2115
  %v2257 = vunpack.c.h.b16 %v2116
  %v2258 = vunpack.c.l.b16 %v2117
  %v2259 = vunpack.c.l.b16 %v2118
  %v2260 = vunpack.c.l.b16 %v2119
  %v2261 = vunpack.c.h.b16 %v2117
  %v2262 = vunpack.c.h.b16 %v2118
  %v2263 = vunpack.c.h.b16 %v2119
  %v2264 = vpack.c.b16 %v2169, %v2168
  %v2265 = vpack.c.b16 %v2170, %v2170
  %v2266 = vpack.c.b16 %v2172, %v2171
  %v2267 = vpack.c.b16 %v2173, %v2173
  %v2268 = vpack.c.b16 %v2175, %v2174
  %v2269 = vpack.c.b16 %v2176, %v2176
  %v2270 = vpack.c.b16 %v2178, %v2177
  %v2271 = vpack.c.b16 %v2179, %v2179
  %v2272 = vpack.c.b16 %v2181, %v2180
  %v2273 = vpack.c.b16 %v2182, %v2182
  %v2274 = vpack.c.b16 %v2184, %v2183
  %v2275 = vpack.c.b16 %v2185, %v2185
  %v2276 = vpack.c.b16 %v2187, %v2186
  %v2277 = vpack.c.b16 %v2188, %v2188
  %v2278 = vpack.c.b16 %v2190, %v2189
  %v2279 = vpack.c.b16 %v2191, %v2191
  %v2280 = vpack.c.b16 %v2193, %v2192
  %v2281 = vpack.c.b16 %v2194, %v2194
  %v2282 = vpack.c.b16 %v2196, %v2195
  %v2283 = vpack.c.b16 %v2197, %v2197
  %v2284 = vpack.c.b16 %v2199, %v2198
  %v2285 = vpack.c.b16 %v2200, %v2200
  %v2286 = vpack.c.b16 %v2202, %v2201
  %v2287 = vpack.c.b16 %v2203, %v2203
  %v2288 = vpack.c.b16 %v2205, %v2204
  %v2289 = vpack.c.b16 %v2206, %v2206
  %v2290 = vpack.c.b16 %v2208, %v2207
  %v2291 = vpack.c.b16 %v2209, %v2209
  %v2292 = vpack.c.b16 %v2211, %v2210
  %v2293 = vpack.c.b16 %v2212, %v2212
  %v2294 = vpack.c.b16 %v2214, %v2213
  %v2295 = vpack.c.b16 %v2215, %v2215
  %v2296 = vpack.c.b16 %v2217, %v2216
  %v2297 = vpack.c.b16 %v2218, %v2218
  %v2298 = vpack.c.b16 %v2220, %v2219
  %v2299 = vpack.c.b16 %v2221, %v2221
  %v2300 = vpack.c.b16 %v2223, %v2222
  %v2301 = vpack.c.b16 %v2224, %v2224
  %v2302 = vpack.c.b16 %v2226, %v2225
  %v2303 = vpack.c.b16 %v2227, %v2227
  %v2304 = vpack.c.b16 %v2229, %v2228
  %v2305 = vpack.c.b16 %v2230, %v2230
  %v2306 = vpack.c.b16 %v2232, %v2231
  %v2307 = vpack.c.b16 %v2233, %v2233
  %v2308 = vpack.c.b16 %v2235, %v2234
  %v2309 = vpack.c.b16 %v2236, %v2236
  %v2310 = vpack.c.b16 %v2238, %v2237
  %v2311 = vpack.c.b16 %v2239, %v2239
  %v2312 = vpack.c.b16 %v2241, %v2240
  %v2313 = vpack.c.b16 %v2242, %v2242
  %v2314 = vpack.c.b16 %v2244, %v2243
  %v2315 = vpack.c.b16 %v2245, %v2245
  %v2316 = vpack.c.b16 %v2247, %v2246
  %v2317 = vpack.c.b16 %v2248, %v2248
  %v2318 = vpack.c.b16 %v2250, %v2249
  %v2319 = vpack.c.b16 %v2251, %v2251
  %v2320 = vpack.c.b16 %v2253, %v2252
  %v2321 = vpack.c.b16 %v2254, %v2254
  %v2322 = vpack.c.b16 %v2256, %v2255
  %v2323 = vpack.c.b16 %v2257, %v2257
  %v2324 = vpack.c.b16 %v2259, %v2258
  %v2325 = vpack.c.b16 %v2260, %v2260
  %v2326 = vpack.c.b16 %v2262, %v2261
  %v2327 = vpack.c.b16 %v2263, %v2263
  %2392 = vst [vmem:[%s4] sm:$0xff] %v2264
  %vm2393 = vcmask 257024
  %2394 = vst.msk [vmem:[%s4 + $0x8] sm:$0xf] %vm2393, %v2265
  %2395 = vst [vmem:[%s4 + $0xc] sm:$0xff] %v2266
  %2396 = vst.msk [vmem:[%s4 + $0x14] sm:$0xf] %vm2393, %v2267
  %2397 = vst [vmem:[%s4 + $0x18] sm:$0xff] %v2268
  %2398 = vst.msk [vmem:[%s4 + $0x20] sm:$0xf] %vm2393, %v2269
  %2399 = vst [vmem:[%s4 + $0x24] sm:$0xff] %v2270
  %2400 = vst.msk [vmem:[%s4 + $0x2c] sm:$0xf] %vm2393, %v2271
  %2401 = vst [vmem:[%s4 + $0x30] sm:$0xff] %v2272
  %2402 = vst.msk [vmem:[%s4 + $0x38] sm:$0xf] %vm2393, %v2273
  %2403 = vst [vmem:[%s4 + $0x3c] sm:$0xff] %v2274
  %2404 = vst.msk [vmem:[%s4 + $0x44] sm:$0xf] %vm2393, %v2275
  %2405 = vst [vmem:[%s4 + $0x48] sm:$0xff] %v2276
  %2406 = vst.msk [vmem:[%s4 + $0x50] sm:$0xf] %vm2393, %v2277
  %2407 = vst [vmem:[%s4 + $0x54] sm:$0xff] %v2278
  %2408 = vst.msk [vmem:[%s4 + $0x5c] sm:$0xf] %vm2393, %v2279
  %2409 = vst [vmem:[%s4 + $0x60] sm:$0xff] %v2280
  %2410 = vst.msk [vmem:[%s4 + $0x68] sm:$0xf] %vm2393, %v2281
  %2411 = vst [vmem:[%s4 + $0x6c] sm:$0xff] %v2282
  %2412 = vst.msk [vmem:[%s4 + $0x74] sm:$0xf] %vm2393, %v2283
  %2413 = vst [vmem:[%s4 + $0x78] sm:$0xff] %v2284
  %2414 = vst.msk [vmem:[%s4 + $0x80] sm:$0xf] %vm2393, %v2285
  %2415 = vst [vmem:[%s4 + $0x84] sm:$0xff] %v2286
  %2416 = vst.msk [vmem:[%s4 + $0x8c] sm:$0xf] %vm2393, %v2287
  %2417 = vst [vmem:[%s4 + $0x90] sm:$0xff] %v2288
  %2418 = vst.msk [vmem:[%s4 + $0x98] sm:$0xf] %vm2393, %v2289
  %2419 = vst [vmem:[%s4 + $0x9c] sm:$0xff] %v2290
  %2420 = vst.msk [vmem:[%s4 + $0xa4] sm:$0xf] %vm2393, %v2291
  %2421 = vst [vmem:[%s4 + $0xa8] sm:$0xff] %v2292
  %2422 = vst.msk [vmem:[%s4 + $0xb0] sm:$0xf] %vm2393, %v2293
  %2423 = vst [vmem:[%s4 + $0xb4] sm:$0xff] %v2294
  %2424 = vst.msk [vmem:[%s4 + $0xbc] sm:$0xf] %vm2393, %v2295
  %2425 = vst [vmem:[%s4 + $0xc0] sm:$0xff] %v2296
  %2426 = vst.msk [vmem:[%s4 + $0xc8] sm:$0xf] %vm2393, %v2297
  %2427 = vst [vmem:[%s4 + $0xcc] sm:$0xff] %v2298
  %2428 = vst.msk [vmem:[%s4 + $0xd4] sm:$0xf] %vm2393, %v2299
  %2429 = vst [vmem:[%s4 + $0xd8] sm:$0xff] %v2300
  %2430 = vst.msk [vmem:[%s4 + $0xe0] sm:$0xf] %vm2393, %v2301
  %2431 = vst [vmem:[%s4 + $0xe4] sm:$0xff] %v2302
  %2432 = vst.msk [vmem:[%s4 + $0xec] sm:$0xf] %vm2393, %v2303
  %2433 = vst [vmem:[%s4 + $0xf0] sm:$0xff] %v2304
  %2434 = vst.msk [vmem:[%s4 + $0xf8] sm:$0xf] %vm2393, %v2305
  %2435 = vst [vmem:[%s4 + $0xfc] sm:$0xff] %v2306
  %2436 = vst.msk [vmem:[%s4 + $0x104] sm:$0xf] %vm2393, %v2307
  %2437 = vst [vmem:[%s4 + $0x108] sm:$0xff] %v2308
  %2438 = vst.msk [vmem:[%s4 + $0x110] sm:$0xf] %vm2393, %v2309
  %2439 = vst [vmem:[%s4 + $0x114] sm:$0xff] %v2310
  %2440 = vst.msk [vmem:[%s4 + $0x11c] sm:$0xf] %vm2393, %v2311
  %2441 = vst [vmem:[%s4 + $0x120] sm:$0xff] %v2312
  %2442 = vst.msk [vmem:[%s4 + $0x128] sm:$0xf] %vm2393, %v2313
  %2443 = vst [vmem:[%s4 + $0x12c] sm:$0xff] %v2314
  %2444 = vst.msk [vmem:[%s4 + $0x134] sm:$0xf] %vm2393, %v2315
  %2445 = vst [vmem:[%s4 + $0x138] sm:$0xff] %v2316
  %2446 = vst.msk [vmem:[%s4 + $0x140] sm:$0xf] %vm2393, %v2317
  %2447 = vst [vmem:[%s4 + $0x144] sm:$0xff] %v2318
  %2448 = vst.msk [vmem:[%s4 + $0x14c] sm:$0xf] %vm2393, %v2319
  %2449 = vst [vmem:[%s4 + $0x150] sm:$0xff] %v2320
  %2450 = vst.msk [vmem:[%s4 + $0x158] sm:$0xf] %vm2393, %v2321
  %2451 = vst [vmem:[%s4 + $0x15c] sm:$0xff] %v2322
  %2452 = vst.msk [vmem:[%s4 + $0x164] sm:$0xf] %vm2393, %v2323
  %2453 = vst [vmem:[%s4 + $0x168] sm:$0xff] %v2324
  %2454 = vst.msk [vmem:[%s4 + $0x170] sm:$0xf] %vm2393, %v2325
  %2455 = vst [vmem:[%s4 + $0x174] sm:$0xff] %v2326
  %2456 = vst.msk [vmem:[%s4 + $0x17c] sm:$0xf] %vm2393, %v2327
  // Predicated region
  $region18: #{mixed_4e_forward.6} parent=0 // pred_check
    _
  $region19: #{mixed_4e_forward.6} parent=0 // pred_check_branch
    %2458 = sbr.rel (0) target = $region21
  $region20: #{mixed_4e_forward.6} parent=0 // pred_region
    _
  $region21: #{mixed_4e_forward.6} parent=0 // pred_fallthru
    _
  // Predicated region
  $region22: #{mixed_4e_forward.6} parent=0 // pred_check
    _
  $region23: #{mixed_4e_forward.6} parent=0 // pred_check_branch
    %2460 = sbr.rel (0) target = $region25
  $region24: #{mixed_4e_forward.6} parent=0 // pred_region
    _
  $region25: #{mixed_4e_forward.6} parent=0 // pred_fallthru
    _

// kernel: mixed_4e_forward.8
$region0: #{mixed_4e_forward.8}
  #allocation0 [shape = 'u32[]', space=smem, size = 0x4, offset = 0x4, fixed_abs, tag = 'smem constant byte address 0x4 - core index']
  #allocation1 [shape = 'u32[144,128]{1,0:T(1,128)}', space=vmem, size = 0x12000, scoped, tag = 'internal scratch']
  #allocation2 [shape = 'f32[64,288]{1,0:T(8,128)}', space=vmem, size = 0x18000, scoped, tag = 'scratch operand']
  %s0 = inlined_call_operand.vmem [shape: bf16[1,6,8,8,288], index: 0, kind: input, shape index: {}]
  %s1 = inlined_call_operand.vmem [shape: bf16[3,288,288], index: 1, kind: input, shape index: {}]
  %s2 = inlined_call_operand.vmem [shape: f32[1,288], index: 2, kind: input, shape index: {}]
  %s3 = inlined_call_operand.vmem [shape: f32[1,288], index: 3, kind: input, shape index: {}]
  %s4 = inlined_call_operand.vmem [shape: bf16[1,4,8,8,288], index: 4, kind: output, shape index: {}]
  %s5 = sld [smem:[#allocation0]]
  $region57: #{mixed_4e_forward.8} parent=0
    _
  %s7 = ssub.s32 1, %s5
  %s8 = scalar_select 0, %s7, %s5
  loop: start=0, step=1, limit=14
  $region2: #{mixed_4e_forward.8} parent=0 // loop_pre_header
    _
  $region3: #{mixed_4e_forward.8} parent=0 // loop_header
    %s10 = sphi 0, %s14
    %p11 = scmp.ge.s32.totalorder %s10, 14
    %s17 = sphi 0, %s36
    %s18 = sphi 0, %s32
    %s19 = sphi 0, %s28
    %s20 = sphi 0, %s17
    %s21 = sphi 0, %s18
    %s22 = sphi 0, %s19
    %s23 = sphi 0, %s20
    %s24 = sphi 0, %s21
    %s25 = sphi 0, %s22
    %s43 = sphi 0, %s45
    %s46 = sphi 0, %s43
    %s47 = sphi 0, %s46
    %s63 = sphi 0, %s47
    %s69 = sphi 0, %s71
    %s72 = sphi 0, %s69
    %s73 = sphi 0, %s72
    %s89 = sphi 0, %s73
    %s93 = sphi 0, %s93
    %s95 = sphi 0, %s93
    %s96 = sphi 0, %s95
    %s110 = sphi 0, %s96
    %s114 = sphi 0, %s114
    %s116 = sphi 0, %s114
    %s117 = sphi 0, %s116
    %s131 = sphi 0, %s117
    %s139 = sphi 0, %s141
    %s142 = sphi 0, %s139
    %s143 = sphi 0, %s142
    %s159 = sphi 0, %s143
  $region4: #{mixed_4e_forward.8} parent=0 // loop_header_branch
    %13 = sbr.rel (%p11) target = $region8
  $region5: #{mixed_4e_forward.8} parent=0 // loop_body
    %s15 = ssub.s32 %s10, 1
    %s16 = ssub.s32 %s10, 2
    %s26 = sadd.s32 1, %s19
    %p27 = scmp.ge.s32.totalorder %s26, 3
    %s28 = scalar_select %p27, 0, %s26
    %s29 = sadd.s32 1, %s18
    %s30 = scalar_select %p27, %s29, %s18
    %p31 = scmp.ge.s32.totalorder %s30, 4
    %s32 = scalar_select %p31, 0, %s30
    %s33 = sadd.s32 1, %s17
    %s34 = scalar_select %p31, %s33, %s17
    %p35 = scmp.ge.s32.totalorder %s34, 1
    %s36 = scalar_select %p35, 0, %s34
    %s37 = sadd.s32 %s18, %s19
    %s38 = sadd.s32 %s32, %s28
    %s39 = ssub.s32 %s17, %s36
    %s40 = ssub.s32 %s37, %s38
    %s41 = sor.u32 %s39, %s40
    %p42 = scmp.eq.s32.totalorder %s41, 0
    %s44 = sadd.s32 %s43, 1
    %s45 = scalar_select %p42, %s43, %s44
    %p48 = pneg %p42
    %p49 = scmp.eq.s32.totalorder %s10, 11
    %p50 = por %p48, %p49
    %p51 = scmp.ne.s32.totalorder %s43, %s46
    %p52 = scmp.eq.s32.totalorder %s10, 0
    %p53 = por %p51, %p52
    %p54 = scmp.ne.s32.totalorder %s43, %s46
    %p55 = scmp.eq.s32.totalorder %s15, 11
    %p56 = por %p54, %p55
    %p57 = scmp.ne.s32.totalorder %s46, %s47
    %p58 = scmp.eq.s32.totalorder %s15, 0
    %p59 = por %p57, %p58
    %p60 = scmp.ne.s32.totalorder %s46, %s47
    %p61 = scmp.eq.s32.totalorder %s16, 11
    %p62 = por %p60, %p61
    %p64 = scmp.ne.s32.totalorder %s47, %s63
    %p65 = scmp.eq.s32.totalorder %s16, 0
    %p66 = por %p64, %p65
    %s67 = ssub.s32 %s19, %s28
    %p68 = scmp.eq.s32.totalorder %s67, 0
    %s70 = sadd.s32 %s69, 1
    %s71 = scalar_select %p68, %s69, %s70
    %p74 = pneg %p68
    %p75 = scmp.eq.s32.totalorder %s10, 11
    %p76 = por %p74, %p75
    %p77 = scmp.ne.s32.totalorder %s69, %s72
    %p78 = scmp.eq.s32.totalorder %s10, 0
    %p79 = por %p77, %p78
    %p80 = scmp.ne.s32.totalorder %s69, %s72
    %p81 = scmp.eq.s32.totalorder %s15, 11
    %p82 = por %p80, %p81
    %p83 = scmp.ne.s32.totalorder %s72, %s73
    %p84 = scmp.eq.s32.totalorder %s15, 0
    %p85 = por %p83, %p84
    %p86 = scmp.ne.s32.totalorder %s72, %s73
    %p87 = scmp.eq.s32.totalorder %s16, 11
    %p88 = por %p86, %p87
    %p90 = scmp.ne.s32.totalorder %s73, %s89
    %p91 = scmp.eq.s32.totalorder %s16, 0
    %p92 = por %p90, %p91
    %s94 = sadd.s32 %s93, 1
    %p97 = scmp.eq.s32.totalorder %s10, 11
    %p98 = scmp.ne.s32.totalorder %s93, %s95
    %p99 = scmp.eq.s32.totalorder %s10, 0
    %p100 = por %p98, %p99
    %p101 = scmp.ne.s32.totalorder %s93, %s95
    %p102 = scmp.eq.s32.totalorder %s15, 11
    %p103 = por %p101, %p102
    %p104 = scmp.ne.s32.totalorder %s95, %s96
    %p105 = scmp.eq.s32.totalorder %s15, 0
    %p106 = por %p104, %p105
    %p107 = scmp.ne.s32.totalorder %s95, %s96
    %p108 = scmp.eq.s32.totalorder %s16, 11
    %p109 = por %p107, %p108
    %p111 = scmp.ne.s32.totalorder %s96, %s110
    %p112 = scmp.eq.s32.totalorder %s16, 0
    %p113 = por %p111, %p112
    %s115 = sadd.s32 %s114, 1
    %p118 = scmp.eq.s32.totalorder %s10, 11
    %p119 = scmp.ne.s32.totalorder %s114, %s116
    %p120 = scmp.eq.s32.totalorder %s10, 0
    %p121 = por %p119, %p120
    %p122 = scmp.ne.s32.totalorder %s114, %s116
    %p123 = scmp.eq.s32.totalorder %s15, 11
    %p124 = por %p122, %p123
    %p125 = scmp.ne.s32.totalorder %s116, %s117
    %p126 = scmp.eq.s32.totalorder %s15, 0
    %p127 = por %p125, %p126
    %p128 = scmp.ne.s32.totalorder %s116, %s117
    %p129 = scmp.eq.s32.totalorder %s16, 11
    %p130 = por %p128, %p129
    %p132 = scmp.ne.s32.totalorder %s117, %s131
    %p133 = scmp.eq.s32.totalorder %s16, 0
    %p134 = por %p132, %p133
    %s135 = ssub.s32 %s17, %s36
    %s136 = ssub.s32 %s18, %s32
    %s137 = sor.u32 %s135, %s136
    %p138 = scmp.eq.s32.totalorder %s137, 0
    %s140 = sadd.s32 %s139, 1
    %s141 = scalar_select %p138, %s139, %s140
    %p144 = pneg %p138
    %p145 = scmp.eq.s32.totalorder %s10, 11
    %p146 = por %p144, %p145
    %p147 = scmp.ne.s32.totalorder %s139, %s142
    %p148 = scmp.eq.s32.totalorder %s10, 0
    %p149 = por %p147, %p148
    %p150 = scmp.ne.s32.totalorder %s139, %s142
    %p151 = scmp.eq.s32.totalorder %s15, 11
    %p152 = por %p150, %p151
    %p153 = scmp.ne.s32.totalorder %s142, %s143
    %p154 = scmp.eq.s32.totalorder %s15, 0
    %p155 = por %p153, %p154
    %p156 = scmp.ne.s32.totalorder %s142, %s143
    %p157 = scmp.eq.s32.totalorder %s16, 11
    %p158 = por %p156, %p157
    %p160 = scmp.ne.s32.totalorder %s143, %s159
    %p161 = scmp.eq.s32.totalorder %s16, 0
    %p162 = por %p160, %p161
    %p163 = scmp.le.s32.totalorder 1, %s10
    %p164 = scmp.lt.s32.totalorder %s10, 13
    %p165 = pnand %p163, %p164
    %p166 = pneg %p165
    // Predicated region
    $region9: #{mixed_4e_forward.8} parent=5 // pred_check
      _
    $region10: #{mixed_4e_forward.8} parent=5 // pred_check_branch
      %168 = sbr.rel (%p165) target = $region12
    $region11: #{mixed_4e_forward.8} parent=5 // pred_region
      %s169 = ssub.s32 %s10, 1
      // Predicated region
      $region13: #{mixed_4e_forward.8} parent=11 // pred_check
        %p170 = pneg %p106
      $region14: #{mixed_4e_forward.8} parent=11 // pred_check_branch
        %172 = sbr.rel (%p170) target = $region16
      $region15: #{mixed_4e_forward.8} parent=11 // pred_region
        _
      $region16: #{mixed_4e_forward.8} parent=11 // pred_fallthru
        _
      // Predicated region
      $region17: #{mixed_4e_forward.8} parent=11 // pred_check
        %p173 = pneg %p127
      $region18: #{mixed_4e_forward.8} parent=11 // pred_check_branch
        %175 = sbr.rel (%p173) target = $region20
      $region19: #{mixed_4e_forward.8} parent=11 // pred_region
        _
      $region20: #{mixed_4e_forward.8} parent=11 // pred_fallthru
        _
    $region12: #{mixed_4e_forward.8} parent=5 // pred_fallthru
      _
    %p176 = scmp.lt.s32.totalorder %s10, 12
    // Predicated region
    $region21: #{mixed_4e_forward.8} parent=5 // pred_check
      %p177 = pneg %p176
    $region22: #{mixed_4e_forward.8} parent=5 // pred_check_branch
      %179 = sbr.rel (%p177) target = $region24
    $region23: #{mixed_4e_forward.8} parent=5 // pred_region
      // Predicated region
      $region25: #{mixed_4e_forward.8} parent=23 // pred_check
        %p180 = pneg %p53
      $region26: #{mixed_4e_forward.8} parent=23 // pred_check_branch
        %182 = sbr.rel (%p180) target = $region28
      $region27: #{mixed_4e_forward.8} parent=23 // pred_region
        %s183 = sadd.s32 %s18, %s19
        %p184 = scmp.lt.s32.totalorder %s17, 0
        %s185 = scalar_select %p184, %s17, 0
        %p186 = scmp.lt.s32.totalorder %s183, 5
        %s187 = scalar_select %p186, %s183, 5
        %s188 = smul.addr %s187, 24
        %s189 = smul.addr %s185, 144
        %s190 = sadd.s32 %s188, %s189
        %s191 = smul.addr %s190, 4
        %s192 = scalar_lea.vmem %s0, %s191
        %s193 = sadd.s32 %s18, %s19
      $region28: #{mixed_4e_forward.8} parent=23 // pred_fallthru
        _
      // Predicated region
      $region29: #{mixed_4e_forward.8} parent=23 // pred_check
        %p194 = pneg %p79
      $region30: #{mixed_4e_forward.8} parent=23 // pred_check_branch
        %196 = sbr.rel (%p194) target = $region32
      $region31: #{mixed_4e_forward.8} parent=23 // pred_region
        %p197 = scmp.lt.s32.totalorder %s19, 2
        %s198 = scalar_select %p197, %s19, 2
        %s199 = smul.addr %s198, 108
        %s200 = smul.addr %s199, 4
        %s201 = scalar_lea.vmem %s1, %s200
      $region32: #{mixed_4e_forward.8} parent=23 // pred_fallthru
        _
    $region24: #{mixed_4e_forward.8} parent=5 // pred_fallthru
      _
    %p202 = scmp.le.s32.totalorder 1, %s10
    %p203 = scmp.lt.s32.totalorder %s10, 13
    %p204 = pnand %p202, %p203
    %p205 = pneg %p204
    // Predicated region
    $region33: #{mixed_4e_forward.8} parent=5 // pred_check
      _
    $region34: #{mixed_4e_forward.8} parent=5 // pred_check_branch
      %207 = sbr.rel (%p204) target = $region36
    $region35: #{mixed_4e_forward.8} parent=5 // pred_region
      %s208 = ssub.s32 %s10, 1
      %s209 = sadd.s32 %s21, %s22
      %p210 = scmp.lt.s32.totalorder %s20, 0
      %s211 = scalar_select %p210, %s20, 0
      %p212 = scmp.lt.s32.totalorder %s209, 5
      %s213 = scalar_select %p212, %s209, 5
      %s214 = smul.addr %s213, 24
      %s215 = smul.addr %s211, 144
      %s216 = sadd.s32 %s214, %s215
      %s217 = smul.addr %s216, 4
      %s218 = scalar_lea.vmem %s0, %s217
      %p219 = pneg %p59
      %p220 = pneg %p56
      %p221 = scmp.lt.s32.totalorder %s22, 2
      %s222 = scalar_select %p221, %s22, 2
      %s223 = smul.addr %s222, 108
      %s224 = smul.addr %s223, 4
      %s225 = scalar_lea.vmem %s1, %s224
      %p226 = pneg %p85
      %p227 = pneg %p82
      %p228 = pneg %p106
      %p229 = pneg %p103
      %p230 = pneg %p127
      %p231 = pneg %p124
      %p232 = pneg %p155
      %p233 = pneg %p152
      %p234 = scmp.lt.s32.totalorder %s20, 0
      %s235 = scalar_select %p234, %s20, 0
      %p236 = scmp.lt.s32.totalorder %s21, 3
      %s237 = scalar_select %p236, %s21, 3
      %s238 = smul.addr %s237, 24
      %s239 = smul.addr %s235, 96
      %s240 = sadd.s32 %s238, %s239
      %s241 = smul.addr %s240, 4
      %s242 = scalar_lea.vmem %s4, %s241
      %s243 = sadd.s32 %s21, %s22
      %p244 = scmp.lt.s32.totalorder %s20, 0
      %s245 = scalar_select %p244, %s20, 0
      %p246 = scmp.lt.s32.totalorder %s243, 5
      %s247 = scalar_select %p246, %s243, 5
      %s248 = smul.addr %s247, 24
      %s249 = smul.addr %s245, 144
      %s250 = sadd.s32 %s248, %s249
      %s251 = smul.addr %s250, 4
      %s252 = scalar_lea.vmem %s0, %s251
      %s253 = sadd.s32 %s21, %s22
      %p254 = scmp.lt.s32.totalorder %s22, 2
      %s255 = scalar_select %p254, %s22, 2
      %s256 = smul.addr %s255, 108
      %s257 = smul.addr %s256, 4
      %s258 = scalar_lea.vmem %s1, %s257
      %p259 = scmp.lt.s32.totalorder %s20, 0
      %s260 = scalar_select %p259, %s20, 0
      %p261 = scmp.lt.s32.totalorder %s21, 3
      %s262 = scalar_select %p261, %s21, 3
      %s263 = smul.addr %s262, 24
      %s264 = smul.addr %s260, 96
      %s265 = sadd.s32 %s263, %s264
      %s266 = smul.addr %s265, 4
      %s267 = scalar_lea.vmem %s4, %s266
      %p269 = scmp.eq.s32.totalorder %s22, 0
      // Predicated region
      $region37: #{mixed_4e_forward.8} parent=35 // pred_check
        %p270 = pneg %p269
      $region38: #{mixed_4e_forward.8} parent=35 // pred_check_branch
        %272 = sbr.rel (%p270) target = $region40
      $region39: #{mixed_4e_forward.8} parent=35 // pred_region
        %273 = vst [vmem:[#allocation2] sm:$0xff] 0.0
        %274 = vst [vmem:[#allocation2 + $0x8] sm:$0xff] 0.0
        %vm275 = vcmask 261120
        %276 = vst.msk [vmem:[#allocation2 + $0x10] sm:$0xff] %vm275, 0.0
        %277 = vst [vmem:[#allocation2 + $0x18] sm:$0xff] 0.0
        %278 = vst [vmem:[#allocation2 + $0x20] sm:$0xff] 0.0
        %279 = vst.msk [vmem:[#allocation2 + $0x28] sm:$0xff] %vm275, 0.0
        %280 = vst [vmem:[#allocation2 + $0x30] sm:$0xff] 0.0
        %281 = vst [vmem:[#allocation2 + $0x38] sm:$0xff] 0.0
        %282 = vst.msk [vmem:[#allocation2 + $0x40] sm:$0xff] %vm275, 0.0
        %283 = vst [vmem:[#allocation2 + $0x48] sm:$0xff] 0.0
        %284 = vst [vmem:[#allocation2 + $0x50] sm:$0xff] 0.0
        %285 = vst.msk [vmem:[#allocation2 + $0x58] sm:$0xff] %vm275, 0.0
        %286 = vst [vmem:[#allocation2 + $0x60] sm:$0xff] 0.0
        %287 = vst [vmem:[#allocation2 + $0x68] sm:$0xff] 0.0
        %288 = vst.msk [vmem:[#allocation2 + $0x70] sm:$0xff] %vm275, 0.0
        %289 = vst [vmem:[#allocation2 + $0x78] sm:$0xff] 0.0
        %290 = vst [vmem:[#allocation2 + $0x80] sm:$0xff] 0.0
        %291 = vst.msk [vmem:[#allocation2 + $0x88] sm:$0xff] %vm275, 0.0
        %292 = vst [vmem:[#allocation2 + $0x90] sm:$0xff] 0.0
        %293 = vst [vmem:[#allocation2 + $0x98] sm:$0xff] 0.0
        %294 = vst.msk [vmem:[#allocation2 + $0xa0] sm:$0xff] %vm275, 0.0
        %295 = vst [vmem:[#allocation2 + $0xa8] sm:$0xff] 0.0
        %296 = vst [vmem:[#allocation2 + $0xb0] sm:$0xff] 0.0
        %297 = vst.msk [vmem:[#allocation2 + $0xb8] sm:$0xff] %vm275, 0.0
      $region40: #{mixed_4e_forward.8} parent=35 // pred_fallthru
        _
      %v298 = vld [vmem:[%s252] sm:$0xff]
      %v299 = vld [vmem:[%s252 + $0x8] sm:$0xf]
      %v300 = vld [vmem:[%s252 + $0xc] sm:$0xff]
      %v301 = vld [vmem:[%s252 + $0x14] sm:$0xf]
      %v302 = vld [vmem:[%s252 + $0x18] sm:$0xff]
      %v303 = vld [vmem:[%s252 + $0x20] sm:$0xf]
      %v304 = vld [vmem:[%s252 + $0x24] sm:$0xff]
      %v305 = vld [vmem:[%s252 + $0x2c] sm:$0xf]
      %v306 = vld [vmem:[%s252 + $0x30] sm:$0xff]
      %v307 = vld [vmem:[%s252 + $0x38] sm:$0xf]
      %v308 = vld [vmem:[%s252 + $0x3c] sm:$0xff]
      %v309 = vld [vmem:[%s252 + $0x44] sm:$0xf]
      %v310 = vld [vmem:[%s252 + $0x48] sm:$0xff]
      %v311 = vld [vmem:[%s252 + $0x50] sm:$0xf]
      %v312 = vld [vmem:[%s252 + $0x54] sm:$0xff]
      %v313 = vld [vmem:[%s252 + $0x5c] sm:$0xf]
      %v314 = vld [vmem:[#allocation2] sm:$0xff]
      %v315 = vld [vmem:[#allocation2 + $0x8] sm:$0xff]
      %v316 = vld [vmem:[#allocation2 + $0x10] sm:$0xff]
      %v317 = vld [vmem:[#allocation2 + $0x18] sm:$0xff]
      %v318 = vld [vmem:[#allocation2 + $0x20] sm:$0xff]
      %v319 = vld [vmem:[#allocation2 + $0x28] sm:$0xff]
      %v320 = vld [vmem:[#allocation2 + $0x30] sm:$0xff]
      %v321 = vld [vmem:[#allocation2 + $0x38] sm:$0xff]
      %v322 = vld [vmem:[#allocation2 + $0x40] sm:$0xff]
      %v323 = vld [vmem:[#allocation2 + $0x48] sm:$0xff]
      %v324 = vld [vmem:[#allocation2 + $0x50] sm:$0xff]
      %v325 = vld [vmem:[#allocation2 + $0x58] sm:$0xff]
      %v326 = vld [vmem:[#allocation2 + $0x60] sm:$0xff]
      %v327 = vld [vmem:[#allocation2 + $0x68] sm:$0xff]
      %v328 = vld [vmem:[#allocation2 + $0x70] sm:$0xff]
      %v329 = vld [vmem:[#allocation2 + $0x78] sm:$0xff]
      %v330 = vld [vmem:[#allocation2 + $0x80] sm:$0xff]
      %v331 = vld [vmem:[#allocation2 + $0x88] sm:$0xff]
      %v332 = vld [vmem:[#allocation2 + $0x90] sm:$0xff]
      %v333 = vld [vmem:[#allocation2 + $0x98] sm:$0xff]
      %v334 = vld [vmem:[#allocation2 + $0xa0] sm:$0xff]
      %v335 = vld [vmem:[#allocation2 + $0xa8] sm:$0xff]
      %v336 = vld [vmem:[#allocation2 + $0xb0] sm:$0xff]
      %v337 = vld [vmem:[#allocation2 + $0xb8] sm:$0xff]
      %v338 = vld [vmem:[%s258] sm:$0xff]
      %v339 = vld [vmem:[%s258 + $0x8] sm:$0xf]
      %v340 = vld [vmem:[%s258 + $0xc] sm:$0xff]
      %v341 = vld [vmem:[%s258 + $0x14] sm:$0xf]
      %v342 = vld [vmem:[%s258 + $0x18] sm:$0xff]
      %v343 = vld [vmem:[%s258 + $0x20] sm:$0xf]
      %v344 = vld [vmem:[%s258 + $0x24] sm:$0xff]
      %v345 = vld [vmem:[%s258 + $0x2c] sm:$0xf]
      %v346 = vld [vmem:[%s258 + $0x30] sm:$0xff]
      %v347 = vld [vmem:[%s258 + $0x38] sm:$0xf]
      %v348 = vld [vmem:[%s258 + $0x3c] sm:$0xff]
      %v349 = vld [vmem:[%s258 + $0x44] sm:$0xf]
      %v350 = vld [vmem:[%s258 + $0x48] sm:$0xff]
      %v351 = vld [vmem:[%s258 + $0x50] sm:$0xf]
      %v352 = vld [vmem:[%s258 + $0x54] sm:$0xff]
      %v353 = vld [vmem:[%s258 + $0x5c] sm:$0xf]
      %v354 = vld [vmem:[%s258 + $0x60] sm:$0xff]
      %v355 = vld [vmem:[%s258 + $0x68] sm:$0xf]
      %v356 = vld [vmem:[%s258 + $0x6c] sm:$0xff]
      %v357 = vld [vmem:[%s258 + $0x74] sm:$0xf]
      %v358 = vld [vmem:[%s258 + $0x78] sm:$0xff]
      %v359 = vld [vmem:[%s258 + $0x80] sm:$0xf]
      %v360 = vld [vmem:[%s258 + $0x84] sm:$0xff]
      %v361 = vld [vmem:[%s258 + $0x8c] sm:$0xf]
      %v362 = vld [vmem:[%s258 + $0x90] sm:$0xff]
      %v363 = vld [vmem:[%s258 + $0x98] sm:$0xf]
      %v364 = vld [vmem:[%s258 + $0x9c] sm:$0xff]
      %v365 = vld [vmem:[%s258 + $0xa4] sm:$0xf]
      %v366 = vld [vmem:[%s258 + $0xa8] sm:$0xff]
      %v367 = vld [vmem:[%s258 + $0xb0] sm:$0xf]
      %v368 = vld [vmem:[%s258 + $0xb4] sm:$0xff]
      %v369 = vld [vmem:[%s258 + $0xbc] sm:$0xf]
      %v370 = vld [vmem:[%s258 + $0xc0] sm:$0xff]
      %v371 = vld [vmem:[%s258 + $0xc8] sm:$0xf]
      %v372 = vld [vmem:[%s258 + $0xcc] sm:$0xff]
      %v373 = vld [vmem:[%s258 + $0xd4] sm:$0xf]
      %v374 = vld [vmem:[%s258 + $0xd8] sm:$0xff]
      %v375 = vld [vmem:[%s258 + $0xe0] sm:$0xf]
      %v376 = vld [vmem:[%s258 + $0xe4] sm:$0xff]
      %v377 = vld [vmem:[%s258 + $0xec] sm:$0xf]
      %v378 = vld [vmem:[%s258 + $0xf0] sm:$0xff]
      %v379 = vld [vmem:[%s258 + $0xf8] sm:$0xf]
      %v380 = vld [vmem:[%s258 + $0xfc] sm:$0xff]
      %v381 = vld [vmem:[%s258 + $0x104] sm:$0xf]
      %v382 = vld [vmem:[%s258 + $0x108] sm:$0xff]
      %v383 = vld [vmem:[%s258 + $0x110] sm:$0xf]
      %v384 = vld [vmem:[%s258 + $0x114] sm:$0xff]
      %v385 = vld [vmem:[%s258 + $0x11c] sm:$0xf]
      %v386 = vld [vmem:[%s258 + $0x120] sm:$0xff]
      %v387 = vld [vmem:[%s258 + $0x128] sm:$0xf]
      %v388 = vld [vmem:[%s258 + $0x12c] sm:$0xff]
      %v389 = vld [vmem:[%s258 + $0x134] sm:$0xf]
      %v390 = vld [vmem:[%s258 + $0x138] sm:$0xff]
      %v391 = vld [vmem:[%s258 + $0x140] sm:$0xf]
      %v392 = vld [vmem:[%s258 + $0x144] sm:$0xff]
      %v393 = vld [vmem:[%s258 + $0x14c] sm:$0xf]
      %v394 = vld [vmem:[%s258 + $0x150] sm:$0xff]
      %v395 = vld [vmem:[%s258 + $0x158] sm:$0xf]
      %v396 = vld [vmem:[%s258 + $0x15c] sm:$0xff]
      %v397 = vld [vmem:[%s258 + $0x164] sm:$0xf]
      %v398 = vld [vmem:[%s258 + $0x168] sm:$0xff]
      %v399 = vld [vmem:[%s258 + $0x170] sm:$0xf]
      %v400 = vld [vmem:[%s258 + $0x174] sm:$0xff]
      %v401 = vld [vmem:[%s258 + $0x17c] sm:$0xf]
      %v402 = vld [vmem:[%s258 + $0x180] sm:$0xff]
      %v403 = vld [vmem:[%s258 + $0x188] sm:$0xf]
      %v404 = vld [vmem:[%s258 + $0x18c] sm:$0xff]
      %v405 = vld [vmem:[%s258 + $0x194] sm:$0xf]
      %v406 = vld [vmem:[%s258 + $0x198] sm:$0xff]
      %v407 = vld [vmem:[%s258 + $0x1a0] sm:$0xf]
      %v408 = vld [vmem:[%s258 + $0x1a4] sm:$0xff]
      %v409 = vld [vmem:[%s258 + $0x1ac] sm:$0xf]
      %v426 = vunpack.c.l.b16 %v298
      %v427 = vunpack.c.h.b16 %v298
      %v428 = vunpack.c.l.b16 %v299
      %v429 = vunpack.c.l.b16 %v300
      %v430 = vunpack.c.h.b16 %v300
      %v431 = vunpack.c.l.b16 %v301
      %v432 = vunpack.c.l.b16 %v302
      %v433 = vunpack.c.h.b16 %v302
      %v434 = vunpack.c.l.b16 %v303
      %v435 = vunpack.c.l.b16 %v304
      %v436 = vunpack.c.h.b16 %v304
      %v437 = vunpack.c.l.b16 %v305
      %v438 = vunpack.c.l.b16 %v306
      %v439 = vunpack.c.h.b16 %v306
      %v440 = vunpack.c.l.b16 %v307
      %v441 = vunpack.c.l.b16 %v308
      %v442 = vunpack.c.h.b16 %v308
      %v443 = vunpack.c.l.b16 %v309
      %v444 = vunpack.c.l.b16 %v310
      %v445 = vunpack.c.h.b16 %v310
      %v446 = vunpack.c.l.b16 %v311
      %v447 = vunpack.c.l.b16 %v312
      %v448 = vunpack.c.h.b16 %v312
      %v449 = vunpack.c.l.b16 %v313
      %v450 = vpack.c.b16 %v429, %v426
      %v451 = vpack.c.b16 %v430, %v427
      %v452 = vpack.c.b16 %v431, %v428
      %v453 = vpack.c.b16 %v435, %v432
      %v454 = vpack.c.b16 %v436, %v433
      %v455 = vpack.c.b16 %v437, %v434
      %v456 = vpack.c.b16 %v441, %v438
      %v457 = vpack.c.b16 %v442, %v439
      %v458 = vpack.c.b16 %v443, %v440
      %v459 = vpack.c.b16 %v447, %v444
      %v460 = vpack.c.b16 %v448, %v445
      %v461 = vpack.c.b16 %v449, %v446
      %v542 = vunpack.c.l.b16 %v338
      %v543 = vunpack.c.h.b16 %v338
      %v544 = vunpack.c.l.b16 %v339
      %v545 = vunpack.c.l.b16 %v340
      %v546 = vunpack.c.h.b16 %v340
      %v547 = vunpack.c.l.b16 %v341
      %v548 = vunpack.c.l.b16 %v342
      %v549 = vunpack.c.h.b16 %v342
      %v550 = vunpack.c.l.b16 %v343
      %v551 = vunpack.c.l.b16 %v344
      %v552 = vunpack.c.h.b16 %v344
      %v553 = vunpack.c.l.b16 %v345
      %v554 = vunpack.c.l.b16 %v346
      %v555 = vunpack.c.h.b16 %v346
      %v556 = vunpack.c.l.b16 %v347
      %v557 = vunpack.c.l.b16 %v348
      %v558 = vunpack.c.h.b16 %v348
      %v559 = vunpack.c.l.b16 %v349
      %v560 = vunpack.c.l.b16 %v350
      %v561 = vunpack.c.h.b16 %v350
      %v562 = vunpack.c.l.b16 %v351
      %v563 = vunpack.c.l.b16 %v352
      %v564 = vunpack.c.h.b16 %v352
      %v565 = vunpack.c.l.b16 %v353
      %v566 = vunpack.c.l.b16 %v354
      %v567 = vunpack.c.h.b16 %v354
      %v568 = vunpack.c.l.b16 %v355
      %v569 = vunpack.c.l.b16 %v356
      %v570 = vunpack.c.h.b16 %v356
      %v571 = vunpack.c.l.b16 %v357
      %v572 = vunpack.c.l.b16 %v358
      %v573 = vunpack.c.h.b16 %v358
      %v574 = vunpack.c.l.b16 %v359
      %v575 = vunpack.c.l.b16 %v360
      %v576 = vunpack.c.h.b16 %v360
      %v577 = vunpack.c.l.b16 %v361
      %v578 = vunpack.c.l.b16 %v362
      %v579 = vunpack.c.h.b16 %v362
      %v580 = vunpack.c.l.b16 %v363
      %v581 = vunpack.c.l.b16 %v364
      %v582 = vunpack.c.h.b16 %v364
      %v583 = vunpack.c.l.b16 %v365
      %v584 = vunpack.c.l.b16 %v366
      %v585 = vunpack.c.h.b16 %v366
      %v586 = vunpack.c.l.b16 %v367
      %v587 = vunpack.c.l.b16 %v368
      %v588 = vunpack.c.h.b16 %v368
      %v589 = vunpack.c.l.b16 %v369
      %v590 = vunpack.c.l.b16 %v370
      %v591 = vunpack.c.h.b16 %v370
      %v592 = vunpack.c.l.b16 %v371
      %v593 = vunpack.c.l.b16 %v372
      %v594 = vunpack.c.h.b16 %v372
      %v595 = vunpack.c.l.b16 %v373
      %v596 = vunpack.c.l.b16 %v374
      %v597 = vunpack.c.h.b16 %v374
      %v598 = vunpack.c.l.b16 %v375
      %v599 = vunpack.c.l.b16 %v376
      %v600 = vunpack.c.h.b16 %v376
      %v601 = vunpack.c.l.b16 %v377
      %v602 = vunpack.c.l.b16 %v378
      %v603 = vunpack.c.h.b16 %v378
      %v604 = vunpack.c.l.b16 %v379
      %v605 = vunpack.c.l.b16 %v380
      %v606 = vunpack.c.h.b16 %v380
      %v607 = vunpack.c.l.b16 %v381
      %v608 = vunpack.c.l.b16 %v382
      %v609 = vunpack.c.h.b16 %v382
      %v610 = vunpack.c.l.b16 %v383
      %v611 = vunpack.c.l.b16 %v384
      %v612 = vunpack.c.h.b16 %v384
      %v613 = vunpack.c.l.b16 %v385
      %v614 = vunpack.c.l.b16 %v386
      %v615 = vunpack.c.h.b16 %v386
      %v616 = vunpack.c.l.b16 %v387
      %v617 = vunpack.c.l.b16 %v388
      %v618 = vunpack.c.h.b16 %v388
      %v619 = vunpack.c.l.b16 %v389
      %v620 = vunpack.c.l.b16 %v390
      %v621 = vunpack.c.h.b16 %v390
      %v622 = vunpack.c.l.b16 %v391
      %v623 = vunpack.c.l.b16 %v392
      %v624 = vunpack.c.h.b16 %v392
      %v625 = vunpack.c.l.b16 %v393
      %v626 = vunpack.c.l.b16 %v394
      %v627 = vunpack.c.h.b16 %v394
      %v628 = vunpack.c.l.b16 %v395
      %v629 = vunpack.c.l.b16 %v396
      %v630 = vunpack.c.h.b16 %v396
      %v631 = vunpack.c.l.b16 %v397
      %v632 = vunpack.c.l.b16 %v398
      %v633 = vunpack.c.h.b16 %v398
      %v634 = vunpack.c.l.b16 %v399
      %v635 = vunpack.c.l.b16 %v400
      %v636 = vunpack.c.h.b16 %v400
      %v637 = vunpack.c.l.b16 %v401
      %v638 = vunpack.c.l.b16 %v402
      %v639 = vunpack.c.h.b16 %v402
      %v640 = vunpack.c.l.b16 %v403
      %v641 = vunpack.c.l.b16 %v404
      %v642 = vunpack.c.h.b16 %v404
      %v643 = vunpack.c.l.b16 %v405
      %v644 = vunpack.c.l.b16 %v406
      %v645 = vunpack.c.h.b16 %v406
      %v646 = vunpack.c.l.b16 %v407
      %v647 = vunpack.c.l.b16 %v408
      %v648 = vunpack.c.h.b16 %v408
      %v649 = vunpack.c.l.b16 %v409
      %v650 = vpack.c.b16 %v545, %v542
      %v651 = vpack.c.b16 %v546, %v543
      %v652 = vpack.c.b16 %v547, %v544
      %v653 = vpack.c.b16 %v551, %v548
      %v654 = vpack.c.b16 %v552, %v549
      %v655 = vpack.c.b16 %v553, %v550
      %v656 = vpack.c.b16 %v557, %v554
      %v657 = vpack.c.b16 %v558, %v555
      %v658 = vpack.c.b16 %v559, %v556
      %v659 = vpack.c.b16 %v563, %v560
      %v660 = vpack.c.b16 %v564, %v561
      %v661 = vpack.c.b16 %v565, %v562
      %v662 = vpack.c.b16 %v569, %v566
      %v663 = vpack.c.b16 %v570, %v567
      %v664 = vpack.c.b16 %v571, %v568
      %v665 = vpack.c.b16 %v575, %v572
      %v666 = vpack.c.b16 %v576, %v573
      %v667 = vpack.c.b16 %v577, %v574
      %v668 = vpack.c.b16 %v581, %v578
      %v669 = vpack.c.b16 %v582, %v579
      %v670 = vpack.c.b16 %v583, %v580
      %v671 = vpack.c.b16 %v587, %v584
      %v672 = vpack.c.b16 %v588, %v585
      %v673 = vpack.c.b16 %v589, %v586
      %v674 = vpack.c.b16 %v593, %v590
      %v675 = vpack.c.b16 %v594, %v591
      %v676 = vpack.c.b16 %v595, %v592
      %v677 = vpack.c.b16 %v599, %v596
      %v678 = vpack.c.b16 %v600, %v597
      %v679 = vpack.c.b16 %v601, %v598
      %v680 = vpack.c.b16 %v605, %v602
      %v681 = vpack.c.b16 %v606, %v603
      %v682 = vpack.c.b16 %v607, %v604
      %v683 = vpack.c.b16 %v611, %v608
      %v684 = vpack.c.b16 %v612, %v609
      %v685 = vpack.c.b16 %v613, %v610
      %v686 = vpack.c.b16 %v617, %v614
      %v687 = vpack.c.b16 %v618, %v615
      %v688 = vpack.c.b16 %v619, %v616
      %v689 = vpack.c.b16 %v623, %v620
      %v690 = vpack.c.b16 %v624, %v621
      %v691 = vpack.c.b16 %v625, %v622
      %v692 = vpack.c.b16 %v629, %v626
      %v693 = vpack.c.b16 %v630, %v627
      %v694 = vpack.c.b16 %v631, %v628
      %v695 = vpack.c.b16 %v635, %v632
      %v696 = vpack.c.b16 %v636, %v633
      %v697 = vpack.c.b16 %v637, %v634
      %v698 = vpack.c.b16 %v641, %v638
      %v699 = vpack.c.b16 %v642, %v639
      %v700 = vpack.c.b16 %v643, %v640
      %v701 = vpack.c.b16 %v647, %v644
      %v702 = vpack.c.b16 %v648, %v645
      %v703 = vpack.c.b16 %v649, %v646
      %vm758 = vcmask 261120
      %v760 = vsel %vm758, %v452, 0
      %v763 = vsel %vm758, %v455, 0
      %v766 = vsel %vm758, %v458, 0
      %v769 = vsel %vm758, %v461, 0
      %771 = vmatprep.subr.bf16.mxu0 %v672
      %772 = vmatpush1.bf16.msra.mxu0 %v671
      %773 = vmatprep.subr.bf16.mxu0 %v669
      %774 = vmatpush1.bf16.msra.mxu0 %v668
      %775 = vmatprep.subr.bf16.mxu0 %v666
      %776 = vmatpush1.bf16.msra.mxu0 %v665
      %777 = vmatprep.subr.bf16.mxu0 %v663
      %778 = vmatpush1.bf16.msra.mxu0 %v662
      %779 = vmatprep.subr.bf16.mxu0 %v660
      %780 = vmatpush1.bf16.msra.mxu0 %v659
      %781 = vmatprep.subr.bf16.mxu0 %v657
      %782 = vmatpush1.bf16.msra.mxu0 %v656
      %783 = vmatprep.subr.bf16.mxu0 %v654
      %784 = vmatpush1.bf16.msra.mxu0 %v653
      %785 = vmatprep.subr.bf16.mxu0 %v651
      %786 = vmatpush1.bf16.msra.mxu0 %v650
      %787 = vmatprep.subr.bf16.mxu0 %v696
      %788 = vmatpush2.bf16.msra.mxu0 %v695
      %789 = vmatprep.subr.bf16.mxu0 %v693
      %790 = vmatpush2.bf16.msra.mxu0 %v692
      %791 = vmatprep.subr.bf16.mxu0 %v690
      %792 = vmatpush2.bf16.msra.mxu0 %v689
      %793 = vmatprep.subr.bf16.mxu0 %v687
      %794 = vmatpush2.bf16.msra.mxu0 %v686
      %795 = vmatprep.subr.bf16.mxu0 %v684
      %796 = vmatpush2.bf16.msra.mxu0 %v683
      %797 = vmatprep.subr.bf16.mxu0 %v681
      %798 = vmatpush2.bf16.msra.mxu0 %v680
      %799 = vmatprep.subr.bf16.mxu0 %v678
      %800 = vmatpush2.bf16.msra.mxu0 %v677
      %801 = vmatprep.subr.bf16.mxu0 %v675
      %802 = vmatpush2.bf16.msra.mxu0 %v674
      %803 = vmatprep.mubr.bf16.mxu0 %v451
      %804 = vmatmul.mubr.bf16.gmra.mxu0 %v450
      %v805 = vpop.f32.mrf.mxu0
      %v806 = vadd.f32 0.0, %v805
      %v807 = vpop.f32.mrf.mxu0
      %v808 = vadd.f32 0.0, %v807
      %v809 = vpop.f32.mrf.mxu0
      %v810 = vadd.f32 0.0, %v809
      %v811 = vpop.f32.mrf.mxu0
      %v812 = vadd.f32 0.0, %v811
      %813 = vmatprep.mubr.bf16.mxu0 %v454
      %814 = vmatmul.mubr.bf16.gmra.mxu0 %v453
      %v815 = vpop.f32.mrf.mxu0
      %v816 = vadd.f32 0.0, %v815
      %v817 = vpop.f32.mrf.mxu0
      %v818 = vadd.f32 0.0, %v817
      %v819 = vpop.f32.mrf.mxu0
      %v820 = vadd.f32 0.0, %v819
      %v821 = vpop.f32.mrf.mxu0
      %v822 = vadd.f32 0.0, %v821
      %823 = vmatprep.mubr.bf16.mxu0 %v457
      %824 = vmatmul.mubr.bf16.gmra.mxu0 %v456
      %v825 = vpop.f32.mrf.mxu0
      %v826 = vadd.f32 0.0, %v825
      %v827 = vpop.f32.mrf.mxu0
      %v828 = vadd.f32 0.0, %v827
      %v829 = vpop.f32.mrf.mxu0
      %v830 = vadd.f32 0.0, %v829
      %v831 = vpop.f32.mrf.mxu0
      %v832 = vadd.f32 0.0, %v831
      %833 = vmatprep.mubr.bf16.mxu0 %v460
      %834 = vmatmul.mubr.bf16.gmra.mxu0 %v459
      %v835 = vpop.f32.mrf.mxu0
      %v836 = vadd.f32 0.0, %v835
      %v837 = vpop.f32.mrf.mxu0
      %v838 = vadd.f32 0.0, %v837
      %v839 = vpop.f32.mrf.mxu0
      %v840 = vadd.f32 0.0, %v839
      %v841 = vpop.f32.mrf.mxu0
      %v842 = vadd.f32 0.0, %v841
      %843 = vdwg.mxu0
      %844 = vmatprep.subr.bf16.mxu0 0
      %845 = vmatpush1.bf16.msra.mxu0 0
      %846 = vmatprep.subr.bf16.mxu0 0
      %847 = vmatpush1.bf16.msra.mxu0 0
      %848 = vmatprep.subr.bf16.mxu0 0
      %849 = vmatpush1.bf16.msra.mxu0 0
      %850 = vmatprep.subr.bf16.mxu0 0
      %851 = vmatpush1.bf16.msra.mxu0 0
      %852 = vmatprep.subr.bf16.mxu0 0
      %853 = vmatpush1.bf16.msra.mxu0 0
      %854 = vmatprep.subr.bf16.mxu0 0
      %855 = vmatpush1.bf16.msra.mxu0 0
      %856 = vmatprep.subr.bf16.mxu0 %v702
      %857 = vmatpush1.bf16.msra.mxu0 %v701
      %858 = vmatprep.subr.bf16.mxu0 %v699
      %859 = vmatpush1.bf16.msra.mxu0 %v698
      %860 = vmatprep.subr.bf16.mxu0 0
      %861 = vmatpush2.bf16.msra.mxu0 0
      %862 = vmatprep.subr.bf16.mxu0 0
      %863 = vmatpush2.bf16.msra.mxu0 0
      %864 = vmatprep.subr.bf16.mxu0 0
      %865 = vmatpush2.bf16.msra.mxu0 0
      %866 = vmatprep.subr.bf16.mxu0 0
      %867 = vmatpush2.bf16.msra.mxu0 0
      %868 = vmatprep.subr.bf16.mxu0 0
      %869 = vmatpush2.bf16.msra.mxu0 0
      %870 = vmatprep.subr.bf16.mxu0 0
      %871 = vmatpush2.bf16.msra.mxu0 0
      %872 = vmatprep.subr.bf16.mxu0 0
      %873 = vmatpush2.bf16.msra.mxu0 0
      %874 = vmatprep.subr.bf16.mxu0 0
      %875 = vmatpush2.bf16.msra.mxu0 0
      %876 = vmatprep.mubr.bf16.mxu0 0
      %877 = vmatmul.mubr.bf16.gmra.mxu0 %v760
      %v878 = vpop.f32.mrf.mxu0
      %v879 = vadd.f32 %v806, %v878
      %v880 = vpop.f32.mrf.mxu0
      %v881 = vadd.f32 %v808, %v880
      %v882 = vpop.f32.mrf.mxu0
      %v883 = vadd.f32 %v810, %v882
      %v884 = vpop.f32.mrf.mxu0
      %v885 = vadd.f32 %v812, %v884
      %886 = vmatprep.mubr.bf16.mxu0 0
      %887 = vmatmul.mubr.bf16.gmra.mxu0 %v763
      %v888 = vpop.f32.mrf.mxu0
      %v889 = vadd.f32 %v816, %v888
      %v890 = vpop.f32.mrf.mxu0
      %v891 = vadd.f32 %v818, %v890
      %v892 = vpop.f32.mrf.mxu0
      %v893 = vadd.f32 %v820, %v892
      %v894 = vpop.f32.mrf.mxu0
      %v895 = vadd.f32 %v822, %v894
      %896 = vmatprep.mubr.bf16.mxu0 0
      %897 = vmatmul.mubr.bf16.gmra.mxu0 %v766
      %v898 = vpop.f32.mrf.mxu0
      %v899 = vadd.f32 %v826, %v898
      %v900 = vpop.f32.mrf.mxu0
      %v901 = vadd.f32 %v828, %v900
      %v902 = vpop.f32.mrf.mxu0
      %v903 = vadd.f32 %v830, %v902
      %v904 = vpop.f32.mrf.mxu0
      %v905 = vadd.f32 %v832, %v904
      %906 = vmatprep.mubr.bf16.mxu0 0
      %907 = vmatmul.mubr.bf16.gmra.mxu0 %v769
      %v908 = vpop.f32.mrf.mxu0
      %v909 = vadd.f32 %v836, %v908
      %v910 = vpop.f32.mrf.mxu0
      %v911 = vadd.f32 %v838, %v910
      %v912 = vpop.f32.mrf.mxu0
      %v913 = vadd.f32 %v840, %v912
      %v914 = vpop.f32.mrf.mxu0
      %v915 = vadd.f32 %v842, %v914
      %916 = vdwg.mxu0
      %917 = vmatprep.subr.bf16.mxu0 0
      %918 = vmatpush1.bf16.msra.mxu0 %v673
      %919 = vmatprep.subr.bf16.mxu0 0
      %920 = vmatpush1.bf16.msra.mxu0 %v670
      %921 = vmatprep.subr.bf16.mxu0 0
      %922 = vmatpush1.bf16.msra.mxu0 %v667
      %923 = vmatprep.subr.bf16.mxu0 0
      %924 = vmatpush1.bf16.msra.mxu0 %v664
      %925 = vmatprep.subr.bf16.mxu0 0
      %926 = vmatpush1.bf16.msra.mxu0 %v661
      %927 = vmatprep.subr.bf16.mxu0 0
      %928 = vmatpush1.bf16.msra.mxu0 %v658
      %929 = vmatprep.subr.bf16.mxu0 0
      %930 = vmatpush1.bf16.msra.mxu0 %v655
      %931 = vmatprep.subr.bf16.mxu0 0
      %932 = vmatpush1.bf16.msra.mxu0 %v652
      %933 = vmatprep.subr.bf16.mxu0 0
      %934 = vmatpush2.bf16.msra.mxu0 %v697
      %935 = vmatprep.subr.bf16.mxu0 0
      %936 = vmatpush2.bf16.msra.mxu0 %v694
      %937 = vmatprep.subr.bf16.mxu0 0
      %938 = vmatpush2.bf16.msra.mxu0 %v691
      %939 = vmatprep.subr.bf16.mxu0 0
      %940 = vmatpush2.bf16.msra.mxu0 %v688
      %941 = vmatprep.subr.bf16.mxu0 0
      %942 = vmatpush2.bf16.msra.mxu0 %v685
      %943 = vmatprep.subr.bf16.mxu0 0
      %944 = vmatpush2.bf16.msra.mxu0 %v682
      %945 = vmatprep.subr.bf16.mxu0 0
      %946 = vmatpush2.bf16.msra.mxu0 %v679
      %947 = vmatprep.subr.bf16.mxu0 0
      %948 = vmatpush2.bf16.msra.mxu0 %v676
      %949 = vmatprep.mubr.bf16.mxu0 %v451
      %950 = vmatmul.mubr.bf16.gmra.mxu0 %v450
      %v951 = vpop.f32.mrf.mxu0
      %v952 = vadd.f32 0.0, %v951
      %v953 = vpop.f32.mrf.mxu0
      %v954 = vpop.f32.mrf.mxu0
      %v955 = vadd.f32 0.0, %v954
      %v956 = vpop.f32.mrf.mxu0
      %957 = vmatprep.mubr.bf16.mxu0 %v454
      %958 = vmatmul.mubr.bf16.gmra.mxu0 %v453
      %v959 = vpop.f32.mrf.mxu0
      %v960 = vadd.f32 0.0, %v959
      %v961 = vpop.f32.mrf.mxu0
      %v962 = vpop.f32.mrf.mxu0
      %v963 = vadd.f32 0.0, %v962
      %v964 = vpop.f32.mrf.mxu0
      %965 = vmatprep.mubr.bf16.mxu0 %v457
      %966 = vmatmul.mubr.bf16.gmra.mxu0 %v456
      %v967 = vpop.f32.mrf.mxu0
      %v968 = vadd.f32 0.0, %v967
      %v969 = vpop.f32.mrf.mxu0
      %v970 = vpop.f32.mrf.mxu0
      %v971 = vadd.f32 0.0, %v970
      %v972 = vpop.f32.mrf.mxu0
      %973 = vmatprep.mubr.bf16.mxu0 %v460
      %974 = vmatmul.mubr.bf16.gmra.mxu0 %v459
      %v975 = vpop.f32.mrf.mxu0
      %v976 = vadd.f32 0.0, %v975
      %v977 = vpop.f32.mrf.mxu0
      %v978 = vpop.f32.mrf.mxu0
      %v979 = vadd.f32 0.0, %v978
      %v980 = vpop.f32.mrf.mxu0
      %981 = vdwg.mxu0
      %982 = vmatprep.subr.bf16.mxu0 0
      %983 = vmatpush1.bf16.msra.mxu0 0
      %984 = vmatprep.subr.bf16.mxu0 0
      %985 = vmatpush1.bf16.msra.mxu0 0
      %986 = vmatprep.subr.bf16.mxu0 0
      %987 = vmatpush1.bf16.msra.mxu0 0
      %988 = vmatprep.subr.bf16.mxu0 0
      %989 = vmatpush1.bf16.msra.mxu0 0
      %990 = vmatprep.subr.bf16.mxu0 0
      %991 = vmatpush1.bf16.msra.mxu0 0
      %992 = vmatprep.subr.bf16.mxu0 0
      %993 = vmatpush1.bf16.msra.mxu0 0
      %994 = vmatprep.subr.bf16.mxu0 0
      %995 = vmatpush1.bf16.msra.mxu0 %v703
      %996 = vmatprep.subr.bf16.mxu0 0
      %997 = vmatpush1.bf16.msra.mxu0 %v700
      %998 = vmatprep.subr.bf16.mxu0 0
      %999 = vmatpush2.bf16.msra.mxu0 0
      %1000 = vmatprep.subr.bf16.mxu0 0
      %1001 = vmatpush2.bf16.msra.mxu0 0
      %1002 = vmatprep.subr.bf16.mxu0 0
      %1003 = vmatpush2.bf16.msra.mxu0 0
      %1004 = vmatprep.subr.bf16.mxu0 0
      %1005 = vmatpush2.bf16.msra.mxu0 0
      %1006 = vmatprep.subr.bf16.mxu0 0
      %1007 = vmatpush2.bf16.msra.mxu0 0
      %1008 = vmatprep.subr.bf16.mxu0 0
      %1009 = vmatpush2.bf16.msra.mxu0 0
      %1010 = vmatprep.subr.bf16.mxu0 0
      %1011 = vmatpush2.bf16.msra.mxu0 0
      %1012 = vmatprep.subr.bf16.mxu0 0
      %1013 = vmatpush2.bf16.msra.mxu0 0
      %1014 = vmatprep.mubr.bf16.mxu0 0
      %1015 = vmatmul.mubr.bf16.gmra.mxu0 %v760
      %v1016 = vpop.f32.mrf.mxu0
      %v1017 = vadd.f32 %v952, %v1016
      %v1018 = vpop.f32.mrf.mxu0
      %v1019 = vpop.f32.mrf.mxu0
      %v1020 = vadd.f32 %v955, %v1019
      %v1021 = vpop.f32.mrf.mxu0
      %1022 = vmatprep.mubr.bf16.mxu0 0
      %1023 = vmatmul.mubr.bf16.gmra.mxu0 %v763
      %v1024 = vpop.f32.mrf.mxu0
      %v1025 = vadd.f32 %v960, %v1024
      %v1026 = vpop.f32.mrf.mxu0
      %v1027 = vpop.f32.mrf.mxu0
      %v1028 = vadd.f32 %v963, %v1027
      %v1029 = vpop.f32.mrf.mxu0
      %1030 = vmatprep.mubr.bf16.mxu0 0
      %1031 = vmatmul.mubr.bf16.gmra.mxu0 %v766
      %v1032 = vpop.f32.mrf.mxu0
      %v1033 = vadd.f32 %v968, %v1032
      %v1034 = vpop.f32.mrf.mxu0
      %v1035 = vpop.f32.mrf.mxu0
      %v1036 = vadd.f32 %v971, %v1035
      %v1037 = vpop.f32.mrf.mxu0
      %1038 = vmatprep.mubr.bf16.mxu0 0
      %1039 = vmatmul.mubr.bf16.gmra.mxu0 %v769
      %v1040 = vpop.f32.mrf.mxu0
      %v1041 = vadd.f32 %v976, %v1040
      %v1042 = vpop.f32.mrf.mxu0
      %v1043 = vpop.f32.mrf.mxu0
      %v1044 = vadd.f32 %v979, %v1043
      %v1045 = vpop.f32.mrf.mxu0
      %1046 = vdwg.mxu0
      %v1047 = vadd.f32 %v314, %v879
      %v1048 = vadd.f32 %v315, %v881
      %v1049 = vadd.f32 %v316, %v1017
      %v1050 = vadd.f32 %v317, %v883
      %v1051 = vadd.f32 %v318, %v885
      %v1052 = vadd.f32 %v319, %v1020
      %v1053 = vadd.f32 %v320, %v889
      %v1054 = vadd.f32 %v321, %v891
      %v1055 = vadd.f32 %v322, %v1025
      %v1056 = vadd.f32 %v323, %v893
      %v1057 = vadd.f32 %v324, %v895
      %v1058 = vadd.f32 %v325, %v1028
      %v1059 = vadd.f32 %v326, %v899
      %v1060 = vadd.f32 %v327, %v901
      %v1061 = vadd.f32 %v328, %v1033
      %v1062 = vadd.f32 %v329, %v903
      %v1063 = vadd.f32 %v330, %v905
      %v1064 = vadd.f32 %v331, %v1036
      %v1065 = vadd.f32 %v332, %v909
      %v1066 = vadd.f32 %v333, %v911
      %v1067 = vadd.f32 %v334, %v1041
      %v1068 = vadd.f32 %v335, %v913
      %v1069 = vadd.f32 %v336, %v915
      %v1070 = vadd.f32 %v337, %v1044
      %1071 = vst [vmem:[#allocation2] sm:$0xff] %v1047
      %1072 = vst [vmem:[#allocation2 + $0x8] sm:$0xff] %v1048
      %1073 = vst.msk [vmem:[#allocation2 + $0x10] sm:$0xff] %vm758, %v1049
      %1074 = vst [vmem:[#allocation2 + $0x18] sm:$0xff] %v1050
      %1075 = vst [vmem:[#allocation2 + $0x20] sm:$0xff] %v1051
      %1076 = vst.msk [vmem:[#allocation2 + $0x28] sm:$0xff] %vm758, %v1052
      %1077 = vst [vmem:[#allocation2 + $0x30] sm:$0xff] %v1053
      %1078 = vst [vmem:[#allocation2 + $0x38] sm:$0xff] %v1054
      %1079 = vst.msk [vmem:[#allocation2 + $0x40] sm:$0xff] %vm758, %v1055
      %1080 = vst [vmem:[#allocation2 + $0x48] sm:$0xff] %v1056
      %1081 = vst [vmem:[#allocation2 + $0x50] sm:$0xff] %v1057
      %1082 = vst.msk [vmem:[#allocation2 + $0x58] sm:$0xff] %vm758, %v1058
      %1083 = vst [vmem:[#allocation2 + $0x60] sm:$0xff] %v1059
      %1084 = vst [vmem:[#allocation2 + $0x68] sm:$0xff] %v1060
      %1085 = vst.msk [vmem:[#allocation2 + $0x70] sm:$0xff] %vm758, %v1061
      %1086 = vst [vmem:[#allocation2 + $0x78] sm:$0xff] %v1062
      %1087 = vst [vmem:[#allocation2 + $0x80] sm:$0xff] %v1063
      %1088 = vst.msk [vmem:[#allocation2 + $0x88] sm:$0xff] %vm758, %v1064
      %1089 = vst [vmem:[#allocation2 + $0x90] sm:$0xff] %v1065
      %1090 = vst [vmem:[#allocation2 + $0x98] sm:$0xff] %v1066
      %1091 = vst.msk [vmem:[#allocation2 + $0xa0] sm:$0xff] %vm758, %v1067
      %1092 = vst [vmem:[#allocation2 + $0xa8] sm:$0xff] %v1068
      %1093 = vst [vmem:[#allocation2 + $0xb0] sm:$0xff] %v1069
      %1094 = vst.msk [vmem:[#allocation2 + $0xb8] sm:$0xff] %vm758, %v1070
      %p1095 = scmp.eq.s32.totalorder %s22, 2
      // Predicated region
      $region41: #{mixed_4e_forward.8} parent=35 // pred_check
        %p1096 = pneg %p1095
      $region42: #{mixed_4e_forward.8} parent=35 // pred_check_branch
        %1098 = sbr.rel (%p1096) target = $region44
      $region43: #{mixed_4e_forward.8} parent=35 // pred_region
        %v1099 = vld [vmem:[#allocation2] sm:$0xff]
        %v1100 = vld [vmem:[#allocation2 + $0x8] sm:$0xff]
        %v1101 = vld [vmem:[#allocation2 + $0x10] sm:$0xff]
        %v1102 = vld [vmem:[#allocation2 + $0x18] sm:$0xff]
        %v1103 = vld [vmem:[#allocation2 + $0x20] sm:$0xff]
        %v1104 = vld [vmem:[#allocation2 + $0x28] sm:$0xff]
        %v1105 = vld [vmem:[#allocation2 + $0x30] sm:$0xff]
        %v1106 = vld [vmem:[#allocation2 + $0x38] sm:$0xff]
        %v1107 = vld [vmem:[#allocation2 + $0x40] sm:$0xff]
        %v1108 = vld [vmem:[#allocation2 + $0x48] sm:$0xff]
        %v1109 = vld [vmem:[#allocation2 + $0x50] sm:$0xff]
        %v1110 = vld [vmem:[#allocation2 + $0x58] sm:$0xff]
        %v1111 = vld [vmem:[#allocation2 + $0x60] sm:$0xff]
        %v1112 = vld [vmem:[#allocation2 + $0x68] sm:$0xff]
        %v1113 = vld [vmem:[#allocation2 + $0x70] sm:$0xff]
        %v1114 = vld [vmem:[#allocation2 + $0x78] sm:$0xff]
        %v1115 = vld [vmem:[#allocation2 + $0x80] sm:$0xff]
        %v1116 = vld [vmem:[#allocation2 + $0x88] sm:$0xff]
        %v1117 = vld [vmem:[#allocation2 + $0x90] sm:$0xff]
        %v1118 = vld [vmem:[#allocation2 + $0x98] sm:$0xff]
        %v1119 = vld [vmem:[#allocation2 + $0xa0] sm:$0xff]
        %v1120 = vld [vmem:[#allocation2 + $0xa8] sm:$0xff]
        %v1121 = vld [vmem:[#allocation2 + $0xb0] sm:$0xff]
        %v1122 = vld [vmem:[#allocation2 + $0xb8] sm:$0xff]
        %v1123 = vld [vmem:[%s2] sm:$0x7]
        %v1125 = vlaneseq
        %v1126 = vshrl.u32 %v1125, 7
        %v1127 = vsub.s32 0, %v1126
        %v1128 = vrot.slane %v1123, %v1127
        %v1129 = vlaneseq
        %v1130 = vshrl.u32 %v1129, 7
        %v1131 = vsub.s32 1, %v1130
        %v1132 = vrot.slane %v1123, %v1131
        %v1133 = vlaneseq
        %v1134 = vshrl.u32 %v1133, 7
        %v1135 = vsub.s32 2, %v1134
        %v1136 = vrot.slane %v1123, %v1135
        %v1140 = vmul.f32 %v1099, %v1128
        %v1141 = vmul.f32 %v1100, %v1132
        %v1142 = vmul.f32 %v1101, %v1136
        %v1143 = vmul.f32 %v1102, %v1128
        %v1144 = vmul.f32 %v1103, %v1132
        %v1145 = vmul.f32 %v1104, %v1136
        %v1146 = vmul.f32 %v1105, %v1128
        %v1147 = vmul.f32 %v1106, %v1132
        %v1148 = vmul.f32 %v1107, %v1136
        %v1149 = vmul.f32 %v1108, %v1128
        %v1150 = vmul.f32 %v1109, %v1132
        %v1151 = vmul.f32 %v1110, %v1136
        %v1152 = vmul.f32 %v1111, %v1128
        %v1153 = vmul.f32 %v1112, %v1132
        %v1154 = vmul.f32 %v1113, %v1136
        %v1155 = vmul.f32 %v1114, %v1128
        %v1156 = vmul.f32 %v1115, %v1132
        %v1157 = vmul.f32 %v1116, %v1136
        %v1158 = vmul.f32 %v1117, %v1128
        %v1159 = vmul.f32 %v1118, %v1132
        %v1160 = vmul.f32 %v1119, %v1136
        %v1161 = vmul.f32 %v1120, %v1128
        %v1162 = vmul.f32 %v1121, %v1132
        %v1163 = vmul.f32 %v1122, %v1136
        %v1164 = vld [vmem:[%s3] sm:$0x7]
        %v1166 = vlaneseq
        %v1167 = vshrl.u32 %v1166, 7
        %v1168 = vsub.s32 0, %v1167
        %v1169 = vrot.slane %v1164, %v1168
        %v1170 = vlaneseq
        %v1171 = vshrl.u32 %v1170, 7
        %v1172 = vsub.s32 1, %v1171
        %v1173 = vrot.slane %v1164, %v1172
        %v1174 = vlaneseq
        %v1175 = vshrl.u32 %v1174, 7
        %v1176 = vsub.s32 2, %v1175
        %v1177 = vrot.slane %v1164, %v1176
        %v1181 = vadd.f32 %v1140, %v1169
        %v1182 = vadd.f32 %v1141, %v1173
        %v1183 = vadd.f32 %v1142, %v1177
        %v1184 = vadd.f32 %v1143, %v1169
        %v1185 = vadd.f32 %v1144, %v1173
        %v1186 = vadd.f32 %v1145, %v1177
        %v1187 = vadd.f32 %v1146, %v1169
        %v1188 = vadd.f32 %v1147, %v1173
        %v1189 = vadd.f32 %v1148, %v1177
        %v1190 = vadd.f32 %v1149, %v1169
        %v1191 = vadd.f32 %v1150, %v1173
        %v1192 = vadd.f32 %v1151, %v1177
        %v1193 = vadd.f32 %v1152, %v1169
        %v1194 = vadd.f32 %v1153, %v1173
        %v1195 = vadd.f32 %v1154, %v1177
        %v1196 = vadd.f32 %v1155, %v1169
        %v1197 = vadd.f32 %v1156, %v1173
        %v1198 = vadd.f32 %v1157, %v1177
        %v1199 = vadd.f32 %v1158, %v1169
        %v1200 = vadd.f32 %v1159, %v1173
        %v1201 = vadd.f32 %v1160, %v1177
        %v1202 = vadd.f32 %v1161, %v1169
        %v1203 = vadd.f32 %v1162, %v1173
        %v1204 = vadd.f32 %v1163, %v1177
        %v1205 = vmax.f32 %v1181, 0.0
        %v1206 = vmax.f32 %v1182, 0.0
        %v1207 = vmax.f32 %v1183, 0.0
        %v1208 = vmax.f32 %v1184, 0.0
        %v1209 = vmax.f32 %v1185, 0.0
        %v1210 = vmax.f32 %v1186, 0.0
        %v1211 = vmax.f32 %v1187, 0.0
        %v1212 = vmax.f32 %v1188, 0.0
        %v1213 = vmax.f32 %v1189, 0.0
        %v1214 = vmax.f32 %v1190, 0.0
        %v1215 = vmax.f32 %v1191, 0.0
        %v1216 = vmax.f32 %v1192, 0.0
        %v1217 = vmax.f32 %v1193, 0.0
        %v1218 = vmax.f32 %v1194, 0.0
        %v1219 = vmax.f32 %v1195, 0.0
        %v1220 = vmax.f32 %v1196, 0.0
        %v1221 = vmax.f32 %v1197, 0.0
        %v1222 = vmax.f32 %v1198, 0.0
        %v1223 = vmax.f32 %v1199, 0.0
        %v1224 = vmax.f32 %v1200, 0.0
        %v1225 = vmax.f32 %v1201, 0.0
        %v1226 = vmax.f32 %v1202, 0.0
        %v1227 = vmax.f32 %v1203, 0.0
        %v1228 = vmax.f32 %v1204, 0.0
        %v1229 = vpack.c.bf16 %v1208, %v1205
        %v1230 = vpack.c.bf16 %v1209, %v1206
        %v1231 = vpack.c.bf16 %v1210, %v1207
        %v1232 = vpack.c.bf16 %v1214, %v1211
        %v1233 = vpack.c.bf16 %v1215, %v1212
        %v1234 = vpack.c.bf16 %v1216, %v1213
        %v1235 = vpack.c.bf16 %v1220, %v1217
        %v1236 = vpack.c.bf16 %v1221, %v1218
        %v1237 = vpack.c.bf16 %v1222, %v1219
        %v1238 = vpack.c.bf16 %v1226, %v1223
        %v1239 = vpack.c.bf16 %v1227, %v1224
        %v1240 = vpack.c.bf16 %v1228, %v1225
        %v1253 = vunpack.c.l.b16 %v1229
        %v1254 = vunpack.c.l.b16 %v1230
        %v1255 = vunpack.c.l.b16 %v1231
        %v1256 = vunpack.c.h.b16 %v1229
        %v1257 = vunpack.c.h.b16 %v1230
        %v1258 = vunpack.c.h.b16 %v1231
        %v1259 = vunpack.c.l.b16 %v1232
        %v1260 = vunpack.c.l.b16 %v1233
        %v1261 = vunpack.c.l.b16 %v1234
        %v1262 = vunpack.c.h.b16 %v1232
        %v1263 = vunpack.c.h.b16 %v1233
        %v1264 = vunpack.c.h.b16 %v1234
        %v1265 = vunpack.c.l.b16 %v1235
        %v1266 = vunpack.c.l.b16 %v1236
        %v1267 = vunpack.c.l.b16 %v1237
        %v1268 = vunpack.c.h.b16 %v1235
        %v1269 = vunpack.c.h.b16 %v1236
        %v1270 = vunpack.c.h.b16 %v1237
        %v1271 = vunpack.c.l.b16 %v1238
        %v1272 = vunpack.c.l.b16 %v1239
        %v1273 = vunpack.c.l.b16 %v1240
        %v1274 = vunpack.c.h.b16 %v1238
        %v1275 = vunpack.c.h.b16 %v1239
        %v1276 = vunpack.c.h.b16 %v1240
        %v1277 = vpack.c.b16 %v1254, %v1253
        %v1278 = vpack.c.b16 %v1255, %v1255
        %v1279 = vpack.c.b16 %v1257, %v1256
        %v1280 = vpack.c.b16 %v1258, %v1258
        %v1281 = vpack.c.b16 %v1260, %v1259
        %v1282 = vpack.c.b16 %v1261, %v1261
        %v1283 = vpack.c.b16 %v1263, %v1262
        %v1284 = vpack.c.b16 %v1264, %v1264
        %v1285 = vpack.c.b16 %v1266, %v1265
        %v1286 = vpack.c.b16 %v1267, %v1267
        %v1287 = vpack.c.b16 %v1269, %v1268
        %v1288 = vpack.c.b16 %v1270, %v1270
        %v1289 = vpack.c.b16 %v1272, %v1271
        %v1290 = vpack.c.b16 %v1273, %v1273
        %v1291 = vpack.c.b16 %v1275, %v1274
        %v1292 = vpack.c.b16 %v1276, %v1276
        %1309 = vst [vmem:[%s267] sm:$0xff] %v1277
        %vm1310 = vcmask 257024
        %1311 = vst.msk [vmem:[%s267 + $0x8] sm:$0xf] %vm1310, %v1278
        %1312 = vst [vmem:[%s267 + $0xc] sm:$0xff] %v1279
        %1313 = vst.msk [vmem:[%s267 + $0x14] sm:$0xf] %vm1310, %v1280
        %1314 = vst [vmem:[%s267 + $0x18] sm:$0xff] %v1281
        %1315 = vst.msk [vmem:[%s267 + $0x20] sm:$0xf] %vm1310, %v1282
        %1316 = vst [vmem:[%s267 + $0x24] sm:$0xff] %v1283
        %1317 = vst.msk [vmem:[%s267 + $0x2c] sm:$0xf] %vm1310, %v1284
        %1318 = vst [vmem:[%s267 + $0x30] sm:$0xff] %v1285
        %1319 = vst.msk [vmem:[%s267 + $0x38] sm:$0xf] %vm1310, %v1286
        %1320 = vst [vmem:[%s267 + $0x3c] sm:$0xff] %v1287
        %1321 = vst.msk [vmem:[%s267 + $0x44] sm:$0xf] %vm1310, %v1288
        %1322 = vst [vmem:[%s267 + $0x48] sm:$0xff] %v1289
        %1323 = vst.msk [vmem:[%s267 + $0x50] sm:$0xf] %vm1310, %v1290
        %1324 = vst [vmem:[%s267 + $0x54] sm:$0xff] %v1291
        %1325 = vst.msk [vmem:[%s267 + $0x5c] sm:$0xf] %vm1310, %v1292
      $region44: #{mixed_4e_forward.8} parent=35 // pred_fallthru
        _
      %p1326 = scmp.lt.s32.totalorder %s20, 0
      %s1327 = scalar_select %p1326, %s20, 0
      %p1328 = scmp.lt.s32.totalorder %s21, 3
      %s1329 = scalar_select %p1328, %s21, 3
      %s1330 = smul.addr %s1329, 24
      %s1331 = smul.addr %s1327, 96
      %s1332 = sadd.s32 %s1330, %s1331
      %s1333 = smul.addr %s1332, 4
      %s1334 = scalar_lea.vmem %s4, %s1333
      // Predicated region
      $region45: #{mixed_4e_forward.8} parent=35 // pred_check
        %p1335 = pneg %p152
      $region46: #{mixed_4e_forward.8} parent=35 // pred_check_branch
        %1337 = sbr.rel (%p1335) target = $region48
      $region47: #{mixed_4e_forward.8} parent=35 // pred_region
        _
      $region48: #{mixed_4e_forward.8} parent=35 // pred_fallthru
        _
    $region36: #{mixed_4e_forward.8} parent=5 // pred_fallthru
      _
    %p1338 = scmp.le.s32.totalorder 2, %s10
    // Predicated region
    $region49: #{mixed_4e_forward.8} parent=5 // pred_check
      %p1339 = pneg %p1338
    $region50: #{mixed_4e_forward.8} parent=5 // pred_check_branch
      %1341 = sbr.rel (%p1339) target = $region52
    $region51: #{mixed_4e_forward.8} parent=5 // pred_region
      %s1342 = ssub.s32 %s10, 2
      // Predicated region
      $region53: #{mixed_4e_forward.8} parent=51 // pred_check
        %p1343 = pneg %p158
      $region54: #{mixed_4e_forward.8} parent=51 // pred_check_branch
        %1345 = sbr.rel (%p1343) target = $region56
      $region55: #{mixed_4e_forward.8} parent=51 // pred_region
        %p1346 = scmp.lt.s32.totalorder %s23, 0
        %s1347 = scalar_select %p1346, %s23, 0
        %p1348 = scmp.lt.s32.totalorder %s24, 3
        %s1349 = scalar_select %p1348, %s24, 3
        %s1350 = smul.addr %s1349, 24
        %s1351 = smul.addr %s1347, 96
        %s1352 = sadd.s32 %s1350, %s1351
        %s1353 = smul.addr %s1352, 4
        %s1354 = scalar_lea.vmem %s4, %s1353
      $region56: #{mixed_4e_forward.8} parent=51 // pred_fallthru
        _
    $region52: #{mixed_4e_forward.8} parent=5 // pred_fallthru
      _
  $region6: #{mixed_4e_forward.8} parent=0 // loop_footer
    %s14 = sadd.s32 1, %s10
  $region7: #{mixed_4e_forward.8} parent=0 // loop_footer_branch
    %9 = sbr.rel target = $region3
  $region8: #{mixed_4e_forward.8} parent=0 // loop_exit
    _

// kernel: mixed_4e_forward.7
$region0: #{mixed_4e_forward.7}
  #allocation0 [shape = 'u32[]', space=smem, size = 0x4, offset = 0x4, fixed_abs, tag = 'smem constant byte address 0x4 - core index']
  #allocation1 [shape = 'u32[144,128]{1,0:T(1,128)}', space=vmem, size = 0x12000, scoped, tag = 'internal scratch']
  %s0 = inlined_call_operand.vmem [shape: bf16[1,4,10,10,144], index: 0, kind: input, shape index: {}]
  %s1 = inlined_call_operand.vmem [shape: bf16[9,144,288], index: 1, kind: input, shape index: {}]
  %s2 = inlined_call_operand.vmem [shape: f32[1,288], index: 2, kind: input, shape index: {}]
  %s3 = inlined_call_operand.vmem [shape: f32[1,288], index: 3, kind: input, shape index: {}]
  %s4 = inlined_call_operand.vmem [shape: bf16[1,4,8,8,288], index: 4, kind: output, shape index: {}]
  %s5 = sld [smem:[#allocation0]]
  $region49: #{mixed_4e_forward.7} parent=0
    _
  %s7 = ssub.s32 1, %s5
  %s8 = scalar_select 0, %s7, %s5
  loop: start=0, step=1, limit=6
  $region2: #{mixed_4e_forward.7} parent=0 // loop_pre_header
    _
  $region3: #{mixed_4e_forward.7} parent=0 // loop_header
    %s10 = sphi 0, %s14
    %p11 = scmp.ge.s32.totalorder %s10, 6
    %s17 = sphi 0, %s29
    %s18 = sphi 0, %s25
    %s19 = sphi 0, %s17
    %s20 = sphi 0, %s18
    %s21 = sphi 0, %s19
    %s22 = sphi 0, %s20
    %s34 = sphi 0, %s36
    %s37 = sphi 0, %s34
    %s38 = sphi 0, %s37
    %s54 = sphi 0, %s38
    %s58 = sphi 0, %s58
    %s60 = sphi 0, %s58
    %s61 = sphi 0, %s60
    %s75 = sphi 0, %s61
    %s79 = sphi 0, %s79
    %s81 = sphi 0, %s79
    %s82 = sphi 0, %s81
    %s96 = sphi 0, %s82
    %s100 = sphi 0, %s100
    %s102 = sphi 0, %s100
    %s103 = sphi 0, %s102
    %s117 = sphi 0, %s103
    %s125 = sphi 0, %s127
    %s128 = sphi 0, %s125
    %s129 = sphi 0, %s128
    %s145 = sphi 0, %s129
  $region4: #{mixed_4e_forward.7} parent=0 // loop_header_branch
    %13 = sbr.rel (%p11) target = $region8
  $region5: #{mixed_4e_forward.7} parent=0 // loop_body
    %s15 = ssub.s32 %s10, 1
    %s16 = ssub.s32 %s10, 2
    %s23 = sadd.s32 1, %s18
    %p24 = scmp.ge.s32.totalorder %s23, 4
    %s25 = scalar_select %p24, 0, %s23
    %s26 = sadd.s32 1, %s17
    %s27 = scalar_select %p24, %s26, %s17
    %p28 = scmp.ge.s32.totalorder %s27, 1
    %s29 = scalar_select %p28, 0, %s27
    %s30 = ssub.s32 %s17, %s29
    %s31 = ssub.s32 %s18, %s25
    %s32 = sor.u32 %s30, %s31
    %p33 = scmp.eq.s32.totalorder %s32, 0
    %s35 = sadd.s32 %s34, 1
    %s36 = scalar_select %p33, %s34, %s35
    %p39 = pneg %p33
    %p40 = scmp.eq.s32.totalorder %s10, 3
    %p41 = por %p39, %p40
    %p42 = scmp.ne.s32.totalorder %s34, %s37
    %p43 = scmp.eq.s32.totalorder %s10, 0
    %p44 = por %p42, %p43
    %p45 = scmp.ne.s32.totalorder %s34, %s37
    %p46 = scmp.eq.s32.totalorder %s15, 3
    %p47 = por %p45, %p46
    %p48 = scmp.ne.s32.totalorder %s37, %s38
    %p49 = scmp.eq.s32.totalorder %s15, 0
    %p50 = por %p48, %p49
    %p51 = scmp.ne.s32.totalorder %s37, %s38
    %p52 = scmp.eq.s32.totalorder %s16, 3
    %p53 = por %p51, %p52
    %p55 = scmp.ne.s32.totalorder %s38, %s54
    %p56 = scmp.eq.s32.totalorder %s16, 0
    %p57 = por %p55, %p56
    %s59 = sadd.s32 %s58, 1
    %p62 = scmp.eq.s32.totalorder %s10, 3
    %p63 = scmp.ne.s32.totalorder %s58, %s60
    %p64 = scmp.eq.s32.totalorder %s10, 0
    %p65 = por %p63, %p64
    %p66 = scmp.ne.s32.totalorder %s58, %s60
    %p67 = scmp.eq.s32.totalorder %s15, 3
    %p68 = por %p66, %p67
    %p69 = scmp.ne.s32.totalorder %s60, %s61
    %p70 = scmp.eq.s32.totalorder %s15, 0
    %p71 = por %p69, %p70
    %p72 = scmp.ne.s32.totalorder %s60, %s61
    %p73 = scmp.eq.s32.totalorder %s16, 3
    %p74 = por %p72, %p73
    %p76 = scmp.ne.s32.totalorder %s61, %s75
    %p77 = scmp.eq.s32.totalorder %s16, 0
    %p78 = por %p76, %p77
    %s80 = sadd.s32 %s79, 1
    %p83 = scmp.eq.s32.totalorder %s10, 3
    %p84 = scmp.ne.s32.totalorder %s79, %s81
    %p85 = scmp.eq.s32.totalorder %s10, 0
    %p86 = por %p84, %p85
    %p87 = scmp.ne.s32.totalorder %s79, %s81
    %p88 = scmp.eq.s32.totalorder %s15, 3
    %p89 = por %p87, %p88
    %p90 = scmp.ne.s32.totalorder %s81, %s82
    %p91 = scmp.eq.s32.totalorder %s15, 0
    %p92 = por %p90, %p91
    %p93 = scmp.ne.s32.totalorder %s81, %s82
    %p94 = scmp.eq.s32.totalorder %s16, 3
    %p95 = por %p93, %p94
    %p97 = scmp.ne.s32.totalorder %s82, %s96
    %p98 = scmp.eq.s32.totalorder %s16, 0
    %p99 = por %p97, %p98
    %s101 = sadd.s32 %s100, 1
    %p104 = scmp.eq.s32.totalorder %s10, 3
    %p105 = scmp.ne.s32.totalorder %s100, %s102
    %p106 = scmp.eq.s32.totalorder %s10, 0
    %p107 = por %p105, %p106
    %p108 = scmp.ne.s32.totalorder %s100, %s102
    %p109 = scmp.eq.s32.totalorder %s15, 3
    %p110 = por %p108, %p109
    %p111 = scmp.ne.s32.totalorder %s102, %s103
    %p112 = scmp.eq.s32.totalorder %s15, 0
    %p113 = por %p111, %p112
    %p114 = scmp.ne.s32.totalorder %s102, %s103
    %p115 = scmp.eq.s32.totalorder %s16, 3
    %p116 = por %p114, %p115
    %p118 = scmp.ne.s32.totalorder %s103, %s117
    %p119 = scmp.eq.s32.totalorder %s16, 0
    %p120 = por %p118, %p119
    %s121 = ssub.s32 %s17, %s29
    %s122 = ssub.s32 %s18, %s25
    %s123 = sor.u32 %s121, %s122
    %p124 = scmp.eq.s32.totalorder %s123, 0
    %s126 = sadd.s32 %s125, 1
    %s127 = scalar_select %p124, %s125, %s126
    %p130 = pneg %p124
    %p131 = scmp.eq.s32.totalorder %s10, 3
    %p132 = por %p130, %p131
    %p133 = scmp.ne.s32.totalorder %s125, %s128
    %p134 = scmp.eq.s32.totalorder %s10, 0
    %p135 = por %p133, %p134
    %p136 = scmp.ne.s32.totalorder %s125, %s128
    %p137 = scmp.eq.s32.totalorder %s15, 3
    %p138 = por %p136, %p137
    %p139 = scmp.ne.s32.totalorder %s128, %s129
    %p140 = scmp.eq.s32.totalorder %s15, 0
    %p141 = por %p139, %p140
    %p142 = scmp.ne.s32.totalorder %s128, %s129
    %p143 = scmp.eq.s32.totalorder %s16, 3
    %p144 = por %p142, %p143
    %p146 = scmp.ne.s32.totalorder %s129, %s145
    %p147 = scmp.eq.s32.totalorder %s16, 0
    %p148 = por %p146, %p147
    %p149 = scmp.le.s32.totalorder 1, %s10
    %p150 = scmp.lt.s32.totalorder %s10, 5
    %p151 = pnand %p149, %p150
    %p152 = pneg %p151
    // Predicated region
    $region9: #{mixed_4e_forward.7} parent=5 // pred_check
      _
    $region10: #{mixed_4e_forward.7} parent=5 // pred_check_branch
      %154 = sbr.rel (%p151) target = $region12
    $region11: #{mixed_4e_forward.7} parent=5 // pred_region
      %s155 = ssub.s32 %s10, 1
      // Predicated region
      $region13: #{mixed_4e_forward.7} parent=11 // pred_check
        %p156 = pneg %p71
      $region14: #{mixed_4e_forward.7} parent=11 // pred_check_branch
        %158 = sbr.rel (%p156) target = $region16
      $region15: #{mixed_4e_forward.7} parent=11 // pred_region
        _
      $region16: #{mixed_4e_forward.7} parent=11 // pred_fallthru
        _
      // Predicated region
      $region17: #{mixed_4e_forward.7} parent=11 // pred_check
        %p159 = pneg %p92
      $region18: #{mixed_4e_forward.7} parent=11 // pred_check_branch
        %161 = sbr.rel (%p159) target = $region20
      $region19: #{mixed_4e_forward.7} parent=11 // pred_region
        _
      $region20: #{mixed_4e_forward.7} parent=11 // pred_fallthru
        _
      // Predicated region
      $region21: #{mixed_4e_forward.7} parent=11 // pred_check
        %p162 = pneg %p113
      $region22: #{mixed_4e_forward.7} parent=11 // pred_check_branch
        %164 = sbr.rel (%p162) target = $region24
      $region23: #{mixed_4e_forward.7} parent=11 // pred_region
        _
      $region24: #{mixed_4e_forward.7} parent=11 // pred_fallthru
        _
    $region12: #{mixed_4e_forward.7} parent=5 // pred_fallthru
      _
    %p165 = scmp.lt.s32.totalorder %s10, 4
    // Predicated region
    $region25: #{mixed_4e_forward.7} parent=5 // pred_check
      %p166 = pneg %p165
    $region26: #{mixed_4e_forward.7} parent=5 // pred_check_branch
      %168 = sbr.rel (%p166) target = $region28
    $region27: #{mixed_4e_forward.7} parent=5 // pred_region
      // Predicated region
      $region29: #{mixed_4e_forward.7} parent=27 // pred_check
        %p169 = pneg %p44
      $region30: #{mixed_4e_forward.7} parent=27 // pred_check_branch
        %171 = sbr.rel (%p169) target = $region32
      $region31: #{mixed_4e_forward.7} parent=27 // pred_region
        %p172 = scmp.lt.s32.totalorder %s17, 0
        %s173 = scalar_select %p172, %s17, 0
        %p174 = scmp.lt.s32.totalorder %s18, 3
        %s175 = scalar_select %p174, %s18, 3
        %s176 = smul.addr %s175, 40
        %s177 = smul.addr %s173, 160
        %s178 = sadd.s32 %s176, %s177
        %s179 = smul.addr %s178, 4
        %s180 = scalar_lea.vmem %s0, %s179
      $region32: #{mixed_4e_forward.7} parent=27 // pred_fallthru
        _
    $region28: #{mixed_4e_forward.7} parent=5 // pred_fallthru
      _
    %p181 = scmp.le.s32.totalorder 1, %s10
    %p182 = scmp.lt.s32.totalorder %s10, 5
    %p183 = pnand %p181, %p182
    %p184 = pneg %p183
    // Predicated region
    $region33: #{mixed_4e_forward.7} parent=5 // pred_check
      _
    $region34: #{mixed_4e_forward.7} parent=5 // pred_check_branch
      %186 = sbr.rel (%p183) target = $region36
    $region35: #{mixed_4e_forward.7} parent=5 // pred_region
      %s187 = ssub.s32 %s10, 1
      %p188 = scmp.lt.s32.totalorder %s19, 0
      %s189 = scalar_select %p188, %s19, 0
      %p190 = scmp.lt.s32.totalorder %s20, 3
      %s191 = scalar_select %p190, %s20, 3
      %s192 = smul.addr %s191, 40
      %s193 = smul.addr %s189, 160
      %s194 = sadd.s32 %s192, %s193
      %s195 = smul.addr %s194, 4
      %s196 = scalar_lea.vmem %s0, %s195
      %p197 = pneg %p50
      %p198 = pneg %p47
      %p199 = pneg %p71
      %p200 = pneg %p68
      %p201 = pneg %p92
      %p202 = pneg %p89
      %p203 = pneg %p113
      %p204 = pneg %p110
      %p205 = pneg %p141
      %p206 = pneg %p138
      %p207 = scmp.lt.s32.totalorder %s19, 0
      %s208 = scalar_select %p207, %s19, 0
      %p209 = scmp.lt.s32.totalorder %s20, 3
      %s210 = scalar_select %p209, %s20, 3
      %s211 = smul.addr %s210, 24
      %s212 = smul.addr %s208, 96
      %s213 = sadd.s32 %s211, %s212
      %s214 = smul.addr %s213, 4
      %s215 = scalar_lea.vmem %s4, %s214
      %p216 = scmp.lt.s32.totalorder %s19, 0
      %s217 = scalar_select %p216, %s19, 0
      %p218 = scmp.lt.s32.totalorder %s20, 3
      %s219 = scalar_select %p218, %s20, 3
      %s220 = smul.addr %s219, 40
      %s221 = smul.addr %s217, 160
      %s222 = sadd.s32 %s220, %s221
      %s223 = smul.addr %s222, 4
      %s224 = scalar_lea.vmem %s0, %s223
      %p225 = scmp.lt.s32.totalorder %s19, 0
      %s226 = scalar_select %p225, %s19, 0
      %p227 = scmp.lt.s32.totalorder %s20, 3
      %s228 = scalar_select %p227, %s20, 3
      %s229 = smul.addr %s228, 24
      %s230 = smul.addr %s226, 96
      %s231 = sadd.s32 %s229, %s230
      %s232 = smul.addr %s231, 4
      %s233 = scalar_lea.vmem %s4, %s232
      %v235 = vld [vmem:[%s224] sm:$0xff]
      %v236 = vld [vmem:[%s224 + $0x8] sm:$0x11]
      %v237 = vld [vmem:[%s224 + $0x10] sm:$0xff]
      %v238 = vld [vmem:[%s224 + $0x18] sm:$0x11]
      %v239 = vld [vmem:[%s224 + $0x20] sm:$0xff]
      %v240 = vld [vmem:[%s224 + $0x28] sm:$0x11]
      %v241 = vld [vmem:[%s224 + $0x30] sm:$0xff]
      %v242 = vld [vmem:[%s224 + $0x38] sm:$0x11]
      %v243 = vld [vmem:[%s224 + $0x40] sm:$0xff]
      %v244 = vld [vmem:[%s224 + $0x48] sm:$0x11]
      %v245 = vld [vmem:[%s224 + $0x50] sm:$0xff]
      %v246 = vld [vmem:[%s224 + $0x58] sm:$0x11]
      %v247 = vld [vmem:[%s224 + $0x60] sm:$0xff]
      %v248 = vld [vmem:[%s224 + $0x68] sm:$0x11]
      %v249 = vld [vmem:[%s224 + $0x70] sm:$0xff]
      %v250 = vld [vmem:[%s224 + $0x78] sm:$0x11]
      %v251 = vld [vmem:[%s224 + $0x80] sm:$0xff]
      %v252 = vld [vmem:[%s224 + $0x88] sm:$0x11]
      %v253 = vld [vmem:[%s224 + $0x90] sm:$0xff]
      %v254 = vld [vmem:[%s224 + $0x98] sm:$0x11]
      %v255 = vld [vmem:[%s1] sm:$0xff]
      %v256 = vld [vmem:[%s1 + $0x8] sm:$0xf]
      %v257 = vld [vmem:[%s1 + $0xc] sm:$0xff]
      %v258 = vld [vmem:[%s1 + $0x14] sm:$0xf]
      %v259 = vld [vmem:[%s1 + $0x18] sm:$0xff]
      %v260 = vld [vmem:[%s1 + $0x20] sm:$0xf]
      %v261 = vld [vmem:[%s1 + $0x24] sm:$0xff]
      %v262 = vld [vmem:[%s1 + $0x2c] sm:$0xf]
      %v263 = vld [vmem:[%s1 + $0x30] sm:$0xff]
      %v264 = vld [vmem:[%s1 + $0x38] sm:$0xf]
      %v265 = vld [vmem:[%s1 + $0x3c] sm:$0xff]
      %v266 = vld [vmem:[%s1 + $0x44] sm:$0xf]
      %v267 = vld [vmem:[%s1 + $0x48] sm:$0xff]
      %v268 = vld [vmem:[%s1 + $0x50] sm:$0xf]
      %v269 = vld [vmem:[%s1 + $0x54] sm:$0xff]
      %v270 = vld [vmem:[%s1 + $0x5c] sm:$0xf]
      %v271 = vld [vmem:[%s1 + $0x60] sm:$0xff]
      %v272 = vld [vmem:[%s1 + $0x68] sm:$0xf]
      %v273 = vld [vmem:[%s1 + $0x6c] sm:$0xff]
      %v274 = vld [vmem:[%s1 + $0x74] sm:$0xf]
      %v275 = vld [vmem:[%s1 + $0x78] sm:$0xff]
      %v276 = vld [vmem:[%s1 + $0x80] sm:$0xf]
      %v277 = vld [vmem:[%s1 + $0x84] sm:$0xff]
      %v278 = vld [vmem:[%s1 + $0x8c] sm:$0xf]
      %v279 = vld [vmem:[%s1 + $0x90] sm:$0xff]
      %v280 = vld [vmem:[%s1 + $0x98] sm:$0xf]
      %v281 = vld [vmem:[%s1 + $0x9c] sm:$0xff]
      %v282 = vld [vmem:[%s1 + $0xa4] sm:$0xf]
      %v283 = vld [vmem:[%s1 + $0xa8] sm:$0xff]
      %v284 = vld [vmem:[%s1 + $0xb0] sm:$0xf]
      %v285 = vld [vmem:[%s1 + $0xb4] sm:$0xff]
      %v286 = vld [vmem:[%s1 + $0xbc] sm:$0xf]
      %v287 = vld [vmem:[%s1 + $0xc0] sm:$0xff]
      %v288 = vld [vmem:[%s1 + $0xc8] sm:$0xf]
      %v289 = vld [vmem:[%s1 + $0xcc] sm:$0xff]
      %v290 = vld [vmem:[%s1 + $0xd4] sm:$0xf]
      %vm291 = vsmask.f32 3328
      %vm292 = vsmask.f32 7440
      %vm293 = vmor %vm291, %vm292
      %v295 = vshrl.u32 %v235, 16
      %v297 = vrot.slane %v295, 4
      %v298 = vshll.u32 %v235, 16
      %v300 = vrot.slane %v298, 5
      %v301 = vor.u32 %v297, %v300
      %v302 = vrot.slane %v301, 4
      %v304 = vshll.u32 %v236, 16
      %v306 = vrot.slane %v304, 5
      %v307 = vsel %vm293, %v302, %v306
      %v309 = vshrl.u32 %v237, 16
      %v311 = vrot.slane %v309, 4
      %v312 = vshll.u32 %v237, 16
      %v314 = vrot.slane %v312, 5
      %v315 = vor.u32 %v311, %v314
      %v316 = vrot.slane %v315, 4
      %v318 = vshll.u32 %v238, 16
      %v320 = vrot.slane %v318, 5
      %v321 = vsel %vm293, %v316, %v320
      %v323 = vshrl.u32 %v239, 16
      %v325 = vrot.slane %v323, 4
      %v326 = vshll.u32 %v239, 16
      %v328 = vrot.slane %v326, 5
      %v329 = vor.u32 %v325, %v328
      %v330 = vrot.slane %v329, 4
      %v332 = vshll.u32 %v240, 16
      %v334 = vrot.slane %v332, 5
      %v335 = vsel %vm293, %v330, %v334
      %v337 = vshrl.u32 %v241, 16
      %v339 = vrot.slane %v337, 4
      %v340 = vshll.u32 %v241, 16
      %v342 = vrot.slane %v340, 5
      %v343 = vor.u32 %v339, %v342
      %v344 = vrot.slane %v343, 4
      %v346 = vshll.u32 %v242, 16
      %v348 = vrot.slane %v346, 5
      %v349 = vsel %vm293, %v344, %v348
      %v351 = vshrl.u32 %v243, 16
      %v353 = vrot.slane %v351, 4
      %v354 = vshll.u32 %v243, 16
      %v356 = vrot.slane %v354, 5
      %v357 = vor.u32 %v353, %v356
      %v358 = vrot.slane %v357, 4
      %v360 = vshll.u32 %v244, 16
      %v362 = vrot.slane %v360, 5
      %v363 = vsel %vm293, %v358, %v362
      %v365 = vshrl.u32 %v245, 16
      %v367 = vrot.slane %v365, 4
      %v368 = vshll.u32 %v245, 16
      %v370 = vrot.slane %v368, 5
      %v371 = vor.u32 %v367, %v370
      %v372 = vrot.slane %v371, 4
      %v374 = vshll.u32 %v246, 16
      %v376 = vrot.slane %v374, 5
      %v377 = vsel %vm293, %v372, %v376
      %v379 = vshrl.u32 %v247, 16
      %v381 = vrot.slane %v379, 4
      %v382 = vshll.u32 %v247, 16
      %v384 = vrot.slane %v382, 5
      %v385 = vor.u32 %v381, %v384
      %v386 = vrot.slane %v385, 4
      %v388 = vshll.u32 %v248, 16
      %v390 = vrot.slane %v388, 5
      %v391 = vsel %vm293, %v386, %v390
      %v393 = vshrl.u32 %v249, 16
      %v395 = vrot.slane %v393, 4
      %v396 = vshll.u32 %v249, 16
      %v398 = vrot.slane %v396, 5
      %v399 = vor.u32 %v395, %v398
      %v400 = vrot.slane %v399, 4
      %v402 = vshll.u32 %v250, 16
      %v404 = vrot.slane %v402, 5
      %v405 = vsel %vm293, %v400, %v404
      %s406 = scalar_lea.vmem %s1, 216
      %v407 = vld [vmem:[%s406] sm:$0xff]
      %v408 = vld [vmem:[%s406 + $0x8] sm:$0xf]
      %v409 = vld [vmem:[%s406 + $0xc] sm:$0xff]
      %v410 = vld [vmem:[%s406 + $0x14] sm:$0xf]
      %v411 = vld [vmem:[%s406 + $0x18] sm:$0xff]
      %v412 = vld [vmem:[%s406 + $0x20] sm:$0xf]
      %v413 = vld [vmem:[%s406 + $0x24] sm:$0xff]
      %v414 = vld [vmem:[%s406 + $0x2c] sm:$0xf]
      %v415 = vld [vmem:[%s406 + $0x30] sm:$0xff]
      %v416 = vld [vmem:[%s406 + $0x38] sm:$0xf]
      %v417 = vld [vmem:[%s406 + $0x3c] sm:$0xff]
      %v418 = vld [vmem:[%s406 + $0x44] sm:$0xf]
      %v419 = vld [vmem:[%s406 + $0x48] sm:$0xff]
      %v420 = vld [vmem:[%s406 + $0x50] sm:$0xf]
      %v421 = vld [vmem:[%s406 + $0x54] sm:$0xff]
      %v422 = vld [vmem:[%s406 + $0x5c] sm:$0xf]
      %v423 = vld [vmem:[%s406 + $0x60] sm:$0xff]
      %v424 = vld [vmem:[%s406 + $0x68] sm:$0xf]
      %v425 = vld [vmem:[%s406 + $0x6c] sm:$0xff]
      %v426 = vld [vmem:[%s406 + $0x74] sm:$0xf]
      %v427 = vld [vmem:[%s406 + $0x78] sm:$0xff]
      %v428 = vld [vmem:[%s406 + $0x80] sm:$0xf]
      %v429 = vld [vmem:[%s406 + $0x84] sm:$0xff]
      %v430 = vld [vmem:[%s406 + $0x8c] sm:$0xf]
      %v431 = vld [vmem:[%s406 + $0x90] sm:$0xff]
      %v432 = vld [vmem:[%s406 + $0x98] sm:$0xf]
      %v433 = vld [vmem:[%s406 + $0x9c] sm:$0xff]
      %v434 = vld [vmem:[%s406 + $0xa4] sm:$0xf]
      %v435 = vld [vmem:[%s406 + $0xa8] sm:$0xff]
      %v436 = vld [vmem:[%s406 + $0xb0] sm:$0xf]
      %v437 = vld [vmem:[%s406 + $0xb4] sm:$0xff]
      %v438 = vld [vmem:[%s406 + $0xbc] sm:$0xf]
      %v439 = vld [vmem:[%s406 + $0xc0] sm:$0xff]
      %v440 = vld [vmem:[%s406 + $0xc8] sm:$0xf]
      %v441 = vld [vmem:[%s406 + $0xcc] sm:$0xff]
      %v442 = vld [vmem:[%s406 + $0xd4] sm:$0xf]
      %v443 = vunpack.c.l.b16 %v307
      %v444 = vunpack.c.h.b16 %v307
      %v445 = vunpack.c.l.b16 %v321
      %v446 = vunpack.c.h.b16 %v321
      %v447 = vunpack.c.l.b16 %v335
      %v448 = vunpack.c.h.b16 %v335
      %v449 = vunpack.c.l.b16 %v349
      %v450 = vunpack.c.h.b16 %v349
      %v451 = vunpack.c.l.b16 %v363
      %v452 = vunpack.c.h.b16 %v363
      %v453 = vunpack.c.l.b16 %v377
      %v454 = vunpack.c.h.b16 %v377
      %v455 = vunpack.c.l.b16 %v391
      %v456 = vunpack.c.h.b16 %v391
      %v457 = vunpack.c.l.b16 %v405
      %v458 = vunpack.c.h.b16 %v405
      %v459 = vpack.c.b16 %v445, %v443
      %v460 = vpack.c.b16 %v446, %v444
      %v461 = vpack.c.b16 %v449, %v447
      %v462 = vpack.c.b16 %v450, %v448
      %v463 = vpack.c.b16 %v453, %v451
      %v464 = vpack.c.b16 %v454, %v452
      %v465 = vpack.c.b16 %v457, %v455
      %v466 = vpack.c.b16 %v458, %v456
      %v507 = vunpack.c.l.b16 %v407
      %v508 = vunpack.c.h.b16 %v407
      %v509 = vunpack.c.l.b16 %v408
      %v510 = vunpack.c.l.b16 %v409
      %v511 = vunpack.c.h.b16 %v409
      %v512 = vunpack.c.l.b16 %v410
      %v513 = vunpack.c.l.b16 %v411
      %v514 = vunpack.c.h.b16 %v411
      %v515 = vunpack.c.l.b16 %v412
      %v516 = vunpack.c.l.b16 %v413
      %v517 = vunpack.c.h.b16 %v413
      %v518 = vunpack.c.l.b16 %v414
      %v519 = vunpack.c.l.b16 %v415
      %v520 = vunpack.c.h.b16 %v415
      %v521 = vunpack.c.l.b16 %v416
      %v522 = vunpack.c.l.b16 %v417
      %v523 = vunpack.c.h.b16 %v417
      %v524 = vunpack.c.l.b16 %v418
      %v525 = vunpack.c.l.b16 %v419
      %v526 = vunpack.c.h.b16 %v419
      %v527 = vunpack.c.l.b16 %v420
      %v528 = vunpack.c.l.b16 %v421
      %v529 = vunpack.c.h.b16 %v421
      %v530 = vunpack.c.l.b16 %v422
      %v531 = vunpack.c.l.b16 %v423
      %v532 = vunpack.c.h.b16 %v423
      %v533 = vunpack.c.l.b16 %v424
      %v534 = vunpack.c.l.b16 %v425
      %v535 = vunpack.c.h.b16 %v425
      %v536 = vunpack.c.l.b16 %v426
      %v537 = vunpack.c.l.b16 %v427
      %v538 = vunpack.c.h.b16 %v427
      %v539 = vunpack.c.l.b16 %v428
      %v540 = vunpack.c.l.b16 %v429
      %v541 = vunpack.c.h.b16 %v429
      %v542 = vunpack.c.l.b16 %v430
      %v543 = vunpack.c.l.b16 %v431
      %v544 = vunpack.c.h.b16 %v431
      %v545 = vunpack.c.l.b16 %v432
      %v546 = vunpack.c.l.b16 %v433
      %v547 = vunpack.c.h.b16 %v433
      %v548 = vunpack.c.l.b16 %v434
      %v549 = vunpack.c.l.b16 %v435
      %v550 = vunpack.c.h.b16 %v435
      %v551 = vunpack.c.l.b16 %v436
      %v552 = vunpack.c.l.b16 %v437
      %v553 = vunpack.c.h.b16 %v437
      %v554 = vunpack.c.l.b16 %v438
      %v555 = vunpack.c.l.b16 %v439
      %v556 = vunpack.c.h.b16 %v439
      %v557 = vunpack.c.l.b16 %v440
      %v558 = vunpack.c.l.b16 %v441
      %v559 = vunpack.c.h.b16 %v441
      %v560 = vunpack.c.l.b16 %v442
      %v561 = vpack.c.b16 %v510, %v507
      %v562 = vpack.c.b16 %v511, %v508
      %v563 = vpack.c.b16 %v512, %v509
      %v564 = vpack.c.b16 %v516, %v513
      %v565 = vpack.c.b16 %v517, %v514
      %v566 = vpack.c.b16 %v518, %v515
      %v567 = vpack.c.b16 %v522, %v519
      %v568 = vpack.c.b16 %v523, %v520
      %v569 = vpack.c.b16 %v524, %v521
      %v570 = vpack.c.b16 %v528, %v525
      %v571 = vpack.c.b16 %v529, %v526
      %v572 = vpack.c.b16 %v530, %v527
      %v573 = vpack.c.b16 %v534, %v531
      %v574 = vpack.c.b16 %v535, %v532
      %v575 = vpack.c.b16 %v536, %v533
      %v576 = vpack.c.b16 %v540, %v537
      %v577 = vpack.c.b16 %v541, %v538
      %v578 = vpack.c.b16 %v542, %v539
      %v579 = vpack.c.b16 %v546, %v543
      %v580 = vpack.c.b16 %v547, %v544
      %v581 = vpack.c.b16 %v548, %v545
      %v582 = vpack.c.b16 %v552, %v549
      %v583 = vpack.c.b16 %v553, %v550
      %v584 = vpack.c.b16 %v554, %v551
      %v585 = vpack.c.b16 %v558, %v555
      %v586 = vpack.c.b16 %v559, %v556
      %v587 = vpack.c.b16 %v560, %v557
      %vm615 = vcmask 130048
      %v617 = vsel %vm615, %v460, 0
      %v620 = vsel %vm615, %v462, 0
      %v623 = vsel %vm615, %v464, 0
      %v626 = vsel %vm615, %v466, 0
      %628 = vmatprep.subr.bf16.mxu0 %v583
      %629 = vmatpush1.bf16.msra.mxu0 %v582
      %630 = vmatprep.subr.bf16.mxu0 %v580
      %631 = vmatpush1.bf16.msra.mxu0 %v579
      %632 = vmatprep.subr.bf16.mxu0 %v577
      %633 = vmatpush1.bf16.msra.mxu0 %v576
      %634 = vmatprep.subr.bf16.mxu0 %v574
      %635 = vmatpush1.bf16.msra.mxu0 %v573
      %636 = vmatprep.subr.bf16.mxu0 %v571
      %637 = vmatpush1.bf16.msra.mxu0 %v570
      %638 = vmatprep.subr.bf16.mxu0 %v568
      %639 = vmatpush1.bf16.msra.mxu0 %v567
      %640 = vmatprep.subr.bf16.mxu0 %v565
      %641 = vmatpush1.bf16.msra.mxu0 %v564
      %642 = vmatprep.subr.bf16.mxu0 %v562
      %643 = vmatpush1.bf16.msra.mxu0 %v561
      %644 = vmatprep.subr.bf16.mxu0 0
      %645 = vmatpush2.bf16.msra.mxu0 0
      %646 = vmatprep.subr.bf16.mxu0 0
      %647 = vmatpush2.bf16.msra.mxu0 0
      %648 = vmatprep.subr.bf16.mxu0 0
      %649 = vmatpush2.bf16.msra.mxu0 0
      %650 = vmatprep.subr.bf16.mxu0 0
      %651 = vmatpush2.bf16.msra.mxu0 0
      %652 = vmatprep.subr.bf16.mxu0 0
      %653 = vmatpush2.bf16.msra.mxu0 0
      %654 = vmatprep.subr.bf16.mxu0 0
      %655 = vmatpush2.bf16.msra.mxu0 0
      %656 = vmatprep.subr.bf16.mxu0 0
      %657 = vmatpush2.bf16.msra.mxu0 0
      %658 = vmatprep.subr.bf16.mxu0 %v586
      %659 = vmatpush2.bf16.msra.mxu0 %v585
      %660 = vmatprep.mubr.bf16.mxu0 %v617
      %661 = vmatmul.mubr.bf16.gmra.mxu0 %v459
      %v662 = vpop.f32.mrf.mxu0
      %v663 = vadd.f32 0.0, %v662
      %v664 = vpop.f32.mrf.mxu0
      %v665 = vadd.f32 0.0, %v664
      %v666 = vpop.f32.mrf.mxu0
      %v667 = vadd.f32 0.0, %v666
      %v668 = vpop.f32.mrf.mxu0
      %v669 = vadd.f32 0.0, %v668
      %670 = vmatprep.mubr.bf16.mxu0 %v620
      %671 = vmatmul.mubr.bf16.gmra.mxu0 %v461
      %v672 = vpop.f32.mrf.mxu0
      %v673 = vadd.f32 0.0, %v672
      %v674 = vpop.f32.mrf.mxu0
      %v675 = vadd.f32 0.0, %v674
      %v676 = vpop.f32.mrf.mxu0
      %v677 = vadd.f32 0.0, %v676
      %v678 = vpop.f32.mrf.mxu0
      %v679 = vadd.f32 0.0, %v678
      %680 = vmatprep.mubr.bf16.mxu0 %v623
      %681 = vmatmul.mubr.bf16.gmra.mxu0 %v463
      %v682 = vpop.f32.mrf.mxu0
      %v683 = vadd.f32 0.0, %v682
      %v684 = vpop.f32.mrf.mxu0
      %v685 = vadd.f32 0.0, %v684
      %v686 = vpop.f32.mrf.mxu0
      %v687 = vadd.f32 0.0, %v686
      %v688 = vpop.f32.mrf.mxu0
      %v689 = vadd.f32 0.0, %v688
      %690 = vmatprep.mubr.bf16.mxu0 %v626
      %691 = vmatmul.mubr.bf16.gmra.mxu0 %v465
      %v692 = vpop.f32.mrf.mxu0
      %v693 = vadd.f32 0.0, %v692
      %v694 = vpop.f32.mrf.mxu0
      %v695 = vadd.f32 0.0, %v694
      %v696 = vpop.f32.mrf.mxu0
      %v697 = vadd.f32 0.0, %v696
      %v698 = vpop.f32.mrf.mxu0
      %v699 = vadd.f32 0.0, %v698
      %700 = vdwg.mxu0
      %701 = vmatprep.subr.bf16.mxu0 0
      %702 = vmatpush1.bf16.msra.mxu0 %v584
      %703 = vmatprep.subr.bf16.mxu0 0
      %704 = vmatpush1.bf16.msra.mxu0 %v581
      %705 = vmatprep.subr.bf16.mxu0 0
      %706 = vmatpush1.bf16.msra.mxu0 %v578
      %707 = vmatprep.subr.bf16.mxu0 0
      %708 = vmatpush1.bf16.msra.mxu0 %v575
      %709 = vmatprep.subr.bf16.mxu0 0
      %710 = vmatpush1.bf16.msra.mxu0 %v572
      %711 = vmatprep.subr.bf16.mxu0 0
      %712 = vmatpush1.bf16.msra.mxu0 %v569
      %713 = vmatprep.subr.bf16.mxu0 0
      %714 = vmatpush1.bf16.msra.mxu0 %v566
      %715 = vmatprep.subr.bf16.mxu0 0
      %716 = vmatpush1.bf16.msra.mxu0 %v563
      %717 = vmatprep.subr.bf16.mxu0 0
      %718 = vmatpush2.bf16.msra.mxu0 0
      %719 = vmatprep.subr.bf16.mxu0 0
      %720 = vmatpush2.bf16.msra.mxu0 0
      %721 = vmatprep.subr.bf16.mxu0 0
      %722 = vmatpush2.bf16.msra.mxu0 0
      %723 = vmatprep.subr.bf16.mxu0 0
      %724 = vmatpush2.bf16.msra.mxu0 0
      %725 = vmatprep.subr.bf16.mxu0 0
      %726 = vmatpush2.bf16.msra.mxu0 0
      %727 = vmatprep.subr.bf16.mxu0 0
      %728 = vmatpush2.bf16.msra.mxu0 0
      %729 = vmatprep.subr.bf16.mxu0 0
      %730 = vmatpush2.bf16.msra.mxu0 0
      %731 = vmatprep.subr.bf16.mxu0 0
      %732 = vmatpush2.bf16.msra.mxu0 %v587
      %733 = vmatprep.mubr.bf16.mxu0 %v617
      %734 = vmatmul.mubr.bf16.gmra.mxu0 %v459
      %v735 = vpop.f32.mrf.mxu0
      %v736 = vadd.f32 0.0, %v735
      %v737 = vpop.f32.mrf.mxu0
      %v738 = vpop.f32.mrf.mxu0
      %v739 = vadd.f32 0.0, %v738
      %v740 = vpop.f32.mrf.mxu0
      %741 = vmatprep.mubr.bf16.mxu0 %v620
      %742 = vmatmul.mubr.bf16.gmra.mxu0 %v461
      %v743 = vpop.f32.mrf.mxu0
      %v744 = vadd.f32 0.0, %v743
      %v745 = vpop.f32.mrf.mxu0
      %v746 = vpop.f32.mrf.mxu0
      %v747 = vadd.f32 0.0, %v746
      %v748 = vpop.f32.mrf.mxu0
      %749 = vmatprep.mubr.bf16.mxu0 %v623
      %750 = vmatmul.mubr.bf16.gmra.mxu0 %v463
      %v751 = vpop.f32.mrf.mxu0
      %v752 = vadd.f32 0.0, %v751
      %v753 = vpop.f32.mrf.mxu0
      %v754 = vpop.f32.mrf.mxu0
      %v755 = vadd.f32 0.0, %v754
      %v756 = vpop.f32.mrf.mxu0
      %757 = vmatprep.mubr.bf16.mxu0 %v626
      %758 = vmatmul.mubr.bf16.gmra.mxu0 %v465
      %v759 = vpop.f32.mrf.mxu0
      %v760 = vadd.f32 0.0, %v759
      %v761 = vpop.f32.mrf.mxu0
      %v762 = vpop.f32.mrf.mxu0
      %v763 = vadd.f32 0.0, %v762
      %v764 = vpop.f32.mrf.mxu0
      %765 = vdwg.mxu0
      %v774 = vunpack.c.l.b16 %v235
      %v775 = vunpack.c.h.b16 %v235
      %v776 = vunpack.c.l.b16 %v237
      %v777 = vunpack.c.h.b16 %v237
      %v778 = vunpack.c.l.b16 %v239
      %v779 = vunpack.c.h.b16 %v239
      %v780 = vunpack.c.l.b16 %v241
      %v781 = vunpack.c.h.b16 %v241
      %v782 = vunpack.c.l.b16 %v243
      %v783 = vunpack.c.h.b16 %v243
      %v784 = vunpack.c.l.b16 %v245
      %v785 = vunpack.c.h.b16 %v245
      %v786 = vunpack.c.l.b16 %v247
      %v787 = vunpack.c.h.b16 %v247
      %v788 = vunpack.c.l.b16 %v249
      %v789 = vunpack.c.h.b16 %v249
      %v790 = vpack.c.b16 %v776, %v774
      %v791 = vpack.c.b16 %v777, %v775
      %v792 = vpack.c.b16 %v780, %v778
      %v793 = vpack.c.b16 %v781, %v779
      %v794 = vpack.c.b16 %v784, %v782
      %v795 = vpack.c.b16 %v785, %v783
      %v796 = vpack.c.b16 %v788, %v786
      %v797 = vpack.c.b16 %v789, %v787
      %v838 = vunpack.c.l.b16 %v255
      %v839 = vunpack.c.h.b16 %v255
      %v840 = vunpack.c.l.b16 %v256
      %v841 = vunpack.c.l.b16 %v257
      %v842 = vunpack.c.h.b16 %v257
      %v843 = vunpack.c.l.b16 %v258
      %v844 = vunpack.c.l.b16 %v259
      %v845 = vunpack.c.h.b16 %v259
      %v846 = vunpack.c.l.b16 %v260
      %v847 = vunpack.c.l.b16 %v261
      %v848 = vunpack.c.h.b16 %v261
      %v849 = vunpack.c.l.b16 %v262
      %v850 = vunpack.c.l.b16 %v263
      %v851 = vunpack.c.h.b16 %v263
      %v852 = vunpack.c.l.b16 %v264
      %v853 = vunpack.c.l.b16 %v265
      %v854 = vunpack.c.h.b16 %v265
      %v855 = vunpack.c.l.b16 %v266
      %v856 = vunpack.c.l.b16 %v267
      %v857 = vunpack.c.h.b16 %v267
      %v858 = vunpack.c.l.b16 %v268
      %v859 = vunpack.c.l.b16 %v269
      %v860 = vunpack.c.h.b16 %v269
      %v861 = vunpack.c.l.b16 %v270
      %v862 = vunpack.c.l.b16 %v271
      %v863 = vunpack.c.h.b16 %v271
      %v864 = vunpack.c.l.b16 %v272
      %v865 = vunpack.c.l.b16 %v273
      %v866 = vunpack.c.h.b16 %v273
      %v867 = vunpack.c.l.b16 %v274
      %v868 = vunpack.c.l.b16 %v275
      %v869 = vunpack.c.h.b16 %v275
      %v870 = vunpack.c.l.b16 %v276
      %v871 = vunpack.c.l.b16 %v277
      %v872 = vunpack.c.h.b16 %v277
      %v873 = vunpack.c.l.b16 %v278
      %v874 = vunpack.c.l.b16 %v279
      %v875 = vunpack.c.h.b16 %v279
      %v876 = vunpack.c.l.b16 %v280
      %v877 = vunpack.c.l.b16 %v281
      %v878 = vunpack.c.h.b16 %v281
      %v879 = vunpack.c.l.b16 %v282
      %v880 = vunpack.c.l.b16 %v283
      %v881 = vunpack.c.h.b16 %v283
      %v882 = vunpack.c.l.b16 %v284
      %v883 = vunpack.c.l.b16 %v285
      %v884 = vunpack.c.h.b16 %v285
      %v885 = vunpack.c.l.b16 %v286
      %v886 = vunpack.c.l.b16 %v287
      %v887 = vunpack.c.h.b16 %v287
      %v888 = vunpack.c.l.b16 %v288
      %v889 = vunpack.c.l.b16 %v289
      %v890 = vunpack.c.h.b16 %v289
      %v891 = vunpack.c.l.b16 %v290
      %v892 = vpack.c.b16 %v841, %v838
      %v893 = vpack.c.b16 %v842, %v839
      %v894 = vpack.c.b16 %v843, %v840
      %v895 = vpack.c.b16 %v847, %v844
      %v896 = vpack.c.b16 %v848, %v845
      %v897 = vpack.c.b16 %v849, %v846
      %v898 = vpack.c.b16 %v853, %v850
      %v899 = vpack.c.b16 %v854, %v851
      %v900 = vpack.c.b16 %v855, %v852
      %v901 = vpack.c.b16 %v859, %v856
      %v902 = vpack.c.b16 %v860, %v857
      %v903 = vpack.c.b16 %v861, %v858
      %v904 = vpack.c.b16 %v865, %v862
      %v905 = vpack.c.b16 %v866, %v863
      %v906 = vpack.c.b16 %v867, %v864
      %v907 = vpack.c.b16 %v871, %v868
      %v908 = vpack.c.b16 %v872, %v869
      %v909 = vpack.c.b16 %v873, %v870
      %v910 = vpack.c.b16 %v877, %v874
      %v911 = vpack.c.b16 %v878, %v875
      %v912 = vpack.c.b16 %v879, %v876
      %v913 = vpack.c.b16 %v883, %v880
      %v914 = vpack.c.b16 %v884, %v881
      %v915 = vpack.c.b16 %v885, %v882
      %v916 = vpack.c.b16 %v889, %v886
      %v917 = vpack.c.b16 %v890, %v887
      %v918 = vpack.c.b16 %v891, %v888
      %v947 = vsel %vm615, %v791, 0
      %v950 = vsel %vm615, %v793, 0
      %v953 = vsel %vm615, %v795, 0
      %v956 = vsel %vm615, %v797, 0
      %958 = vmatprep.subr.bf16.mxu0 %v914
      %959 = vmatpush1.bf16.msra.mxu0 %v913
      %960 = vmatprep.subr.bf16.mxu0 %v911
      %961 = vmatpush1.bf16.msra.mxu0 %v910
      %962 = vmatprep.subr.bf16.mxu0 %v908
      %963 = vmatpush1.bf16.msra.mxu0 %v907
      %964 = vmatprep.subr.bf16.mxu0 %v905
      %965 = vmatpush1.bf16.msra.mxu0 %v904
      %966 = vmatprep.subr.bf16.mxu0 %v902
      %967 = vmatpush1.bf16.msra.mxu0 %v901
      %968 = vmatprep.subr.bf16.mxu0 %v899
      %969 = vmatpush1.bf16.msra.mxu0 %v898
      %970 = vmatprep.subr.bf16.mxu0 %v896
      %971 = vmatpush1.bf16.msra.mxu0 %v895
      %972 = vmatprep.subr.bf16.mxu0 %v893
      %973 = vmatpush1.bf16.msra.mxu0 %v892
      %974 = vmatprep.subr.bf16.mxu0 0
      %975 = vmatpush2.bf16.msra.mxu0 0
      %976 = vmatprep.subr.bf16.mxu0 0
      %977 = vmatpush2.bf16.msra.mxu0 0
      %978 = vmatprep.subr.bf16.mxu0 0
      %979 = vmatpush2.bf16.msra.mxu0 0
      %980 = vmatprep.subr.bf16.mxu0 0
      %981 = vmatpush2.bf16.msra.mxu0 0
      %982 = vmatprep.subr.bf16.mxu0 0
      %983 = vmatpush2.bf16.msra.mxu0 0
      %984 = vmatprep.subr.bf16.mxu0 0
      %985 = vmatpush2.bf16.msra.mxu0 0
      %986 = vmatprep.subr.bf16.mxu0 0
      %987 = vmatpush2.bf16.msra.mxu0 0
      %988 = vmatprep.subr.bf16.mxu0 %v917
      %989 = vmatpush2.bf16.msra.mxu0 %v916
      %990 = vmatprep.mubr.bf16.mxu0 %v947
      %991 = vmatmul.mubr.bf16.gmra.mxu0 %v790
      %v992 = vpop.f32.mrf.mxu0
      %v993 = vadd.f32 %v663, %v992
      %v994 = vpop.f32.mrf.mxu0
      %v995 = vadd.f32 %v665, %v994
      %v996 = vpop.f32.mrf.mxu0
      %v997 = vadd.f32 %v667, %v996
      %v998 = vpop.f32.mrf.mxu0
      %v999 = vadd.f32 %v669, %v998
      %1000 = vmatprep.mubr.bf16.mxu0 %v950
      %1001 = vmatmul.mubr.bf16.gmra.mxu0 %v792
      %v1002 = vpop.f32.mrf.mxu0
      %v1003 = vadd.f32 %v673, %v1002
      %v1004 = vpop.f32.mrf.mxu0
      %v1005 = vadd.f32 %v675, %v1004
      %v1006 = vpop.f32.mrf.mxu0
      %v1007 = vadd.f32 %v677, %v1006
      %v1008 = vpop.f32.mrf.mxu0
      %v1009 = vadd.f32 %v679, %v1008
      %1010 = vmatprep.mubr.bf16.mxu0 %v953
      %1011 = vmatmul.mubr.bf16.gmra.mxu0 %v794
      %v1012 = vpop.f32.mrf.mxu0
      %v1013 = vadd.f32 %v683, %v1012
      %v1014 = vpop.f32.mrf.mxu0
      %v1015 = vadd.f32 %v685, %v1014
      %v1016 = vpop.f32.mrf.mxu0
      %v1017 = vadd.f32 %v687, %v1016
      %v1018 = vpop.f32.mrf.mxu0
      %v1019 = vadd.f32 %v689, %v1018
      %1020 = vmatprep.mubr.bf16.mxu0 %v956
      %1021 = vmatmul.mubr.bf16.gmra.mxu0 %v796
      %v1022 = vpop.f32.mrf.mxu0
      %v1023 = vadd.f32 %v693, %v1022
      %v1024 = vpop.f32.mrf.mxu0
      %v1025 = vadd.f32 %v695, %v1024
      %v1026 = vpop.f32.mrf.mxu0
      %v1027 = vadd.f32 %v697, %v1026
      %v1028 = vpop.f32.mrf.mxu0
      %v1029 = vadd.f32 %v699, %v1028
      %1030 = vdwg.mxu0
      %1031 = vmatprep.subr.bf16.mxu0 0
      %1032 = vmatpush1.bf16.msra.mxu0 %v915
      %1033 = vmatprep.subr.bf16.mxu0 0
      %1034 = vmatpush1.bf16.msra.mxu0 %v912
      %1035 = vmatprep.subr.bf16.mxu0 0
      %1036 = vmatpush1.bf16.msra.mxu0 %v909
      %1037 = vmatprep.subr.bf16.mxu0 0
      %1038 = vmatpush1.bf16.msra.mxu0 %v906
      %1039 = vmatprep.subr.bf16.mxu0 0
      %1040 = vmatpush1.bf16.msra.mxu0 %v903
      %1041 = vmatprep.subr.bf16.mxu0 0
      %1042 = vmatpush1.bf16.msra.mxu0 %v900
      %1043 = vmatprep.subr.bf16.mxu0 0
      %1044 = vmatpush1.bf16.msra.mxu0 %v897
      %1045 = vmatprep.subr.bf16.mxu0 0
      %1046 = vmatpush1.bf16.msra.mxu0 %v894
      %1047 = vmatprep.subr.bf16.mxu0 0
      %1048 = vmatpush2.bf16.msra.mxu0 0
      %1049 = vmatprep.subr.bf16.mxu0 0
      %1050 = vmatpush2.bf16.msra.mxu0 0
      %1051 = vmatprep.subr.bf16.mxu0 0
      %1052 = vmatpush2.bf16.msra.mxu0 0
      %1053 = vmatprep.subr.bf16.mxu0 0
      %1054 = vmatpush2.bf16.msra.mxu0 0
      %1055 = vmatprep.subr.bf16.mxu0 0
      %1056 = vmatpush2.bf16.msra.mxu0 0
      %1057 = vmatprep.subr.bf16.mxu0 0
      %1058 = vmatpush2.bf16.msra.mxu0 0
      %1059 = vmatprep.subr.bf16.mxu0 0
      %1060 = vmatpush2.bf16.msra.mxu0 0
      %1061 = vmatprep.subr.bf16.mxu0 0
      %1062 = vmatpush2.bf16.msra.mxu0 %v918
      %1063 = vmatprep.mubr.bf16.mxu0 %v947
      %1064 = vmatmul.mubr.bf16.gmra.mxu0 %v790
      %v1065 = vpop.f32.mrf.mxu0
      %v1066 = vadd.f32 %v736, %v1065
      %v1067 = vpop.f32.mrf.mxu0
      %v1068 = vpop.f32.mrf.mxu0
      %v1069 = vadd.f32 %v739, %v1068
      %v1070 = vpop.f32.mrf.mxu0
      %1071 = vmatprep.mubr.bf16.mxu0 %v950
      %1072 = vmatmul.mubr.bf16.gmra.mxu0 %v792
      %v1073 = vpop.f32.mrf.mxu0
      %v1074 = vadd.f32 %v744, %v1073
      %v1075 = vpop.f32.mrf.mxu0
      %v1076 = vpop.f32.mrf.mxu0
      %v1077 = vadd.f32 %v747, %v1076
      %v1078 = vpop.f32.mrf.mxu0
      %1079 = vmatprep.mubr.bf16.mxu0 %v953
      %1080 = vmatmul.mubr.bf16.gmra.mxu0 %v794
      %v1081 = vpop.f32.mrf.mxu0
      %v1082 = vadd.f32 %v752, %v1081
      %v1083 = vpop.f32.mrf.mxu0
      %v1084 = vpop.f32.mrf.mxu0
      %v1085 = vadd.f32 %v755, %v1084
      %v1086 = vpop.f32.mrf.mxu0
      %1087 = vmatprep.mubr.bf16.mxu0 %v956
      %1088 = vmatmul.mubr.bf16.gmra.mxu0 %v796
      %v1089 = vpop.f32.mrf.mxu0
      %v1090 = vadd.f32 %v760, %v1089
      %v1091 = vpop.f32.mrf.mxu0
      %v1092 = vpop.f32.mrf.mxu0
      %v1093 = vadd.f32 %v763, %v1092
      %v1094 = vpop.f32.mrf.mxu0
      %1095 = vdwg.mxu0
      %vm1104 = vcmask 1042432
      %vm1105 = vcmask 1046532
      %vm1106 = vmor %vm1104, %vm1105
      %v1107 = vrot.slane %v235, 5
      %v1108 = vrot.slane %v1107, 4
      %v1109 = vrot.slane %v236, 5
      %v1110 = vsel %vm1106, %v1108, %v1109
      %v1111 = vrot.slane %v237, 5
      %v1112 = vrot.slane %v1111, 4
      %v1113 = vrot.slane %v238, 5
      %v1114 = vsel %vm1106, %v1112, %v1113
      %v1115 = vrot.slane %v239, 5
      %v1116 = vrot.slane %v1115, 4
      %v1117 = vrot.slane %v240, 5
      %v1118 = vsel %vm1106, %v1116, %v1117
      %v1119 = vrot.slane %v241, 5
      %v1120 = vrot.slane %v1119, 4
      %v1121 = vrot.slane %v242, 5
      %v1122 = vsel %vm1106, %v1120, %v1121
      %v1123 = vrot.slane %v243, 5
      %v1124 = vrot.slane %v1123, 4
      %v1125 = vrot.slane %v244, 5
      %v1126 = vsel %vm1106, %v1124, %v1125
      %v1127 = vrot.slane %v245, 5
      %v1128 = vrot.slane %v1127, 4
      %v1129 = vrot.slane %v246, 5
      %v1130 = vsel %vm1106, %v1128, %v1129
      %v1131 = vrot.slane %v247, 5
      %v1132 = vrot.slane %v1131, 4
      %v1133 = vrot.slane %v248, 5
      %v1134 = vsel %vm1106, %v1132, %v1133
      %v1135 = vrot.slane %v249, 5
      %v1136 = vrot.slane %v1135, 4
      %v1137 = vrot.slane %v250, 5
      %v1138 = vsel %vm1106, %v1136, %v1137
      %s1139 = scalar_lea.vmem %s1, 432
      %v1140 = vld [vmem:[%s1139] sm:$0xff]
      %v1141 = vld [vmem:[%s1139 + $0x8] sm:$0xf]
      %v1142 = vld [vmem:[%s1139 + $0xc] sm:$0xff]
      %v1143 = vld [vmem:[%s1139 + $0x14] sm:$0xf]
      %v1144 = vld [vmem:[%s1139 + $0x18] sm:$0xff]
      %v1145 = vld [vmem:[%s1139 + $0x20] sm:$0xf]
      %v1146 = vld [vmem:[%s1139 + $0x24] sm:$0xff]
      %v1147 = vld [vmem:[%s1139 + $0x2c] sm:$0xf]
      %v1148 = vld [vmem:[%s1139 + $0x30] sm:$0xff]
      %v1149 = vld [vmem:[%s1139 + $0x38] sm:$0xf]
      %v1150 = vld [vmem:[%s1139 + $0x3c] sm:$0xff]
      %v1151 = vld [vmem:[%s1139 + $0x44] sm:$0xf]
      %v1152 = vld [vmem:[%s1139 + $0x48] sm:$0xff]
      %v1153 = vld [vmem:[%s1139 + $0x50] sm:$0xf]
      %v1154 = vld [vmem:[%s1139 + $0x54] sm:$0xff]
      %v1155 = vld [vmem:[%s1139 + $0x5c] sm:$0xf]
      %v1156 = vld [vmem:[%s1139 + $0x60] sm:$0xff]
      %v1157 = vld [vmem:[%s1139 + $0x68] sm:$0xf]
      %v1158 = vld [vmem:[%s1139 + $0x6c] sm:$0xff]
      %v1159 = vld [vmem:[%s1139 + $0x74] sm:$0xf]
      %v1160 = vld [vmem:[%s1139 + $0x78] sm:$0xff]
      %v1161 = vld [vmem:[%s1139 + $0x80] sm:$0xf]
      %v1162 = vld [vmem:[%s1139 + $0x84] sm:$0xff]
      %v1163 = vld [vmem:[%s1139 + $0x8c] sm:$0xf]
      %v1164 = vld [vmem:[%s1139 + $0x90] sm:$0xff]
      %v1165 = vld [vmem:[%s1139 + $0x98] sm:$0xf]
      %v1166 = vld [vmem:[%s1139 + $0x9c] sm:$0xff]
      %v1167 = vld [vmem:[%s1139 + $0xa4] sm:$0xf]
      %v1168 = vld [vmem:[%s1139 + $0xa8] sm:$0xff]
      %v1169 = vld [vmem:[%s1139 + $0xb0] sm:$0xf]
      %v1170 = vld [vmem:[%s1139 + $0xb4] sm:$0xff]
      %v1171 = vld [vmem:[%s1139 + $0xbc] sm:$0xf]
      %v1172 = vld [vmem:[%s1139 + $0xc0] sm:$0xff]
      %v1173 = vld [vmem:[%s1139 + $0xc8] sm:$0xf]
      %v1174 = vld [vmem:[%s1139 + $0xcc] sm:$0xff]
      %v1175 = vld [vmem:[%s1139 + $0xd4] sm:$0xf]
      %v1176 = vunpack.c.l.b16 %v1110
      %v1177 = vunpack.c.h.b16 %v1110
      %v1178 = vunpack.c.l.b16 %v1114
      %v1179 = vunpack.c.h.b16 %v1114
      %v1180 = vunpack.c.l.b16 %v1118
      %v1181 = vunpack.c.h.b16 %v1118
      %v1182 = vunpack.c.l.b16 %v1122
      %v1183 = vunpack.c.h.b16 %v1122
      %v1184 = vunpack.c.l.b16 %v1126
      %v1185 = vunpack.c.h.b16 %v1126
      %v1186 = vunpack.c.l.b16 %v1130
      %v1187 = vunpack.c.h.b16 %v1130
      %v1188 = vunpack.c.l.b16 %v1134
      %v1189 = vunpack.c.h.b16 %v1134
      %v1190 = vunpack.c.l.b16 %v1138
      %v1191 = vunpack.c.h.b16 %v1138
      %v1192 = vpack.c.b16 %v1178, %v1176
      %v1193 = vpack.c.b16 %v1179, %v1177
      %v1194 = vpack.c.b16 %v1182, %v1180
      %v1195 = vpack.c.b16 %v1183, %v1181
      %v1196 = vpack.c.b16 %v1186, %v1184
      %v1197 = vpack.c.b16 %v1187, %v1185
      %v1198 = vpack.c.b16 %v1190, %v1188
      %v1199 = vpack.c.b16 %v1191, %v1189
      %v1240 = vunpack.c.l.b16 %v1140
      %v1241 = vunpack.c.h.b16 %v1140
      %v1242 = vunpack.c.l.b16 %v1141
      %v1243 = vunpack.c.l.b16 %v1142
      %v1244 = vunpack.c.h.b16 %v1142
      %v1245 = vunpack.c.l.b16 %v1143
      %v1246 = vunpack.c.l.b16 %v1144
      %v1247 = vunpack.c.h.b16 %v1144
      %v1248 = vunpack.c.l.b16 %v1145
      %v1249 = vunpack.c.l.b16 %v1146
      %v1250 = vunpack.c.h.b16 %v1146
      %v1251 = vunpack.c.l.b16 %v1147
      %v1252 = vunpack.c.l.b16 %v1148
      %v1253 = vunpack.c.h.b16 %v1148
      %v1254 = vunpack.c.l.b16 %v1149
      %v1255 = vunpack.c.l.b16 %v1150
      %v1256 = vunpack.c.h.b16 %v1150
      %v1257 = vunpack.c.l.b16 %v1151
      %v1258 = vunpack.c.l.b16 %v1152
      %v1259 = vunpack.c.h.b16 %v1152
      %v1260 = vunpack.c.l.b16 %v1153
      %v1261 = vunpack.c.l.b16 %v1154
      %v1262 = vunpack.c.h.b16 %v1154
      %v1263 = vunpack.c.l.b16 %v1155
      %v1264 = vunpack.c.l.b16 %v1156
      %v1265 = vunpack.c.h.b16 %v1156
      %v1266 = vunpack.c.l.b16 %v1157
      %v1267 = vunpack.c.l.b16 %v1158
      %v1268 = vunpack.c.h.b16 %v1158
      %v1269 = vunpack.c.l.b16 %v1159
      %v1270 = vunpack.c.l.b16 %v1160
      %v1271 = vunpack.c.h.b16 %v1160
      %v1272 = vunpack.c.l.b16 %v1161
      %v1273 = vunpack.c.l.b16 %v1162
      %v1274 = vunpack.c.h.b16 %v1162
      %v1275 = vunpack.c.l.b16 %v1163
      %v1276 = vunpack.c.l.b16 %v1164
      %v1277 = vunpack.c.h.b16 %v1164
      %v1278 = vunpack.c.l.b16 %v1165
      %v1279 = vunpack.c.l.b16 %v1166
      %v1280 = vunpack.c.h.b16 %v1166
      %v1281 = vunpack.c.l.b16 %v1167
      %v1282 = vunpack.c.l.b16 %v1168
      %v1283 = vunpack.c.h.b16 %v1168
      %v1284 = vunpack.c.l.b16 %v1169
      %v1285 = vunpack.c.l.b16 %v1170
      %v1286 = vunpack.c.h.b16 %v1170
      %v1287 = vunpack.c.l.b16 %v1171
      %v1288 = vunpack.c.l.b16 %v1172
      %v1289 = vunpack.c.h.b16 %v1172
      %v1290 = vunpack.c.l.b16 %v1173
      %v1291 = vunpack.c.l.b16 %v1174
      %v1292 = vunpack.c.h.b16 %v1174
      %v1293 = vunpack.c.l.b16 %v1175
      %v1294 = vpack.c.b16 %v1243, %v1240
      %v1295 = vpack.c.b16 %v1244, %v1241
      %v1296 = vpack.c.b16 %v1245, %v1242
      %v1297 = vpack.c.b16 %v1249, %v1246
      %v1298 = vpack.c.b16 %v1250, %v1247
      %v1299 = vpack.c.b16 %v1251, %v1248
      %v1300 = vpack.c.b16 %v1255, %v1252
      %v1301 = vpack.c.b16 %v1256, %v1253
      %v1302 = vpack.c.b16 %v1257, %v1254
      %v1303 = vpack.c.b16 %v1261, %v1258
      %v1304 = vpack.c.b16 %v1262, %v1259
      %v1305 = vpack.c.b16 %v1263, %v1260
      %v1306 = vpack.c.b16 %v1267, %v1264
      %v1307 = vpack.c.b16 %v1268, %v1265
      %v1308 = vpack.c.b16 %v1269, %v1266
      %v1309 = vpack.c.b16 %v1273, %v1270
      %v1310 = vpack.c.b16 %v1274, %v1271
      %v1311 = vpack.c.b16 %v1275, %v1272
      %v1312 = vpack.c.b16 %v1279, %v1276
      %v1313 = vpack.c.b16 %v1280, %v1277
      %v1314 = vpack.c.b16 %v1281, %v1278
      %v1315 = vpack.c.b16 %v1285, %v1282
      %v1316 = vpack.c.b16 %v1286, %v1283
      %v1317 = vpack.c.b16 %v1287, %v1284
      %v1318 = vpack.c.b16 %v1291, %v1288
      %v1319 = vpack.c.b16 %v1292, %v1289
      %v1320 = vpack.c.b16 %v1293, %v1290
      %v1349 = vsel %vm615, %v1193, 0
      %v1352 = vsel %vm615, %v1195, 0
      %v1355 = vsel %vm615, %v1197, 0
      %v1358 = vsel %vm615, %v1199, 0
      %1360 = vmatprep.subr.bf16.mxu0 %v1316
      %1361 = vmatpush1.bf16.msra.mxu0 %v1315
      %1362 = vmatprep.subr.bf16.mxu0 %v1313
      %1363 = vmatpush1.bf16.msra.mxu0 %v1312
      %1364 = vmatprep.subr.bf16.mxu0 %v1310
      %1365 = vmatpush1.bf16.msra.mxu0 %v1309
      %1366 = vmatprep.subr.bf16.mxu0 %v1307
      %1367 = vmatpush1.bf16.msra.mxu0 %v1306
      %1368 = vmatprep.subr.bf16.mxu0 %v1304
      %1369 = vmatpush1.bf16.msra.mxu0 %v1303
      %1370 = vmatprep.subr.bf16.mxu0 %v1301
      %1371 = vmatpush1.bf16.msra.mxu0 %v1300
      %1372 = vmatprep.subr.bf16.mxu0 %v1298
      %1373 = vmatpush1.bf16.msra.mxu0 %v1297
      %1374 = vmatprep.subr.bf16.mxu0 %v1295
      %1375 = vmatpush1.bf16.msra.mxu0 %v1294
      %1376 = vmatprep.subr.bf16.mxu0 0
      %1377 = vmatpush2.bf16.msra.mxu0 0
      %1378 = vmatprep.subr.bf16.mxu0 0
      %1379 = vmatpush2.bf16.msra.mxu0 0
      %1380 = vmatprep.subr.bf16.mxu0 0
      %1381 = vmatpush2.bf16.msra.mxu0 0
      %1382 = vmatprep.subr.bf16.mxu0 0
      %1383 = vmatpush2.bf16.msra.mxu0 0
      %1384 = vmatprep.subr.bf16.mxu0 0
      %1385 = vmatpush2.bf16.msra.mxu0 0
      %1386 = vmatprep.subr.bf16.mxu0 0
      %1387 = vmatpush2.bf16.msra.mxu0 0
      %1388 = vmatprep.subr.bf16.mxu0 0
      %1389 = vmatpush2.bf16.msra.mxu0 0
      %1390 = vmatprep.subr.bf16.mxu0 %v1319
      %1391 = vmatpush2.bf16.msra.mxu0 %v1318
      %1392 = vmatprep.mubr.bf16.mxu0 %v1349
      %1393 = vmatmul.mubr.bf16.gmra.mxu0 %v1192
      %v1394 = vpop.f32.mrf.mxu0
      %v1395 = vadd.f32 0.0, %v1394
      %v1396 = vpop.f32.mrf.mxu0
      %v1397 = vadd.f32 0.0, %v1396
      %v1398 = vpop.f32.mrf.mxu0
      %v1399 = vadd.f32 0.0, %v1398
      %v1400 = vpop.f32.mrf.mxu0
      %v1401 = vadd.f32 0.0, %v1400
      %1402 = vmatprep.mubr.bf16.mxu0 %v1352
      %1403 = vmatmul.mubr.bf16.gmra.mxu0 %v1194
      %v1404 = vpop.f32.mrf.mxu0
      %v1405 = vadd.f32 0.0, %v1404
      %v1406 = vpop.f32.mrf.mxu0
      %v1407 = vadd.f32 0.0, %v1406
      %v1408 = vpop.f32.mrf.mxu0
      %v1409 = vadd.f32 0.0, %v1408
      %v1410 = vpop.f32.mrf.mxu0
      %v1411 = vadd.f32 0.0, %v1410
      %1412 = vmatprep.mubr.bf16.mxu0 %v1355
      %1413 = vmatmul.mubr.bf16.gmra.mxu0 %v1196
      %v1414 = vpop.f32.mrf.mxu0
      %v1415 = vadd.f32 0.0, %v1414
      %v1416 = vpop.f32.mrf.mxu0
      %v1417 = vadd.f32 0.0, %v1416
      %v1418 = vpop.f32.mrf.mxu0
      %v1419 = vadd.f32 0.0, %v1418
      %v1420 = vpop.f32.mrf.mxu0
      %v1421 = vadd.f32 0.0, %v1420
      %1422 = vmatprep.mubr.bf16.mxu0 %v1358
      %1423 = vmatmul.mubr.bf16.gmra.mxu0 %v1198
      %v1424 = vpop.f32.mrf.mxu0
      %v1425 = vadd.f32 0.0, %v1424
      %v1426 = vpop.f32.mrf.mxu0
      %v1427 = vadd.f32 0.0, %v1426
      %v1428 = vpop.f32.mrf.mxu0
      %v1429 = vadd.f32 0.0, %v1428
      %v1430 = vpop.f32.mrf.mxu0
      %v1431 = vadd.f32 0.0, %v1430
      %1432 = vdwg.mxu0
      %1433 = vmatprep.subr.bf16.mxu0 0
      %1434 = vmatpush1.bf16.msra.mxu0 %v1317
      %1435 = vmatprep.subr.bf16.mxu0 0
      %1436 = vmatpush1.bf16.msra.mxu0 %v1314
      %1437 = vmatprep.subr.bf16.mxu0 0
      %1438 = vmatpush1.bf16.msra.mxu0 %v1311
      %1439 = vmatprep.subr.bf16.mxu0 0
      %1440 = vmatpush1.bf16.msra.mxu0 %v1308
      %1441 = vmatprep.subr.bf16.mxu0 0
      %1442 = vmatpush1.bf16.msra.mxu0 %v1305
      %1443 = vmatprep.subr.bf16.mxu0 0
      %1444 = vmatpush1.bf16.msra.mxu0 %v1302
      %1445 = vmatprep.subr.bf16.mxu0 0
      %1446 = vmatpush1.bf16.msra.mxu0 %v1299
      %1447 = vmatprep.subr.bf16.mxu0 0
      %1448 = vmatpush1.bf16.msra.mxu0 %v1296
      %1449 = vmatprep.subr.bf16.mxu0 0
      %1450 = vmatpush2.bf16.msra.mxu0 0
      %1451 = vmatprep.subr.bf16.mxu0 0
      %1452 = vmatpush2.bf16.msra.mxu0 0
      %1453 = vmatprep.subr.bf16.mxu0 0
      %1454 = vmatpush2.bf16.msra.mxu0 0
      %1455 = vmatprep.subr.bf16.mxu0 0
      %1456 = vmatpush2.bf16.msra.mxu0 0
      %1457 = vmatprep.subr.bf16.mxu0 0
      %1458 = vmatpush2.bf16.msra.mxu0 0
      %1459 = vmatprep.subr.bf16.mxu0 0
      %1460 = vmatpush2.bf16.msra.mxu0 0
      %1461 = vmatprep.subr.bf16.mxu0 0
      %1462 = vmatpush2.bf16.msra.mxu0 0
      %1463 = vmatprep.subr.bf16.mxu0 0
      %1464 = vmatpush2.bf16.msra.mxu0 %v1320
      %1465 = vmatprep.mubr.bf16.mxu0 %v1349
      %1466 = vmatmul.mubr.bf16.gmra.mxu0 %v1192
      %v1467 = vpop.f32.mrf.mxu0
      %v1468 = vadd.f32 0.0, %v1467
      %v1469 = vpop.f32.mrf.mxu0
      %v1470 = vpop.f32.mrf.mxu0
      %v1471 = vadd.f32 0.0, %v1470
      %v1472 = vpop.f32.mrf.mxu0
      %1473 = vmatprep.mubr.bf16.mxu0 %v1352
      %1474 = vmatmul.mubr.bf16.gmra.mxu0 %v1194
      %v1475 = vpop.f32.mrf.mxu0
      %v1476 = vadd.f32 0.0, %v1475
      %v1477 = vpop.f32.mrf.mxu0
      %v1478 = vpop.f32.mrf.mxu0
      %v1479 = vadd.f32 0.0, %v1478
      %v1480 = vpop.f32.mrf.mxu0
      %1481 = vmatprep.mubr.bf16.mxu0 %v1355
      %1482 = vmatmul.mubr.bf16.gmra.mxu0 %v1196
      %v1483 = vpop.f32.mrf.mxu0
      %v1484 = vadd.f32 0.0, %v1483
      %v1485 = vpop.f32.mrf.mxu0
      %v1486 = vpop.f32.mrf.mxu0
      %v1487 = vadd.f32 0.0, %v1486
      %v1488 = vpop.f32.mrf.mxu0
      %1489 = vmatprep.mubr.bf16.mxu0 %v1358
      %1490 = vmatmul.mubr.bf16.gmra.mxu0 %v1198
      %v1491 = vpop.f32.mrf.mxu0
      %v1492 = vadd.f32 0.0, %v1491
      %v1493 = vpop.f32.mrf.mxu0
      %v1494 = vpop.f32.mrf.mxu0
      %v1495 = vadd.f32 0.0, %v1494
      %v1496 = vpop.f32.mrf.mxu0
      %1497 = vdwg.mxu0
      %v1498 = vadd.f32 %v993, %v1395
      %v1499 = vadd.f32 %v995, %v1397
      %v1500 = vadd.f32 %v1066, %v1468
      %v1501 = vadd.f32 %v997, %v1399
      %v1502 = vadd.f32 %v999, %v1401
      %v1503 = vadd.f32 %v1069, %v1471
      %v1504 = vadd.f32 %v1003, %v1405
      %v1505 = vadd.f32 %v1005, %v1407
      %v1506 = vadd.f32 %v1074, %v1476
      %v1507 = vadd.f32 %v1007, %v1409
      %v1508 = vadd.f32 %v1009, %v1411
      %v1509 = vadd.f32 %v1077, %v1479
      %v1510 = vadd.f32 %v1013, %v1415
      %v1511 = vadd.f32 %v1015, %v1417
      %v1512 = vadd.f32 %v1082, %v1484
      %v1513 = vadd.f32 %v1017, %v1419
      %v1514 = vadd.f32 %v1019, %v1421
      %v1515 = vadd.f32 %v1085, %v1487
      %v1516 = vadd.f32 %v1023, %v1425
      %v1517 = vadd.f32 %v1025, %v1427
      %v1518 = vadd.f32 %v1090, %v1492
      %v1519 = vadd.f32 %v1027, %v1429
      %v1520 = vadd.f32 %v1029, %v1431
      %v1521 = vadd.f32 %v1093, %v1495
      %s1522 = scalar_lea.vmem %s1, 648
      %v1523 = vld [vmem:[%s1522] sm:$0xff]
      %v1524 = vld [vmem:[%s1522 + $0x8] sm:$0xf]
      %v1525 = vld [vmem:[%s1522 + $0xc] sm:$0xff]
      %v1526 = vld [vmem:[%s1522 + $0x14] sm:$0xf]
      %v1527 = vld [vmem:[%s1522 + $0x18] sm:$0xff]
      %v1528 = vld [vmem:[%s1522 + $0x20] sm:$0xf]
      %v1529 = vld [vmem:[%s1522 + $0x24] sm:$0xff]
      %v1530 = vld [vmem:[%s1522 + $0x2c] sm:$0xf]
      %v1531 = vld [vmem:[%s1522 + $0x30] sm:$0xff]
      %v1532 = vld [vmem:[%s1522 + $0x38] sm:$0xf]
      %v1533 = vld [vmem:[%s1522 + $0x3c] sm:$0xff]
      %v1534 = vld [vmem:[%s1522 + $0x44] sm:$0xf]
      %v1535 = vld [vmem:[%s1522 + $0x48] sm:$0xff]
      %v1536 = vld [vmem:[%s1522 + $0x50] sm:$0xf]
      %v1537 = vld [vmem:[%s1522 + $0x54] sm:$0xff]
      %v1538 = vld [vmem:[%s1522 + $0x5c] sm:$0xf]
      %v1539 = vld [vmem:[%s1522 + $0x60] sm:$0xff]
      %v1540 = vld [vmem:[%s1522 + $0x68] sm:$0xf]
      %v1541 = vld [vmem:[%s1522 + $0x6c] sm:$0xff]
      %v1542 = vld [vmem:[%s1522 + $0x74] sm:$0xf]
      %v1543 = vld [vmem:[%s1522 + $0x78] sm:$0xff]
      %v1544 = vld [vmem:[%s1522 + $0x80] sm:$0xf]
      %v1545 = vld [vmem:[%s1522 + $0x84] sm:$0xff]
      %v1546 = vld [vmem:[%s1522 + $0x8c] sm:$0xf]
      %v1547 = vld [vmem:[%s1522 + $0x90] sm:$0xff]
      %v1548 = vld [vmem:[%s1522 + $0x98] sm:$0xf]
      %v1549 = vld [vmem:[%s1522 + $0x9c] sm:$0xff]
      %v1550 = vld [vmem:[%s1522 + $0xa4] sm:$0xf]
      %v1551 = vld [vmem:[%s1522 + $0xa8] sm:$0xff]
      %v1552 = vld [vmem:[%s1522 + $0xb0] sm:$0xf]
      %v1553 = vld [vmem:[%s1522 + $0xb4] sm:$0xff]
      %v1554 = vld [vmem:[%s1522 + $0xbc] sm:$0xf]
      %v1555 = vld [vmem:[%s1522 + $0xc0] sm:$0xff]
      %v1556 = vld [vmem:[%s1522 + $0xc8] sm:$0xf]
      %v1557 = vld [vmem:[%s1522 + $0xcc] sm:$0xff]
      %v1558 = vld [vmem:[%s1522 + $0xd4] sm:$0xf]
      %v1560 = vunpack.c.l.b16 %v251
      %v1561 = vunpack.c.h.b16 %v251
      %v1562 = vpack.c.b16 %v778, %v776
      %v1563 = vpack.c.b16 %v779, %v777
      %v1564 = vpack.c.b16 %v782, %v780
      %v1565 = vpack.c.b16 %v783, %v781
      %v1566 = vpack.c.b16 %v786, %v784
      %v1567 = vpack.c.b16 %v787, %v785
      %v1568 = vpack.c.b16 %v1560, %v788
      %v1569 = vpack.c.b16 %v1561, %v789
      %v1610 = vunpack.c.l.b16 %v1523
      %v1611 = vunpack.c.h.b16 %v1523
      %v1612 = vunpack.c.l.b16 %v1524
      %v1613 = vunpack.c.l.b16 %v1525
      %v1614 = vunpack.c.h.b16 %v1525
      %v1615 = vunpack.c.l.b16 %v1526
      %v1616 = vunpack.c.l.b16 %v1527
      %v1617 = vunpack.c.h.b16 %v1527
      %v1618 = vunpack.c.l.b16 %v1528
      %v1619 = vunpack.c.l.b16 %v1529
      %v1620 = vunpack.c.h.b16 %v1529
      %v1621 = vunpack.c.l.b16 %v1530
      %v1622 = vunpack.c.l.b16 %v1531
      %v1623 = vunpack.c.h.b16 %v1531
      %v1624 = vunpack.c.l.b16 %v1532
      %v1625 = vunpack.c.l.b16 %v1533
      %v1626 = vunpack.c.h.b16 %v1533
      %v1627 = vunpack.c.l.b16 %v1534
      %v1628 = vunpack.c.l.b16 %v1535
      %v1629 = vunpack.c.h.b16 %v1535
      %v1630 = vunpack.c.l.b16 %v1536
      %v1631 = vunpack.c.l.b16 %v1537
      %v1632 = vunpack.c.h.b16 %v1537
      %v1633 = vunpack.c.l.b16 %v1538
      %v1634 = vunpack.c.l.b16 %v1539
      %v1635 = vunpack.c.h.b16 %v1539
      %v1636 = vunpack.c.l.b16 %v1540
      %v1637 = vunpack.c.l.b16 %v1541
      %v1638 = vunpack.c.h.b16 %v1541
      %v1639 = vunpack.c.l.b16 %v1542
      %v1640 = vunpack.c.l.b16 %v1543
      %v1641 = vunpack.c.h.b16 %v1543
      %v1642 = vunpack.c.l.b16 %v1544
      %v1643 = vunpack.c.l.b16 %v1545
      %v1644 = vunpack.c.h.b16 %v1545
      %v1645 = vunpack.c.l.b16 %v1546
      %v1646 = vunpack.c.l.b16 %v1547
      %v1647 = vunpack.c.h.b16 %v1547
      %v1648 = vunpack.c.l.b16 %v1548
      %v1649 = vunpack.c.l.b16 %v1549
      %v1650 = vunpack.c.h.b16 %v1549
      %v1651 = vunpack.c.l.b16 %v1550
      %v1652 = vunpack.c.l.b16 %v1551
      %v1653 = vunpack.c.h.b16 %v1551
      %v1654 = vunpack.c.l.b16 %v1552
      %v1655 = vunpack.c.l.b16 %v1553
      %v1656 = vunpack.c.h.b16 %v1553
      %v1657 = vunpack.c.l.b16 %v1554
      %v1658 = vunpack.c.l.b16 %v1555
      %v1659 = vunpack.c.h.b16 %v1555
      %v1660 = vunpack.c.l.b16 %v1556
      %v1661 = vunpack.c.l.b16 %v1557
      %v1662 = vunpack.c.h.b16 %v1557
      %v1663 = vunpack.c.l.b16 %v1558
      %v1664 = vpack.c.b16 %v1613, %v1610
      %v1665 = vpack.c.b16 %v1614, %v1611
      %v1666 = vpack.c.b16 %v1615, %v1612
      %v1667 = vpack.c.b16 %v1619, %v1616
      %v1668 = vpack.c.b16 %v1620, %v1617
      %v1669 = vpack.c.b16 %v1621, %v1618
      %v1670 = vpack.c.b16 %v1625, %v1622
      %v1671 = vpack.c.b16 %v1626, %v1623
      %v1672 = vpack.c.b16 %v1627, %v1624
      %v1673 = vpack.c.b16 %v1631, %v1628
      %v1674 = vpack.c.b16 %v1632, %v1629
      %v1675 = vpack.c.b16 %v1633, %v1630
      %v1676 = vpack.c.b16 %v1637, %v1634
      %v1677 = vpack.c.b16 %v1638, %v1635
      %v1678 = vpack.c.b16 %v1639, %v1636
      %v1679 = vpack.c.b16 %v1643, %v1640
      %v1680 = vpack.c.b16 %v1644, %v1641
      %v1681 = vpack.c.b16 %v1645, %v1642
      %v1682 = vpack.c.b16 %v1649, %v1646
      %v1683 = vpack.c.b16 %v1650, %v1647
      %v1684 = vpack.c.b16 %v1651, %v1648
      %v1685 = vpack.c.b16 %v1655, %v1652
      %v1686 = vpack.c.b16 %v1656, %v1653
      %v1687 = vpack.c.b16 %v1657, %v1654
      %v1688 = vpack.c.b16 %v1661, %v1658
      %v1689 = vpack.c.b16 %v1662, %v1659
      %v1690 = vpack.c.b16 %v1663, %v1660
      %v1719 = vsel %vm615, %v1563, 0
      %v1722 = vsel %vm615, %v1565, 0
      %v1725 = vsel %vm615, %v1567, 0
      %v1728 = vsel %vm615, %v1569, 0
      %1730 = vmatprep.subr.bf16.mxu0 %v1686
      %1731 = vmatpush1.bf16.msra.mxu0 %v1685
      %1732 = vmatprep.subr.bf16.mxu0 %v1683
      %1733 = vmatpush1.bf16.msra.mxu0 %v1682
      %1734 = vmatprep.subr.bf16.mxu0 %v1680
      %1735 = vmatpush1.bf16.msra.mxu0 %v1679
      %1736 = vmatprep.subr.bf16.mxu0 %v1677
      %1737 = vmatpush1.bf16.msra.mxu0 %v1676
      %1738 = vmatprep.subr.bf16.mxu0 %v1674
      %1739 = vmatpush1.bf16.msra.mxu0 %v1673
      %1740 = vmatprep.subr.bf16.mxu0 %v1671
      %1741 = vmatpush1.bf16.msra.mxu0 %v1670
      %1742 = vmatprep.subr.bf16.mxu0 %v1668
      %1743 = vmatpush1.bf16.msra.mxu0 %v1667
      %1744 = vmatprep.subr.bf16.mxu0 %v1665
      %1745 = vmatpush1.bf16.msra.mxu0 %v1664
      %1746 = vmatprep.subr.bf16.mxu0 0
      %1747 = vmatpush2.bf16.msra.mxu0 0
      %1748 = vmatprep.subr.bf16.mxu0 0
      %1749 = vmatpush2.bf16.msra.mxu0 0
      %1750 = vmatprep.subr.bf16.mxu0 0
      %1751 = vmatpush2.bf16.msra.mxu0 0
      %1752 = vmatprep.subr.bf16.mxu0 0
      %1753 = vmatpush2.bf16.msra.mxu0 0
      %1754 = vmatprep.subr.bf16.mxu0 0
      %1755 = vmatpush2.bf16.msra.mxu0 0
      %1756 = vmatprep.subr.bf16.mxu0 0
      %1757 = vmatpush2.bf16.msra.mxu0 0
      %1758 = vmatprep.subr.bf16.mxu0 0
      %1759 = vmatpush2.bf16.msra.mxu0 0
      %1760 = vmatprep.subr.bf16.mxu0 %v1689
      %1761 = vmatpush2.bf16.msra.mxu0 %v1688
      %1762 = vmatprep.mubr.bf16.mxu0 %v1719
      %1763 = vmatmul.mubr.bf16.gmra.mxu0 %v1562
      %v1764 = vpop.f32.mrf.mxu0
      %v1765 = vadd.f32 0.0, %v1764
      %v1766 = vpop.f32.mrf.mxu0
      %v1767 = vadd.f32 0.0, %v1766
      %v1768 = vpop.f32.mrf.mxu0
      %v1769 = vadd.f32 0.0, %v1768
      %v1770 = vpop.f32.mrf.mxu0
      %v1771 = vadd.f32 0.0, %v1770
      %1772 = vmatprep.mubr.bf16.mxu0 %v1722
      %1773 = vmatmul.mubr.bf16.gmra.mxu0 %v1564
      %v1774 = vpop.f32.mrf.mxu0
      %v1775 = vadd.f32 0.0, %v1774
      %v1776 = vpop.f32.mrf.mxu0
      %v1777 = vadd.f32 0.0, %v1776
      %v1778 = vpop.f32.mrf.mxu0
      %v1779 = vadd.f32 0.0, %v1778
      %v1780 = vpop.f32.mrf.mxu0
      %v1781 = vadd.f32 0.0, %v1780
      %1782 = vmatprep.mubr.bf16.mxu0 %v1725
      %1783 = vmatmul.mubr.bf16.gmra.mxu0 %v1566
      %v1784 = vpop.f32.mrf.mxu0
      %v1785 = vadd.f32 0.0, %v1784
      %v1786 = vpop.f32.mrf.mxu0
      %v1787 = vadd.f32 0.0, %v1786
      %v1788 = vpop.f32.mrf.mxu0
      %v1789 = vadd.f32 0.0, %v1788
      %v1790 = vpop.f32.mrf.mxu0
      %v1791 = vadd.f32 0.0, %v1790
      %1792 = vmatprep.mubr.bf16.mxu0 %v1728
      %1793 = vmatmul.mubr.bf16.gmra.mxu0 %v1568
      %v1794 = vpop.f32.mrf.mxu0
      %v1795 = vadd.f32 0.0, %v1794
      %v1796 = vpop.f32.mrf.mxu0
      %v1797 = vadd.f32 0.0, %v1796
      %v1798 = vpop.f32.mrf.mxu0
      %v1799 = vadd.f32 0.0, %v1798
      %v1800 = vpop.f32.mrf.mxu0
      %v1801 = vadd.f32 0.0, %v1800
      %1802 = vdwg.mxu0
      %1803 = vmatprep.subr.bf16.mxu0 0
      %1804 = vmatpush1.bf16.msra.mxu0 %v1687
      %1805 = vmatprep.subr.bf16.mxu0 0
      %1806 = vmatpush1.bf16.msra.mxu0 %v1684
      %1807 = vmatprep.subr.bf16.mxu0 0
      %1808 = vmatpush1.bf16.msra.mxu0 %v1681
      %1809 = vmatprep.subr.bf16.mxu0 0
      %1810 = vmatpush1.bf16.msra.mxu0 %v1678
      %1811 = vmatprep.subr.bf16.mxu0 0
      %1812 = vmatpush1.bf16.msra.mxu0 %v1675
      %1813 = vmatprep.subr.bf16.mxu0 0
      %1814 = vmatpush1.bf16.msra.mxu0 %v1672
      %1815 = vmatprep.subr.bf16.mxu0 0
      %1816 = vmatpush1.bf16.msra.mxu0 %v1669
      %1817 = vmatprep.subr.bf16.mxu0 0
      %1818 = vmatpush1.bf16.msra.mxu0 %v1666
      %1819 = vmatprep.subr.bf16.mxu0 0
      %1820 = vmatpush2.bf16.msra.mxu0 0
      %1821 = vmatprep.subr.bf16.mxu0 0
      %1822 = vmatpush2.bf16.msra.mxu0 0
      %1823 = vmatprep.subr.bf16.mxu0 0
      %1824 = vmatpush2.bf16.msra.mxu0 0
      %1825 = vmatprep.subr.bf16.mxu0 0
      %1826 = vmatpush2.bf16.msra.mxu0 0
      %1827 = vmatprep.subr.bf16.mxu0 0
      %1828 = vmatpush2.bf16.msra.mxu0 0
      %1829 = vmatprep.subr.bf16.mxu0 0
      %1830 = vmatpush2.bf16.msra.mxu0 0
      %1831 = vmatprep.subr.bf16.mxu0 0
      %1832 = vmatpush2.bf16.msra.mxu0 0
      %1833 = vmatprep.subr.bf16.mxu0 0
      %1834 = vmatpush2.bf16.msra.mxu0 %v1690
      %1835 = vmatprep.mubr.bf16.mxu0 %v1719
      %1836 = vmatmul.mubr.bf16.gmra.mxu0 %v1562
      %v1837 = vpop.f32.mrf.mxu0
      %v1838 = vadd.f32 0.0, %v1837
      %v1839 = vpop.f32.mrf.mxu0
      %v1840 = vpop.f32.mrf.mxu0
      %v1841 = vadd.f32 0.0, %v1840
      %v1842 = vpop.f32.mrf.mxu0
      %1843 = vmatprep.mubr.bf16.mxu0 %v1722
      %1844 = vmatmul.mubr.bf16.gmra.mxu0 %v1564
      %v1845 = vpop.f32.mrf.mxu0
      %v1846 = vadd.f32 0.0, %v1845
      %v1847 = vpop.f32.mrf.mxu0
      %v1848 = vpop.f32.mrf.mxu0
      %v1849 = vadd.f32 0.0, %v1848
      %v1850 = vpop.f32.mrf.mxu0
      %1851 = vmatprep.mubr.bf16.mxu0 %v1725
      %1852 = vmatmul.mubr.bf16.gmra.mxu0 %v1566
      %v1853 = vpop.f32.mrf.mxu0
      %v1854 = vadd.f32 0.0, %v1853
      %v1855 = vpop.f32.mrf.mxu0
      %v1856 = vpop.f32.mrf.mxu0
      %v1857 = vadd.f32 0.0, %v1856
      %v1858 = vpop.f32.mrf.mxu0
      %1859 = vmatprep.mubr.bf16.mxu0 %v1728
      %1860 = vmatmul.mubr.bf16.gmra.mxu0 %v1568
      %v1861 = vpop.f32.mrf.mxu0
      %v1862 = vadd.f32 0.0, %v1861
      %v1863 = vpop.f32.mrf.mxu0
      %v1864 = vpop.f32.mrf.mxu0
      %v1865 = vadd.f32 0.0, %v1864
      %v1866 = vpop.f32.mrf.mxu0
      %1867 = vdwg.mxu0
      %v1868 = vadd.f32 %v1498, %v1765
      %v1869 = vadd.f32 %v1499, %v1767
      %v1870 = vadd.f32 %v1500, %v1838
      %v1871 = vadd.f32 %v1501, %v1769
      %v1872 = vadd.f32 %v1502, %v1771
      %v1873 = vadd.f32 %v1503, %v1841
      %v1874 = vadd.f32 %v1504, %v1775
      %v1875 = vadd.f32 %v1505, %v1777
      %v1876 = vadd.f32 %v1506, %v1846
      %v1877 = vadd.f32 %v1507, %v1779
      %v1878 = vadd.f32 %v1508, %v1781
      %v1879 = vadd.f32 %v1509, %v1849
      %v1880 = vadd.f32 %v1510, %v1785
      %v1881 = vadd.f32 %v1511, %v1787
      %v1882 = vadd.f32 %v1512, %v1854
      %v1883 = vadd.f32 %v1513, %v1789
      %v1884 = vadd.f32 %v1514, %v1791
      %v1885 = vadd.f32 %v1515, %v1857
      %v1886 = vadd.f32 %v1516, %v1795
      %v1887 = vadd.f32 %v1517, %v1797
      %v1888 = vadd.f32 %v1518, %v1862
      %v1889 = vadd.f32 %v1519, %v1799
      %v1890 = vadd.f32 %v1520, %v1801
      %v1891 = vadd.f32 %v1521, %v1865
      %v1893 = vshrl.u32 %v251, 16
      %v1895 = vrot.slane %v1893, 4
      %v1896 = vshll.u32 %v251, 16
      %v1898 = vrot.slane %v1896, 5
      %v1899 = vor.u32 %v1895, %v1898
      %v1900 = vrot.slane %v1899, 4
      %v1902 = vshll.u32 %v252, 16
      %v1904 = vrot.slane %v1902, 5
      %v1905 = vsel %vm293, %v1900, %v1904
      %s1906 = scalar_lea.vmem %s1, 864
      %v1907 = vld [vmem:[%s1906] sm:$0xff]
      %v1908 = vld [vmem:[%s1906 + $0x8] sm:$0xf]
      %v1909 = vld [vmem:[%s1906 + $0xc] sm:$0xff]
      %v1910 = vld [vmem:[%s1906 + $0x14] sm:$0xf]
      %v1911 = vld [vmem:[%s1906 + $0x18] sm:$0xff]
      %v1912 = vld [vmem:[%s1906 + $0x20] sm:$0xf]
      %v1913 = vld [vmem:[%s1906 + $0x24] sm:$0xff]
      %v1914 = vld [vmem:[%s1906 + $0x2c] sm:$0xf]
      %v1915 = vld [vmem:[%s1906 + $0x30] sm:$0xff]
      %v1916 = vld [vmem:[%s1906 + $0x38] sm:$0xf]
      %v1917 = vld [vmem:[%s1906 + $0x3c] sm:$0xff]
      %v1918 = vld [vmem:[%s1906 + $0x44] sm:$0xf]
      %v1919 = vld [vmem:[%s1906 + $0x48] sm:$0xff]
      %v1920 = vld [vmem:[%s1906 + $0x50] sm:$0xf]
      %v1921 = vld [vmem:[%s1906 + $0x54] sm:$0xff]
      %v1922 = vld [vmem:[%s1906 + $0x5c] sm:$0xf]
      %v1923 = vld [vmem:[%s1906 + $0x60] sm:$0xff]
      %v1924 = vld [vmem:[%s1906 + $0x68] sm:$0xf]
      %v1925 = vld [vmem:[%s1906 + $0x6c] sm:$0xff]
      %v1926 = vld [vmem:[%s1906 + $0x74] sm:$0xf]
      %v1927 = vld [vmem:[%s1906 + $0x78] sm:$0xff]
      %v1928 = vld [vmem:[%s1906 + $0x80] sm:$0xf]
      %v1929 = vld [vmem:[%s1906 + $0x84] sm:$0xff]
      %v1930 = vld [vmem:[%s1906 + $0x8c] sm:$0xf]
      %v1931 = vld [vmem:[%s1906 + $0x90] sm:$0xff]
      %v1932 = vld [vmem:[%s1906 + $0x98] sm:$0xf]
      %v1933 = vld [vmem:[%s1906 + $0x9c] sm:$0xff]
      %v1934 = vld [vmem:[%s1906 + $0xa4] sm:$0xf]
      %v1935 = vld [vmem:[%s1906 + $0xa8] sm:$0xff]
      %v1936 = vld [vmem:[%s1906 + $0xb0] sm:$0xf]
      %v1937 = vld [vmem:[%s1906 + $0xb4] sm:$0xff]
      %v1938 = vld [vmem:[%s1906 + $0xbc] sm:$0xf]
      %v1939 = vld [vmem:[%s1906 + $0xc0] sm:$0xff]
      %v1940 = vld [vmem:[%s1906 + $0xc8] sm:$0xf]
      %v1941 = vld [vmem:[%s1906 + $0xcc] sm:$0xff]
      %v1942 = vld [vmem:[%s1906 + $0xd4] sm:$0xf]
      %v1943 = vunpack.c.l.b16 %v1905
      %v1944 = vunpack.c.h.b16 %v1905
      %v1945 = vpack.c.b16 %v447, %v445
      %v1946 = vpack.c.b16 %v448, %v446
      %v1947 = vpack.c.b16 %v451, %v449
      %v1948 = vpack.c.b16 %v452, %v450
      %v1949 = vpack.c.b16 %v455, %v453
      %v1950 = vpack.c.b16 %v456, %v454
      %v1951 = vpack.c.b16 %v1943, %v457
      %v1952 = vpack.c.b16 %v1944, %v458
      %v1993 = vunpack.c.l.b16 %v1907
      %v1994 = vunpack.c.h.b16 %v1907
      %v1995 = vunpack.c.l.b16 %v1908
      %v1996 = vunpack.c.l.b16 %v1909
      %v1997 = vunpack.c.h.b16 %v1909
      %v1998 = vunpack.c.l.b16 %v1910
      %v1999 = vunpack.c.l.b16 %v1911
      %v2000 = vunpack.c.h.b16 %v1911
      %v2001 = vunpack.c.l.b16 %v1912
      %v2002 = vunpack.c.l.b16 %v1913
      %v2003 = vunpack.c.h.b16 %v1913
      %v2004 = vunpack.c.l.b16 %v1914
      %v2005 = vunpack.c.l.b16 %v1915
      %v2006 = vunpack.c.h.b16 %v1915
      %v2007 = vunpack.c.l.b16 %v1916
      %v2008 = vunpack.c.l.b16 %v1917
      %v2009 = vunpack.c.h.b16 %v1917
      %v2010 = vunpack.c.l.b16 %v1918
      %v2011 = vunpack.c.l.b16 %v1919
      %v2012 = vunpack.c.h.b16 %v1919
      %v2013 = vunpack.c.l.b16 %v1920
      %v2014 = vunpack.c.l.b16 %v1921
      %v2015 = vunpack.c.h.b16 %v1921
      %v2016 = vunpack.c.l.b16 %v1922
      %v2017 = vunpack.c.l.b16 %v1923
      %v2018 = vunpack.c.h.b16 %v1923
      %v2019 = vunpack.c.l.b16 %v1924
      %v2020 = vunpack.c.l.b16 %v1925
      %v2021 = vunpack.c.h.b16 %v1925
      %v2022 = vunpack.c.l.b16 %v1926
      %v2023 = vunpack.c.l.b16 %v1927
      %v2024 = vunpack.c.h.b16 %v1927
      %v2025 = vunpack.c.l.b16 %v1928
      %v2026 = vunpack.c.l.b16 %v1929
      %v2027 = vunpack.c.h.b16 %v1929
      %v2028 = vunpack.c.l.b16 %v1930
      %v2029 = vunpack.c.l.b16 %v1931
      %v2030 = vunpack.c.h.b16 %v1931
      %v2031 = vunpack.c.l.b16 %v1932
      %v2032 = vunpack.c.l.b16 %v1933
      %v2033 = vunpack.c.h.b16 %v1933
      %v2034 = vunpack.c.l.b16 %v1934
      %v2035 = vunpack.c.l.b16 %v1935
      %v2036 = vunpack.c.h.b16 %v1935
      %v2037 = vunpack.c.l.b16 %v1936
      %v2038 = vunpack.c.l.b16 %v1937
      %v2039 = vunpack.c.h.b16 %v1937
      %v2040 = vunpack.c.l.b16 %v1938
      %v2041 = vunpack.c.l.b16 %v1939
      %v2042 = vunpack.c.h.b16 %v1939
      %v2043 = vunpack.c.l.b16 %v1940
      %v2044 = vunpack.c.l.b16 %v1941
      %v2045 = vunpack.c.h.b16 %v1941
      %v2046 = vunpack.c.l.b16 %v1942
      %v2047 = vpack.c.b16 %v1996, %v1993
      %v2048 = vpack.c.b16 %v1997, %v1994
      %v2049 = vpack.c.b16 %v1998, %v1995
      %v2050 = vpack.c.b16 %v2002, %v1999
      %v2051 = vpack.c.b16 %v2003, %v2000
      %v2052 = vpack.c.b16 %v2004, %v2001
      %v2053 = vpack.c.b16 %v2008, %v2005
      %v2054 = vpack.c.b16 %v2009, %v2006
      %v2055 = vpack.c.b16 %v2010, %v2007
      %v2056 = vpack.c.b16 %v2014, %v2011
      %v2057 = vpack.c.b16 %v2015, %v2012
      %v2058 = vpack.c.b16 %v2016, %v2013
      %v2059 = vpack.c.b16 %v2020, %v2017
      %v2060 = vpack.c.b16 %v2021, %v2018
      %v2061 = vpack.c.b16 %v2022, %v2019
      %v2062 = vpack.c.b16 %v2026, %v2023
      %v2063 = vpack.c.b16 %v2027, %v2024
      %v2064 = vpack.c.b16 %v2028, %v2025
      %v2065 = vpack.c.b16 %v2032, %v2029
      %v2066 = vpack.c.b16 %v2033, %v2030
      %v2067 = vpack.c.b16 %v2034, %v2031
      %v2068 = vpack.c.b16 %v2038, %v2035
      %v2069 = vpack.c.b16 %v2039, %v2036
      %v2070 = vpack.c.b16 %v2040, %v2037
      %v2071 = vpack.c.b16 %v2044, %v2041
      %v2072 = vpack.c.b16 %v2045, %v2042
      %v2073 = vpack.c.b16 %v2046, %v2043
      %v2102 = vsel %vm615, %v1946, 0
      %v2105 = vsel %vm615, %v1948, 0
      %v2108 = vsel %vm615, %v1950, 0
      %v2111 = vsel %vm615, %v1952, 0
      %2113 = vmatprep.subr.bf16.mxu0 %v2069
      %2114 = vmatpush1.bf16.msra.mxu0 %v2068
      %2115 = vmatprep.subr.bf16.mxu0 %v2066
      %2116 = vmatpush1.bf16.msra.mxu0 %v2065
      %2117 = vmatprep.subr.bf16.mxu0 %v2063
      %2118 = vmatpush1.bf16.msra.mxu0 %v2062
      %2119 = vmatprep.subr.bf16.mxu0 %v2060
      %2120 = vmatpush1.bf16.msra.mxu0 %v2059
      %2121 = vmatprep.subr.bf16.mxu0 %v2057
      %2122 = vmatpush1.bf16.msra.mxu0 %v2056
      %2123 = vmatprep.subr.bf16.mxu0 %v2054
      %2124 = vmatpush1.bf16.msra.mxu0 %v2053
      %2125 = vmatprep.subr.bf16.mxu0 %v2051
      %2126 = vmatpush1.bf16.msra.mxu0 %v2050
      %2127 = vmatprep.subr.bf16.mxu0 %v2048
      %2128 = vmatpush1.bf16.msra.mxu0 %v2047
      %2129 = vmatprep.subr.bf16.mxu0 0
      %2130 = vmatpush2.bf16.msra.mxu0 0
      %2131 = vmatprep.subr.bf16.mxu0 0
      %2132 = vmatpush2.bf16.msra.mxu0 0
      %2133 = vmatprep.subr.bf16.mxu0 0
      %2134 = vmatpush2.bf16.msra.mxu0 0
      %2135 = vmatprep.subr.bf16.mxu0 0
      %2136 = vmatpush2.bf16.msra.mxu0 0
      %2137 = vmatprep.subr.bf16.mxu0 0
      %2138 = vmatpush2.bf16.msra.mxu0 0
      %2139 = vmatprep.subr.bf16.mxu0 0
      %2140 = vmatpush2.bf16.msra.mxu0 0
      %2141 = vmatprep.subr.bf16.mxu0 0
      %2142 = vmatpush2.bf16.msra.mxu0 0
      %2143 = vmatprep.subr.bf16.mxu0 %v2072
      %2144 = vmatpush2.bf16.msra.mxu0 %v2071
      %2145 = vmatprep.mubr.bf16.mxu0 %v2102
      %2146 = vmatmul.mubr.bf16.gmra.mxu0 %v1945
      %v2147 = vpop.f32.mrf.mxu0
      %v2148 = vadd.f32 0.0, %v2147
      %v2149 = vpop.f32.mrf.mxu0
      %v2150 = vadd.f32 0.0, %v2149
      %v2151 = vpop.f32.mrf.mxu0
      %v2152 = vadd.f32 0.0, %v2151
      %v2153 = vpop.f32.mrf.mxu0
      %v2154 = vadd.f32 0.0, %v2153
      %2155 = vmatprep.mubr.bf16.mxu0 %v2105
      %2156 = vmatmul.mubr.bf16.gmra.mxu0 %v1947
      %v2157 = vpop.f32.mrf.mxu0
      %v2158 = vadd.f32 0.0, %v2157
      %v2159 = vpop.f32.mrf.mxu0
      %v2160 = vadd.f32 0.0, %v2159
      %v2161 = vpop.f32.mrf.mxu0
      %v2162 = vadd.f32 0.0, %v2161
      %v2163 = vpop.f32.mrf.mxu0
      %v2164 = vadd.f32 0.0, %v2163
      %2165 = vmatprep.mubr.bf16.mxu0 %v2108
      %2166 = vmatmul.mubr.bf16.gmra.mxu0 %v1949
      %v2167 = vpop.f32.mrf.mxu0
      %v2168 = vadd.f32 0.0, %v2167
      %v2169 = vpop.f32.mrf.mxu0
      %v2170 = vadd.f32 0.0, %v2169
      %v2171 = vpop.f32.mrf.mxu0
      %v2172 = vadd.f32 0.0, %v2171
      %v2173 = vpop.f32.mrf.mxu0
      %v2174 = vadd.f32 0.0, %v2173
      %2175 = vmatprep.mubr.bf16.mxu0 %v2111
      %2176 = vmatmul.mubr.bf16.gmra.mxu0 %v1951
      %v2177 = vpop.f32.mrf.mxu0
      %v2178 = vadd.f32 0.0, %v2177
      %v2179 = vpop.f32.mrf.mxu0
      %v2180 = vadd.f32 0.0, %v2179
      %v2181 = vpop.f32.mrf.mxu0
      %v2182 = vadd.f32 0.0, %v2181
      %v2183 = vpop.f32.mrf.mxu0
      %v2184 = vadd.f32 0.0, %v2183
      %2185 = vdwg.mxu0
      %2186 = vmatprep.subr.bf16.mxu0 0
      %2187 = vmatpush1.bf16.msra.mxu0 %v2070
      %2188 = vmatprep.subr.bf16.mxu0 0
      %2189 = vmatpush1.bf16.msra.mxu0 %v2067
      %2190 = vmatprep.subr.bf16.mxu0 0
      %2191 = vmatpush1.bf16.msra.mxu0 %v2064
      %2192 = vmatprep.subr.bf16.mxu0 0
      %2193 = vmatpush1.bf16.msra.mxu0 %v2061
      %2194 = vmatprep.subr.bf16.mxu0 0
      %2195 = vmatpush1.bf16.msra.mxu0 %v2058
      %2196 = vmatprep.subr.bf16.mxu0 0
      %2197 = vmatpush1.bf16.msra.mxu0 %v2055
      %2198 = vmatprep.subr.bf16.mxu0 0
      %2199 = vmatpush1.bf16.msra.mxu0 %v2052
      %2200 = vmatprep.subr.bf16.mxu0 0
      %2201 = vmatpush1.bf16.msra.mxu0 %v2049
      %2202 = vmatprep.subr.bf16.mxu0 0
      %2203 = vmatpush2.bf16.msra.mxu0 0
      %2204 = vmatprep.subr.bf16.mxu0 0
      %2205 = vmatpush2.bf16.msra.mxu0 0
      %2206 = vmatprep.subr.bf16.mxu0 0
      %2207 = vmatpush2.bf16.msra.mxu0 0
      %2208 = vmatprep.subr.bf16.mxu0 0
      %2209 = vmatpush2.bf16.msra.mxu0 0
      %2210 = vmatprep.subr.bf16.mxu0 0
      %2211 = vmatpush2.bf16.msra.mxu0 0
      %2212 = vmatprep.subr.bf16.mxu0 0
      %2213 = vmatpush2.bf16.msra.mxu0 0
      %2214 = vmatprep.subr.bf16.mxu0 0
      %2215 = vmatpush2.bf16.msra.mxu0 0
      %2216 = vmatprep.subr.bf16.mxu0 0
      %2217 = vmatpush2.bf16.msra.mxu0 %v2073
      %2218 = vmatprep.mubr.bf16.mxu0 %v2102
      %2219 = vmatmul.mubr.bf16.gmra.mxu0 %v1945
      %v2220 = vpop.f32.mrf.mxu0
      %v2221 = vadd.f32 0.0, %v2220
      %v2222 = vpop.f32.mrf.mxu0
      %v2223 = vpop.f32.mrf.mxu0
      %v2224 = vadd.f32 0.0, %v2223
      %v2225 = vpop.f32.mrf.mxu0
      %2226 = vmatprep.mubr.bf16.mxu0 %v2105
      %2227 = vmatmul.mubr.bf16.gmra.mxu0 %v1947
      %v2228 = vpop.f32.mrf.mxu0
      %v2229 = vadd.f32 0.0, %v2228
      %v2230 = vpop.f32.mrf.mxu0
      %v2231 = vpop.f32.mrf.mxu0
      %v2232 = vadd.f32 0.0, %v2231
      %v2233 = vpop.f32.mrf.mxu0
      %2234 = vmatprep.mubr.bf16.mxu0 %v2108
      %2235 = vmatmul.mubr.bf16.gmra.mxu0 %v1949
      %v2236 = vpop.f32.mrf.mxu0
      %v2237 = vadd.f32 0.0, %v2236
      %v2238 = vpop.f32.mrf.mxu0
      %v2239 = vpop.f32.mrf.mxu0
      %v2240 = vadd.f32 0.0, %v2239
      %v2241 = vpop.f32.mrf.mxu0
      %2242 = vmatprep.mubr.bf16.mxu0 %v2111
      %2243 = vmatmul.mubr.bf16.gmra.mxu0 %v1951
      %v2244 = vpop.f32.mrf.mxu0
      %v2245 = vadd.f32 0.0, %v2244
      %v2246 = vpop.f32.mrf.mxu0
      %v2247 = vpop.f32.mrf.mxu0
      %v2248 = vadd.f32 0.0, %v2247
      %v2249 = vpop.f32.mrf.mxu0
      %2250 = vdwg.mxu0
      %v2251 = vadd.f32 %v1868, %v2148
      %v2252 = vadd.f32 %v1869, %v2150
      %v2253 = vadd.f32 %v1870, %v2221
      %v2254 = vadd.f32 %v1871, %v2152
      %v2255 = vadd.f32 %v1872, %v2154
      %v2256 = vadd.f32 %v1873, %v2224
      %v2257 = vadd.f32 %v1874, %v2158
      %v2258 = vadd.f32 %v1875, %v2160
      %v2259 = vadd.f32 %v1876, %v2229
      %v2260 = vadd.f32 %v1877, %v2162
      %v2261 = vadd.f32 %v1878, %v2164
      %v2262 = vadd.f32 %v1879, %v2232
      %v2263 = vadd.f32 %v1880, %v2168
      %v2264 = vadd.f32 %v1881, %v2170
      %v2265 = vadd.f32 %v1882, %v2237
      %v2266 = vadd.f32 %v1883, %v2172
      %v2267 = vadd.f32 %v1884, %v2174
      %v2268 = vadd.f32 %v1885, %v2240
      %v2269 = vadd.f32 %v1886, %v2178
      %v2270 = vadd.f32 %v1887, %v2180
      %v2271 = vadd.f32 %v1888, %v2245
      %v2272 = vadd.f32 %v1889, %v2182
      %v2273 = vadd.f32 %v1890, %v2184
      %v2274 = vadd.f32 %v1891, %v2248
      %v2276 = vrot.slane %v251, 5
      %v2277 = vrot.slane %v2276, 4
      %v2278 = vrot.slane %v252, 5
      %v2279 = vsel %vm1106, %v2277, %v2278
      %s2280 = scalar_lea.vmem %s1, 1080
      %v2281 = vld [vmem:[%s2280] sm:$0xff]
      %v2282 = vld [vmem:[%s2280 + $0x8] sm:$0xf]
      %v2283 = vld [vmem:[%s2280 + $0xc] sm:$0xff]
      %v2284 = vld [vmem:[%s2280 + $0x14] sm:$0xf]
      %v2285 = vld [vmem:[%s2280 + $0x18] sm:$0xff]
      %v2286 = vld [vmem:[%s2280 + $0x20] sm:$0xf]
      %v2287 = vld [vmem:[%s2280 + $0x24] sm:$0xff]
      %v2288 = vld [vmem:[%s2280 + $0x2c] sm:$0xf]
      %v2289 = vld [vmem:[%s2280 + $0x30] sm:$0xff]
      %v2290 = vld [vmem:[%s2280 + $0x38] sm:$0xf]
      %v2291 = vld [vmem:[%s2280 + $0x3c] sm:$0xff]
      %v2292 = vld [vmem:[%s2280 + $0x44] sm:$0xf]
      %v2293 = vld [vmem:[%s2280 + $0x48] sm:$0xff]
      %v2294 = vld [vmem:[%s2280 + $0x50] sm:$0xf]
      %v2295 = vld [vmem:[%s2280 + $0x54] sm:$0xff]
      %v2296 = vld [vmem:[%s2280 + $0x5c] sm:$0xf]
      %v2297 = vld [vmem:[%s2280 + $0x60] sm:$0xff]
      %v2298 = vld [vmem:[%s2280 + $0x68] sm:$0xf]
      %v2299 = vld [vmem:[%s2280 + $0x6c] sm:$0xff]
      %v2300 = vld [vmem:[%s2280 + $0x74] sm:$0xf]
      %v2301 = vld [vmem:[%s2280 + $0x78] sm:$0xff]
      %v2302 = vld [vmem:[%s2280 + $0x80] sm:$0xf]
      %v2303 = vld [vmem:[%s2280 + $0x84] sm:$0xff]
      %v2304 = vld [vmem:[%s2280 + $0x8c] sm:$0xf]
      %v2305 = vld [vmem:[%s2280 + $0x90] sm:$0xff]
      %v2306 = vld [vmem:[%s2280 + $0x98] sm:$0xf]
      %v2307 = vld [vmem:[%s2280 + $0x9c] sm:$0xff]
      %v2308 = vld [vmem:[%s2280 + $0xa4] sm:$0xf]
      %v2309 = vld [vmem:[%s2280 + $0xa8] sm:$0xff]
      %v2310 = vld [vmem:[%s2280 + $0xb0] sm:$0xf]
      %v2311 = vld [vmem:[%s2280 + $0xb4] sm:$0xff]
      %v2312 = vld [vmem:[%s2280 + $0xbc] sm:$0xf]
      %v2313 = vld [vmem:[%s2280 + $0xc0] sm:$0xff]
      %v2314 = vld [vmem:[%s2280 + $0xc8] sm:$0xf]
      %v2315 = vld [vmem:[%s2280 + $0xcc] sm:$0xff]
      %v2316 = vld [vmem:[%s2280 + $0xd4] sm:$0xf]
      %v2317 = vunpack.c.l.b16 %v2279
      %v2318 = vunpack.c.h.b16 %v2279
      %v2319 = vpack.c.b16 %v1180, %v1178
      %v2320 = vpack.c.b16 %v1181, %v1179
      %v2321 = vpack.c.b16 %v1184, %v1182
      %v2322 = vpack.c.b16 %v1185, %v1183
      %v2323 = vpack.c.b16 %v1188, %v1186
      %v2324 = vpack.c.b16 %v1189, %v1187
      %v2325 = vpack.c.b16 %v2317, %v1190
      %v2326 = vpack.c.b16 %v2318, %v1191
      %v2367 = vunpack.c.l.b16 %v2281
      %v2368 = vunpack.c.h.b16 %v2281
      %v2369 = vunpack.c.l.b16 %v2282
      %v2370 = vunpack.c.l.b16 %v2283
      %v2371 = vunpack.c.h.b16 %v2283
      %v2372 = vunpack.c.l.b16 %v2284
      %v2373 = vunpack.c.l.b16 %v2285
      %v2374 = vunpack.c.h.b16 %v2285
      %v2375 = vunpack.c.l.b16 %v2286
      %v2376 = vunpack.c.l.b16 %v2287
      %v2377 = vunpack.c.h.b16 %v2287
      %v2378 = vunpack.c.l.b16 %v2288
      %v2379 = vunpack.c.l.b16 %v2289
      %v2380 = vunpack.c.h.b16 %v2289
      %v2381 = vunpack.c.l.b16 %v2290
      %v2382 = vunpack.c.l.b16 %v2291
      %v2383 = vunpack.c.h.b16 %v2291
      %v2384 = vunpack.c.l.b16 %v2292
      %v2385 = vunpack.c.l.b16 %v2293
      %v2386 = vunpack.c.h.b16 %v2293
      %v2387 = vunpack.c.l.b16 %v2294
      %v2388 = vunpack.c.l.b16 %v2295
      %v2389 = vunpack.c.h.b16 %v2295
      %v2390 = vunpack.c.l.b16 %v2296
      %v2391 = vunpack.c.l.b16 %v2297
      %v2392 = vunpack.c.h.b16 %v2297
      %v2393 = vunpack.c.l.b16 %v2298
      %v2394 = vunpack.c.l.b16 %v2299
      %v2395 = vunpack.c.h.b16 %v2299
      %v2396 = vunpack.c.l.b16 %v2300
      %v2397 = vunpack.c.l.b16 %v2301
      %v2398 = vunpack.c.h.b16 %v2301
      %v2399 = vunpack.c.l.b16 %v2302
      %v2400 = vunpack.c.l.b16 %v2303
      %v2401 = vunpack.c.h.b16 %v2303
      %v2402 = vunpack.c.l.b16 %v2304
      %v2403 = vunpack.c.l.b16 %v2305
      %v2404 = vunpack.c.h.b16 %v2305
      %v2405 = vunpack.c.l.b16 %v2306
      %v2406 = vunpack.c.l.b16 %v2307
      %v2407 = vunpack.c.h.b16 %v2307
      %v2408 = vunpack.c.l.b16 %v2308
      %v2409 = vunpack.c.l.b16 %v2309
      %v2410 = vunpack.c.h.b16 %v2309
      %v2411 = vunpack.c.l.b16 %v2310
      %v2412 = vunpack.c.l.b16 %v2311
      %v2413 = vunpack.c.h.b16 %v2311
      %v2414 = vunpack.c.l.b16 %v2312
      %v2415 = vunpack.c.l.b16 %v2313
      %v2416 = vunpack.c.h.b16 %v2313
      %v2417 = vunpack.c.l.b16 %v2314
      %v2418 = vunpack.c.l.b16 %v2315
      %v2419 = vunpack.c.h.b16 %v2315
      %v2420 = vunpack.c.l.b16 %v2316
      %v2421 = vpack.c.b16 %v2370, %v2367
      %v2422 = vpack.c.b16 %v2371, %v2368
      %v2423 = vpack.c.b16 %v2372, %v2369
      %v2424 = vpack.c.b16 %v2376, %v2373
      %v2425 = vpack.c.b16 %v2377, %v2374
      %v2426 = vpack.c.b16 %v2378, %v2375
      %v2427 = vpack.c.b16 %v2382, %v2379
      %v2428 = vpack.c.b16 %v2383, %v2380
      %v2429 = vpack.c.b16 %v2384, %v2381
      %v2430 = vpack.c.b16 %v2388, %v2385
      %v2431 = vpack.c.b16 %v2389, %v2386
      %v2432 = vpack.c.b16 %v2390, %v2387
      %v2433 = vpack.c.b16 %v2394, %v2391
      %v2434 = vpack.c.b16 %v2395, %v2392
      %v2435 = vpack.c.b16 %v2396, %v2393
      %v2436 = vpack.c.b16 %v2400, %v2397
      %v2437 = vpack.c.b16 %v2401, %v2398
      %v2438 = vpack.c.b16 %v2402, %v2399
      %v2439 = vpack.c.b16 %v2406, %v2403
      %v2440 = vpack.c.b16 %v2407, %v2404
      %v2441 = vpack.c.b16 %v2408, %v2405
      %v2442 = vpack.c.b16 %v2412, %v2409
      %v2443 = vpack.c.b16 %v2413, %v2410
      %v2444 = vpack.c.b16 %v2414, %v2411
      %v2445 = vpack.c.b16 %v2418, %v2415
      %v2446 = vpack.c.b16 %v2419, %v2416
      %v2447 = vpack.c.b16 %v2420, %v2417
      %v2476 = vsel %vm615, %v2320, 0
      %v2479 = vsel %vm615, %v2322, 0
      %v2482 = vsel %vm615, %v2324, 0
      %v2485 = vsel %vm615, %v2326, 0
      %2487 = vmatprep.subr.bf16.mxu0 %v2443
      %2488 = vmatpush1.bf16.msra.mxu0 %v2442
      %2489 = vmatprep.subr.bf16.mxu0 %v2440
      %2490 = vmatpush1.bf16.msra.mxu0 %v2439
      %2491 = vmatprep.subr.bf16.mxu0 %v2437
      %2492 = vmatpush1.bf16.msra.mxu0 %v2436
      %2493 = vmatprep.subr.bf16.mxu0 %v2434
      %2494 = vmatpush1.bf16.msra.mxu0 %v2433
      %2495 = vmatprep.subr.bf16.mxu0 %v2431
      %2496 = vmatpush1.bf16.msra.mxu0 %v2430
      %2497 = vmatprep.subr.bf16.mxu0 %v2428
      %2498 = vmatpush1.bf16.msra.mxu0 %v2427
      %2499 = vmatprep.subr.bf16.mxu0 %v2425
      %2500 = vmatpush1.bf16.msra.mxu0 %v2424
      %2501 = vmatprep.subr.bf16.mxu0 %v2422
      %2502 = vmatpush1.bf16.msra.mxu0 %v2421
      %2503 = vmatprep.subr.bf16.mxu0 0
      %2504 = vmatpush2.bf16.msra.mxu0 0
      %2505 = vmatprep.subr.bf16.mxu0 0
      %2506 = vmatpush2.bf16.msra.mxu0 0
      %2507 = vmatprep.subr.bf16.mxu0 0
      %2508 = vmatpush2.bf16.msra.mxu0 0
      %2509 = vmatprep.subr.bf16.mxu0 0
      %2510 = vmatpush2.bf16.msra.mxu0 0
      %2511 = vmatprep.subr.bf16.mxu0 0
      %2512 = vmatpush2.bf16.msra.mxu0 0
      %2513 = vmatprep.subr.bf16.mxu0 0
      %2514 = vmatpush2.bf16.msra.mxu0 0
      %2515 = vmatprep.subr.bf16.mxu0 0
      %2516 = vmatpush2.bf16.msra.mxu0 0
      %2517 = vmatprep.subr.bf16.mxu0 %v2446
      %2518 = vmatpush2.bf16.msra.mxu0 %v2445
      %2519 = vmatprep.mubr.bf16.mxu0 %v2476
      %2520 = vmatmul.mubr.bf16.gmra.mxu0 %v2319
      %v2521 = vpop.f32.mrf.mxu0
      %v2522 = vadd.f32 0.0, %v2521
      %v2523 = vpop.f32.mrf.mxu0
      %v2524 = vadd.f32 0.0, %v2523
      %v2525 = vpop.f32.mrf.mxu0
      %v2526 = vadd.f32 0.0, %v2525
      %v2527 = vpop.f32.mrf.mxu0
      %v2528 = vadd.f32 0.0, %v2527
      %2529 = vmatprep.mubr.bf16.mxu0 %v2479
      %2530 = vmatmul.mubr.bf16.gmra.mxu0 %v2321
      %v2531 = vpop.f32.mrf.mxu0
      %v2532 = vadd.f32 0.0, %v2531
      %v2533 = vpop.f32.mrf.mxu0
      %v2534 = vadd.f32 0.0, %v2533
      %v2535 = vpop.f32.mrf.mxu0
      %v2536 = vadd.f32 0.0, %v2535
      %v2537 = vpop.f32.mrf.mxu0
      %v2538 = vadd.f32 0.0, %v2537
      %2539 = vmatprep.mubr.bf16.mxu0 %v2482
      %2540 = vmatmul.mubr.bf16.gmra.mxu0 %v2323
      %v2541 = vpop.f32.mrf.mxu0
      %v2542 = vadd.f32 0.0, %v2541
      %v2543 = vpop.f32.mrf.mxu0
      %v2544 = vadd.f32 0.0, %v2543
      %v2545 = vpop.f32.mrf.mxu0
      %v2546 = vadd.f32 0.0, %v2545
      %v2547 = vpop.f32.mrf.mxu0
      %v2548 = vadd.f32 0.0, %v2547
      %2549 = vmatprep.mubr.bf16.mxu0 %v2485
      %2550 = vmatmul.mubr.bf16.gmra.mxu0 %v2325
      %v2551 = vpop.f32.mrf.mxu0
      %v2552 = vadd.f32 0.0, %v2551
      %v2553 = vpop.f32.mrf.mxu0
      %v2554 = vadd.f32 0.0, %v2553
      %v2555 = vpop.f32.mrf.mxu0
      %v2556 = vadd.f32 0.0, %v2555
      %v2557 = vpop.f32.mrf.mxu0
      %v2558 = vadd.f32 0.0, %v2557
      %2559 = vdwg.mxu0
      %2560 = vmatprep.subr.bf16.mxu0 0
      %2561 = vmatpush1.bf16.msra.mxu0 %v2444
      %2562 = vmatprep.subr.bf16.mxu0 0
      %2563 = vmatpush1.bf16.msra.mxu0 %v2441
      %2564 = vmatprep.subr.bf16.mxu0 0
      %2565 = vmatpush1.bf16.msra.mxu0 %v2438
      %2566 = vmatprep.subr.bf16.mxu0 0
      %2567 = vmatpush1.bf16.msra.mxu0 %v2435
      %2568 = vmatprep.subr.bf16.mxu0 0
      %2569 = vmatpush1.bf16.msra.mxu0 %v2432
      %2570 = vmatprep.subr.bf16.mxu0 0
      %2571 = vmatpush1.bf16.msra.mxu0 %v2429
      %2572 = vmatprep.subr.bf16.mxu0 0
      %2573 = vmatpush1.bf16.msra.mxu0 %v2426
      %2574 = vmatprep.subr.bf16.mxu0 0
      %2575 = vmatpush1.bf16.msra.mxu0 %v2423
      %2576 = vmatprep.subr.bf16.mxu0 0
      %2577 = vmatpush2.bf16.msra.mxu0 0
      %2578 = vmatprep.subr.bf16.mxu0 0
      %2579 = vmatpush2.bf16.msra.mxu0 0
      %2580 = vmatprep.subr.bf16.mxu0 0
      %2581 = vmatpush2.bf16.msra.mxu0 0
      %2582 = vmatprep.subr.bf16.mxu0 0
      %2583 = vmatpush2.bf16.msra.mxu0 0
      %2584 = vmatprep.subr.bf16.mxu0 0
      %2585 = vmatpush2.bf16.msra.mxu0 0
      %2586 = vmatprep.subr.bf16.mxu0 0
      %2587 = vmatpush2.bf16.msra.mxu0 0
      %2588 = vmatprep.subr.bf16.mxu0 0
      %2589 = vmatpush2.bf16.msra.mxu0 0
      %2590 = vmatprep.subr.bf16.mxu0 0
      %2591 = vmatpush2.bf16.msra.mxu0 %v2447
      %2592 = vmatprep.mubr.bf16.mxu0 %v2476
      %2593 = vmatmul.mubr.bf16.gmra.mxu0 %v2319
      %v2594 = vpop.f32.mrf.mxu0
      %v2595 = vadd.f32 0.0, %v2594
      %v2596 = vpop.f32.mrf.mxu0
      %v2597 = vpop.f32.mrf.mxu0
      %v2598 = vadd.f32 0.0, %v2597
      %v2599 = vpop.f32.mrf.mxu0
      %2600 = vmatprep.mubr.bf16.mxu0 %v2479
      %2601 = vmatmul.mubr.bf16.gmra.mxu0 %v2321
      %v2602 = vpop.f32.mrf.mxu0
      %v2603 = vadd.f32 0.0, %v2602
      %v2604 = vpop.f32.mrf.mxu0
      %v2605 = vpop.f32.mrf.mxu0
      %v2606 = vadd.f32 0.0, %v2605
      %v2607 = vpop.f32.mrf.mxu0
      %2608 = vmatprep.mubr.bf16.mxu0 %v2482
      %2609 = vmatmul.mubr.bf16.gmra.mxu0 %v2323
      %v2610 = vpop.f32.mrf.mxu0
      %v2611 = vadd.f32 0.0, %v2610
      %v2612 = vpop.f32.mrf.mxu0
      %v2613 = vpop.f32.mrf.mxu0
      %v2614 = vadd.f32 0.0, %v2613
      %v2615 = vpop.f32.mrf.mxu0
      %2616 = vmatprep.mubr.bf16.mxu0 %v2485
      %2617 = vmatmul.mubr.bf16.gmra.mxu0 %v2325
      %v2618 = vpop.f32.mrf.mxu0
      %v2619 = vadd.f32 0.0, %v2618
      %v2620 = vpop.f32.mrf.mxu0
      %v2621 = vpop.f32.mrf.mxu0
      %v2622 = vadd.f32 0.0, %v2621
      %v2623 = vpop.f32.mrf.mxu0
      %2624 = vdwg.mxu0
      %v2625 = vadd.f32 %v2251, %v2522
      %v2626 = vadd.f32 %v2252, %v2524
      %v2627 = vadd.f32 %v2253, %v2595
      %v2628 = vadd.f32 %v2254, %v2526
      %v2629 = vadd.f32 %v2255, %v2528
      %v2630 = vadd.f32 %v2256, %v2598
      %v2631 = vadd.f32 %v2257, %v2532
      %v2632 = vadd.f32 %v2258, %v2534
      %v2633 = vadd.f32 %v2259, %v2603
      %v2634 = vadd.f32 %v2260, %v2536
      %v2635 = vadd.f32 %v2261, %v2538
      %v2636 = vadd.f32 %v2262, %v2606
      %v2637 = vadd.f32 %v2263, %v2542
      %v2638 = vadd.f32 %v2264, %v2544
      %v2639 = vadd.f32 %v2265, %v2611
      %v2640 = vadd.f32 %v2266, %v2546
      %v2641 = vadd.f32 %v2267, %v2548
      %v2642 = vadd.f32 %v2268, %v2614
      %v2643 = vadd.f32 %v2269, %v2552
      %v2644 = vadd.f32 %v2270, %v2554
      %v2645 = vadd.f32 %v2271, %v2619
      %v2646 = vadd.f32 %v2272, %v2556
      %v2647 = vadd.f32 %v2273, %v2558
      %v2648 = vadd.f32 %v2274, %v2622
      %s2649 = scalar_lea.vmem %s1, 1296
      %v2650 = vld [vmem:[%s2649] sm:$0xff]
      %v2651 = vld [vmem:[%s2649 + $0x8] sm:$0xf]
      %v2652 = vld [vmem:[%s2649 + $0xc] sm:$0xff]
      %v2653 = vld [vmem:[%s2649 + $0x14] sm:$0xf]
      %v2654 = vld [vmem:[%s2649 + $0x18] sm:$0xff]
      %v2655 = vld [vmem:[%s2649 + $0x20] sm:$0xf]
      %v2656 = vld [vmem:[%s2649 + $0x24] sm:$0xff]
      %v2657 = vld [vmem:[%s2649 + $0x2c] sm:$0xf]
      %v2658 = vld [vmem:[%s2649 + $0x30] sm:$0xff]
      %v2659 = vld [vmem:[%s2649 + $0x38] sm:$0xf]
      %v2660 = vld [vmem:[%s2649 + $0x3c] sm:$0xff]
      %v2661 = vld [vmem:[%s2649 + $0x44] sm:$0xf]
      %v2662 = vld [vmem:[%s2649 + $0x48] sm:$0xff]
      %v2663 = vld [vmem:[%s2649 + $0x50] sm:$0xf]
      %v2664 = vld [vmem:[%s2649 + $0x54] sm:$0xff]
      %v2665 = vld [vmem:[%s2649 + $0x5c] sm:$0xf]
      %v2666 = vld [vmem:[%s2649 + $0x60] sm:$0xff]
      %v2667 = vld [vmem:[%s2649 + $0x68] sm:$0xf]
      %v2668 = vld [vmem:[%s2649 + $0x6c] sm:$0xff]
      %v2669 = vld [vmem:[%s2649 + $0x74] sm:$0xf]
      %v2670 = vld [vmem:[%s2649 + $0x78] sm:$0xff]
      %v2671 = vld [vmem:[%s2649 + $0x80] sm:$0xf]
      %v2672 = vld [vmem:[%s2649 + $0x84] sm:$0xff]
      %v2673 = vld [vmem:[%s2649 + $0x8c] sm:$0xf]
      %v2674 = vld [vmem:[%s2649 + $0x90] sm:$0xff]
      %v2675 = vld [vmem:[%s2649 + $0x98] sm:$0xf]
      %v2676 = vld [vmem:[%s2649 + $0x9c] sm:$0xff]
      %v2677 = vld [vmem:[%s2649 + $0xa4] sm:$0xf]
      %v2678 = vld [vmem:[%s2649 + $0xa8] sm:$0xff]
      %v2679 = vld [vmem:[%s2649 + $0xb0] sm:$0xf]
      %v2680 = vld [vmem:[%s2649 + $0xb4] sm:$0xff]
      %v2681 = vld [vmem:[%s2649 + $0xbc] sm:$0xf]
      %v2682 = vld [vmem:[%s2649 + $0xc0] sm:$0xff]
      %v2683 = vld [vmem:[%s2649 + $0xc8] sm:$0xf]
      %v2684 = vld [vmem:[%s2649 + $0xcc] sm:$0xff]
      %v2685 = vld [vmem:[%s2649 + $0xd4] sm:$0xf]
      %v2687 = vunpack.c.l.b16 %v253
      %v2688 = vunpack.c.h.b16 %v253
      %v2689 = vpack.c.b16 %v2687, %v1560
      %v2690 = vpack.c.b16 %v2688, %v1561
      %v2728 = vunpack.c.l.b16 %v2650
      %v2729 = vunpack.c.h.b16 %v2650
      %v2730 = vunpack.c.l.b16 %v2651
      %v2731 = vunpack.c.l.b16 %v2652
      %v2732 = vunpack.c.h.b16 %v2652
      %v2733 = vunpack.c.l.b16 %v2653
      %v2734 = vunpack.c.l.b16 %v2654
      %v2735 = vunpack.c.h.b16 %v2654
      %v2736 = vunpack.c.l.b16 %v2655
      %v2737 = vunpack.c.l.b16 %v2656
      %v2738 = vunpack.c.h.b16 %v2656
      %v2739 = vunpack.c.l.b16 %v2657
      %v2740 = vunpack.c.l.b16 %v2658
      %v2741 = vunpack.c.h.b16 %v2658
      %v2742 = vunpack.c.l.b16 %v2659
      %v2743 = vunpack.c.l.b16 %v2660
      %v2744 = vunpack.c.h.b16 %v2660
      %v2745 = vunpack.c.l.b16 %v2661
      %v2746 = vunpack.c.l.b16 %v2662
      %v2747 = vunpack.c.h.b16 %v2662
      %v2748 = vunpack.c.l.b16 %v2663
      %v2749 = vunpack.c.l.b16 %v2664
      %v2750 = vunpack.c.h.b16 %v2664
      %v2751 = vunpack.c.l.b16 %v2665
      %v2752 = vunpack.c.l.b16 %v2666
      %v2753 = vunpack.c.h.b16 %v2666
      %v2754 = vunpack.c.l.b16 %v2667
      %v2755 = vunpack.c.l.b16 %v2668
      %v2756 = vunpack.c.h.b16 %v2668
      %v2757 = vunpack.c.l.b16 %v2669
      %v2758 = vunpack.c.l.b16 %v2670
      %v2759 = vunpack.c.h.b16 %v2670
      %v2760 = vunpack.c.l.b16 %v2671
      %v2761 = vunpack.c.l.b16 %v2672
      %v2762 = vunpack.c.h.b16 %v2672
      %v2763 = vunpack.c.l.b16 %v2673
      %v2764 = vunpack.c.l.b16 %v2674
      %v2765 = vunpack.c.h.b16 %v2674
      %v2766 = vunpack.c.l.b16 %v2675
      %v2767 = vunpack.c.l.b16 %v2676
      %v2768 = vunpack.c.h.b16 %v2676
      %v2769 = vunpack.c.l.b16 %v2677
      %v2770 = vunpack.c.l.b16 %v2678
      %v2771 = vunpack.c.h.b16 %v2678
      %v2772 = vunpack.c.l.b16 %v2679
      %v2773 = vunpack.c.l.b16 %v2680
      %v2774 = vunpack.c.h.b16 %v2680
      %v2775 = vunpack.c.l.b16 %v2681
      %v2776 = vunpack.c.l.b16 %v2682
      %v2777 = vunpack.c.h.b16 %v2682
      %v2778 = vunpack.c.l.b16 %v2683
      %v2779 = vunpack.c.l.b16 %v2684
      %v2780 = vunpack.c.h.b16 %v2684
      %v2781 = vunpack.c.l.b16 %v2685
      %v2782 = vpack.c.b16 %v2731, %v2728
      %v2783 = vpack.c.b16 %v2732, %v2729
      %v2784 = vpack.c.b16 %v2733, %v2730
      %v2785 = vpack.c.b16 %v2737, %v2734
      %v2786 = vpack.c.b16 %v2738, %v2735
      %v2787 = vpack.c.b16 %v2739, %v2736
      %v2788 = vpack.c.b16 %v2743, %v2740
      %v2789 = vpack.c.b16 %v2744, %v2741
      %v2790 = vpack.c.b16 %v2745, %v2742
      %v2791 = vpack.c.b16 %v2749, %v2746
      %v2792 = vpack.c.b16 %v2750, %v2747
      %v2793 = vpack.c.b16 %v2751, %v2748
      %v2794 = vpack.c.b16 %v2755, %v2752
      %v2795 = vpack.c.b16 %v2756, %v2753
      %v2796 = vpack.c.b16 %v2757, %v2754
      %v2797 = vpack.c.b16 %v2761, %v2758
      %v2798 = vpack.c.b16 %v2762, %v2759
      %v2799 = vpack.c.b16 %v2763, %v2760
      %v2800 = vpack.c.b16 %v2767, %v2764
      %v2801 = vpack.c.b16 %v2768, %v2765
      %v2802 = vpack.c.b16 %v2769, %v2766
      %v2803 = vpack.c.b16 %v2773, %v2770
      %v2804 = vpack.c.b16 %v2774, %v2771
      %v2805 = vpack.c.b16 %v2775, %v2772
      %v2806 = vpack.c.b16 %v2779, %v2776
      %v2807 = vpack.c.b16 %v2780, %v2777
      %v2808 = vpack.c.b16 %v2781, %v2778
      %v2837 = vsel %vm615, %v2690, 0
      %2839 = vmatprep.subr.bf16.mxu0 %v2804
      %2840 = vmatpush1.bf16.msra.mxu0 %v2803
      %2841 = vmatprep.subr.bf16.mxu0 %v2801
      %2842 = vmatpush1.bf16.msra.mxu0 %v2800
      %2843 = vmatprep.subr.bf16.mxu0 %v2798
      %2844 = vmatpush1.bf16.msra.mxu0 %v2797
      %2845 = vmatprep.subr.bf16.mxu0 %v2795
      %2846 = vmatpush1.bf16.msra.mxu0 %v2794
      %2847 = vmatprep.subr.bf16.mxu0 %v2792
      %2848 = vmatpush1.bf16.msra.mxu0 %v2791
      %2849 = vmatprep.subr.bf16.mxu0 %v2789
      %2850 = vmatpush1.bf16.msra.mxu0 %v2788
      %2851 = vmatprep.subr.bf16.mxu0 %v2786
      %2852 = vmatpush1.bf16.msra.mxu0 %v2785
      %2853 = vmatprep.subr.bf16.mxu0 %v2783
      %2854 = vmatpush1.bf16.msra.mxu0 %v2782
      %2855 = vmatprep.subr.bf16.mxu0 0
      %2856 = vmatpush2.bf16.msra.mxu0 0
      %2857 = vmatprep.subr.bf16.mxu0 0
      %2858 = vmatpush2.bf16.msra.mxu0 0
      %2859 = vmatprep.subr.bf16.mxu0 0
      %2860 = vmatpush2.bf16.msra.mxu0 0
      %2861 = vmatprep.subr.bf16.mxu0 0
      %2862 = vmatpush2.bf16.msra.mxu0 0
      %2863 = vmatprep.subr.bf16.mxu0 0
      %2864 = vmatpush2.bf16.msra.mxu0 0
      %2865 = vmatprep.subr.bf16.mxu0 0
      %2866 = vmatpush2.bf16.msra.mxu0 0
      %2867 = vmatprep.subr.bf16.mxu0 0
      %2868 = vmatpush2.bf16.msra.mxu0 0
      %2869 = vmatprep.subr.bf16.mxu0 %v2807
      %2870 = vmatpush2.bf16.msra.mxu0 %v2806
      %2871 = vmatprep.mubr.bf16.mxu0 %v950
      %2872 = vmatmul.mubr.bf16.gmra.mxu0 %v792
      %v2873 = vpop.f32.mrf.mxu0
      %v2874 = vadd.f32 0.0, %v2873
      %v2875 = vpop.f32.mrf.mxu0
      %v2876 = vadd.f32 0.0, %v2875
      %v2877 = vpop.f32.mrf.mxu0
      %v2878 = vadd.f32 0.0, %v2877
      %v2879 = vpop.f32.mrf.mxu0
      %v2880 = vadd.f32 0.0, %v2879
      %2881 = vmatprep.mubr.bf16.mxu0 %v953
      %2882 = vmatmul.mubr.bf16.gmra.mxu0 %v794
      %v2883 = vpop.f32.mrf.mxu0
      %v2884 = vadd.f32 0.0, %v2883
      %v2885 = vpop.f32.mrf.mxu0
      %v2886 = vadd.f32 0.0, %v2885
      %v2887 = vpop.f32.mrf.mxu0
      %v2888 = vadd.f32 0.0, %v2887
      %v2889 = vpop.f32.mrf.mxu0
      %v2890 = vadd.f32 0.0, %v2889
      %2891 = vmatprep.mubr.bf16.mxu0 %v956
      %2892 = vmatmul.mubr.bf16.gmra.mxu0 %v796
      %v2893 = vpop.f32.mrf.mxu0
      %v2894 = vadd.f32 0.0, %v2893
      %v2895 = vpop.f32.mrf.mxu0
      %v2896 = vadd.f32 0.0, %v2895
      %v2897 = vpop.f32.mrf.mxu0
      %v2898 = vadd.f32 0.0, %v2897
      %v2899 = vpop.f32.mrf.mxu0
      %v2900 = vadd.f32 0.0, %v2899
      %2901 = vmatprep.mubr.bf16.mxu0 %v2837
      %2902 = vmatmul.mubr.bf16.gmra.mxu0 %v2689
      %v2903 = vpop.f32.mrf.mxu0
      %v2904 = vadd.f32 0.0, %v2903
      %v2905 = vpop.f32.mrf.mxu0
      %v2906 = vadd.f32 0.0, %v2905
      %v2907 = vpop.f32.mrf.mxu0
      %v2908 = vadd.f32 0.0, %v2907
      %v2909 = vpop.f32.mrf.mxu0
      %v2910 = vadd.f32 0.0, %v2909
      %2911 = vdwg.mxu0
      %2912 = vmatprep.subr.bf16.mxu0 0
      %2913 = vmatpush1.bf16.msra.mxu0 %v2805
      %2914 = vmatprep.subr.bf16.mxu0 0
      %2915 = vmatpush1.bf16.msra.mxu0 %v2802
      %2916 = vmatprep.subr.bf16.mxu0 0
      %2917 = vmatpush1.bf16.msra.mxu0 %v2799
      %2918 = vmatprep.subr.bf16.mxu0 0
      %2919 = vmatpush1.bf16.msra.mxu0 %v2796
      %2920 = vmatprep.subr.bf16.mxu0 0
      %2921 = vmatpush1.bf16.msra.mxu0 %v2793
      %2922 = vmatprep.subr.bf16.mxu0 0
      %2923 = vmatpush1.bf16.msra.mxu0 %v2790
      %2924 = vmatprep.subr.bf16.mxu0 0
      %2925 = vmatpush1.bf16.msra.mxu0 %v2787
      %2926 = vmatprep.subr.bf16.mxu0 0
      %2927 = vmatpush1.bf16.msra.mxu0 %v2784
      %2928 = vmatprep.subr.bf16.mxu0 0
      %2929 = vmatpush2.bf16.msra.mxu0 0
      %2930 = vmatprep.subr.bf16.mxu0 0
      %2931 = vmatpush2.bf16.msra.mxu0 0
      %2932 = vmatprep.subr.bf16.mxu0 0
      %2933 = vmatpush2.bf16.msra.mxu0 0
      %2934 = vmatprep.subr.bf16.mxu0 0
      %2935 = vmatpush2.bf16.msra.mxu0 0
      %2936 = vmatprep.subr.bf16.mxu0 0
      %2937 = vmatpush2.bf16.msra.mxu0 0
      %2938 = vmatprep.subr.bf16.mxu0 0
      %2939 = vmatpush2.bf16.msra.mxu0 0
      %2940 = vmatprep.subr.bf16.mxu0 0
      %2941 = vmatpush2.bf16.msra.mxu0 0
      %2942 = vmatprep.subr.bf16.mxu0 0
      %2943 = vmatpush2.bf16.msra.mxu0 %v2808
      %2944 = vmatprep.mubr.bf16.mxu0 %v950
      %2945 = vmatmul.mubr.bf16.gmra.mxu0 %v792
      %v2946 = vpop.f32.mrf.mxu0
      %v2947 = vadd.f32 0.0, %v2946
      %v2948 = vpop.f32.mrf.mxu0
      %v2949 = vpop.f32.mrf.mxu0
      %v2950 = vadd.f32 0.0, %v2949
      %v2951 = vpop.f32.mrf.mxu0
      %2952 = vmatprep.mubr.bf16.mxu0 %v953
      %2953 = vmatmul.mubr.bf16.gmra.mxu0 %v794
      %v2954 = vpop.f32.mrf.mxu0
      %v2955 = vadd.f32 0.0, %v2954
      %v2956 = vpop.f32.mrf.mxu0
      %v2957 = vpop.f32.mrf.mxu0
      %v2958 = vadd.f32 0.0, %v2957
      %v2959 = vpop.f32.mrf.mxu0
      %2960 = vmatprep.mubr.bf16.mxu0 %v956
      %2961 = vmatmul.mubr.bf16.gmra.mxu0 %v796
      %v2962 = vpop.f32.mrf.mxu0
      %v2963 = vadd.f32 0.0, %v2962
      %v2964 = vpop.f32.mrf.mxu0
      %v2965 = vpop.f32.mrf.mxu0
      %v2966 = vadd.f32 0.0, %v2965
      %v2967 = vpop.f32.mrf.mxu0
      %2968 = vmatprep.mubr.bf16.mxu0 %v2837
      %2969 = vmatmul.mubr.bf16.gmra.mxu0 %v2689
      %v2970 = vpop.f32.mrf.mxu0
      %v2971 = vadd.f32 0.0, %v2970
      %v2972 = vpop.f32.mrf.mxu0
      %v2973 = vpop.f32.mrf.mxu0
      %v2974 = vadd.f32 0.0, %v2973
      %v2975 = vpop.f32.mrf.mxu0
      %2976 = vdwg.mxu0
      %v2977 = vadd.f32 %v2625, %v2874
      %v2978 = vadd.f32 %v2626, %v2876
      %v2979 = vadd.f32 %v2627, %v2947
      %v2980 = vadd.f32 %v2628, %v2878
      %v2981 = vadd.f32 %v2629, %v2880
      %v2982 = vadd.f32 %v2630, %v2950
      %v2983 = vadd.f32 %v2631, %v2884
      %v2984 = vadd.f32 %v2632, %v2886
      %v2985 = vadd.f32 %v2633, %v2955
      %v2986 = vadd.f32 %v2634, %v2888
      %v2987 = vadd.f32 %v2635, %v2890
      %v2988 = vadd.f32 %v2636, %v2958
      %v2989 = vadd.f32 %v2637, %v2894
      %v2990 = vadd.f32 %v2638, %v2896
      %v2991 = vadd.f32 %v2639, %v2963
      %v2992 = vadd.f32 %v2640, %v2898
      %v2993 = vadd.f32 %v2641, %v2900
      %v2994 = vadd.f32 %v2642, %v2966
      %v2995 = vadd.f32 %v2643, %v2904
      %v2996 = vadd.f32 %v2644, %v2906
      %v2997 = vadd.f32 %v2645, %v2971
      %v2998 = vadd.f32 %v2646, %v2908
      %v2999 = vadd.f32 %v2647, %v2910
      %v3000 = vadd.f32 %v2648, %v2974
      %v3002 = vshrl.u32 %v253, 16
      %v3004 = vrot.slane %v3002, 4
      %v3005 = vshll.u32 %v253, 16
      %v3007 = vrot.slane %v3005, 5
      %v3008 = vor.u32 %v3004, %v3007
      %v3009 = vrot.slane %v3008, 4
      %v3011 = vshll.u32 %v254, 16
      %v3013 = vrot.slane %v3011, 5
      %v3014 = vsel %vm293, %v3009, %v3013
      %s3015 = scalar_lea.vmem %s1, 1512
      %v3016 = vld [vmem:[%s3015] sm:$0xff]
      %v3017 = vld [vmem:[%s3015 + $0x8] sm:$0xf]
      %v3018 = vld [vmem:[%s3015 + $0xc] sm:$0xff]
      %v3019 = vld [vmem:[%s3015 + $0x14] sm:$0xf]
      %v3020 = vld [vmem:[%s3015 + $0x18] sm:$0xff]
      %v3021 = vld [vmem:[%s3015 + $0x20] sm:$0xf]
      %v3022 = vld [vmem:[%s3015 + $0x24] sm:$0xff]
      %v3023 = vld [vmem:[%s3015 + $0x2c] sm:$0xf]
      %v3024 = vld [vmem:[%s3015 + $0x30] sm:$0xff]
      %v3025 = vld [vmem:[%s3015 + $0x38] sm:$0xf]
      %v3026 = vld [vmem:[%s3015 + $0x3c] sm:$0xff]
      %v3027 = vld [vmem:[%s3015 + $0x44] sm:$0xf]
      %v3028 = vld [vmem:[%s3015 + $0x48] sm:$0xff]
      %v3029 = vld [vmem:[%s3015 + $0x50] sm:$0xf]
      %v3030 = vld [vmem:[%s3015 + $0x54] sm:$0xff]
      %v3031 = vld [vmem:[%s3015 + $0x5c] sm:$0xf]
      %v3032 = vld [vmem:[%s3015 + $0x60] sm:$0xff]
      %v3033 = vld [vmem:[%s3015 + $0x68] sm:$0xf]
      %v3034 = vld [vmem:[%s3015 + $0x6c] sm:$0xff]
      %v3035 = vld [vmem:[%s3015 + $0x74] sm:$0xf]
      %v3036 = vld [vmem:[%s3015 + $0x78] sm:$0xff]
      %v3037 = vld [vmem:[%s3015 + $0x80] sm:$0xf]
      %v3038 = vld [vmem:[%s3015 + $0x84] sm:$0xff]
      %v3039 = vld [vmem:[%s3015 + $0x8c] sm:$0xf]
      %v3040 = vld [vmem:[%s3015 + $0x90] sm:$0xff]
      %v3041 = vld [vmem:[%s3015 + $0x98] sm:$0xf]
      %v3042 = vld [vmem:[%s3015 + $0x9c] sm:$0xff]
      %v3043 = vld [vmem:[%s3015 + $0xa4] sm:$0xf]
      %v3044 = vld [vmem:[%s3015 + $0xa8] sm:$0xff]
      %v3045 = vld [vmem:[%s3015 + $0xb0] sm:$0xf]
      %v3046 = vld [vmem:[%s3015 + $0xb4] sm:$0xff]
      %v3047 = vld [vmem:[%s3015 + $0xbc] sm:$0xf]
      %v3048 = vld [vmem:[%s3015 + $0xc0] sm:$0xff]
      %v3049 = vld [vmem:[%s3015 + $0xc8] sm:$0xf]
      %v3050 = vld [vmem:[%s3015 + $0xcc] sm:$0xff]
      %v3051 = vld [vmem:[%s3015 + $0xd4] sm:$0xf]
      %v3052 = vunpack.c.l.b16 %v3014
      %v3053 = vunpack.c.h.b16 %v3014
      %v3054 = vpack.c.b16 %v3052, %v1943
      %v3055 = vpack.c.b16 %v3053, %v1944
      %v3093 = vunpack.c.l.b16 %v3016
      %v3094 = vunpack.c.h.b16 %v3016
      %v3095 = vunpack.c.l.b16 %v3017
      %v3096 = vunpack.c.l.b16 %v3018
      %v3097 = vunpack.c.h.b16 %v3018
      %v3098 = vunpack.c.l.b16 %v3019
      %v3099 = vunpack.c.l.b16 %v3020
      %v3100 = vunpack.c.h.b16 %v3020
      %v3101 = vunpack.c.l.b16 %v3021
      %v3102 = vunpack.c.l.b16 %v3022
      %v3103 = vunpack.c.h.b16 %v3022
      %v3104 = vunpack.c.l.b16 %v3023
      %v3105 = vunpack.c.l.b16 %v3024
      %v3106 = vunpack.c.h.b16 %v3024
      %v3107 = vunpack.c.l.b16 %v3025
      %v3108 = vunpack.c.l.b16 %v3026
      %v3109 = vunpack.c.h.b16 %v3026
      %v3110 = vunpack.c.l.b16 %v3027
      %v3111 = vunpack.c.l.b16 %v3028
      %v3112 = vunpack.c.h.b16 %v3028
      %v3113 = vunpack.c.l.b16 %v3029
      %v3114 = vunpack.c.l.b16 %v3030
      %v3115 = vunpack.c.h.b16 %v3030
      %v3116 = vunpack.c.l.b16 %v3031
      %v3117 = vunpack.c.l.b16 %v3032
      %v3118 = vunpack.c.h.b16 %v3032
      %v3119 = vunpack.c.l.b16 %v3033
      %v3120 = vunpack.c.l.b16 %v3034
      %v3121 = vunpack.c.h.b16 %v3034
      %v3122 = vunpack.c.l.b16 %v3035
      %v3123 = vunpack.c.l.b16 %v3036
      %v3124 = vunpack.c.h.b16 %v3036
      %v3125 = vunpack.c.l.b16 %v3037
      %v3126 = vunpack.c.l.b16 %v3038
      %v3127 = vunpack.c.h.b16 %v3038
      %v3128 = vunpack.c.l.b16 %v3039
      %v3129 = vunpack.c.l.b16 %v3040
      %v3130 = vunpack.c.h.b16 %v3040
      %v3131 = vunpack.c.l.b16 %v3041
      %v3132 = vunpack.c.l.b16 %v3042
      %v3133 = vunpack.c.h.b16 %v3042
      %v3134 = vunpack.c.l.b16 %v3043
      %v3135 = vunpack.c.l.b16 %v3044
      %v3136 = vunpack.c.h.b16 %v3044
      %v3137 = vunpack.c.l.b16 %v3045
      %v3138 = vunpack.c.l.b16 %v3046
      %v3139 = vunpack.c.h.b16 %v3046
      %v3140 = vunpack.c.l.b16 %v3047
      %v3141 = vunpack.c.l.b16 %v3048
      %v3142 = vunpack.c.h.b16 %v3048
      %v3143 = vunpack.c.l.b16 %v3049
      %v3144 = vunpack.c.l.b16 %v3050
      %v3145 = vunpack.c.h.b16 %v3050
      %v3146 = vunpack.c.l.b16 %v3051
      %v3147 = vpack.c.b16 %v3096, %v3093
      %v3148 = vpack.c.b16 %v3097, %v3094
      %v3149 = vpack.c.b16 %v3098, %v3095
      %v3150 = vpack.c.b16 %v3102, %v3099
      %v3151 = vpack.c.b16 %v3103, %v3100
      %v3152 = vpack.c.b16 %v3104, %v3101
      %v3153 = vpack.c.b16 %v3108, %v3105
      %v3154 = vpack.c.b16 %v3109, %v3106
      %v3155 = vpack.c.b16 %v3110, %v3107
      %v3156 = vpack.c.b16 %v3114, %v3111
      %v3157 = vpack.c.b16 %v3115, %v3112
      %v3158 = vpack.c.b16 %v3116, %v3113
      %v3159 = vpack.c.b16 %v3120, %v3117
      %v3160 = vpack.c.b16 %v3121, %v3118
      %v3161 = vpack.c.b16 %v3122, %v3119
      %v3162 = vpack.c.b16 %v3126, %v3123
      %v3163 = vpack.c.b16 %v3127, %v3124
      %v3164 = vpack.c.b16 %v3128, %v3125
      %v3165 = vpack.c.b16 %v3132, %v3129
      %v3166 = vpack.c.b16 %v3133, %v3130
      %v3167 = vpack.c.b16 %v3134, %v3131
      %v3168 = vpack.c.b16 %v3138, %v3135
      %v3169 = vpack.c.b16 %v3139, %v3136
      %v3170 = vpack.c.b16 %v3140, %v3137
      %v3171 = vpack.c.b16 %v3144, %v3141
      %v3172 = vpack.c.b16 %v3145, %v3142
      %v3173 = vpack.c.b16 %v3146, %v3143
      %v3202 = vsel %vm615, %v3055, 0
      %3204 = vmatprep.subr.bf16.mxu0 %v3169
      %3205 = vmatpush1.bf16.msra.mxu0 %v3168
      %3206 = vmatprep.subr.bf16.mxu0 %v3166
      %3207 = vmatpush1.bf16.msra.mxu0 %v3165
      %3208 = vmatprep.subr.bf16.mxu0 %v3163
      %3209 = vmatpush1.bf16.msra.mxu0 %v3162
      %3210 = vmatprep.subr.bf16.mxu0 %v3160
      %3211 = vmatpush1.bf16.msra.mxu0 %v3159
      %3212 = vmatprep.subr.bf16.mxu0 %v3157
      %3213 = vmatpush1.bf16.msra.mxu0 %v3156
      %3214 = vmatprep.subr.bf16.mxu0 %v3154
      %3215 = vmatpush1.bf16.msra.mxu0 %v3153
      %3216 = vmatprep.subr.bf16.mxu0 %v3151
      %3217 = vmatpush1.bf16.msra.mxu0 %v3150
      %3218 = vmatprep.subr.bf16.mxu0 %v3148
      %3219 = vmatpush1.bf16.msra.mxu0 %v3147
      %3220 = vmatprep.subr.bf16.mxu0 0
      %3221 = vmatpush2.bf16.msra.mxu0 0
      %3222 = vmatprep.subr.bf16.mxu0 0
      %3223 = vmatpush2.bf16.msra.mxu0 0
      %3224 = vmatprep.subr.bf16.mxu0 0
      %3225 = vmatpush2.bf16.msra.mxu0 0
      %3226 = vmatprep.subr.bf16.mxu0 0
      %3227 = vmatpush2.bf16.msra.mxu0 0
      %3228 = vmatprep.subr.bf16.mxu0 0
      %3229 = vmatpush2.bf16.msra.mxu0 0
      %3230 = vmatprep.subr.bf16.mxu0 0
      %3231 = vmatpush2.bf16.msra.mxu0 0
      %3232 = vmatprep.subr.bf16.mxu0 0
      %3233 = vmatpush2.bf16.msra.mxu0 0
      %3234 = vmatprep.subr.bf16.mxu0 %v3172
      %3235 = vmatpush2.bf16.msra.mxu0 %v3171
      %3236 = vmatprep.mubr.bf16.mxu0 %v620
      %3237 = vmatmul.mubr.bf16.gmra.mxu0 %v461
      %v3238 = vpop.f32.mrf.mxu0
      %v3239 = vadd.f32 0.0, %v3238
      %v3240 = vpop.f32.mrf.mxu0
      %v3241 = vadd.f32 0.0, %v3240
      %v3242 = vpop.f32.mrf.mxu0
      %v3243 = vadd.f32 0.0, %v3242
      %v3244 = vpop.f32.mrf.mxu0
      %v3245 = vadd.f32 0.0, %v3244
      %3246 = vmatprep.mubr.bf16.mxu0 %v623
      %3247 = vmatmul.mubr.bf16.gmra.mxu0 %v463
      %v3248 = vpop.f32.mrf.mxu0
      %v3249 = vadd.f32 0.0, %v3248
      %v3250 = vpop.f32.mrf.mxu0
      %v3251 = vadd.f32 0.0, %v3250
      %v3252 = vpop.f32.mrf.mxu0
      %v3253 = vadd.f32 0.0, %v3252
      %v3254 = vpop.f32.mrf.mxu0
      %v3255 = vadd.f32 0.0, %v3254
      %3256 = vmatprep.mubr.bf16.mxu0 %v626
      %3257 = vmatmul.mubr.bf16.gmra.mxu0 %v465
      %v3258 = vpop.f32.mrf.mxu0
      %v3259 = vadd.f32 0.0, %v3258
      %v3260 = vpop.f32.mrf.mxu0
      %v3261 = vadd.f32 0.0, %v3260
      %v3262 = vpop.f32.mrf.mxu0
      %v3263 = vadd.f32 0.0, %v3262
      %v3264 = vpop.f32.mrf.mxu0
      %v3265 = vadd.f32 0.0, %v3264
      %3266 = vmatprep.mubr.bf16.mxu0 %v3202
      %3267 = vmatmul.mubr.bf16.gmra.mxu0 %v3054
      %v3268 = vpop.f32.mrf.mxu0
      %v3269 = vadd.f32 0.0, %v3268
      %v3270 = vpop.f32.mrf.mxu0
      %v3271 = vadd.f32 0.0, %v3270
      %v3272 = vpop.f32.mrf.mxu0
      %v3273 = vadd.f32 0.0, %v3272
      %v3274 = vpop.f32.mrf.mxu0
      %v3275 = vadd.f32 0.0, %v3274
      %3276 = vdwg.mxu0
      %3277 = vmatprep.subr.bf16.mxu0 0
      %3278 = vmatpush1.bf16.msra.mxu0 %v3170
      %3279 = vmatprep.subr.bf16.mxu0 0
      %3280 = vmatpush1.bf16.msra.mxu0 %v3167
      %3281 = vmatprep.subr.bf16.mxu0 0
      %3282 = vmatpush1.bf16.msra.mxu0 %v3164
      %3283 = vmatprep.subr.bf16.mxu0 0
      %3284 = vmatpush1.bf16.msra.mxu0 %v3161
      %3285 = vmatprep.subr.bf16.mxu0 0
      %3286 = vmatpush1.bf16.msra.mxu0 %v3158
      %3287 = vmatprep.subr.bf16.mxu0 0
      %3288 = vmatpush1.bf16.msra.mxu0 %v3155
      %3289 = vmatprep.subr.bf16.mxu0 0
      %3290 = vmatpush1.bf16.msra.mxu0 %v3152
      %3291 = vmatprep.subr.bf16.mxu0 0
      %3292 = vmatpush1.bf16.msra.mxu0 %v3149
      %3293 = vmatprep.subr.bf16.mxu0 0
      %3294 = vmatpush2.bf16.msra.mxu0 0
      %3295 = vmatprep.subr.bf16.mxu0 0
      %3296 = vmatpush2.bf16.msra.mxu0 0
      %3297 = vmatprep.subr.bf16.mxu0 0
      %3298 = vmatpush2.bf16.msra.mxu0 0
      %3299 = vmatprep.subr.bf16.mxu0 0
      %3300 = vmatpush2.bf16.msra.mxu0 0
      %3301 = vmatprep.subr.bf16.mxu0 0
      %3302 = vmatpush2.bf16.msra.mxu0 0
      %3303 = vmatprep.subr.bf16.mxu0 0
      %3304 = vmatpush2.bf16.msra.mxu0 0
      %3305 = vmatprep.subr.bf16.mxu0 0
      %3306 = vmatpush2.bf16.msra.mxu0 0
      %3307 = vmatprep.subr.bf16.mxu0 0
      %3308 = vmatpush2.bf16.msra.mxu0 %v3173
      %3309 = vmatprep.mubr.bf16.mxu0 %v620
      %3310 = vmatmul.mubr.bf16.gmra.mxu0 %v461
      %v3311 = vpop.f32.mrf.mxu0
      %v3312 = vadd.f32 0.0, %v3311
      %v3313 = vpop.f32.mrf.mxu0
      %v3314 = vpop.f32.mrf.mxu0
      %v3315 = vadd.f32 0.0, %v3314
      %v3316 = vpop.f32.mrf.mxu0
      %3317 = vmatprep.mubr.bf16.mxu0 %v623
      %3318 = vmatmul.mubr.bf16.gmra.mxu0 %v463
      %v3319 = vpop.f32.mrf.mxu0
      %v3320 = vadd.f32 0.0, %v3319
      %v3321 = vpop.f32.mrf.mxu0
      %v3322 = vpop.f32.mrf.mxu0
      %v3323 = vadd.f32 0.0, %v3322
      %v3324 = vpop.f32.mrf.mxu0
      %3325 = vmatprep.mubr.bf16.mxu0 %v626
      %3326 = vmatmul.mubr.bf16.gmra.mxu0 %v465
      %v3327 = vpop.f32.mrf.mxu0
      %v3328 = vadd.f32 0.0, %v3327
      %v3329 = vpop.f32.mrf.mxu0
      %v3330 = vpop.f32.mrf.mxu0
      %v3331 = vadd.f32 0.0, %v3330
      %v3332 = vpop.f32.mrf.mxu0
      %3333 = vmatprep.mubr.bf16.mxu0 %v3202
      %3334 = vmatmul.mubr.bf16.gmra.mxu0 %v3054
      %v3335 = vpop.f32.mrf.mxu0
      %v3336 = vadd.f32 0.0, %v3335
      %v3337 = vpop.f32.mrf.mxu0
      %v3338 = vpop.f32.mrf.mxu0
      %v3339 = vadd.f32 0.0, %v3338
      %v3340 = vpop.f32.mrf.mxu0
      %3341 = vdwg.mxu0
      %v3342 = vadd.f32 %v2977, %v3239
      %v3343 = vadd.f32 %v2978, %v3241
      %v3344 = vadd.f32 %v2979, %v3312
      %v3345 = vadd.f32 %v2980, %v3243
      %v3346 = vadd.f32 %v2981, %v3245
      %v3347 = vadd.f32 %v2982, %v3315
      %v3348 = vadd.f32 %v2983, %v3249
      %v3349 = vadd.f32 %v2984, %v3251
      %v3350 = vadd.f32 %v2985, %v3320
      %v3351 = vadd.f32 %v2986, %v3253
      %v3352 = vadd.f32 %v2987, %v3255
      %v3353 = vadd.f32 %v2988, %v3323
      %v3354 = vadd.f32 %v2989, %v3259
      %v3355 = vadd.f32 %v2990, %v3261
      %v3356 = vadd.f32 %v2991, %v3328
      %v3357 = vadd.f32 %v2992, %v3263
      %v3358 = vadd.f32 %v2993, %v3265
      %v3359 = vadd.f32 %v2994, %v3331
      %v3360 = vadd.f32 %v2995, %v3269
      %v3361 = vadd.f32 %v2996, %v3271
      %v3362 = vadd.f32 %v2997, %v3336
      %v3363 = vadd.f32 %v2998, %v3273
      %v3364 = vadd.f32 %v2999, %v3275
      %v3365 = vadd.f32 %v3000, %v3339
      %v3367 = vrot.slane %v253, 5
      %v3368 = vrot.slane %v3367, 4
      %v3369 = vrot.slane %v254, 5
      %v3370 = vsel %vm1106, %v3368, %v3369
      %s3371 = scalar_lea.vmem %s1, 1728
      %v3372 = vld [vmem:[%s3371] sm:$0xff]
      %v3373 = vld [vmem:[%s3371 + $0x8] sm:$0xf]
      %v3374 = vld [vmem:[%s3371 + $0xc] sm:$0xff]
      %v3375 = vld [vmem:[%s3371 + $0x14] sm:$0xf]
      %v3376 = vld [vmem:[%s3371 + $0x18] sm:$0xff]
      %v3377 = vld [vmem:[%s3371 + $0x20] sm:$0xf]
      %v3378 = vld [vmem:[%s3371 + $0x24] sm:$0xff]
      %v3379 = vld [vmem:[%s3371 + $0x2c] sm:$0xf]
      %v3380 = vld [vmem:[%s3371 + $0x30] sm:$0xff]
      %v3381 = vld [vmem:[%s3371 + $0x38] sm:$0xf]
      %v3382 = vld [vmem:[%s3371 + $0x3c] sm:$0xff]
      %v3383 = vld [vmem:[%s3371 + $0x44] sm:$0xf]
      %v3384 = vld [vmem:[%s3371 + $0x48] sm:$0xff]
      %v3385 = vld [vmem:[%s3371 + $0x50] sm:$0xf]
      %v3386 = vld [vmem:[%s3371 + $0x54] sm:$0xff]
      %v3387 = vld [vmem:[%s3371 + $0x5c] sm:$0xf]
      %v3388 = vld [vmem:[%s3371 + $0x60] sm:$0xff]
      %v3389 = vld [vmem:[%s3371 + $0x68] sm:$0xf]
      %v3390 = vld [vmem:[%s3371 + $0x6c] sm:$0xff]
      %v3391 = vld [vmem:[%s3371 + $0x74] sm:$0xf]
      %v3392 = vld [vmem:[%s3371 + $0x78] sm:$0xff]
      %v3393 = vld [vmem:[%s3371 + $0x80] sm:$0xf]
      %v3394 = vld [vmem:[%s3371 + $0x84] sm:$0xff]
      %v3395 = vld [vmem:[%s3371 + $0x8c] sm:$0xf]
      %v3396 = vld [vmem:[%s3371 + $0x90] sm:$0xff]
      %v3397 = vld [vmem:[%s3371 + $0x98] sm:$0xf]
      %v3398 = vld [vmem:[%s3371 + $0x9c] sm:$0xff]
      %v3399 = vld [vmem:[%s3371 + $0xa4] sm:$0xf]
      %v3400 = vld [vmem:[%s3371 + $0xa8] sm:$0xff]
      %v3401 = vld [vmem:[%s3371 + $0xb0] sm:$0xf]
      %v3402 = vld [vmem:[%s3371 + $0xb4] sm:$0xff]
      %v3403 = vld [vmem:[%s3371 + $0xbc] sm:$0xf]
      %v3404 = vld [vmem:[%s3371 + $0xc0] sm:$0xff]
      %v3405 = vld [vmem:[%s3371 + $0xc8] sm:$0xf]
      %v3406 = vld [vmem:[%s3371 + $0xcc] sm:$0xff]
      %v3407 = vld [vmem:[%s3371 + $0xd4] sm:$0xf]
      %v3408 = vunpack.c.l.b16 %v3370
      %v3409 = vunpack.c.h.b16 %v3370
      %v3410 = vpack.c.b16 %v3408, %v2317
      %v3411 = vpack.c.b16 %v3409, %v2318
      %v3449 = vunpack.c.l.b16 %v3372
      %v3450 = vunpack.c.h.b16 %v3372
      %v3451 = vunpack.c.l.b16 %v3373
      %v3452 = vunpack.c.l.b16 %v3374
      %v3453 = vunpack.c.h.b16 %v3374
      %v3454 = vunpack.c.l.b16 %v3375
      %v3455 = vunpack.c.l.b16 %v3376
      %v3456 = vunpack.c.h.b16 %v3376
      %v3457 = vunpack.c.l.b16 %v3377
      %v3458 = vunpack.c.l.b16 %v3378
      %v3459 = vunpack.c.h.b16 %v3378
      %v3460 = vunpack.c.l.b16 %v3379
      %v3461 = vunpack.c.l.b16 %v3380
      %v3462 = vunpack.c.h.b16 %v3380
      %v3463 = vunpack.c.l.b16 %v3381
      %v3464 = vunpack.c.l.b16 %v3382
      %v3465 = vunpack.c.h.b16 %v3382
      %v3466 = vunpack.c.l.b16 %v3383
      %v3467 = vunpack.c.l.b16 %v3384
      %v3468 = vunpack.c.h.b16 %v3384
      %v3469 = vunpack.c.l.b16 %v3385
      %v3470 = vunpack.c.l.b16 %v3386
      %v3471 = vunpack.c.h.b16 %v3386
      %v3472 = vunpack.c.l.b16 %v3387
      %v3473 = vunpack.c.l.b16 %v3388
      %v3474 = vunpack.c.h.b16 %v3388
      %v3475 = vunpack.c.l.b16 %v3389
      %v3476 = vunpack.c.l.b16 %v3390
      %v3477 = vunpack.c.h.b16 %v3390
      %v3478 = vunpack.c.l.b16 %v3391
      %v3479 = vunpack.c.l.b16 %v3392
      %v3480 = vunpack.c.h.b16 %v3392
      %v3481 = vunpack.c.l.b16 %v3393
      %v3482 = vunpack.c.l.b16 %v3394
      %v3483 = vunpack.c.h.b16 %v3394
      %v3484 = vunpack.c.l.b16 %v3395
      %v3485 = vunpack.c.l.b16 %v3396
      %v3486 = vunpack.c.h.b16 %v3396
      %v3487 = vunpack.c.l.b16 %v3397
      %v3488 = vunpack.c.l.b16 %v3398
      %v3489 = vunpack.c.h.b16 %v3398
      %v3490 = vunpack.c.l.b16 %v3399
      %v3491 = vunpack.c.l.b16 %v3400
      %v3492 = vunpack.c.h.b16 %v3400
      %v3493 = vunpack.c.l.b16 %v3401
      %v3494 = vunpack.c.l.b16 %v3402
      %v3495 = vunpack.c.h.b16 %v3402
      %v3496 = vunpack.c.l.b16 %v3403
      %v3497 = vunpack.c.l.b16 %v3404
      %v3498 = vunpack.c.h.b16 %v3404
      %v3499 = vunpack.c.l.b16 %v3405
      %v3500 = vunpack.c.l.b16 %v3406
      %v3501 = vunpack.c.h.b16 %v3406
      %v3502 = vunpack.c.l.b16 %v3407
      %v3503 = vpack.c.b16 %v3452, %v3449
      %v3504 = vpack.c.b16 %v3453, %v3450
      %v3505 = vpack.c.b16 %v3454, %v3451
      %v3506 = vpack.c.b16 %v3458, %v3455
      %v3507 = vpack.c.b16 %v3459, %v3456
      %v3508 = vpack.c.b16 %v3460, %v3457
      %v3509 = vpack.c.b16 %v3464, %v3461
      %v3510 = vpack.c.b16 %v3465, %v3462
      %v3511 = vpack.c.b16 %v3466, %v3463
      %v3512 = vpack.c.b16 %v3470, %v3467
      %v3513 = vpack.c.b16 %v3471, %v3468
      %v3514 = vpack.c.b16 %v3472, %v3469
      %v3515 = vpack.c.b16 %v3476, %v3473
      %v3516 = vpack.c.b16 %v3477, %v3474
      %v3517 = vpack.c.b16 %v3478, %v3475
      %v3518 = vpack.c.b16 %v3482, %v3479
      %v3519 = vpack.c.b16 %v3483, %v3480
      %v3520 = vpack.c.b16 %v3484, %v3481
      %v3521 = vpack.c.b16 %v3488, %v3485
      %v3522 = vpack.c.b16 %v3489, %v3486
      %v3523 = vpack.c.b16 %v3490, %v3487
      %v3524 = vpack.c.b16 %v3494, %v3491
      %v3525 = vpack.c.b16 %v3495, %v3492
      %v3526 = vpack.c.b16 %v3496, %v3493
      %v3527 = vpack.c.b16 %v3500, %v3497
      %v3528 = vpack.c.b16 %v3501, %v3498
      %v3529 = vpack.c.b16 %v3502, %v3499
      %v3558 = vsel %vm615, %v3411, 0
      %3560 = vmatprep.subr.bf16.mxu0 %v3525
      %3561 = vmatpush1.bf16.msra.mxu0 %v3524
      %3562 = vmatprep.subr.bf16.mxu0 %v3522
      %3563 = vmatpush1.bf16.msra.mxu0 %v3521
      %3564 = vmatprep.subr.bf16.mxu0 %v3519
      %3565 = vmatpush1.bf16.msra.mxu0 %v3518
      %3566 = vmatprep.subr.bf16.mxu0 %v3516
      %3567 = vmatpush1.bf16.msra.mxu0 %v3515
      %3568 = vmatprep.subr.bf16.mxu0 %v3513
      %3569 = vmatpush1.bf16.msra.mxu0 %v3512
      %3570 = vmatprep.subr.bf16.mxu0 %v3510
      %3571 = vmatpush1.bf16.msra.mxu0 %v3509
      %3572 = vmatprep.subr.bf16.mxu0 %v3507
      %3573 = vmatpush1.bf16.msra.mxu0 %v3506
      %3574 = vmatprep.subr.bf16.mxu0 %v3504
      %3575 = vmatpush1.bf16.msra.mxu0 %v3503
      %3576 = vmatprep.subr.bf16.mxu0 0
      %3577 = vmatpush2.bf16.msra.mxu0 0
      %3578 = vmatprep.subr.bf16.mxu0 0
      %3579 = vmatpush2.bf16.msra.mxu0 0
      %3580 = vmatprep.subr.bf16.mxu0 0
      %3581 = vmatpush2.bf16.msra.mxu0 0
      %3582 = vmatprep.subr.bf16.mxu0 0
      %3583 = vmatpush2.bf16.msra.mxu0 0
      %3584 = vmatprep.subr.bf16.mxu0 0
      %3585 = vmatpush2.bf16.msra.mxu0 0
      %3586 = vmatprep.subr.bf16.mxu0 0
      %3587 = vmatpush2.bf16.msra.mxu0 0
      %3588 = vmatprep.subr.bf16.mxu0 0
      %3589 = vmatpush2.bf16.msra.mxu0 0
      %3590 = vmatprep.subr.bf16.mxu0 %v3528
      %3591 = vmatpush2.bf16.msra.mxu0 %v3527
      %3592 = vmatprep.mubr.bf16.mxu0 %v1352
      %3593 = vmatmul.mubr.bf16.gmra.mxu0 %v1194
      %v3594 = vpop.f32.mrf.mxu0
      %v3595 = vadd.f32 0.0, %v3594
      %v3596 = vpop.f32.mrf.mxu0
      %v3597 = vadd.f32 0.0, %v3596
      %v3598 = vpop.f32.mrf.mxu0
      %v3599 = vadd.f32 0.0, %v3598
      %v3600 = vpop.f32.mrf.mxu0
      %v3601 = vadd.f32 0.0, %v3600
      %3602 = vmatprep.mubr.bf16.mxu0 %v1355
      %3603 = vmatmul.mubr.bf16.gmra.mxu0 %v1196
      %v3604 = vpop.f32.mrf.mxu0
      %v3605 = vadd.f32 0.0, %v3604
      %v3606 = vpop.f32.mrf.mxu0
      %v3607 = vadd.f32 0.0, %v3606
      %v3608 = vpop.f32.mrf.mxu0
      %v3609 = vadd.f32 0.0, %v3608
      %v3610 = vpop.f32.mrf.mxu0
      %v3611 = vadd.f32 0.0, %v3610
      %3612 = vmatprep.mubr.bf16.mxu0 %v1358
      %3613 = vmatmul.mubr.bf16.gmra.mxu0 %v1198
      %v3614 = vpop.f32.mrf.mxu0
      %v3615 = vadd.f32 0.0, %v3614
      %v3616 = vpop.f32.mrf.mxu0
      %v3617 = vadd.f32 0.0, %v3616
      %v3618 = vpop.f32.mrf.mxu0
      %v3619 = vadd.f32 0.0, %v3618
      %v3620 = vpop.f32.mrf.mxu0
      %v3621 = vadd.f32 0.0, %v3620
      %3622 = vmatprep.mubr.bf16.mxu0 %v3558
      %3623 = vmatmul.mubr.bf16.gmra.mxu0 %v3410
      %v3624 = vpop.f32.mrf.mxu0
      %v3625 = vadd.f32 0.0, %v3624
      %v3626 = vpop.f32.mrf.mxu0
      %v3627 = vadd.f32 0.0, %v3626
      %v3628 = vpop.f32.mrf.mxu0
      %v3629 = vadd.f32 0.0, %v3628
      %v3630 = vpop.f32.mrf.mxu0
      %v3631 = vadd.f32 0.0, %v3630
      %3632 = vdwg.mxu0
      %3633 = vmatprep.subr.bf16.mxu0 0
      %3634 = vmatpush1.bf16.msra.mxu0 %v3526
      %3635 = vmatprep.subr.bf16.mxu0 0
      %3636 = vmatpush1.bf16.msra.mxu0 %v3523
      %3637 = vmatprep.subr.bf16.mxu0 0
      %3638 = vmatpush1.bf16.msra.mxu0 %v3520
      %3639 = vmatprep.subr.bf16.mxu0 0
      %3640 = vmatpush1.bf16.msra.mxu0 %v3517
      %3641 = vmatprep.subr.bf16.mxu0 0
      %3642 = vmatpush1.bf16.msra.mxu0 %v3514
      %3643 = vmatprep.subr.bf16.mxu0 0
      %3644 = vmatpush1.bf16.msra.mxu0 %v3511
      %3645 = vmatprep.subr.bf16.mxu0 0
      %3646 = vmatpush1.bf16.msra.mxu0 %v3508
      %3647 = vmatprep.subr.bf16.mxu0 0
      %3648 = vmatpush1.bf16.msra.mxu0 %v3505
      %3649 = vmatprep.subr.bf16.mxu0 0
      %3650 = vmatpush2.bf16.msra.mxu0 0
      %3651 = vmatprep.subr.bf16.mxu0 0
      %3652 = vmatpush2.bf16.msra.mxu0 0
      %3653 = vmatprep.subr.bf16.mxu0 0
      %3654 = vmatpush2.bf16.msra.mxu0 0
      %3655 = vmatprep.subr.bf16.mxu0 0
      %3656 = vmatpush2.bf16.msra.mxu0 0
      %3657 = vmatprep.subr.bf16.mxu0 0
      %3658 = vmatpush2.bf16.msra.mxu0 0
      %3659 = vmatprep.subr.bf16.mxu0 0
      %3660 = vmatpush2.bf16.msra.mxu0 0
      %3661 = vmatprep.subr.bf16.mxu0 0
      %3662 = vmatpush2.bf16.msra.mxu0 0
      %3663 = vmatprep.subr.bf16.mxu0 0
      %3664 = vmatpush2.bf16.msra.mxu0 %v3529
      %3665 = vmatprep.mubr.bf16.mxu0 %v1352
      %3666 = vmatmul.mubr.bf16.gmra.mxu0 %v1194
      %v3667 = vpop.f32.mrf.mxu0
      %v3668 = vadd.f32 0.0, %v3667
      %v3669 = vpop.f32.mrf.mxu0
      %v3670 = vpop.f32.mrf.mxu0
      %v3671 = vadd.f32 0.0, %v3670
      %v3672 = vpop.f32.mrf.mxu0
      %3673 = vmatprep.mubr.bf16.mxu0 %v1355
      %3674 = vmatmul.mubr.bf16.gmra.mxu0 %v1196
      %v3675 = vpop.f32.mrf.mxu0
      %v3676 = vadd.f32 0.0, %v3675
      %v3677 = vpop.f32.mrf.mxu0
      %v3678 = vpop.f32.mrf.mxu0
      %v3679 = vadd.f32 0.0, %v3678
      %v3680 = vpop.f32.mrf.mxu0
      %3681 = vmatprep.mubr.bf16.mxu0 %v1358
      %3682 = vmatmul.mubr.bf16.gmra.mxu0 %v1198
      %v3683 = vpop.f32.mrf.mxu0
      %v3684 = vadd.f32 0.0, %v3683
      %v3685 = vpop.f32.mrf.mxu0
      %v3686 = vpop.f32.mrf.mxu0
      %v3687 = vadd.f32 0.0, %v3686
      %v3688 = vpop.f32.mrf.mxu0
      %3689 = vmatprep.mubr.bf16.mxu0 %v3558
      %3690 = vmatmul.mubr.bf16.gmra.mxu0 %v3410
      %v3691 = vpop.f32.mrf.mxu0
      %v3692 = vadd.f32 0.0, %v3691
      %v3693 = vpop.f32.mrf.mxu0
      %v3694 = vpop.f32.mrf.mxu0
      %v3695 = vadd.f32 0.0, %v3694
      %v3696 = vpop.f32.mrf.mxu0
      %3697 = vdwg.mxu0
      %v3698 = vadd.f32 %v3342, %v3595
      %v3699 = vadd.f32 %v3343, %v3597
      %v3700 = vadd.f32 %v3344, %v3668
      %v3701 = vadd.f32 %v3345, %v3599
      %v3702 = vadd.f32 %v3346, %v3601
      %v3703 = vadd.f32 %v3347, %v3671
      %v3704 = vadd.f32 %v3348, %v3605
      %v3705 = vadd.f32 %v3349, %v3607
      %v3706 = vadd.f32 %v3350, %v3676
      %v3707 = vadd.f32 %v3351, %v3609
      %v3708 = vadd.f32 %v3352, %v3611
      %v3709 = vadd.f32 %v3353, %v3679
      %v3710 = vadd.f32 %v3354, %v3615
      %v3711 = vadd.f32 %v3355, %v3617
      %v3712 = vadd.f32 %v3356, %v3684
      %v3713 = vadd.f32 %v3357, %v3619
      %v3714 = vadd.f32 %v3358, %v3621
      %v3715 = vadd.f32 %v3359, %v3687
      %v3716 = vadd.f32 %v3360, %v3625
      %v3717 = vadd.f32 %v3361, %v3627
      %v3718 = vadd.f32 %v3362, %v3692
      %v3719 = vadd.f32 %v3363, %v3629
      %v3720 = vadd.f32 %v3364, %v3631
      %v3721 = vadd.f32 %v3365, %v3695
      %v3722 = vld [vmem:[%s2] sm:$0x7]
      %v3724 = vlaneseq
      %v3725 = vshrl.u32 %v3724, 7
      %v3726 = vsub.s32 0, %v3725
      %v3727 = vrot.slane %v3722, %v3726
      %v3728 = vlaneseq
      %v3729 = vshrl.u32 %v3728, 7
      %v3730 = vsub.s32 1, %v3729
      %v3731 = vrot.slane %v3722, %v3730
      %v3732 = vlaneseq
      %v3733 = vshrl.u32 %v3732, 7
      %v3734 = vsub.s32 2, %v3733
      %v3735 = vrot.slane %v3722, %v3734
      %v3739 = vmul.f32 %v3698, %v3727
      %v3740 = vmul.f32 %v3699, %v3731
      %v3741 = vmul.f32 %v3700, %v3735
      %v3742 = vmul.f32 %v3701, %v3727
      %v3743 = vmul.f32 %v3702, %v3731
      %v3744 = vmul.f32 %v3703, %v3735
      %v3745 = vmul.f32 %v3704, %v3727
      %v3746 = vmul.f32 %v3705, %v3731
      %v3747 = vmul.f32 %v3706, %v3735
      %v3748 = vmul.f32 %v3707, %v3727
      %v3749 = vmul.f32 %v3708, %v3731
      %v3750 = vmul.f32 %v3709, %v3735
      %v3751 = vmul.f32 %v3710, %v3727
      %v3752 = vmul.f32 %v3711, %v3731
      %v3753 = vmul.f32 %v3712, %v3735
      %v3754 = vmul.f32 %v3713, %v3727
      %v3755 = vmul.f32 %v3714, %v3731
      %v3756 = vmul.f32 %v3715, %v3735
      %v3757 = vmul.f32 %v3716, %v3727
      %v3758 = vmul.f32 %v3717, %v3731
      %v3759 = vmul.f32 %v3718, %v3735
      %v3760 = vmul.f32 %v3719, %v3727
      %v3761 = vmul.f32 %v3720, %v3731
      %v3762 = vmul.f32 %v3721, %v3735
      %v3763 = vld [vmem:[%s3] sm:$0x7]
      %v3765 = vlaneseq
      %v3766 = vshrl.u32 %v3765, 7
      %v3767 = vsub.s32 0, %v3766
      %v3768 = vrot.slane %v3763, %v3767
      %v3769 = vlaneseq
      %v3770 = vshrl.u32 %v3769, 7
      %v3771 = vsub.s32 1, %v3770
      %v3772 = vrot.slane %v3763, %v3771
      %v3773 = vlaneseq
      %v3774 = vshrl.u32 %v3773, 7
      %v3775 = vsub.s32 2, %v3774
      %v3776 = vrot.slane %v3763, %v3775
      %v3780 = vadd.f32 %v3739, %v3768
      %v3781 = vadd.f32 %v3740, %v3772
      %v3782 = vadd.f32 %v3741, %v3776
      %v3783 = vadd.f32 %v3742, %v3768
      %v3784 = vadd.f32 %v3743, %v3772
      %v3785 = vadd.f32 %v3744, %v3776
      %v3786 = vadd.f32 %v3745, %v3768
      %v3787 = vadd.f32 %v3746, %v3772
      %v3788 = vadd.f32 %v3747, %v3776
      %v3789 = vadd.f32 %v3748, %v3768
      %v3790 = vadd.f32 %v3749, %v3772
      %v3791 = vadd.f32 %v3750, %v3776
      %v3792 = vadd.f32 %v3751, %v3768
      %v3793 = vadd.f32 %v3752, %v3772
      %v3794 = vadd.f32 %v3753, %v3776
      %v3795 = vadd.f32 %v3754, %v3768
      %v3796 = vadd.f32 %v3755, %v3772
      %v3797 = vadd.f32 %v3756, %v3776
      %v3798 = vadd.f32 %v3757, %v3768
      %v3799 = vadd.f32 %v3758, %v3772
      %v3800 = vadd.f32 %v3759, %v3776
      %v3801 = vadd.f32 %v3760, %v3768
      %v3802 = vadd.f32 %v3761, %v3772
      %v3803 = vadd.f32 %v3762, %v3776
      %v3804 = vmax.f32 %v3780, 0.0
      %v3805 = vmax.f32 %v3781, 0.0
      %v3806 = vmax.f32 %v3782, 0.0
      %v3807 = vmax.f32 %v3783, 0.0
      %v3808 = vmax.f32 %v3784, 0.0
      %v3809 = vmax.f32 %v3785, 0.0
      %v3810 = vmax.f32 %v3786, 0.0
      %v3811 = vmax.f32 %v3787, 0.0
      %v3812 = vmax.f32 %v3788, 0.0
      %v3813 = vmax.f32 %v3789, 0.0
      %v3814 = vmax.f32 %v3790, 0.0
      %v3815 = vmax.f32 %v3791, 0.0
      %v3816 = vmax.f32 %v3792, 0.0
      %v3817 = vmax.f32 %v3793, 0.0
      %v3818 = vmax.f32 %v3794, 0.0
      %v3819 = vmax.f32 %v3795, 0.0
      %v3820 = vmax.f32 %v3796, 0.0
      %v3821 = vmax.f32 %v3797, 0.0
      %v3822 = vmax.f32 %v3798, 0.0
      %v3823 = vmax.f32 %v3799, 0.0
      %v3824 = vmax.f32 %v3800, 0.0
      %v3825 = vmax.f32 %v3801, 0.0
      %v3826 = vmax.f32 %v3802, 0.0
      %v3827 = vmax.f32 %v3803, 0.0
      %v3828 = vpack.c.bf16 %v3807, %v3804
      %v3829 = vpack.c.bf16 %v3808, %v3805
      %v3830 = vpack.c.bf16 %v3809, %v3806
      %v3831 = vpack.c.bf16 %v3813, %v3810
      %v3832 = vpack.c.bf16 %v3814, %v3811
      %v3833 = vpack.c.bf16 %v3815, %v3812
      %v3834 = vpack.c.bf16 %v3819, %v3816
      %v3835 = vpack.c.bf16 %v3820, %v3817
      %v3836 = vpack.c.bf16 %v3821, %v3818
      %v3837 = vpack.c.bf16 %v3825, %v3822
      %v3838 = vpack.c.bf16 %v3826, %v3823
      %v3839 = vpack.c.bf16 %v3827, %v3824
      %v3852 = vunpack.c.l.b16 %v3828
      %v3853 = vunpack.c.l.b16 %v3829
      %v3854 = vunpack.c.l.b16 %v3830
      %v3855 = vunpack.c.h.b16 %v3828
      %v3856 = vunpack.c.h.b16 %v3829
      %v3857 = vunpack.c.h.b16 %v3830
      %v3858 = vunpack.c.l.b16 %v3831
      %v3859 = vunpack.c.l.b16 %v3832
      %v3860 = vunpack.c.l.b16 %v3833
      %v3861 = vunpack.c.h.b16 %v3831
      %v3862 = vunpack.c.h.b16 %v3832
      %v3863 = vunpack.c.h.b16 %v3833
      %v3864 = vunpack.c.l.b16 %v3834
      %v3865 = vunpack.c.l.b16 %v3835
      %v3866 = vunpack.c.l.b16 %v3836
      %v3867 = vunpack.c.h.b16 %v3834
      %v3868 = vunpack.c.h.b16 %v3835
      %v3869 = vunpack.c.h.b16 %v3836
      %v3870 = vunpack.c.l.b16 %v3837
      %v3871 = vunpack.c.l.b16 %v3838
      %v3872 = vunpack.c.l.b16 %v3839
      %v3873 = vunpack.c.h.b16 %v3837
      %v3874 = vunpack.c.h.b16 %v3838
      %v3875 = vunpack.c.h.b16 %v3839
      %v3876 = vpack.c.b16 %v3853, %v3852
      %v3877 = vpack.c.b16 %v3854, %v3854
      %v3878 = vpack.c.b16 %v3856, %v3855
      %v3879 = vpack.c.b16 %v3857, %v3857
      %v3880 = vpack.c.b16 %v3859, %v3858
      %v3881 = vpack.c.b16 %v3860, %v3860
      %v3882 = vpack.c.b16 %v3862, %v3861
      %v3883 = vpack.c.b16 %v3863, %v3863
      %v3884 = vpack.c.b16 %v3865, %v3864
      %v3885 = vpack.c.b16 %v3866, %v3866
      %v3886 = vpack.c.b16 %v3868, %v3867
      %v3887 = vpack.c.b16 %v3869, %v3869
      %v3888 = vpack.c.b16 %v3871, %v3870
      %v3889 = vpack.c.b16 %v3872, %v3872
      %v3890 = vpack.c.b16 %v3874, %v3873
      %v3891 = vpack.c.b16 %v3875, %v3875
      %3908 = vst [vmem:[%s233] sm:$0xff] %v3876
      %vm3909 = vcmask 257024
      %3910 = vst.msk [vmem:[%s233 + $0x8] sm:$0xf] %vm3909, %v3877
      %3911 = vst [vmem:[%s233 + $0xc] sm:$0xff] %v3878
      %3912 = vst.msk [vmem:[%s233 + $0x14] sm:$0xf] %vm3909, %v3879
      %3913 = vst [vmem:[%s233 + $0x18] sm:$0xff] %v3880
      %3914 = vst.msk [vmem:[%s233 + $0x20] sm:$0xf] %vm3909, %v3881
      %3915 = vst [vmem:[%s233 + $0x24] sm:$0xff] %v3882
      %3916 = vst.msk [vmem:[%s233 + $0x2c] sm:$0xf] %vm3909, %v3883
      %3917 = vst [vmem:[%s233 + $0x30] sm:$0xff] %v3884
      %3918 = vst.msk [vmem:[%s233 + $0x38] sm:$0xf] %vm3909, %v3885
      %3919 = vst [vmem:[%s233 + $0x3c] sm:$0xff] %v3886
      %3920 = vst.msk [vmem:[%s233 + $0x44] sm:$0xf] %vm3909, %v3887
      %3921 = vst [vmem:[%s233 + $0x48] sm:$0xff] %v3888
      %3922 = vst.msk [vmem:[%s233 + $0x50] sm:$0xf] %vm3909, %v3889
      %3923 = vst [vmem:[%s233 + $0x54] sm:$0xff] %v3890
      %3924 = vst.msk [vmem:[%s233 + $0x5c] sm:$0xf] %vm3909, %v3891
      %p3925 = scmp.lt.s32.totalorder %s19, 0
      %s3926 = scalar_select %p3925, %s19, 0
      %p3927 = scmp.lt.s32.totalorder %s20, 3
      %s3928 = scalar_select %p3927, %s20, 3
      %s3929 = smul.addr %s3928, 24
      %s3930 = smul.addr %s3926, 96
      %s3931 = sadd.s32 %s3929, %s3930
      %s3932 = smul.addr %s3931, 4
      %s3933 = scalar_lea.vmem %s4, %s3932
      // Predicated region
      $region37: #{mixed_4e_forward.7} parent=35 // pred_check
        %p3934 = pneg %p138
      $region38: #{mixed_4e_forward.7} parent=35 // pred_check_branch
        %3936 = sbr.rel (%p3934) target = $region40
      $region39: #{mixed_4e_forward.7} parent=35 // pred_region
        _
      $region40: #{mixed_4e_forward.7} parent=35 // pred_fallthru
        _
    $region36: #{mixed_4e_forward.7} parent=5 // pred_fallthru
      _
    %p3937 = scmp.le.s32.totalorder 2, %s10
    // Predicated region
    $region41: #{mixed_4e_forward.7} parent=5 // pred_check
      %p3938 = pneg %p3937
    $region42: #{mixed_4e_forward.7} parent=5 // pred_check_branch
      %3940 = sbr.rel (%p3938) target = $region44
    $region43: #{mixed_4e_forward.7} parent=5 // pred_region
      %s3941 = ssub.s32 %s10, 2
      // Predicated region
      $region45: #{mixed_4e_forward.7} parent=43 // pred_check
        %p3942 = pneg %p144
      $region46: #{mixed_4e_forward.7} parent=43 // pred_check_branch
        %3944 = sbr.rel (%p3942) target = $region48
      $region47: #{mixed_4e_forward.7} parent=43 // pred_region
        %p3945 = scmp.lt.s32.totalorder %s21, 0
        %s3946 = scalar_select %p3945, %s21, 0
        %p3947 = scmp.lt.s32.totalorder %s22, 3
        %s3948 = scalar_select %p3947, %s22, 3
        %s3949 = smul.addr %s3948, 24
        %s3950 = smul.addr %s3946, 96
        %s3951 = sadd.s32 %s3949, %s3950
        %s3952 = smul.addr %s3951, 4
        %s3953 = scalar_lea.vmem %s4, %s3952
      $region48: #{mixed_4e_forward.7} parent=43 // pred_fallthru
        _
    $region44: #{mixed_4e_forward.7} parent=5 // pred_fallthru
      _
  $region6: #{mixed_4e_forward.7} parent=0 // loop_footer
    %s14 = sadd.s32 1, %s10
  $region7: #{mixed_4e_forward.7} parent=0 // loop_footer_branch
    %9 = sbr.rel target = $region3
  $region8: #{mixed_4e_forward.7} parent=0 // loop_exit
    _

</llo_original>
